<compile_context>
chip_gen: v7x
topology: tpu7x:2x2x1
jax: 0.10.0
libtpu: 0.0.40
codegen_flags: <defaults>
</compile_context>

<pallas_src>
import functools

import jax
import jax.numpy as jnp
import numpy as np
from jax.experimental import pallas as pl
from jax.experimental.pallas import tpu as pltpu


# ----------------------------------------------------------------------------
# Fused batched kernel: conv1 -> pool -> relu -> conv2 -> pool -> relu ->
# fc -> log_softmax.  All intermediates stay in VMEM.
# ----------------------------------------------------------------------------
def net_kernel(x_ref, r1e_ref, r1o_ref, b1_ref, r2e_ref, r2o_ref, b2_ref,
               wf_ref, bfc_ref, out_ref, z1s_ref, z2s_ref):
    f32, bf16 = jnp.float32, jnp.bfloat16
    B = x_ref.shape[0]

    # ---- conv1 (5x5, 1->10), width pool folded into the packed weights -----
    # LHS per kernel row kh: the B images' rows kh..kh+23 stacked along M.
    y1e = jnp.zeros((B * 24, 120), f32)
    y1o = jnp.zeros((B * 24, 120), f32)
    for kh in range(5):
        lhs = x_ref[:, kh:kh + 24, :].reshape(B * 24, 28).astype(bf16)
        y1e = y1e + jnp.dot(lhs, r1e_ref[kh], preferred_element_type=f32)
        y1o = y1o + jnp.dot(lhs, r1o_ref[kh], preferred_element_type=f32)

    # Width pool = max(even, odd output column); park it in VMEM scratch.
    z1s_ref[...] = jnp.maximum(y1e, y1o).reshape(B, 24, 120)

    # Height pool = even/odd strided-sublane max, then bias + ReLU (f32).
    a1 = jnp.maximum(z1s_ref[:, pl.ds(0, 12, 2), :],
                     z1s_ref[:, pl.ds(1, 12, 2), :]) + b1_ref[...]
    a1 = jnp.maximum(a1, 0.0)                                   # (B, 12, 120)

    # ---- conv2 (5x5, 10->20), width pool folded -----------------------------
    y2e = jnp.zeros((B * 8, 80), f32)
    y2o = jnp.zeros((B * 8, 80), f32)
    for kh in range(5):
        lhs = a1[:, kh:kh + 8, :].reshape(B * 8, 120).astype(bf16)
        y2e = y2e + jnp.dot(lhs, r2e_ref[kh], preferred_element_type=f32)
        y2o = y2o + jnp.dot(lhs, r2o_ref[kh], preferred_element_type=f32)

    z2s_ref[...] = jnp.maximum(y2e, y2o).reshape(B, 8, 80)

    # ---- height pool + bias + ReLU + fc (flatten order folded into wf) -----
    # wf lanes 10..127 are zero and bfc lanes 10..127 are -1e9, so the 128-lane
    # log_softmax below is exactly the 10-class log_softmax on lanes 0..9.
    logits = bfc_ref[...]                                       # (1, 128)
    for r in range(4):
        row = jnp.maximum(z2s_ref[:, 2 * r, :],
                          z2s_ref[:, 2 * r + 1, :]) + b2_ref[...]
        row = jnp.maximum(row, 0.0)                             # (B, 80)
        logits = logits + jnp.dot(row.astype(bf16), wf_ref[r],
                                  preferred_element_type=f32)   # (B, 128)

    mx = jnp.max(logits, axis=-1, keepdims=True)
    z = logits - mx
    lse = jnp.log(jnp.sum(jnp.exp(z), axis=-1, keepdims=True))
    out_ref[...] = z - lse


# ----------------------------------------------------------------------------
# One-time host-side parameter packing (outside the jitted forward path).
# ----------------------------------------------------------------------------
def pack_params(params):
    w1, b1, w2, b2, wfc, bfc = (np.asarray(p, np.float32) for p in params)

    # conv1 + width pool: even output col 2j uses input col 2j+kw (odd: +1).
    # Lane layout: co*12 + j  (j = pooled output column).
    r1e = np.zeros((5, 28, 120), np.float32)
    r1o = np.zeros((5, 28, 120), np.float32)
    for kh in range(5):
        for co in range(10):
            for j in range(12):
                for kw in range(5):
                    r1e[kh, 2 * j + kw, co * 12 + j] = w1[co, 0, kh, kw]
                    r1o[kh, 2 * j + 1 + kw, co * 12 + j] = w1[co, 0, kh, kw]
    b1r = np.repeat(b1, 12)[None, :]                            # (1, 120)

    # conv2 + width pool: a1 lanes are cin*12 + input col; output lane co*4+s.
    r2e = np.zeros((5, 120, 80), np.float32)
    r2o = np.zeros((5, 120, 80), np.float32)
    for kh in range(5):
        for co in range(20):
            for cin in range(10):
                for s in range(4):
                    for kw in range(5):
                        r2e[kh, cin * 12 + 2 * s + kw, co * 4 + s] = \
                            w2[co, cin, kh, kw]
                        r2o[kh, cin * 12 + 2 * s + 1 + kw, co * 4 + s] = \
                            w2[co, cin, kh, kw]
    b2r = np.repeat(b2, 4)[None, :]                             # (1, 80)

    # fc: torch flatten index f = co*16 + r*4 + s ; kernel row-r lane = co*4+s.
    # Output padded to 128 lanes (weights zero, bias -1e9 on pad lanes).
    wf = np.zeros((4, 80, 128), np.float32)
    for r in range(4):
        for co in range(20):
            for s in range(4):
                wf[r, co * 4 + s, :10] = wfc[:, co * 16 + r * 4 + s]
    bfc_pad = np.full((1, 128), -1e9, np.float32)
    bfc_pad[0, :10] = bfc

    bf16 = jnp.bfloat16
    return (jnp.asarray(r1e, bf16), jnp.asarray(r1o, bf16), jnp.asarray(b1r),
            jnp.asarray(r2e, bf16), jnp.asarray(r2o, bf16), jnp.asarray(b2r),
            jnp.asarray(wf, bf16), jnp.asarray(bfc_pad))


# ----------------------------------------------------------------------------
# Forward pass: one fused pallas_call, grid over batch tiles of block_b images.
# block_b=32 aligns conv M to 256 (v6e/v7x); use block_b=16 on v5e.
# ----------------------------------------------------------------------------
@functools.partial(jax.jit, static_argnames=("block_b",))
def net_forward(x_nchw, packed, *, block_b=32):
    n = x_nchw.shape[0]
    B = block_b
    n_pad = pl.cdiv(n, B) * B
    x3 = x_nchw.reshape(n, 28, 28)                              # free reshape
    if n_pad != n:
        x3 = jnp.pad(x3, ((0, n_pad - n), (0, 0), (0, 0)))
    r1e, r1o, b1r, r2e, r2o, b2r, wf, bfc_pad = packed

    def fixed(a):
        nd = a.ndim
        return pl.BlockSpec(a.shape, lambda *_: (0,) * nd)

    out = pl.pallas_call(
        net_kernel,
        out_shape=jax.ShapeDtypeStruct((n_pad, 128), jnp.float32),
        grid=(n_pad // B,),
        in_specs=[
            pl.BlockSpec((B, 28, 28), lambda i: (i, 0, 0)),
            fixed(r1e), fixed(r1o), fixed(b1r),
            fixed(r2e), fixed(r2o), fixed(b2r),
            fixed(wf), fixed(bfc_pad),
        ],
        out_specs=pl.BlockSpec((B, 128), lambda i: (i, 0)),
        scratch_shapes=[pltpu.VMEM((B, 24, 120), jnp.float32),
                        pltpu.VMEM((B, 8, 80), jnp.float32)],
        compiler_params=pltpu.CompilerParams(
            dimension_semantics=("parallel",)),
    )(x3, r1e, r1o, b1r, r2e, r2o, b2r, wf, bfc_pad)
    return out[:n, :10]


# ----------------------------------------------------------------------------
# Plain-XLA reference of the PyTorch forward (correctness checking only).
# ----------------------------------------------------------------------------
def reference_forward(x_nchw, params):
    w1, b1, w2, b2, wfc, bfc = params
    hp = jax.lax.Precision.HIGHEST

    def conv(x, w, b):
        y = jax.lax.conv_general_dilated(
            x, w, window_strides=(1, 1), padding="VALID",
            dimension_numbers=("NCHW", "OIHW", "NCHW"), precision=hp)
        return y + b[None, :, None, None]

    def pool(x):
        n, c, h, w = x.shape
        return jnp.max(x.reshape(n, c, h // 2, 2, w // 2, 2), axis=(3, 5))

    a1 = jax.nn.relu(pool(conv(x_nchw, w1, b1)))
    a2 = jax.nn.relu(pool(conv(a1, w2, b2)))
    flat = a2.reshape(x_nchw.shape[0], -1)
    logits = jnp.dot(flat, wfc.T, precision=hp) + bfc
    return jax.nn.log_softmax(logits, axis=-1)


def init_params(key):
    ks = jax.random.split(key, 6)
    w1 = 0.1 * jax.random.normal(ks[0], (10, 1, 5, 5), jnp.float32)
    b1 = 0.1 * jax.random.normal(ks[1], (10,), jnp.float32)
    w2 = 0.1 * jax.random.normal(ks[2], (20, 10, 5, 5), jnp.float32)
    b2 = 0.1 * jax.random.normal(ks[3], (20,), jnp.float32)
    wfc = 0.1 * jax.random.normal(ks[4], (10, 320), jnp.float32)
    bfc = 0.1 * jax.random.normal(ks[5], (10,), jnp.float32)
    return (w1, b1, w2, b2, wfc, bfc)


if __name__ == "__main__":
    key = jax.random.PRNGKey(0)
    pkey, xkey = jax.random.split(key)
    params = init_params(pkey)
    packed = pack_params(params)          # one-time host-side weight packing

    # MNIST-shaped input: the Linear(320, 10) layer pins H=W=28, Cin=1.
    x = jax.random.normal(xkey, (2, 1, 28, 28), jnp.float32)

    out = jax.block_until_ready(net_forward(x, packed, block_b=32))

    assert out.shape == (2, 10), out.shape
    # log_softmax sanity: exp(out) sums to 1 per row (computed in f32).
    row_sums = np.asarray(jnp.sum(jnp.exp(out), axis=1))
    assert np.allclose(row_sums, 1.0, atol=1e-4), row_sums
    # End-to-end check against the plain-XLA reference.  MXU operands are
    # bf16 (f32 accumulation), so tolerance is slightly looser than the pure
    # f32 version's 1e-2.
    ref = np.asarray(reference_forward(x, params))
    max_err = float(np.max(np.abs(np.asarray(out) - ref)))
    assert np.allclose(np.asarray(out), ref, rtol=2e-2, atol=3e-2), max_err

    print("KERNEL_OK")
</pallas_src>

<mosaic_0001>
module attributes {stable_mosaic.version = 11 : i64} {
  func.func @net_kernel(%arg0: i32, %arg1: memref<32x28x28xf32, #tpu.memory_space<vmem>>, %arg2: memref<5x28x120xbf16, #tpu.memory_space<vmem>>, %arg3: memref<5x28x120xbf16, #tpu.memory_space<vmem>>, %arg4: memref<1x120xf32, #tpu.memory_space<vmem>>, %arg5: memref<5x120x80xbf16, #tpu.memory_space<vmem>>, %arg6: memref<5x120x80xbf16, #tpu.memory_space<vmem>>, %arg7: memref<1x80xf32, #tpu.memory_space<vmem>>, %arg8: memref<4x80x128xbf16, #tpu.memory_space<vmem>>, %arg9: memref<1x128xf32, #tpu.memory_space<vmem>>, %arg10: memref<32x128xf32, #tpu.memory_space<vmem>>, %arg11: memref<32x24x120xf32, #tpu.memory_space<vmem>>, %arg12: memref<32x8x80xf32, #tpu.memory_space<vmem>>) attributes {dimension_semantics = [#tpu.dimension_semantics<parallel>], iteration_bounds = array<i64: 1>, scalar_prefetch = 0 : i64, scratch_operands = 2 : i64, tpu.core_type = #tpu.core_type<tc>, window_params = [{transform_indices = @transform_0, window_bounds = array<i64: 32, 28, 28>}, {pipeline_mode = #tpu.pipeline_mode<synchronous>, transform_indices = @transform_1, window_bounds = array<i64: 5, 28, 120>}, {pipeline_mode = #tpu.pipeline_mode<synchronous>, transform_indices = @transform_2, window_bounds = array<i64: 5, 28, 120>}, {pipeline_mode = #tpu.pipeline_mode<synchronous>, transform_indices = @transform_3, window_bounds = array<i64: 1, 120>}, {pipeline_mode = #tpu.pipeline_mode<synchronous>, transform_indices = @transform_4, window_bounds = array<i64: 5, 120, 80>}, {pipeline_mode = #tpu.pipeline_mode<synchronous>, transform_indices = @transform_5, window_bounds = array<i64: 5, 120, 80>}, {pipeline_mode = #tpu.pipeline_mode<synchronous>, transform_indices = @transform_6, window_bounds = array<i64: 1, 80>}, {pipeline_mode = #tpu.pipeline_mode<synchronous>, transform_indices = @transform_7, window_bounds = array<i64: 4, 80, 128>}, {pipeline_mode = #tpu.pipeline_mode<synchronous>, transform_indices = @transform_8, window_bounds = array<i64: 1, 128>}, {transform_indices = @transform_9, window_bounds = array<i64: 32, 128>}]} {
    %cst = arith.constant 0.000000e+00 : f32
    %0 = vector.broadcast %cst : f32 to vector<768x120xf32>
    %cst_0 = arith.constant 0.000000e+00 : f32
    %1 = vector.broadcast %cst_0 : f32 to vector<768x120xf32>
    %c0 = arith.constant 0 : index
    %c0_1 = arith.constant 0 : index
    %c0_2 = arith.constant 0 : index
    %2 = vector.load %arg1[%c0, %c0_1, %c0_2] : memref<32x28x28xf32, #tpu.memory_space<vmem>>, vector<32x24x28xf32>
    %3 = vector.shape_cast %2 : vector<32x24x28xf32> to vector<768x28xf32>
    %4 = arith.truncf %3 : vector<768x28xf32> to vector<768x28xbf16>
    %c0_3 = arith.constant 0 : index
    %c0_4 = arith.constant 0 : index
    %c0_5 = arith.constant 0 : index
    %5 = vector.load %arg2[%c0_3, %c0_4, %c0_5] : memref<5x28x120xbf16, #tpu.memory_space<vmem>>, vector<1x28x120xbf16>
    %6 = vector.shape_cast %5 : vector<1x28x120xbf16> to vector<28x120xbf16>
    %cst_6 = arith.constant dense<0.000000e+00> : vector<768x120xf32>
    %7 = tpu.matmul %4, %6, %cst_6 {dimension_numbers = #tpu.dot_dimension_numbers<[1], [0], [0], [1], [0, 0, 1, 1], [], []>} : vector<768x28xbf16>, vector<28x120xbf16>, vector<768x120xf32> -> vector<768x120xf32>
    %8 = arith.addf %0, %7 : vector<768x120xf32>
    %c0_7 = arith.constant 0 : index
    %c0_8 = arith.constant 0 : index
    %c0_9 = arith.constant 0 : index
    %9 = vector.load %arg3[%c0_7, %c0_8, %c0_9] : memref<5x28x120xbf16, #tpu.memory_space<vmem>>, vector<1x28x120xbf16>
    %10 = vector.shape_cast %9 : vector<1x28x120xbf16> to vector<28x120xbf16>
    %cst_10 = arith.constant dense<0.000000e+00> : vector<768x120xf32>
    %11 = tpu.matmul %4, %10, %cst_10 {dimension_numbers = #tpu.dot_dimension_numbers<[1], [0], [0], [1], [0, 0, 1, 1], [], []>} : vector<768x28xbf16>, vector<28x120xbf16>, vector<768x120xf32> -> vector<768x120xf32>
    %12 = arith.addf %1, %11 : vector<768x120xf32>
    %c0_11 = arith.constant 0 : index
    %c1 = arith.constant 1 : index
    %c0_12 = arith.constant 0 : index
    %13 = vector.load %arg1[%c0_11, %c1, %c0_12] : memref<32x28x28xf32, #tpu.memory_space<vmem>>, vector<32x24x28xf32>
    %14 = vector.shape_cast %13 : vector<32x24x28xf32> to vector<768x28xf32>
    %15 = arith.truncf %14 : vector<768x28xf32> to vector<768x28xbf16>
    %c1_13 = arith.constant 1 : index
    %c0_14 = arith.constant 0 : index
    %c0_15 = arith.constant 0 : index
    %16 = vector.load %arg2[%c1_13, %c0_14, %c0_15] : memref<5x28x120xbf16, #tpu.memory_space<vmem>>, vector<1x28x120xbf16>
    %17 = vector.shape_cast %16 : vector<1x28x120xbf16> to vector<28x120xbf16>
    %cst_16 = arith.constant dense<0.000000e+00> : vector<768x120xf32>
    %18 = tpu.matmul %15, %17, %cst_16 {dimension_numbers = #tpu.dot_dimension_numbers<[1], [0], [0], [1], [0, 0, 1, 1], [], []>} : vector<768x28xbf16>, vector<28x120xbf16>, vector<768x120xf32> -> vector<768x120xf32>
    %19 = arith.addf %8, %18 : vector<768x120xf32>
    %c1_17 = arith.constant 1 : index
    %c0_18 = arith.constant 0 : index
    %c0_19 = arith.constant 0 : index
    %20 = vector.load %arg3[%c1_17, %c0_18, %c0_19] : memref<5x28x120xbf16, #tpu.memory_space<vmem>>, vector<1x28x120xbf16>
    %21 = vector.shape_cast %20 : vector<1x28x120xbf16> to vector<28x120xbf16>
    %cst_20 = arith.constant dense<0.000000e+00> : vector<768x120xf32>
    %22 = tpu.matmul %15, %21, %cst_20 {dimension_numbers = #tpu.dot_dimension_numbers<[1], [0], [0], [1], [0, 0, 1, 1], [], []>} : vector<768x28xbf16>, vector<28x120xbf16>, vector<768x120xf32> -> vector<768x120xf32>
    %23 = arith.addf %12, %22 : vector<768x120xf32>
    %c0_21 = arith.constant 0 : index
    %c2 = arith.constant 2 : index
    %c0_22 = arith.constant 0 : index
    %24 = vector.load %arg1[%c0_21, %c2, %c0_22] : memref<32x28x28xf32, #tpu.memory_space<vmem>>, vector<32x24x28xf32>
    %25 = vector.shape_cast %24 : vector<32x24x28xf32> to vector<768x28xf32>
    %26 = arith.truncf %25 : vector<768x28xf32> to vector<768x28xbf16>
    %c2_23 = arith.constant 2 : index
    %c0_24 = arith.constant 0 : index
    %c0_25 = arith.constant 0 : index
    %27 = vector.load %arg2[%c2_23, %c0_24, %c0_25] : memref<5x28x120xbf16, #tpu.memory_space<vmem>>, vector<1x28x120xbf16>
    %28 = vector.shape_cast %27 : vector<1x28x120xbf16> to vector<28x120xbf16>
    %cst_26 = arith.constant dense<0.000000e+00> : vector<768x120xf32>
    %29 = tpu.matmul %26, %28, %cst_26 {dimension_numbers = #tpu.dot_dimension_numbers<[1], [0], [0], [1], [0, 0, 1, 1], [], []>} : vector<768x28xbf16>, vector<28x120xbf16>, vector<768x120xf32> -> vector<768x120xf32>
    %30 = arith.addf %19, %29 : vector<768x120xf32>
    %c2_27 = arith.constant 2 : index
    %c0_28 = arith.constant 0 : index
    %c0_29 = arith.constant 0 : index
    %31 = vector.load %arg3[%c2_27, %c0_28, %c0_29] : memref<5x28x120xbf16, #tpu.memory_space<vmem>>, vector<1x28x120xbf16>
    %32 = vector.shape_cast %31 : vector<1x28x120xbf16> to vector<28x120xbf16>
    %cst_30 = arith.constant dense<0.000000e+00> : vector<768x120xf32>
    %33 = tpu.matmul %26, %32, %cst_30 {dimension_numbers = #tpu.dot_dimension_numbers<[1], [0], [0], [1], [0, 0, 1, 1], [], []>} : vector<768x28xbf16>, vector<28x120xbf16>, vector<768x120xf32> -> vector<768x120xf32>
    %34 = arith.addf %23, %33 : vector<768x120xf32>
    %c0_31 = arith.constant 0 : index
    %c3 = arith.constant 3 : index
    %c0_32 = arith.constant 0 : index
    %35 = vector.load %arg1[%c0_31, %c3, %c0_32] : memref<32x28x28xf32, #tpu.memory_space<vmem>>, vector<32x24x28xf32>
    %36 = vector.shape_cast %35 : vector<32x24x28xf32> to vector<768x28xf32>
    %37 = arith.truncf %36 : vector<768x28xf32> to vector<768x28xbf16>
    %c3_33 = arith.constant 3 : index
    %c0_34 = arith.constant 0 : index
    %c0_35 = arith.constant 0 : index
    %38 = vector.load %arg2[%c3_33, %c0_34, %c0_35] : memref<5x28x120xbf16, #tpu.memory_space<vmem>>, vector<1x28x120xbf16>
    %39 = vector.shape_cast %38 : vector<1x28x120xbf16> to vector<28x120xbf16>
    %cst_36 = arith.constant dense<0.000000e+00> : vector<768x120xf32>
    %40 = tpu.matmul %37, %39, %cst_36 {dimension_numbers = #tpu.dot_dimension_numbers<[1], [0], [0], [1], [0, 0, 1, 1], [], []>} : vector<768x28xbf16>, vector<28x120xbf16>, vector<768x120xf32> -> vector<768x120xf32>
    %41 = arith.addf %30, %40 : vector<768x120xf32>
    %c3_37 = arith.constant 3 : index
    %c0_38 = arith.constant 0 : index
    %c0_39 = arith.constant 0 : index
    %42 = vector.load %arg3[%c3_37, %c0_38, %c0_39] : memref<5x28x120xbf16, #tpu.memory_space<vmem>>, vector<1x28x120xbf16>
    %43 = vector.shape_cast %42 : vector<1x28x120xbf16> to vector<28x120xbf16>
    %cst_40 = arith.constant dense<0.000000e+00> : vector<768x120xf32>
    %44 = tpu.matmul %37, %43, %cst_40 {dimension_numbers = #tpu.dot_dimension_numbers<[1], [0], [0], [1], [0, 0, 1, 1], [], []>} : vector<768x28xbf16>, vector<28x120xbf16>, vector<768x120xf32> -> vector<768x120xf32>
    %45 = arith.addf %34, %44 : vector<768x120xf32>
    %c0_41 = arith.constant 0 : index
    %c4 = arith.constant 4 : index
    %c0_42 = arith.constant 0 : index
    %46 = vector.load %arg1[%c0_41, %c4, %c0_42] : memref<32x28x28xf32, #tpu.memory_space<vmem>>, vector<32x24x28xf32>
    %47 = vector.shape_cast %46 : vector<32x24x28xf32> to vector<768x28xf32>
    %48 = arith.truncf %47 : vector<768x28xf32> to vector<768x28xbf16>
    %c4_43 = arith.constant 4 : index
    %c0_44 = arith.constant 0 : index
    %c0_45 = arith.constant 0 : index
    %49 = vector.load %arg2[%c4_43, %c0_44, %c0_45] : memref<5x28x120xbf16, #tpu.memory_space<vmem>>, vector<1x28x120xbf16>
    %50 = vector.shape_cast %49 : vector<1x28x120xbf16> to vector<28x120xbf16>
    %cst_46 = arith.constant dense<0.000000e+00> : vector<768x120xf32>
    %51 = tpu.matmul %48, %50, %cst_46 {dimension_numbers = #tpu.dot_dimension_numbers<[1], [0], [0], [1], [0, 0, 1, 1], [], []>} : vector<768x28xbf16>, vector<28x120xbf16>, vector<768x120xf32> -> vector<768x120xf32>
    %52 = arith.addf %41, %51 : vector<768x120xf32>
    %c4_47 = arith.constant 4 : index
    %c0_48 = arith.constant 0 : index
    %c0_49 = arith.constant 0 : index
    %53 = vector.load %arg3[%c4_47, %c0_48, %c0_49] : memref<5x28x120xbf16, #tpu.memory_space<vmem>>, vector<1x28x120xbf16>
    %54 = vector.shape_cast %53 : vector<1x28x120xbf16> to vector<28x120xbf16>
    %cst_50 = arith.constant dense<0.000000e+00> : vector<768x120xf32>
    %55 = tpu.matmul %48, %54, %cst_50 {dimension_numbers = #tpu.dot_dimension_numbers<[1], [0], [0], [1], [0, 0, 1, 1], [], []>} : vector<768x28xbf16>, vector<28x120xbf16>, vector<768x120xf32> -> vector<768x120xf32>
    %56 = arith.addf %45, %55 : vector<768x120xf32>
    %57 = arith.maximumf %52, %56 : vector<768x120xf32>
    %58 = vector.shape_cast %57 : vector<768x120xf32> to vector<32x24x120xf32>
    %c0_51 = arith.constant 0 : index
    %c0_52 = arith.constant 0 : index
    %c0_53 = arith.constant 0 : index
    %59 = vector.load %arg11[%c0_51, %c0_52, %c0_53] : memref<32x24x120xf32, #tpu.memory_space<vmem>>, vector<32x24x120xf32>
    tpu.vector_store %arg11[%c0_51, %c0_52, %c0_53], %58 {strides = array<i32>} : memref<32x24x120xf32, #tpu.memory_space<vmem>>, vector<32x24x120xf32>,
    %c0_54 = arith.constant 0 : index
    %c0_55 = arith.constant 0 : index
    %c0_56 = arith.constant 0 : index
    %60 = tpu.strided_load %arg11[%c0_54, %c0_55, %c0_56] {strides = array<i32: 1, 2, 1>} : memref<32x24x120xf32, #tpu.memory_space<vmem>>, vector<32x12x120xf32>
    %c0_57 = arith.constant 0 : index
    %c1_58 = arith.constant 1 : index
    %c0_59 = arith.constant 0 : index
    %61 = tpu.strided_load %arg11[%c0_57, %c1_58, %c0_59] {strides = array<i32: 1, 2, 1>} : memref<32x24x120xf32, #tpu.memory_space<vmem>>, vector<32x12x120xf32>
    %62 = arith.maximumf %60, %61 : vector<32x12x120xf32>
    %c0_60 = arith.constant 0 : index
    %c0_61 = arith.constant 0 : index
    %63 = vector.load %arg4[%c0_60, %c0_61] : memref<1x120xf32, #tpu.memory_space<vmem>>, vector<1x120xf32>
    %64 = vector.shape_cast %63 : vector<1x120xf32> to vector<1x1x120xf32>
    %65 = vector.broadcast %64 : vector<1x1x120xf32> to vector<32x12x120xf32>
    %66 = arith.addf %62, %65 : vector<32x12x120xf32>
    %cst_62 = arith.constant 0.000000e+00 : f32
    %67 = vector.broadcast %cst_62 : f32 to vector<32x12x120xf32>
    %68 = arith.maximumf %66, %67 : vector<32x12x120xf32>
    %cst_63 = arith.constant 0.000000e+00 : f32
    %69 = vector.broadcast %cst_63 : f32 to vector<256x80xf32>
    %cst_64 = arith.constant 0.000000e+00 : f32
    %70 = vector.broadcast %cst_64 : f32 to vector<256x80xf32>
    %71 = vector.extract_strided_slice %68 {offsets = [0, 0, 0], sizes = [32, 8, 120], strides = [1, 1, 1]} : vector<32x12x120xf32> to vector<32x8x120xf32>
    %72 = vector.shape_cast %71 : vector<32x8x120xf32> to vector<256x120xf32>
    %73 = arith.truncf %72 : vector<256x120xf32> to vector<256x120xbf16>
    %c0_65 = arith.constant 0 : index
    %c0_66 = arith.constant 0 : index
    %c0_67 = arith.constant 0 : index
    %74 = vector.load %arg5[%c0_65, %c0_66, %c0_67] : memref<5x120x80xbf16, #tpu.memory_space<vmem>>, vector<1x120x80xbf16>
    %75 = vector.shape_cast %74 : vector<1x120x80xbf16> to vector<120x80xbf16>
    %cst_68 = arith.constant dense<0.000000e+00> : vector<256x80xf32>
    %76 = tpu.matmul %73, %75, %cst_68 {dimension_numbers = #tpu.dot_dimension_numbers<[1], [0], [0], [1], [0, 0, 1, 1], [], []>} : vector<256x120xbf16>, vector<120x80xbf16>, vector<256x80xf32> -> vector<256x80xf32>
    %77 = arith.addf %69, %76 : vector<256x80xf32>
    %c0_69 = arith.constant 0 : index
    %c0_70 = arith.constant 0 : index
    %c0_71 = arith.constant 0 : index
    %78 = vector.load %arg6[%c0_69, %c0_70, %c0_71] : memref<5x120x80xbf16, #tpu.memory_space<vmem>>, vector<1x120x80xbf16>
    %79 = vector.shape_cast %78 : vector<1x120x80xbf16> to vector<120x80xbf16>
    %cst_72 = arith.constant dense<0.000000e+00> : vector<256x80xf32>
    %80 = tpu.matmul %73, %79, %cst_72 {dimension_numbers = #tpu.dot_dimension_numbers<[1], [0], [0], [1], [0, 0, 1, 1], [], []>} : vector<256x120xbf16>, vector<120x80xbf16>, vector<256x80xf32> -> vector<256x80xf32>
    %81 = arith.addf %70, %80 : vector<256x80xf32>
    %82 = vector.extract_strided_slice %68 {offsets = [0, 1, 0], sizes = [32, 8, 120], strides = [1, 1, 1]} : vector<32x12x120xf32> to vector<32x8x120xf32>
    %83 = vector.shape_cast %82 : vector<32x8x120xf32> to vector<256x120xf32>
    %84 = arith.truncf %83 : vector<256x120xf32> to vector<256x120xbf16>
    %c1_73 = arith.constant 1 : index
    %c0_74 = arith.constant 0 : index
    %c0_75 = arith.constant 0 : index
    %85 = vector.load %arg5[%c1_73, %c0_74, %c0_75] : memref<5x120x80xbf16, #tpu.memory_space<vmem>>, vector<1x120x80xbf16>
    %86 = vector.shape_cast %85 : vector<1x120x80xbf16> to vector<120x80xbf16>
    %cst_76 = arith.constant dense<0.000000e+00> : vector<256x80xf32>
    %87 = tpu.matmul %84, %86, %cst_76 {dimension_numbers = #tpu.dot_dimension_numbers<[1], [0], [0], [1], [0, 0, 1, 1], [], []>} : vector<256x120xbf16>, vector<120x80xbf16>, vector<256x80xf32> -> vector<256x80xf32>
    %88 = arith.addf %77, %87 : vector<256x80xf32>
    %c1_77 = arith.constant 1 : index
    %c0_78 = arith.constant 0 : index
    %c0_79 = arith.constant 0 : index
    %89 = vector.load %arg6[%c1_77, %c0_78, %c0_79] : memref<5x120x80xbf16, #tpu.memory_space<vmem>>, vector<1x120x80xbf16>
    %90 = vector.shape_cast %89 : vector<1x120x80xbf16> to vector<120x80xbf16>
    %cst_80 = arith.constant dense<0.000000e+00> : vector<256x80xf32>
    %91 = tpu.matmul %84, %90, %cst_80 {dimension_numbers = #tpu.dot_dimension_numbers<[1], [0], [0], [1], [0, 0, 1, 1], [], []>} : vector<256x120xbf16>, vector<120x80xbf16>, vector<256x80xf32> -> vector<256x80xf32>
    %92 = arith.addf %81, %91 : vector<256x80xf32>
    %93 = vector.extract_strided_slice %68 {offsets = [0, 2, 0], sizes = [32, 8, 120], strides = [1, 1, 1]} : vector<32x12x120xf32> to vector<32x8x120xf32>
    %94 = vector.shape_cast %93 : vector<32x8x120xf32> to vector<256x120xf32>
    %95 = arith.truncf %94 : vector<256x120xf32> to vector<256x120xbf16>
    %c2_81 = arith.constant 2 : index
    %c0_82 = arith.constant 0 : index
    %c0_83 = arith.constant 0 : index
    %96 = vector.load %arg5[%c2_81, %c0_82, %c0_83] : memref<5x120x80xbf16, #tpu.memory_space<vmem>>, vector<1x120x80xbf16>
    %97 = vector.shape_cast %96 : vector<1x120x80xbf16> to vector<120x80xbf16>
    %cst_84 = arith.constant dense<0.000000e+00> : vector<256x80xf32>
    %98 = tpu.matmul %95, %97, %cst_84 {dimension_numbers = #tpu.dot_dimension_numbers<[1], [0], [0], [1], [0, 0, 1, 1], [], []>} : vector<256x120xbf16>, vector<120x80xbf16>, vector<256x80xf32> -> vector<256x80xf32>
    %99 = arith.addf %88, %98 : vector<256x80xf32>
    %c2_85 = arith.constant 2 : index
    %c0_86 = arith.constant 0 : index
    %c0_87 = arith.constant 0 : index
    %100 = vector.load %arg6[%c2_85, %c0_86, %c0_87] : memref<5x120x80xbf16, #tpu.memory_space<vmem>>, vector<1x120x80xbf16>
    %101 = vector.shape_cast %100 : vector<1x120x80xbf16> to vector<120x80xbf16>
    %cst_88 = arith.constant dense<0.000000e+00> : vector<256x80xf32>
    %102 = tpu.matmul %95, %101, %cst_88 {dimension_numbers = #tpu.dot_dimension_numbers<[1], [0], [0], [1], [0, 0, 1, 1], [], []>} : vector<256x120xbf16>, vector<120x80xbf16>, vector<256x80xf32> -> vector<256x80xf32>
    %103 = arith.addf %92, %102 : vector<256x80xf32>
    %104 = vector.extract_strided_slice %68 {offsets = [0, 3, 0], sizes = [32, 8, 120], strides = [1, 1, 1]} : vector<32x12x120xf32> to vector<32x8x120xf32>
    %105 = vector.shape_cast %104 : vector<32x8x120xf32> to vector<256x120xf32>
    %106 = arith.truncf %105 : vector<256x120xf32> to vector<256x120xbf16>
    %c3_89 = arith.constant 3 : index
    %c0_90 = arith.constant 0 : index
    %c0_91 = arith.constant 0 : index
    %107 = vector.load %arg5[%c3_89, %c0_90, %c0_91] : memref<5x120x80xbf16, #tpu.memory_space<vmem>>, vector<1x120x80xbf16>
    %108 = vector.shape_cast %107 : vector<1x120x80xbf16> to vector<120x80xbf16>
    %cst_92 = arith.constant dense<0.000000e+00> : vector<256x80xf32>
    %109 = tpu.matmul %106, %108, %cst_92 {dimension_numbers = #tpu.dot_dimension_numbers<[1], [0], [0], [1], [0, 0, 1, 1], [], []>} : vector<256x120xbf16>, vector<120x80xbf16>, vector<256x80xf32> -> vector<256x80xf32>
    %110 = arith.addf %99, %109 : vector<256x80xf32>
    %c3_93 = arith.constant 3 : index
    %c0_94 = arith.constant 0 : index
    %c0_95 = arith.constant 0 : index
    %111 = vector.load %arg6[%c3_93, %c0_94, %c0_95] : memref<5x120x80xbf16, #tpu.memory_space<vmem>>, vector<1x120x80xbf16>
    %112 = vector.shape_cast %111 : vector<1x120x80xbf16> to vector<120x80xbf16>
    %cst_96 = arith.constant dense<0.000000e+00> : vector<256x80xf32>
    %113 = tpu.matmul %106, %112, %cst_96 {dimension_numbers = #tpu.dot_dimension_numbers<[1], [0], [0], [1], [0, 0, 1, 1], [], []>} : vector<256x120xbf16>, vector<120x80xbf16>, vector<256x80xf32> -> vector<256x80xf32>
    %114 = arith.addf %103, %113 : vector<256x80xf32>
    %115 = vector.extract_strided_slice %68 {offsets = [0, 4, 0], sizes = [32, 8, 120], strides = [1, 1, 1]} : vector<32x12x120xf32> to vector<32x8x120xf32>
    %116 = vector.shape_cast %115 : vector<32x8x120xf32> to vector<256x120xf32>
    %117 = arith.truncf %116 : vector<256x120xf32> to vector<256x120xbf16>
    %c4_97 = arith.constant 4 : index
    %c0_98 = arith.constant 0 : index
    %c0_99 = arith.constant 0 : index
    %118 = vector.load %arg5[%c4_97, %c0_98, %c0_99] : memref<5x120x80xbf16, #tpu.memory_space<vmem>>, vector<1x120x80xbf16>
    %119 = vector.shape_cast %118 : vector<1x120x80xbf16> to vector<120x80xbf16>
    %cst_100 = arith.constant dense<0.000000e+00> : vector<256x80xf32>
    %120 = tpu.matmul %117, %119, %cst_100 {dimension_numbers = #tpu.dot_dimension_numbers<[1], [0], [0], [1], [0, 0, 1, 1], [], []>} : vector<256x120xbf16>, vector<120x80xbf16>, vector<256x80xf32> -> vector<256x80xf32>
    %121 = arith.addf %110, %120 : vector<256x80xf32>
    %c4_101 = arith.constant 4 : index
    %c0_102 = arith.constant 0 : index
    %c0_103 = arith.constant 0 : index
    %122 = vector.load %arg6[%c4_101, %c0_102, %c0_103] : memref<5x120x80xbf16, #tpu.memory_space<vmem>>, vector<1x120x80xbf16>
    %123 = vector.shape_cast %122 : vector<1x120x80xbf16> to vector<120x80xbf16>
    %cst_104 = arith.constant dense<0.000000e+00> : vector<256x80xf32>
    %124 = tpu.matmul %117, %123, %cst_104 {dimension_numbers = #tpu.dot_dimension_numbers<[1], [0], [0], [1], [0, 0, 1, 1], [], []>} : vector<256x120xbf16>, vector<120x80xbf16>, vector<256x80xf32> -> vector<256x80xf32>
    %125 = arith.addf %114, %124 : vector<256x80xf32>
    %126 = arith.maximumf %121, %125 : vector<256x80xf32>
    %127 = vector.shape_cast %126 : vector<256x80xf32> to vector<32x8x80xf32>
    %c0_105 = arith.constant 0 : index
    %c0_106 = arith.constant 0 : index
    %c0_107 = arith.constant 0 : index
    %128 = vector.load %arg12[%c0_105, %c0_106, %c0_107] : memref<32x8x80xf32, #tpu.memory_space<vmem>>, vector<32x8x80xf32>
    tpu.vector_store %arg12[%c0_105, %c0_106, %c0_107], %127 {strides = array<i32>} : memref<32x8x80xf32, #tpu.memory_space<vmem>>, vector<32x8x80xf32>,
    %c0_108 = arith.constant 0 : index
    %c0_109 = arith.constant 0 : index
    %129 = vector.load %arg9[%c0_108, %c0_109] : memref<1x128xf32, #tpu.memory_space<vmem>>, vector<1x128xf32>
    %c0_110 = arith.constant 0 : index
    %c0_111 = arith.constant 0 : index
    %c0_112 = arith.constant 0 : index
    %130 = vector.load %arg12[%c0_110, %c0_111, %c0_112] : memref<32x8x80xf32, #tpu.memory_space<vmem>>, vector<32x1x80xf32>
    %131 = vector.shape_cast %130 : vector<32x1x80xf32> to vector<32x80xf32>
    %c0_113 = arith.constant 0 : index
    %c1_114 = arith.constant 1 : index
    %c0_115 = arith.constant 0 : index
    %132 = vector.load %arg12[%c0_113, %c1_114, %c0_115] : memref<32x8x80xf32, #tpu.memory_space<vmem>>, vector<32x1x80xf32>
    %133 = vector.shape_cast %132 : vector<32x1x80xf32> to vector<32x80xf32>
    %134 = arith.maximumf %131, %133 : vector<32x80xf32>
    %c0_116 = arith.constant 0 : index
    %c0_117 = arith.constant 0 : index
    %135 = vector.load %arg7[%c0_116, %c0_117] : memref<1x80xf32, #tpu.memory_space<vmem>>, vector<1x80xf32>
    %136 = vector.broadcast %135 : vector<1x80xf32> to vector<32x80xf32>
    %137 = arith.addf %134, %136 : vector<32x80xf32>
    %cst_118 = arith.constant 0.000000e+00 : f32
    %138 = vector.broadcast %cst_118 : f32 to vector<32x80xf32>
    %139 = arith.maximumf %137, %138 : vector<32x80xf32>
    %140 = arith.truncf %139 : vector<32x80xf32> to vector<32x80xbf16>
    %c0_119 = arith.constant 0 : index
    %c0_120 = arith.constant 0 : index
    %c0_121 = arith.constant 0 : index
    %141 = vector.load %arg8[%c0_119, %c0_120, %c0_121] : memref<4x80x128xbf16, #tpu.memory_space<vmem>>, vector<1x80x128xbf16>
    %142 = vector.shape_cast %141 : vector<1x80x128xbf16> to vector<80x128xbf16>
    %cst_122 = arith.constant dense<0.000000e+00> : vector<32x128xf32>
    %143 = tpu.matmul %140, %142, %cst_122 {dimension_numbers = #tpu.dot_dimension_numbers<[1], [0], [0], [1], [0, 0, 1, 1], [], []>} : vector<32x80xbf16>, vector<80x128xbf16>, vector<32x128xf32> -> vector<32x128xf32>
    %144 = vector.broadcast %129 : vector<1x128xf32> to vector<32x128xf32>
    %145 = arith.addf %144, %143 : vector<32x128xf32>
    %c0_123 = arith.constant 0 : index
    %c2_124 = arith.constant 2 : index
    %c0_125 = arith.constant 0 : index
    %146 = vector.load %arg12[%c0_123, %c2_124, %c0_125] : memref<32x8x80xf32, #tpu.memory_space<vmem>>, vector<32x1x80xf32>
    %147 = vector.shape_cast %146 : vector<32x1x80xf32> to vector<32x80xf32>
    %c0_126 = arith.constant 0 : index
    %c3_127 = arith.constant 3 : index
    %c0_128 = arith.constant 0 : index
    %148 = vector.load %arg12[%c0_126, %c3_127, %c0_128] : memref<32x8x80xf32, #tpu.memory_space<vmem>>, vector<32x1x80xf32>
    %149 = vector.shape_cast %148 : vector<32x1x80xf32> to vector<32x80xf32>
    %150 = arith.maximumf %147, %149 : vector<32x80xf32>
    %c0_129 = arith.constant 0 : index
    %c0_130 = arith.constant 0 : index
    %151 = vector.load %arg7[%c0_129, %c0_130] : memref<1x80xf32, #tpu.memory_space<vmem>>, vector<1x80xf32>
    %152 = vector.broadcast %151 : vector<1x80xf32> to vector<32x80xf32>
    %153 = arith.addf %150, %152 : vector<32x80xf32>
    %cst_131 = arith.constant 0.000000e+00 : f32
    %154 = vector.broadcast %cst_131 : f32 to vector<32x80xf32>
    %155 = arith.maximumf %153, %154 : vector<32x80xf32>
    %156 = arith.truncf %155 : vector<32x80xf32> to vector<32x80xbf16>
    %c1_132 = arith.constant 1 : index
    %c0_133 = arith.constant 0 : index
    %c0_134 = arith.constant 0 : index
    %157 = vector.load %arg8[%c1_132, %c0_133, %c0_134] : memref<4x80x128xbf16, #tpu.memory_space<vmem>>, vector<1x80x128xbf16>
    %158 = vector.shape_cast %157 : vector<1x80x128xbf16> to vector<80x128xbf16>
    %cst_135 = arith.constant dense<0.000000e+00> : vector<32x128xf32>
    %159 = tpu.matmul %156, %158, %cst_135 {dimension_numbers = #tpu.dot_dimension_numbers<[1], [0], [0], [1], [0, 0, 1, 1], [], []>} : vector<32x80xbf16>, vector<80x128xbf16>, vector<32x128xf32> -> vector<32x128xf32>
    %160 = arith.addf %145, %159 : vector<32x128xf32>
    %c0_136 = arith.constant 0 : index
    %c4_137 = arith.constant 4 : index
    %c0_138 = arith.constant 0 : index
    %161 = vector.load %arg12[%c0_136, %c4_137, %c0_138] : memref<32x8x80xf32, #tpu.memory_space<vmem>>, vector<32x1x80xf32>
    %162 = vector.shape_cast %161 : vector<32x1x80xf32> to vector<32x80xf32>
    %c0_139 = arith.constant 0 : index
    %c5 = arith.constant 5 : index
    %c0_140 = arith.constant 0 : index
    %163 = vector.load %arg12[%c0_139, %c5, %c0_140] : memref<32x8x80xf32, #tpu.memory_space<vmem>>, vector<32x1x80xf32>
    %164 = vector.shape_cast %163 : vector<32x1x80xf32> to vector<32x80xf32>
    %165 = arith.maximumf %162, %164 : vector<32x80xf32>
    %c0_141 = arith.constant 0 : index
    %c0_142 = arith.constant 0 : index
    %166 = vector.load %arg7[%c0_141, %c0_142] : memref<1x80xf32, #tpu.memory_space<vmem>>, vector<1x80xf32>
    %167 = vector.broadcast %166 : vector<1x80xf32> to vector<32x80xf32>
    %168 = arith.addf %165, %167 : vector<32x80xf32>
    %cst_143 = arith.constant 0.000000e+00 : f32
    %169 = vector.broadcast %cst_143 : f32 to vector<32x80xf32>
    %170 = arith.maximumf %168, %169 : vector<32x80xf32>
    %171 = arith.truncf %170 : vector<32x80xf32> to vector<32x80xbf16>
    %c2_144 = arith.constant 2 : index
    %c0_145 = arith.constant 0 : index
    %c0_146 = arith.constant 0 : index
    %172 = vector.load %arg8[%c2_144, %c0_145, %c0_146] : memref<4x80x128xbf16, #tpu.memory_space<vmem>>, vector<1x80x128xbf16>
    %173 = vector.shape_cast %172 : vector<1x80x128xbf16> to vector<80x128xbf16>
    %cst_147 = arith.constant dense<0.000000e+00> : vector<32x128xf32>
    %174 = tpu.matmul %171, %173, %cst_147 {dimension_numbers = #tpu.dot_dimension_numbers<[1], [0], [0], [1], [0, 0, 1, 1], [], []>} : vector<32x80xbf16>, vector<80x128xbf16>, vector<32x128xf32> -> vector<32x128xf32>
    %175 = arith.addf %160, %174 : vector<32x128xf32>
    %c0_148 = arith.constant 0 : index
    %c6 = arith.constant 6 : index
    %c0_149 = arith.constant 0 : index
    %176 = vector.load %arg12[%c0_148, %c6, %c0_149] : memref<32x8x80xf32, #tpu.memory_space<vmem>>, vector<32x1x80xf32>
    %177 = vector.shape_cast %176 : vector<32x1x80xf32> to vector<32x80xf32>
    %c0_150 = arith.constant 0 : index
    %c7 = arith.constant 7 : index
    %c0_151 = arith.constant 0 : index
    %178 = vector.load %arg12[%c0_150, %c7, %c0_151] : memref<32x8x80xf32, #tpu.memory_space<vmem>>, vector<32x1x80xf32>
    %179 = vector.shape_cast %178 : vector<32x1x80xf32> to vector<32x80xf32>
    %180 = arith.maximumf %177, %179 : vector<32x80xf32>
    %c0_152 = arith.constant 0 : index
    %c0_153 = arith.constant 0 : index
    %181 = vector.load %arg7[%c0_152, %c0_153] : memref<1x80xf32, #tpu.memory_space<vmem>>, vector<1x80xf32>
    %182 = vector.broadcast %181 : vector<1x80xf32> to vector<32x80xf32>
    %183 = arith.addf %180, %182 : vector<32x80xf32>
    %cst_154 = arith.constant 0.000000e+00 : f32
    %184 = vector.broadcast %cst_154 : f32 to vector<32x80xf32>
    %185 = arith.maximumf %183, %184 : vector<32x80xf32>
    %186 = arith.truncf %185 : vector<32x80xf32> to vector<32x80xbf16>
    %c3_155 = arith.constant 3 : index
    %c0_156 = arith.constant 0 : index
    %c0_157 = arith.constant 0 : index
    %187 = vector.load %arg8[%c3_155, %c0_156, %c0_157] : memref<4x80x128xbf16, #tpu.memory_space<vmem>>, vector<1x80x128xbf16>
    %188 = vector.shape_cast %187 : vector<1x80x128xbf16> to vector<80x128xbf16>
    %cst_158 = arith.constant dense<0.000000e+00> : vector<32x128xf32>
    %189 = tpu.matmul %186, %188, %cst_158 {dimension_numbers = #tpu.dot_dimension_numbers<[1], [0], [0], [1], [0, 0, 1, 1], [], []>} : vector<32x80xbf16>, vector<80x128xbf16>, vector<32x128xf32> -> vector<32x128xf32>
    %190 = arith.addf %175, %189 : vector<32x128xf32>
    %cst_159 = arith.constant dense<0xFF800000> : vector<32xf32>
    %191 = vector.multi_reduction <maximumf>, %190, %cst_159 [1] : vector<32x128xf32> to vector<32xf32>
    %192 = vector.shape_cast %191 : vector<32xf32> to vector<32x1xf32>
    %193 = vector.broadcast %192 : vector<32x1xf32> to vector<32x128xf32>
    %194 = arith.subf %190, %193 : vector<32x128xf32>
    %195 = math.exp %194 : vector<32x128xf32>
    %cst_160 = arith.constant dense<0.000000e+00> : vector<32xf32>
    %196 = vector.multi_reduction <add>, %195, %cst_160 [1] : vector<32x128xf32> to vector<32xf32>
    %197 = vector.shape_cast %196 : vector<32xf32> to vector<32x1xf32>
    %198 = math.log %197 : vector<32x1xf32>
    %199 = vector.broadcast %198 : vector<32x1xf32> to vector<32x128xf32>
    %200 = arith.subf %194, %199 : vector<32x128xf32>
    %c0_161 = arith.constant 0 : index
    %c0_162 = arith.constant 0 : index
    %201 = vector.load %arg10[%c0_161, %c0_162] : memref<32x128xf32, #tpu.memory_space<vmem>>, vector<32x128xf32>
    tpu.vector_store %arg10[%c0_161, %c0_162], %200 {strides = array<i32>} : memref<32x128xf32, #tpu.memory_space<vmem>>, vector<32x128xf32>,
    return
  }
  func.func @transform_0(%arg0: i32) -> (i32, i32, i32) {
    %c0_i32 = arith.constant 0 : i32
    %c0_i32_0 = arith.constant 0 : i32
    %c0_i32_1 = arith.constant 0 : i32
    return %arg0, %c0_i32, %c0_i32_0 : i32, i32, i32
  }
  func.func @transform_1(%arg0: i32) -> (i32, i32, i32) {
    %c0_i32 = arith.constant 0 : i32
    %c0_i32_0 = arith.constant 0 : i32
    %c0_i32_1 = arith.constant 0 : i32
    %c0_i32_2 = arith.constant 0 : i32
    return %c0_i32, %c0_i32_0, %c0_i32_1 : i32, i32, i32
  }
  func.func @transform_2(%arg0: i32) -> (i32, i32, i32) {
    %c0_i32 = arith.constant 0 : i32
    %c0_i32_0 = arith.constant 0 : i32
    %c0_i32_1 = arith.constant 0 : i32
    %c0_i32_2 = arith.constant 0 : i32
    return %c0_i32, %c0_i32_0, %c0_i32_1 : i32, i32, i32
  }
  func.func @transform_3(%arg0: i32) -> (i32, i32) {
    %c0_i32 = arith.constant 0 : i32
    %c0_i32_0 = arith.constant 0 : i32
    %c0_i32_1 = arith.constant 0 : i32
    return %c0_i32, %c0_i32_0 : i32, i32
  }
  func.func @transform_4(%arg0: i32) -> (i32, i32, i32) {
    %c0_i32 = arith.constant 0 : i32
    %c0_i32_0 = arith.constant 0 : i32
    %c0_i32_1 = arith.constant 0 : i32
    %c0_i32_2 = arith.constant 0 : i32
    return %c0_i32, %c0_i32_0, %c0_i32_1 : i32, i32, i32
  }
  func.func @transform_5(%arg0: i32) -> (i32, i32, i32) {
    %c0_i32 = arith.constant 0 : i32
    %c0_i32_0 = arith.constant 0 : i32
    %c0_i32_1 = arith.constant 0 : i32
    %c0_i32_2 = arith.constant 0 : i32
    return %c0_i32, %c0_i32_0, %c0_i32_1 : i32, i32, i32
  }
  func.func @transform_6(%arg0: i32) -> (i32, i32) {
    %c0_i32 = arith.constant 0 : i32
    %c0_i32_0 = arith.constant 0 : i32
    %c0_i32_1 = arith.constant 0 : i32
    return %c0_i32, %c0_i32_0 : i32, i32
  }
  func.func @transform_7(%arg0: i32) -> (i32, i32, i32) {
    %c0_i32 = arith.constant 0 : i32
    %c0_i32_0 = arith.constant 0 : i32
    %c0_i32_1 = arith.constant 0 : i32
    %c0_i32_2 = arith.constant 0 : i32
    return %c0_i32, %c0_i32_0, %c0_i32_1 : i32, i32, i32
  }
  func.func @transform_8(%arg0: i32) -> (i32, i32) {
    %c0_i32 = arith.constant 0 : i32
    %c0_i32_0 = arith.constant 0 : i32
    %c0_i32_1 = arith.constant 0 : i32
    return %c0_i32, %c0_i32_0 : i32, i32
  }
  func.func @transform_9(%arg0: i32) -> (i32, i32) {
    %c0_i32 = arith.constant 0 : i32
    %c0_i32_0 = arith.constant 0 : i32
    return %arg0, %c0_i32 : i32, i32
  }
}

</mosaic_0001>

<llo_original>
// kernel: net_forward.1
$region0: #{net_forward.1}
  #allocation0 [shape = 'u32[]', space=smem, size = 0x4, offset = 0x4, fixed_abs, tag = 'smem constant byte address 0x4 - core index']
  #allocation1 [shape = 'u32[144,128]{1,0:T(1,128)}', space=vmem, size = 0x12000, scoped, tag = 'internal scratch']
  #allocation2 [shape = 'f32[32,24,120]{2,1,0:T(8,128)}', space=vmem, size = 0x60000, scoped, tag = 'scratch operand']
  #allocation3 [shape = 'f32[32,8,80]{2,1,0:T(8,128)}', space=vmem, size = 0x20000, scoped, tag = 'scratch operand']
  %s0 = inlined_call_operand.vmem [shape: f32[32,28,28], index: 0, kind: input, shape index: {}]
  %s1 = inlined_call_operand.vmem [shape: bf16[5,28,120], index: 1, kind: input, shape index: {}]
  %s2 = inlined_call_operand.vmem [shape: bf16[5,28,120], index: 2, kind: input, shape index: {}]
  %s3 = inlined_call_operand.vmem [shape: f32[1,120], index: 3, kind: input, shape index: {}]
  %s4 = inlined_call_operand.vmem [shape: bf16[5,120,80], index: 4, kind: input, shape index: {}]
  %s5 = inlined_call_operand.vmem [shape: bf16[5,120,80], index: 5, kind: input, shape index: {}]
  %s6 = inlined_call_operand.vmem [shape: f32[1,80], index: 6, kind: input, shape index: {}]
  %s7 = inlined_call_operand.vmem [shape: bf16[4,80,128], index: 7, kind: input, shape index: {}]
  %s8 = inlined_call_operand.vmem [shape: f32[1,128], index: 8, kind: input, shape index: {}]
  %s9 = inlined_call_operand.vmem [shape: f32[32,128], index: 9, kind: output, shape index: {}]
  %s10 = sld [smem:[#allocation0]]
  $region46: #{net_forward.1} parent=0
    _
  %s12 = ssub.s32 1, %s10
  %s13 = scalar_select 0, %s12, %s10
  // Predicated region
  $region2: #{net_forward.1} parent=0 // pred_check
    _
  $region3: #{net_forward.1} parent=0 // pred_check_branch
    %15 = sbr.rel (0) target = $region5
  $region4: #{net_forward.1} parent=0 // pred_region
    _
  $region5: #{net_forward.1} parent=0 // pred_fallthru
    _
  // Predicated region
  $region6: #{net_forward.1} parent=0 // pred_check
    _
  $region7: #{net_forward.1} parent=0 // pred_check_branch
    %17 = sbr.rel (0) target = $region9
  $region8: #{net_forward.1} parent=0 // pred_region
    _
  $region9: #{net_forward.1} parent=0 // pred_fallthru
    _
  // Predicated region
  $region10: #{net_forward.1} parent=0 // pred_check
    _
  $region11: #{net_forward.1} parent=0 // pred_check_branch
    %19 = sbr.rel (0) target = $region13
  $region12: #{net_forward.1} parent=0 // pred_region
    _
  $region13: #{net_forward.1} parent=0 // pred_fallthru
    _
  // Predicated region
  $region14: #{net_forward.1} parent=0 // pred_check
    _
  $region15: #{net_forward.1} parent=0 // pred_check_branch
    %21 = sbr.rel (0) target = $region17
  $region16: #{net_forward.1} parent=0 // pred_region
    _
  $region17: #{net_forward.1} parent=0 // pred_fallthru
    _
  // Predicated region
  $region18: #{net_forward.1} parent=0 // pred_check
    _
  $region19: #{net_forward.1} parent=0 // pred_check_branch
    %23 = sbr.rel (0) target = $region21
  $region20: #{net_forward.1} parent=0 // pred_region
    _
  $region21: #{net_forward.1} parent=0 // pred_fallthru
    _
  // Predicated region
  $region22: #{net_forward.1} parent=0 // pred_check
    _
  $region23: #{net_forward.1} parent=0 // pred_check_branch
    %25 = sbr.rel (0) target = $region25
  $region24: #{net_forward.1} parent=0 // pred_region
    _
  $region25: #{net_forward.1} parent=0 // pred_fallthru
    _
  // Predicated region
  $region26: #{net_forward.1} parent=0 // pred_check
    _
  $region27: #{net_forward.1} parent=0 // pred_check_branch
    %27 = sbr.rel (0) target = $region29
  $region28: #{net_forward.1} parent=0 // pred_region
    _
  $region29: #{net_forward.1} parent=0 // pred_fallthru
    _
  // Predicated region
  $region30: #{net_forward.1} parent=0 // pred_check
    _
  $region31: #{net_forward.1} parent=0 // pred_check_branch
    %29 = sbr.rel (0) target = $region33
  $region32: #{net_forward.1} parent=0 // pred_region
    _
  $region33: #{net_forward.1} parent=0 // pred_fallthru
    _
  // Predicated region
  $region34: #{net_forward.1} parent=0 // pred_check
    _
  $region35: #{net_forward.1} parent=0 // pred_check_branch
    %31 = sbr.rel (0) target = $region37
  $region36: #{net_forward.1} parent=0 // pred_region
    _
  $region37: #{net_forward.1} parent=0 // pred_fallthru
    _
  %v33 = vld [vmem:[%s0] sm:$0xff]
  %v34 = vld [vmem:[%s0 + $0x8] sm:$0xff]
  %v35 = vld [vmem:[%s0 + $0x10] sm:$0xff]
  %v36 = vld [vmem:[%s0 + $0x20] sm:$0xff]
  %v37 = vld [vmem:[%s0 + $0x28] sm:$0xff]
  %v38 = vld [vmem:[%s0 + $0x30] sm:$0xff]
  %v39 = vld [vmem:[%s0 + $0x40] sm:$0xff]
  %v40 = vld [vmem:[%s0 + $0x48] sm:$0xff]
  %v41 = vld [vmem:[%s0 + $0x50] sm:$0xff]
  %v42 = vld [vmem:[%s0 + $0x60] sm:$0xff]
  %v43 = vld [vmem:[%s0 + $0x68] sm:$0xff]
  %v44 = vld [vmem:[%s0 + $0x70] sm:$0xff]
  %v45 = vld [vmem:[%s0 + $0x80] sm:$0xff]
  %v46 = vld [vmem:[%s0 + $0x88] sm:$0xff]
  %v47 = vld [vmem:[%s0 + $0x90] sm:$0xff]
  %v48 = vld [vmem:[%s0 + $0xa0] sm:$0xff]
  %v49 = vld [vmem:[%s0 + $0xa8] sm:$0xff]
  %v50 = vld [vmem:[%s0 + $0xb0] sm:$0xff]
  %v51 = vld [vmem:[%s0 + $0xc0] sm:$0xff]
  %v52 = vld [vmem:[%s0 + $0xc8] sm:$0xff]
  %v53 = vld [vmem:[%s0 + $0xd0] sm:$0xff]
  %v54 = vld [vmem:[%s0 + $0xe0] sm:$0xff]
  %v55 = vld [vmem:[%s0 + $0xe8] sm:$0xff]
  %v56 = vld [vmem:[%s0 + $0xf0] sm:$0xff]
  %v57 = vld [vmem:[%s0 + $0x100] sm:$0xff]
  %v58 = vld [vmem:[%s0 + $0x108] sm:$0xff]
  %v59 = vld [vmem:[%s0 + $0x110] sm:$0xff]
  %v60 = vld [vmem:[%s0 + $0x120] sm:$0xff]
  %v61 = vld [vmem:[%s0 + $0x128] sm:$0xff]
  %v62 = vld [vmem:[%s0 + $0x130] sm:$0xff]
  %v63 = vld [vmem:[%s0 + $0x140] sm:$0xff]
  %v64 = vld [vmem:[%s0 + $0x148] sm:$0xff]
  %v65 = vld [vmem:[%s0 + $0x150] sm:$0xff]
  %v66 = vld [vmem:[%s0 + $0x160] sm:$0xff]
  %v67 = vld [vmem:[%s0 + $0x168] sm:$0xff]
  %v68 = vld [vmem:[%s0 + $0x170] sm:$0xff]
  %v69 = vld [vmem:[%s0 + $0x180] sm:$0xff]
  %v70 = vld [vmem:[%s0 + $0x188] sm:$0xff]
  %v71 = vld [vmem:[%s0 + $0x190] sm:$0xff]
  %v72 = vld [vmem:[%s0 + $0x1a0] sm:$0xff]
  %v73 = vld [vmem:[%s0 + $0x1a8] sm:$0xff]
  %v74 = vld [vmem:[%s0 + $0x1b0] sm:$0xff]
  %v75 = vld [vmem:[%s0 + $0x1c0] sm:$0xff]
  %v76 = vld [vmem:[%s0 + $0x1c8] sm:$0xff]
  %v77 = vld [vmem:[%s0 + $0x1d0] sm:$0xff]
  %v78 = vld [vmem:[%s0 + $0x1e0] sm:$0xff]
  %v79 = vld [vmem:[%s0 + $0x1e8] sm:$0xff]
  %v80 = vld [vmem:[%s0 + $0x1f0] sm:$0xff]
  %v81 = vld [vmem:[%s0 + $0x200] sm:$0xff]
  %v82 = vld [vmem:[%s0 + $0x208] sm:$0xff]
  %v83 = vld [vmem:[%s0 + $0x210] sm:$0xff]
  %v84 = vld [vmem:[%s0 + $0x220] sm:$0xff]
  %v85 = vld [vmem:[%s0 + $0x228] sm:$0xff]
  %v86 = vld [vmem:[%s0 + $0x230] sm:$0xff]
  %v87 = vld [vmem:[%s0 + $0x240] sm:$0xff]
  %v88 = vld [vmem:[%s0 + $0x248] sm:$0xff]
  %v89 = vld [vmem:[%s0 + $0x250] sm:$0xff]
  %v90 = vld [vmem:[%s0 + $0x260] sm:$0xff]
  %v91 = vld [vmem:[%s0 + $0x268] sm:$0xff]
  %v92 = vld [vmem:[%s0 + $0x270] sm:$0xff]
  %v93 = vld [vmem:[%s0 + $0x280] sm:$0xff]
  %v94 = vld [vmem:[%s0 + $0x288] sm:$0xff]
  %v95 = vld [vmem:[%s0 + $0x290] sm:$0xff]
  %v96 = vld [vmem:[%s0 + $0x2a0] sm:$0xff]
  %v97 = vld [vmem:[%s0 + $0x2a8] sm:$0xff]
  %v98 = vld [vmem:[%s0 + $0x2b0] sm:$0xff]
  %v99 = vld [vmem:[%s0 + $0x2c0] sm:$0xff]
  %v100 = vld [vmem:[%s0 + $0x2c8] sm:$0xff]
  %v101 = vld [vmem:[%s0 + $0x2d0] sm:$0xff]
  %v102 = vld [vmem:[%s0 + $0x2e0] sm:$0xff]
  %v103 = vld [vmem:[%s0 + $0x2e8] sm:$0xff]
  %v104 = vld [vmem:[%s0 + $0x2f0] sm:$0xff]
  %v105 = vld [vmem:[%s0 + $0x300] sm:$0xff]
  %v106 = vld [vmem:[%s0 + $0x308] sm:$0xff]
  %v107 = vld [vmem:[%s0 + $0x310] sm:$0xff]
  %v108 = vld [vmem:[%s0 + $0x320] sm:$0xff]
  %v109 = vld [vmem:[%s0 + $0x328] sm:$0xff]
  %v110 = vld [vmem:[%s0 + $0x330] sm:$0xff]
  %v111 = vld [vmem:[%s0 + $0x340] sm:$0xff]
  %v112 = vld [vmem:[%s0 + $0x348] sm:$0xff]
  %v113 = vld [vmem:[%s0 + $0x350] sm:$0xff]
  %v114 = vld [vmem:[%s0 + $0x360] sm:$0xff]
  %v115 = vld [vmem:[%s0 + $0x368] sm:$0xff]
  %v116 = vld [vmem:[%s0 + $0x370] sm:$0xff]
  %v117 = vld [vmem:[%s0 + $0x380] sm:$0xff]
  %v118 = vld [vmem:[%s0 + $0x388] sm:$0xff]
  %v119 = vld [vmem:[%s0 + $0x390] sm:$0xff]
  %v120 = vld [vmem:[%s0 + $0x3a0] sm:$0xff]
  %v121 = vld [vmem:[%s0 + $0x3a8] sm:$0xff]
  %v122 = vld [vmem:[%s0 + $0x3b0] sm:$0xff]
  %v123 = vld [vmem:[%s0 + $0x3c0] sm:$0xff]
  %v124 = vld [vmem:[%s0 + $0x3c8] sm:$0xff]
  %v125 = vld [vmem:[%s0 + $0x3d0] sm:$0xff]
  %v126 = vld [vmem:[%s0 + $0x3e0] sm:$0xff]
  %v127 = vld [vmem:[%s0 + $0x3e8] sm:$0xff]
  %v128 = vld [vmem:[%s0 + $0x3f0] sm:$0xff]
  %v129 = vpack.c.bf16 %v34, %v33
  %v130 = vpack.c.bf16 %v36, %v35
  %v131 = vpack.c.bf16 %v38, %v37
  %v132 = vpack.c.bf16 %v40, %v39
  %v133 = vpack.c.bf16 %v42, %v41
  %v134 = vpack.c.bf16 %v44, %v43
  %v135 = vpack.c.bf16 %v46, %v45
  %v136 = vpack.c.bf16 %v48, %v47
  %v137 = vpack.c.bf16 %v50, %v49
  %v138 = vpack.c.bf16 %v52, %v51
  %v139 = vpack.c.bf16 %v54, %v53
  %v140 = vpack.c.bf16 %v56, %v55
  %v141 = vpack.c.bf16 %v58, %v57
  %v142 = vpack.c.bf16 %v60, %v59
  %v143 = vpack.c.bf16 %v62, %v61
  %v144 = vpack.c.bf16 %v64, %v63
  %v145 = vpack.c.bf16 %v66, %v65
  %v146 = vpack.c.bf16 %v68, %v67
  %v147 = vpack.c.bf16 %v70, %v69
  %v148 = vpack.c.bf16 %v72, %v71
  %v149 = vpack.c.bf16 %v74, %v73
  %v150 = vpack.c.bf16 %v76, %v75
  %v151 = vpack.c.bf16 %v78, %v77
  %v152 = vpack.c.bf16 %v80, %v79
  %v153 = vpack.c.bf16 %v82, %v81
  %v154 = vpack.c.bf16 %v84, %v83
  %v155 = vpack.c.bf16 %v86, %v85
  %v156 = vpack.c.bf16 %v88, %v87
  %v157 = vpack.c.bf16 %v90, %v89
  %v158 = vpack.c.bf16 %v92, %v91
  %v159 = vpack.c.bf16 %v94, %v93
  %v160 = vpack.c.bf16 %v96, %v95
  %v161 = vpack.c.bf16 %v98, %v97
  %v162 = vpack.c.bf16 %v100, %v99
  %v163 = vpack.c.bf16 %v102, %v101
  %v164 = vpack.c.bf16 %v104, %v103
  %v165 = vpack.c.bf16 %v106, %v105
  %v166 = vpack.c.bf16 %v108, %v107
  %v167 = vpack.c.bf16 %v110, %v109
  %v168 = vpack.c.bf16 %v112, %v111
  %v169 = vpack.c.bf16 %v114, %v113
  %v170 = vpack.c.bf16 %v116, %v115
  %v171 = vpack.c.bf16 %v118, %v117
  %v172 = vpack.c.bf16 %v120, %v119
  %v173 = vpack.c.bf16 %v122, %v121
  %v174 = vpack.c.bf16 %v124, %v123
  %v175 = vpack.c.bf16 %v126, %v125
  %v176 = vpack.c.bf16 %v128, %v127
  %v177 = vld [vmem:[%s1] sm:$0xf]
  %v178 = vld [vmem:[%s1 + $0x4] sm:$0xf]
  %v179 = vld [vmem:[%s1 + $0x8] sm:$0xf]
  %v180 = vld [vmem:[%s1 + $0xc] sm:$0x3]
  %v181 = vld [vmem:[%s2] sm:$0xf]
  %v182 = vld [vmem:[%s2 + $0x4] sm:$0xf]
  %v183 = vld [vmem:[%s2 + $0x8] sm:$0xf]
  %v184 = vld [vmem:[%s2 + $0xc] sm:$0x3]
  %v185 = vld [vmem:[%s0 + $0x1] sm:$0xff]
  %v186 = vld [vmem:[%s0 + $0x9] sm:$0xff]
  %v187 = vld [vmem:[%s0 + $0x11] sm:$0xff]
  %v188 = vld [vmem:[%s0 + $0x21] sm:$0xff]
  %v189 = vld [vmem:[%s0 + $0x29] sm:$0xff]
  %v190 = vld [vmem:[%s0 + $0x31] sm:$0xff]
  %v191 = vld [vmem:[%s0 + $0x41] sm:$0xff]
  %v192 = vld [vmem:[%s0 + $0x49] sm:$0xff]
  %v193 = vld [vmem:[%s0 + $0x51] sm:$0xff]
  %v194 = vld [vmem:[%s0 + $0x61] sm:$0xff]
  %v195 = vld [vmem:[%s0 + $0x69] sm:$0xff]
  %v196 = vld [vmem:[%s0 + $0x71] sm:$0xff]
  %v197 = vld [vmem:[%s0 + $0x81] sm:$0xff]
  %v198 = vld [vmem:[%s0 + $0x89] sm:$0xff]
  %v199 = vld [vmem:[%s0 + $0x91] sm:$0xff]
  %v200 = vld [vmem:[%s0 + $0xa1] sm:$0xff]
  %v201 = vld [vmem:[%s0 + $0xa9] sm:$0xff]
  %v202 = vld [vmem:[%s0 + $0xb1] sm:$0xff]
  %v203 = vld [vmem:[%s0 + $0xc1] sm:$0xff]
  %v204 = vld [vmem:[%s0 + $0xc9] sm:$0xff]
  %v205 = vld [vmem:[%s0 + $0xd1] sm:$0xff]
  %v206 = vld [vmem:[%s0 + $0xe1] sm:$0xff]
  %v207 = vld [vmem:[%s0 + $0xe9] sm:$0xff]
  %v208 = vld [vmem:[%s0 + $0xf1] sm:$0xff]
  %v209 = vld [vmem:[%s0 + $0x101] sm:$0xff]
  %v210 = vld [vmem:[%s0 + $0x109] sm:$0xff]
  %v211 = vld [vmem:[%s0 + $0x111] sm:$0xff]
  %v212 = vld [vmem:[%s0 + $0x121] sm:$0xff]
  %v213 = vld [vmem:[%s0 + $0x129] sm:$0xff]
  %v214 = vld [vmem:[%s0 + $0x131] sm:$0xff]
  %v215 = vld [vmem:[%s0 + $0x141] sm:$0xff]
  %v216 = vld [vmem:[%s0 + $0x149] sm:$0xff]
  %v217 = vld [vmem:[%s0 + $0x151] sm:$0xff]
  %v218 = vld [vmem:[%s0 + $0x161] sm:$0xff]
  %v219 = vld [vmem:[%s0 + $0x169] sm:$0xff]
  %v220 = vld [vmem:[%s0 + $0x171] sm:$0xff]
  %v221 = vld [vmem:[%s0 + $0x181] sm:$0xff]
  %v222 = vld [vmem:[%s0 + $0x189] sm:$0xff]
  %v223 = vld [vmem:[%s0 + $0x191] sm:$0xff]
  %v224 = vld [vmem:[%s0 + $0x1a1] sm:$0xff]
  %v225 = vld [vmem:[%s0 + $0x1a9] sm:$0xff]
  %v226 = vld [vmem:[%s0 + $0x1b1] sm:$0xff]
  %v227 = vld [vmem:[%s0 + $0x1c1] sm:$0xff]
  %v228 = vld [vmem:[%s0 + $0x1c9] sm:$0xff]
  %v229 = vld [vmem:[%s0 + $0x1d1] sm:$0xff]
  %v230 = vld [vmem:[%s0 + $0x1e1] sm:$0xff]
  %v231 = vld [vmem:[%s0 + $0x1e9] sm:$0xff]
  %v232 = vld [vmem:[%s0 + $0x1f1] sm:$0xff]
  %v233 = vld [vmem:[%s0 + $0x201] sm:$0xff]
  %v234 = vld [vmem:[%s0 + $0x209] sm:$0xff]
  %v235 = vld [vmem:[%s0 + $0x211] sm:$0xff]
  %v236 = vld [vmem:[%s0 + $0x221] sm:$0xff]
  %v237 = vld [vmem:[%s0 + $0x229] sm:$0xff]
  %v238 = vld [vmem:[%s0 + $0x231] sm:$0xff]
  %v239 = vld [vmem:[%s0 + $0x241] sm:$0xff]
  %v240 = vld [vmem:[%s0 + $0x249] sm:$0xff]
  %v241 = vld [vmem:[%s0 + $0x251] sm:$0xff]
  %v242 = vld [vmem:[%s0 + $0x261] sm:$0xff]
  %v243 = vld [vmem:[%s0 + $0x269] sm:$0xff]
  %v244 = vld [vmem:[%s0 + $0x271] sm:$0xff]
  %v245 = vld [vmem:[%s0 + $0x281] sm:$0xff]
  %v246 = vld [vmem:[%s0 + $0x289] sm:$0xff]
  %v247 = vld [vmem:[%s0 + $0x291] sm:$0xff]
  %v248 = vld [vmem:[%s0 + $0x2a1] sm:$0xff]
  %v249 = vld [vmem:[%s0 + $0x2a9] sm:$0xff]
  %v250 = vld [vmem:[%s0 + $0x2b1] sm:$0xff]
  %v251 = vld [vmem:[%s0 + $0x2c1] sm:$0xff]
  %v252 = vld [vmem:[%s0 + $0x2c9] sm:$0xff]
  %v253 = vld [vmem:[%s0 + $0x2d1] sm:$0xff]
  %v254 = vld [vmem:[%s0 + $0x2e1] sm:$0xff]
  %v255 = vld [vmem:[%s0 + $0x2e9] sm:$0xff]
  %v256 = vld [vmem:[%s0 + $0x2f1] sm:$0xff]
  %v257 = vld [vmem:[%s0 + $0x301] sm:$0xff]
  %v258 = vld [vmem:[%s0 + $0x309] sm:$0xff]
  %v259 = vld [vmem:[%s0 + $0x311] sm:$0xff]
  %v260 = vld [vmem:[%s0 + $0x321] sm:$0xff]
  %v261 = vld [vmem:[%s0 + $0x329] sm:$0xff]
  %v262 = vld [vmem:[%s0 + $0x331] sm:$0xff]
  %v263 = vld [vmem:[%s0 + $0x341] sm:$0xff]
  %v264 = vld [vmem:[%s0 + $0x349] sm:$0xff]
  %v265 = vld [vmem:[%s0 + $0x351] sm:$0xff]
  %v266 = vld [vmem:[%s0 + $0x361] sm:$0xff]
  %v267 = vld [vmem:[%s0 + $0x369] sm:$0xff]
  %v268 = vld [vmem:[%s0 + $0x371] sm:$0xff]
  %v269 = vld [vmem:[%s0 + $0x381] sm:$0xff]
  %v270 = vld [vmem:[%s0 + $0x389] sm:$0xff]
  %v271 = vld [vmem:[%s0 + $0x391] sm:$0xff]
  %v272 = vld [vmem:[%s0 + $0x3a1] sm:$0xff]
  %v273 = vld [vmem:[%s0 + $0x3a9] sm:$0xff]
  %v274 = vld [vmem:[%s0 + $0x3b1] sm:$0xff]
  %v275 = vld [vmem:[%s0 + $0x3c1] sm:$0xff]
  %v276 = vld [vmem:[%s0 + $0x3c9] sm:$0xff]
  %v277 = vld [vmem:[%s0 + $0x3d1] sm:$0xff]
  %v278 = vld [vmem:[%s0 + $0x3e1] sm:$0xff]
  %v279 = vld [vmem:[%s0 + $0x3e9] sm:$0xff]
  %v280 = vld [vmem:[%s0 + $0x3f1] sm:$0xff]
  %v281 = vpack.c.bf16 %v186, %v185
  %v282 = vpack.c.bf16 %v188, %v187
  %v283 = vpack.c.bf16 %v190, %v189
  %v284 = vpack.c.bf16 %v192, %v191
  %v285 = vpack.c.bf16 %v194, %v193
  %v286 = vpack.c.bf16 %v196, %v195
  %v287 = vpack.c.bf16 %v198, %v197
  %v288 = vpack.c.bf16 %v200, %v199
  %v289 = vpack.c.bf16 %v202, %v201
  %v290 = vpack.c.bf16 %v204, %v203
  %v291 = vpack.c.bf16 %v206, %v205
  %v292 = vpack.c.bf16 %v208, %v207
  %v293 = vpack.c.bf16 %v210, %v209
  %v294 = vpack.c.bf16 %v212, %v211
  %v295 = vpack.c.bf16 %v214, %v213
  %v296 = vpack.c.bf16 %v216, %v215
  %v297 = vpack.c.bf16 %v218, %v217
  %v298 = vpack.c.bf16 %v220, %v219
  %v299 = vpack.c.bf16 %v222, %v221
  %v300 = vpack.c.bf16 %v224, %v223
  %v301 = vpack.c.bf16 %v226, %v225
  %v302 = vpack.c.bf16 %v228, %v227
  %v303 = vpack.c.bf16 %v230, %v229
  %v304 = vpack.c.bf16 %v232, %v231
  %v305 = vpack.c.bf16 %v234, %v233
  %v306 = vpack.c.bf16 %v236, %v235
  %v307 = vpack.c.bf16 %v238, %v237
  %v308 = vpack.c.bf16 %v240, %v239
  %v309 = vpack.c.bf16 %v242, %v241
  %v310 = vpack.c.bf16 %v244, %v243
  %v311 = vpack.c.bf16 %v246, %v245
  %v312 = vpack.c.bf16 %v248, %v247
  %v313 = vpack.c.bf16 %v250, %v249
  %v314 = vpack.c.bf16 %v252, %v251
  %v315 = vpack.c.bf16 %v254, %v253
  %v316 = vpack.c.bf16 %v256, %v255
  %v317 = vpack.c.bf16 %v258, %v257
  %v318 = vpack.c.bf16 %v260, %v259
  %v319 = vpack.c.bf16 %v262, %v261
  %v320 = vpack.c.bf16 %v264, %v263
  %v321 = vpack.c.bf16 %v266, %v265
  %v322 = vpack.c.bf16 %v268, %v267
  %v323 = vpack.c.bf16 %v270, %v269
  %v324 = vpack.c.bf16 %v272, %v271
  %v325 = vpack.c.bf16 %v274, %v273
  %v326 = vpack.c.bf16 %v276, %v275
  %v327 = vpack.c.bf16 %v278, %v277
  %v328 = vpack.c.bf16 %v280, %v279
  %s329 = scalar_lea.vmem %s1, 16
  %v330 = vld [vmem:[%s329] sm:$0xf]
  %v331 = vld [vmem:[%s329 + $0x4] sm:$0xf]
  %v332 = vld [vmem:[%s329 + $0x8] sm:$0xf]
  %v333 = vld [vmem:[%s329 + $0xc] sm:$0x3]
  %v338 = vunpack.c.l.b16 %v330
  %v339 = vunpack.c.l.b16 %v331
  %v340 = vunpack.c.l.b16 %v332
  %v341 = vunpack.c.l.b16 %v333
  %v342 = vpack.c.b16 %v339, %v338
  %v343 = vpack.c.b16 %v341, %v340
  %vm345 = vcmask 228352
  %v347 = vsel %vm345, %v281, 0
  %v350 = vsel %vm345, %v282, 0
  %v353 = vsel %vm345, %v283, 0
  %v356 = vsel %vm345, %v284, 0
  %v359 = vsel %vm345, %v285, 0
  %v362 = vsel %vm345, %v286, 0
  %v365 = vsel %vm345, %v287, 0
  %v368 = vsel %vm345, %v288, 0
  %v371 = vsel %vm345, %v289, 0
  %v374 = vsel %vm345, %v290, 0
  %v377 = vsel %vm345, %v291, 0
  %v380 = vsel %vm345, %v292, 0
  %v383 = vsel %vm345, %v293, 0
  %v386 = vsel %vm345, %v294, 0
  %v389 = vsel %vm345, %v295, 0
  %v392 = vsel %vm345, %v296, 0
  %v395 = vsel %vm345, %v297, 0
  %v398 = vsel %vm345, %v298, 0
  %v401 = vsel %vm345, %v299, 0
  %v404 = vsel %vm345, %v300, 0
  %v407 = vsel %vm345, %v301, 0
  %v410 = vsel %vm345, %v302, 0
  %v413 = vsel %vm345, %v303, 0
  %v416 = vsel %vm345, %v304, 0
  %v419 = vsel %vm345, %v305, 0
  %v422 = vsel %vm345, %v306, 0
  %v425 = vsel %vm345, %v307, 0
  %v428 = vsel %vm345, %v308, 0
  %v431 = vsel %vm345, %v309, 0
  %v434 = vsel %vm345, %v310, 0
  %v437 = vsel %vm345, %v311, 0
  %v440 = vsel %vm345, %v312, 0
  %v443 = vsel %vm345, %v313, 0
  %v446 = vsel %vm345, %v314, 0
  %v449 = vsel %vm345, %v315, 0
  %v452 = vsel %vm345, %v316, 0
  %v455 = vsel %vm345, %v317, 0
  %v458 = vsel %vm345, %v318, 0
  %v461 = vsel %vm345, %v319, 0
  %v464 = vsel %vm345, %v320, 0
  %v467 = vsel %vm345, %v321, 0
  %v470 = vsel %vm345, %v322, 0
  %v473 = vsel %vm345, %v323, 0
  %v476 = vsel %vm345, %v324, 0
  %v479 = vsel %vm345, %v325, 0
  %v482 = vsel %vm345, %v326, 0
  %v485 = vsel %vm345, %v327, 0
  %v488 = vsel %vm345, %v328, 0
  %vm490 = vcmask 1045504
  %v492 = vsel %vm490, %v343, 0
  %494 = vmatprep.subr.bf16.mxu0 0
  %495 = vmatpush1.bf16.msra.mxu0 %v342
  %496 = vmatprep.subr.bf16.mxu0 0
  %497 = vmatpush1.bf16.msra.mxu0 %v492
  %498 = vmatprep.subr.bf16.mxu0 0
  %499 = vmatpush1.bf16.msra.mxu0 0
  %500 = vmatprep.subr.bf16.mxu0 0
  %501 = vmatpush1.bf16.msra.mxu0 0
  %502 = vmatprep.subr.bf16.mxu0 0
  %503 = vmatpush1.bf16.msra.mxu0 0
  %504 = vmatprep.subr.bf16.mxu0 0
  %505 = vmatpush1.bf16.msra.mxu0 0
  %506 = vmatprep.subr.bf16.mxu0 0
  %507 = vmatpush1.bf16.msra.mxu0 0
  %508 = vmatprep.subr.bf16.mxu0 0
  %509 = vmatpush1.bf16.msra.mxu0 0
  %510 = vmatprep.subr.bf16.mxu0 0
  %511 = vmatpush1.bf16.msra.mxu0 0
  %512 = vmatprep.subr.bf16.mxu0 0
  %513 = vmatpush1.bf16.msra.mxu0 0
  %514 = vmatprep.subr.bf16.mxu0 0
  %515 = vmatpush1.bf16.msra.mxu0 0
  %516 = vmatprep.subr.bf16.mxu0 0
  %517 = vmatpush1.bf16.msra.mxu0 0
  %518 = vmatprep.subr.bf16.mxu0 0
  %519 = vmatpush1.bf16.msra.mxu0 0
  %520 = vmatprep.subr.bf16.mxu0 0
  %521 = vmatpush1.bf16.msra.mxu0 0
  %522 = vmatprep.subr.bf16.mxu0 0
  %523 = vmatpush1.bf16.msra.mxu0 0
  %524 = vmatprep.subr.bf16.mxu0 0
  %525 = vmatpush1.bf16.msra.mxu0 0
  %526 = vmatprep.mubr.bf16.mxu0 0
  %527 = vmatmul.mubr.bf16.gmra.mrb[0].mxu0 %v347
  %v528 = vpop.f32.mrb[0].mxu0
  %v529 = vadd.f32 0.0, %v528
  %v530 = vpop.f32.mrb[0].mxu0
  %v531 = vpop.f32.mrb[0].mxu0
  %v532 = vadd.f32 0.0, %v531
  %v533 = vpop.f32.mrb[0].mxu0
  %534 = vmatprep.mubr.bf16.mxu0 0
  %535 = vmatmul.mubr.bf16.gmra.mrb[0].mxu0 %v350
  %v536 = vpop.f32.mrb[0].mxu0
  %v537 = vadd.f32 0.0, %v536
  %v538 = vpop.f32.mrb[0].mxu0
  %v539 = vpop.f32.mrb[0].mxu0
  %v540 = vadd.f32 0.0, %v539
  %v541 = vpop.f32.mrb[0].mxu0
  %542 = vmatprep.mubr.bf16.mxu0 0
  %543 = vmatmul.mubr.bf16.gmra.mrb[0].mxu0 %v353
  %v544 = vpop.f32.mrb[0].mxu0
  %v545 = vadd.f32 0.0, %v544
  %v546 = vpop.f32.mrb[0].mxu0
  %v547 = vpop.f32.mrb[0].mxu0
  %v548 = vadd.f32 0.0, %v547
  %v549 = vpop.f32.mrb[0].mxu0
  %550 = vmatprep.mubr.bf16.mxu0 0
  %551 = vmatmul.mubr.bf16.gmra.mrb[0].mxu0 %v356
  %v552 = vpop.f32.mrb[0].mxu0
  %v553 = vadd.f32 0.0, %v552
  %v554 = vpop.f32.mrb[0].mxu0
  %v555 = vpop.f32.mrb[0].mxu0
  %v556 = vadd.f32 0.0, %v555
  %v557 = vpop.f32.mrb[0].mxu0
  %558 = vmatprep.mubr.bf16.mxu0 0
  %559 = vmatmul.mubr.bf16.gmra.mrb[0].mxu0 %v359
  %v560 = vpop.f32.mrb[0].mxu0
  %v561 = vadd.f32 0.0, %v560
  %v562 = vpop.f32.mrb[0].mxu0
  %v563 = vpop.f32.mrb[0].mxu0
  %v564 = vadd.f32 0.0, %v563
  %v565 = vpop.f32.mrb[0].mxu0
  %566 = vmatprep.mubr.bf16.mxu0 0
  %567 = vmatmul.mubr.bf16.gmra.mrb[0].mxu0 %v362
  %v568 = vpop.f32.mrb[0].mxu0
  %v569 = vadd.f32 0.0, %v568
  %v570 = vpop.f32.mrb[0].mxu0
  %v571 = vpop.f32.mrb[0].mxu0
  %v572 = vadd.f32 0.0, %v571
  %v573 = vpop.f32.mrb[0].mxu0
  %574 = vmatprep.mubr.bf16.mxu0 0
  %575 = vmatmul.mubr.bf16.gmra.mrb[0].mxu0 %v365
  %v576 = vpop.f32.mrb[0].mxu0
  %v577 = vadd.f32 0.0, %v576
  %v578 = vpop.f32.mrb[0].mxu0
  %v579 = vpop.f32.mrb[0].mxu0
  %v580 = vadd.f32 0.0, %v579
  %v581 = vpop.f32.mrb[0].mxu0
  %582 = vmatprep.mubr.bf16.mxu0 0
  %583 = vmatmul.mubr.bf16.gmra.mrb[0].mxu0 %v368
  %v584 = vpop.f32.mrb[0].mxu0
  %v585 = vadd.f32 0.0, %v584
  %v586 = vpop.f32.mrb[0].mxu0
  %v587 = vpop.f32.mrb[0].mxu0
  %v588 = vadd.f32 0.0, %v587
  %v589 = vpop.f32.mrb[0].mxu0
  %590 = vmatprep.mubr.bf16.mxu0 0
  %591 = vmatmul.mubr.bf16.gmra.mrb[0].mxu0 %v371
  %v592 = vpop.f32.mrb[0].mxu0
  %v593 = vadd.f32 0.0, %v592
  %v594 = vpop.f32.mrb[0].mxu0
  %v595 = vpop.f32.mrb[0].mxu0
  %v596 = vadd.f32 0.0, %v595
  %v597 = vpop.f32.mrb[0].mxu0
  %598 = vmatprep.mubr.bf16.mxu0 0
  %599 = vmatmul.mubr.bf16.gmra.mrb[0].mxu0 %v374
  %v600 = vpop.f32.mrb[0].mxu0
  %v601 = vadd.f32 0.0, %v600
  %v602 = vpop.f32.mrb[0].mxu0
  %v603 = vpop.f32.mrb[0].mxu0
  %v604 = vadd.f32 0.0, %v603
  %v605 = vpop.f32.mrb[0].mxu0
  %606 = vmatprep.mubr.bf16.mxu0 0
  %607 = vmatmul.mubr.bf16.gmra.mrb[0].mxu0 %v377
  %v608 = vpop.f32.mrb[0].mxu0
  %v609 = vadd.f32 0.0, %v608
  %v610 = vpop.f32.mrb[0].mxu0
  %v611 = vpop.f32.mrb[0].mxu0
  %v612 = vadd.f32 0.0, %v611
  %v613 = vpop.f32.mrb[0].mxu0
  %614 = vmatprep.mubr.bf16.mxu0 0
  %615 = vmatmul.mubr.bf16.gmra.mrb[0].mxu0 %v380
  %v616 = vpop.f32.mrb[0].mxu0
  %v617 = vadd.f32 0.0, %v616
  %v618 = vpop.f32.mrb[0].mxu0
  %v619 = vpop.f32.mrb[0].mxu0
  %v620 = vadd.f32 0.0, %v619
  %v621 = vpop.f32.mrb[0].mxu0
  %622 = vmatprep.mubr.bf16.mxu0 0
  %623 = vmatmul.mubr.bf16.gmra.mrb[0].mxu0 %v383
  %v624 = vpop.f32.mrb[0].mxu0
  %v625 = vadd.f32 0.0, %v624
  %v626 = vpop.f32.mrb[0].mxu0
  %v627 = vpop.f32.mrb[0].mxu0
  %v628 = vadd.f32 0.0, %v627
  %v629 = vpop.f32.mrb[0].mxu0
  %630 = vmatprep.mubr.bf16.mxu0 0
  %631 = vmatmul.mubr.bf16.gmra.mrb[0].mxu0 %v386
  %v632 = vpop.f32.mrb[0].mxu0
  %v633 = vadd.f32 0.0, %v632
  %v634 = vpop.f32.mrb[0].mxu0
  %v635 = vpop.f32.mrb[0].mxu0
  %v636 = vadd.f32 0.0, %v635
  %v637 = vpop.f32.mrb[0].mxu0
  %638 = vmatprep.mubr.bf16.mxu0 0
  %639 = vmatmul.mubr.bf16.gmra.mrb[0].mxu0 %v389
  %v640 = vpop.f32.mrb[0].mxu0
  %v641 = vadd.f32 0.0, %v640
  %v642 = vpop.f32.mrb[0].mxu0
  %v643 = vpop.f32.mrb[0].mxu0
  %v644 = vadd.f32 0.0, %v643
  %v645 = vpop.f32.mrb[0].mxu0
  %646 = vmatprep.mubr.bf16.mxu0 0
  %647 = vmatmul.mubr.bf16.gmra.mrb[0].mxu0 %v392
  %v648 = vpop.f32.mrb[0].mxu0
  %v649 = vadd.f32 0.0, %v648
  %v650 = vpop.f32.mrb[0].mxu0
  %v651 = vpop.f32.mrb[0].mxu0
  %v652 = vadd.f32 0.0, %v651
  %v653 = vpop.f32.mrb[0].mxu0
  %654 = vmatprep.mubr.bf16.mxu0 0
  %655 = vmatmul.mubr.bf16.gmra.mrb[0].mxu0 %v395
  %v656 = vpop.f32.mrb[0].mxu0
  %v657 = vadd.f32 0.0, %v656
  %v658 = vpop.f32.mrb[0].mxu0
  %v659 = vpop.f32.mrb[0].mxu0
  %v660 = vadd.f32 0.0, %v659
  %v661 = vpop.f32.mrb[0].mxu0
  %662 = vmatprep.mubr.bf16.mxu0 0
  %663 = vmatmul.mubr.bf16.gmra.mrb[0].mxu0 %v398
  %v664 = vpop.f32.mrb[0].mxu0
  %v665 = vadd.f32 0.0, %v664
  %v666 = vpop.f32.mrb[0].mxu0
  %v667 = vpop.f32.mrb[0].mxu0
  %v668 = vadd.f32 0.0, %v667
  %v669 = vpop.f32.mrb[0].mxu0
  %670 = vmatprep.mubr.bf16.mxu0 0
  %671 = vmatmul.mubr.bf16.gmra.mrb[0].mxu0 %v401
  %v672 = vpop.f32.mrb[0].mxu0
  %v673 = vadd.f32 0.0, %v672
  %v674 = vpop.f32.mrb[0].mxu0
  %v675 = vpop.f32.mrb[0].mxu0
  %v676 = vadd.f32 0.0, %v675
  %v677 = vpop.f32.mrb[0].mxu0
  %678 = vmatprep.mubr.bf16.mxu0 0
  %679 = vmatmul.mubr.bf16.gmra.mrb[0].mxu0 %v404
  %v680 = vpop.f32.mrb[0].mxu0
  %v681 = vadd.f32 0.0, %v680
  %v682 = vpop.f32.mrb[0].mxu0
  %v683 = vpop.f32.mrb[0].mxu0
  %v684 = vadd.f32 0.0, %v683
  %v685 = vpop.f32.mrb[0].mxu0
  %686 = vmatprep.mubr.bf16.mxu0 0
  %687 = vmatmul.mubr.bf16.gmra.mrb[0].mxu0 %v407
  %v688 = vpop.f32.mrb[0].mxu0
  %v689 = vadd.f32 0.0, %v688
  %v690 = vpop.f32.mrb[0].mxu0
  %v691 = vpop.f32.mrb[0].mxu0
  %v692 = vadd.f32 0.0, %v691
  %v693 = vpop.f32.mrb[0].mxu0
  %694 = vmatprep.mubr.bf16.mxu0 0
  %695 = vmatmul.mubr.bf16.gmra.mrb[0].mxu0 %v410
  %v696 = vpop.f32.mrb[0].mxu0
  %v697 = vadd.f32 0.0, %v696
  %v698 = vpop.f32.mrb[0].mxu0
  %v699 = vpop.f32.mrb[0].mxu0
  %v700 = vadd.f32 0.0, %v699
  %v701 = vpop.f32.mrb[0].mxu0
  %702 = vmatprep.mubr.bf16.mxu0 0
  %703 = vmatmul.mubr.bf16.gmra.mrb[0].mxu0 %v413
  %v704 = vpop.f32.mrb[0].mxu0
  %v705 = vadd.f32 0.0, %v704
  %v706 = vpop.f32.mrb[0].mxu0
  %v707 = vpop.f32.mrb[0].mxu0
  %v708 = vadd.f32 0.0, %v707
  %v709 = vpop.f32.mrb[0].mxu0
  %710 = vmatprep.mubr.bf16.mxu0 0
  %711 = vmatmul.mubr.bf16.gmra.mrb[0].mxu0 %v416
  %v712 = vpop.f32.mrb[0].mxu0
  %v713 = vadd.f32 0.0, %v712
  %v714 = vpop.f32.mrb[0].mxu0
  %v715 = vpop.f32.mrb[0].mxu0
  %v716 = vadd.f32 0.0, %v715
  %v717 = vpop.f32.mrb[0].mxu0
  %718 = vmatprep.mubr.bf16.mxu0 0
  %719 = vmatmul.mubr.bf16.gmra.mrb[0].mxu0 %v419
  %v720 = vpop.f32.mrb[0].mxu0
  %v721 = vadd.f32 0.0, %v720
  %v722 = vpop.f32.mrb[0].mxu0
  %v723 = vpop.f32.mrb[0].mxu0
  %v724 = vadd.f32 0.0, %v723
  %v725 = vpop.f32.mrb[0].mxu0
  %726 = vmatprep.mubr.bf16.mxu0 0
  %727 = vmatmul.mubr.bf16.gmra.mrb[0].mxu0 %v422
  %v728 = vpop.f32.mrb[0].mxu0
  %v729 = vadd.f32 0.0, %v728
  %v730 = vpop.f32.mrb[0].mxu0
  %v731 = vpop.f32.mrb[0].mxu0
  %v732 = vadd.f32 0.0, %v731
  %v733 = vpop.f32.mrb[0].mxu0
  %734 = vmatprep.mubr.bf16.mxu0 0
  %735 = vmatmul.mubr.bf16.gmra.mrb[0].mxu0 %v425
  %v736 = vpop.f32.mrb[0].mxu0
  %v737 = vadd.f32 0.0, %v736
  %v738 = vpop.f32.mrb[0].mxu0
  %v739 = vpop.f32.mrb[0].mxu0
  %v740 = vadd.f32 0.0, %v739
  %v741 = vpop.f32.mrb[0].mxu0
  %742 = vmatprep.mubr.bf16.mxu0 0
  %743 = vmatmul.mubr.bf16.gmra.mrb[0].mxu0 %v428
  %v744 = vpop.f32.mrb[0].mxu0
  %v745 = vadd.f32 0.0, %v744
  %v746 = vpop.f32.mrb[0].mxu0
  %v747 = vpop.f32.mrb[0].mxu0
  %v748 = vadd.f32 0.0, %v747
  %v749 = vpop.f32.mrb[0].mxu0
  %750 = vmatprep.mubr.bf16.mxu0 0
  %751 = vmatmul.mubr.bf16.gmra.mrb[0].mxu0 %v431
  %v752 = vpop.f32.mrb[0].mxu0
  %v753 = vadd.f32 0.0, %v752
  %v754 = vpop.f32.mrb[0].mxu0
  %v755 = vpop.f32.mrb[0].mxu0
  %v756 = vadd.f32 0.0, %v755
  %v757 = vpop.f32.mrb[0].mxu0
  %758 = vmatprep.mubr.bf16.mxu0 0
  %759 = vmatmul.mubr.bf16.gmra.mrb[0].mxu0 %v434
  %v760 = vpop.f32.mrb[0].mxu0
  %v761 = vadd.f32 0.0, %v760
  %v762 = vpop.f32.mrb[0].mxu0
  %v763 = vpop.f32.mrb[0].mxu0
  %v764 = vadd.f32 0.0, %v763
  %v765 = vpop.f32.mrb[0].mxu0
  %766 = vmatprep.mubr.bf16.mxu0 0
  %767 = vmatmul.mubr.bf16.gmra.mrb[0].mxu0 %v437
  %v768 = vpop.f32.mrb[0].mxu0
  %v769 = vadd.f32 0.0, %v768
  %v770 = vpop.f32.mrb[0].mxu0
  %v771 = vpop.f32.mrb[0].mxu0
  %v772 = vadd.f32 0.0, %v771
  %v773 = vpop.f32.mrb[0].mxu0
  %774 = vmatprep.mubr.bf16.mxu0 0
  %775 = vmatmul.mubr.bf16.gmra.mrb[0].mxu0 %v440
  %v776 = vpop.f32.mrb[0].mxu0
  %v777 = vadd.f32 0.0, %v776
  %v778 = vpop.f32.mrb[0].mxu0
  %v779 = vpop.f32.mrb[0].mxu0
  %v780 = vadd.f32 0.0, %v779
  %v781 = vpop.f32.mrb[0].mxu0
  %782 = vmatprep.mubr.bf16.mxu0 0
  %783 = vmatmul.mubr.bf16.gmra.mrb[0].mxu0 %v443
  %v784 = vpop.f32.mrb[0].mxu0
  %v785 = vadd.f32 0.0, %v784
  %v786 = vpop.f32.mrb[0].mxu0
  %v787 = vpop.f32.mrb[0].mxu0
  %v788 = vadd.f32 0.0, %v787
  %v789 = vpop.f32.mrb[0].mxu0
  %790 = vmatprep.mubr.bf16.mxu0 0
  %791 = vmatmul.mubr.bf16.gmra.mrb[0].mxu0 %v446
  %v792 = vpop.f32.mrb[0].mxu0
  %v793 = vadd.f32 0.0, %v792
  %v794 = vpop.f32.mrb[0].mxu0
  %v795 = vpop.f32.mrb[0].mxu0
  %v796 = vadd.f32 0.0, %v795
  %v797 = vpop.f32.mrb[0].mxu0
  %798 = vmatprep.mubr.bf16.mxu0 0
  %799 = vmatmul.mubr.bf16.gmra.mrb[0].mxu0 %v449
  %v800 = vpop.f32.mrb[0].mxu0
  %v801 = vadd.f32 0.0, %v800
  %v802 = vpop.f32.mrb[0].mxu0
  %v803 = vpop.f32.mrb[0].mxu0
  %v804 = vadd.f32 0.0, %v803
  %v805 = vpop.f32.mrb[0].mxu0
  %806 = vmatprep.mubr.bf16.mxu0 0
  %807 = vmatmul.mubr.bf16.gmra.mrb[0].mxu0 %v452
  %v808 = vpop.f32.mrb[0].mxu0
  %v809 = vadd.f32 0.0, %v808
  %v810 = vpop.f32.mrb[0].mxu0
  %v811 = vpop.f32.mrb[0].mxu0
  %v812 = vadd.f32 0.0, %v811
  %v813 = vpop.f32.mrb[0].mxu0
  %814 = vmatprep.mubr.bf16.mxu0 0
  %815 = vmatmul.mubr.bf16.gmra.mrb[0].mxu0 %v455
  %v816 = vpop.f32.mrb[0].mxu0
  %v817 = vadd.f32 0.0, %v816
  %v818 = vpop.f32.mrb[0].mxu0
  %v819 = vpop.f32.mrb[0].mxu0
  %v820 = vadd.f32 0.0, %v819
  %v821 = vpop.f32.mrb[0].mxu0
  %822 = vmatprep.mubr.bf16.mxu0 0
  %823 = vmatmul.mubr.bf16.gmra.mrb[0].mxu0 %v458
  %v824 = vpop.f32.mrb[0].mxu0
  %v825 = vadd.f32 0.0, %v824
  %v826 = vpop.f32.mrb[0].mxu0
  %v827 = vpop.f32.mrb[0].mxu0
  %v828 = vadd.f32 0.0, %v827
  %v829 = vpop.f32.mrb[0].mxu0
  %830 = vmatprep.mubr.bf16.mxu0 0
  %831 = vmatmul.mubr.bf16.gmra.mrb[0].mxu0 %v461
  %v832 = vpop.f32.mrb[0].mxu0
  %v833 = vadd.f32 0.0, %v832
  %v834 = vpop.f32.mrb[0].mxu0
  %v835 = vpop.f32.mrb[0].mxu0
  %v836 = vadd.f32 0.0, %v835
  %v837 = vpop.f32.mrb[0].mxu0
  %838 = vmatprep.mubr.bf16.mxu0 0
  %839 = vmatmul.mubr.bf16.gmra.mrb[0].mxu0 %v464
  %v840 = vpop.f32.mrb[0].mxu0
  %v841 = vadd.f32 0.0, %v840
  %v842 = vpop.f32.mrb[0].mxu0
  %v843 = vpop.f32.mrb[0].mxu0
  %v844 = vadd.f32 0.0, %v843
  %v845 = vpop.f32.mrb[0].mxu0
  %846 = vmatprep.mubr.bf16.mxu0 0
  %847 = vmatmul.mubr.bf16.gmra.mrb[0].mxu0 %v467
  %v848 = vpop.f32.mrb[0].mxu0
  %v849 = vadd.f32 0.0, %v848
  %v850 = vpop.f32.mrb[0].mxu0
  %v851 = vpop.f32.mrb[0].mxu0
  %v852 = vadd.f32 0.0, %v851
  %v853 = vpop.f32.mrb[0].mxu0
  %854 = vmatprep.mubr.bf16.mxu0 0
  %855 = vmatmul.mubr.bf16.gmra.mrb[0].mxu0 %v470
  %v856 = vpop.f32.mrb[0].mxu0
  %v857 = vadd.f32 0.0, %v856
  %v858 = vpop.f32.mrb[0].mxu0
  %v859 = vpop.f32.mrb[0].mxu0
  %v860 = vadd.f32 0.0, %v859
  %v861 = vpop.f32.mrb[0].mxu0
  %862 = vmatprep.mubr.bf16.mxu0 0
  %863 = vmatmul.mubr.bf16.gmra.mrb[0].mxu0 %v473
  %v864 = vpop.f32.mrb[0].mxu0
  %v865 = vadd.f32 0.0, %v864
  %v866 = vpop.f32.mrb[0].mxu0
  %v867 = vpop.f32.mrb[0].mxu0
  %v868 = vadd.f32 0.0, %v867
  %v869 = vpop.f32.mrb[0].mxu0
  %870 = vmatprep.mubr.bf16.mxu0 0
  %871 = vmatmul.mubr.bf16.gmra.mrb[0].mxu0 %v476
  %v872 = vpop.f32.mrb[0].mxu0
  %v873 = vadd.f32 0.0, %v872
  %v874 = vpop.f32.mrb[0].mxu0
  %v875 = vpop.f32.mrb[0].mxu0
  %v876 = vadd.f32 0.0, %v875
  %v877 = vpop.f32.mrb[0].mxu0
  %878 = vmatprep.mubr.bf16.mxu0 0
  %879 = vmatmul.mubr.bf16.gmra.mrb[0].mxu0 %v479
  %v880 = vpop.f32.mrb[0].mxu0
  %v881 = vadd.f32 0.0, %v880
  %v882 = vpop.f32.mrb[0].mxu0
  %v883 = vpop.f32.mrb[0].mxu0
  %v884 = vadd.f32 0.0, %v883
  %v885 = vpop.f32.mrb[0].mxu0
  %886 = vmatprep.mubr.bf16.mxu0 0
  %887 = vmatmul.mubr.bf16.gmra.mrb[0].mxu0 %v482
  %v888 = vpop.f32.mrb[0].mxu0
  %v889 = vadd.f32 0.0, %v888
  %v890 = vpop.f32.mrb[0].mxu0
  %v891 = vpop.f32.mrb[0].mxu0
  %v892 = vadd.f32 0.0, %v891
  %v893 = vpop.f32.mrb[0].mxu0
  %894 = vmatprep.mubr.bf16.mxu0 0
  %895 = vmatmul.mubr.bf16.gmra.mrb[0].mxu0 %v485
  %v896 = vpop.f32.mrb[0].mxu0
  %v897 = vadd.f32 0.0, %v896
  %v898 = vpop.f32.mrb[0].mxu0
  %v899 = vpop.f32.mrb[0].mxu0
  %v900 = vadd.f32 0.0, %v899
  %v901 = vpop.f32.mrb[0].mxu0
  %902 = vmatprep.mubr.bf16.mxu0 0
  %903 = vmatmul.mubr.bf16.gmra.mrb[0].mxu0 %v488
  %v904 = vpop.f32.mrb[0].mxu0
  %v905 = vadd.f32 0.0, %v904
  %v906 = vpop.f32.mrb[0].mxu0
  %v907 = vpop.f32.mrb[0].mxu0
  %v908 = vadd.f32 0.0, %v907
  %v909 = vpop.f32.mrb[0].mxu0
  %910 = vdwg.mxu0
  %v915 = vunpack.c.l.b16 %v177
  %v916 = vunpack.c.l.b16 %v178
  %v917 = vunpack.c.l.b16 %v179
  %v918 = vunpack.c.l.b16 %v180
  %v919 = vpack.c.b16 %v916, %v915
  %v920 = vpack.c.b16 %v918, %v917
  %v923 = vsel %vm345, %v129, 0
  %v926 = vsel %vm345, %v130, 0
  %v929 = vsel %vm345, %v131, 0
  %v932 = vsel %vm345, %v132, 0
  %v935 = vsel %vm345, %v133, 0
  %v938 = vsel %vm345, %v134, 0
  %v941 = vsel %vm345, %v135, 0
  %v944 = vsel %vm345, %v136, 0
  %v947 = vsel %vm345, %v137, 0
  %v950 = vsel %vm345, %v138, 0
  %v953 = vsel %vm345, %v139, 0
  %v956 = vsel %vm345, %v140, 0
  %v959 = vsel %vm345, %v141, 0
  %v962 = vsel %vm345, %v142, 0
  %v965 = vsel %vm345, %v143, 0
  %v968 = vsel %vm345, %v144, 0
  %v971 = vsel %vm345, %v145, 0
  %v974 = vsel %vm345, %v146, 0
  %v977 = vsel %vm345, %v147, 0
  %v980 = vsel %vm345, %v148, 0
  %v983 = vsel %vm345, %v149, 0
  %v986 = vsel %vm345, %v150, 0
  %v989 = vsel %vm345, %v151, 0
  %v992 = vsel %vm345, %v152, 0
  %v995 = vsel %vm345, %v153, 0
  %v998 = vsel %vm345, %v154, 0
  %v1001 = vsel %vm345, %v155, 0
  %v1004 = vsel %vm345, %v156, 0
  %v1007 = vsel %vm345, %v157, 0
  %v1010 = vsel %vm345, %v158, 0
  %v1013 = vsel %vm345, %v159, 0
  %v1016 = vsel %vm345, %v160, 0
  %v1019 = vsel %vm345, %v161, 0
  %v1022 = vsel %vm345, %v162, 0
  %v1025 = vsel %vm345, %v163, 0
  %v1028 = vsel %vm345, %v164, 0
  %v1031 = vsel %vm345, %v165, 0
  %v1034 = vsel %vm345, %v166, 0
  %v1037 = vsel %vm345, %v167, 0
  %v1040 = vsel %vm345, %v168, 0
  %v1043 = vsel %vm345, %v169, 0
  %v1046 = vsel %vm345, %v170, 0
  %v1049 = vsel %vm345, %v171, 0
  %v1052 = vsel %vm345, %v172, 0
  %v1055 = vsel %vm345, %v173, 0
  %v1058 = vsel %vm345, %v174, 0
  %v1061 = vsel %vm345, %v175, 0
  %v1064 = vsel %vm345, %v176, 0
  %v1067 = vsel %vm490, %v920, 0
  %1069 = vmatprep.subr.bf16.mxu0 0
  %1070 = vmatpush1.bf16.msra.mxu0 %v919
  %1071 = vmatprep.subr.bf16.mxu0 0
  %1072 = vmatpush1.bf16.msra.mxu0 %v1067
  %1073 = vmatprep.subr.bf16.mxu0 0
  %1074 = vmatpush1.bf16.msra.mxu0 0
  %1075 = vmatprep.subr.bf16.mxu0 0
  %1076 = vmatpush1.bf16.msra.mxu0 0
  %1077 = vmatprep.subr.bf16.mxu0 0
  %1078 = vmatpush1.bf16.msra.mxu0 0
  %1079 = vmatprep.subr.bf16.mxu0 0
  %1080 = vmatpush1.bf16.msra.mxu0 0
  %1081 = vmatprep.subr.bf16.mxu0 0
  %1082 = vmatpush1.bf16.msra.mxu0 0
  %1083 = vmatprep.subr.bf16.mxu0 0
  %1084 = vmatpush1.bf16.msra.mxu0 0
  %1085 = vmatprep.subr.bf16.mxu0 0
  %1086 = vmatpush1.bf16.msra.mxu0 0
  %1087 = vmatprep.subr.bf16.mxu0 0
  %1088 = vmatpush1.bf16.msra.mxu0 0
  %1089 = vmatprep.subr.bf16.mxu0 0
  %1090 = vmatpush1.bf16.msra.mxu0 0
  %1091 = vmatprep.subr.bf16.mxu0 0
  %1092 = vmatpush1.bf16.msra.mxu0 0
  %1093 = vmatprep.subr.bf16.mxu0 0
  %1094 = vmatpush1.bf16.msra.mxu0 0
  %1095 = vmatprep.subr.bf16.mxu0 0
  %1096 = vmatpush1.bf16.msra.mxu0 0
  %1097 = vmatprep.subr.bf16.mxu0 0
  %1098 = vmatpush1.bf16.msra.mxu0 0
  %1099 = vmatprep.subr.bf16.mxu0 0
  %1100 = vmatpush1.bf16.msra.mxu0 0
  %1101 = vmatprep.mubr.bf16.mxu0 0
  %1102 = vmatmul.mubr.bf16.gmra.mrb[0].mxu0 %v923
  %v1103 = vpop.f32.mrb[0].mxu0
  %v1104 = vadd.f32 %v529, %v1103
  %v1105 = vpop.f32.mrb[0].mxu0
  %v1106 = vpop.f32.mrb[0].mxu0
  %v1107 = vadd.f32 %v532, %v1106
  %v1108 = vpop.f32.mrb[0].mxu0
  %1109 = vmatprep.mubr.bf16.mxu0 0
  %1110 = vmatmul.mubr.bf16.gmra.mrb[0].mxu0 %v926
  %v1111 = vpop.f32.mrb[0].mxu0
  %v1112 = vadd.f32 %v537, %v1111
  %v1113 = vpop.f32.mrb[0].mxu0
  %v1114 = vpop.f32.mrb[0].mxu0
  %v1115 = vadd.f32 %v540, %v1114
  %v1116 = vpop.f32.mrb[0].mxu0
  %1117 = vmatprep.mubr.bf16.mxu0 0
  %1118 = vmatmul.mubr.bf16.gmra.mrb[0].mxu0 %v929
  %v1119 = vpop.f32.mrb[0].mxu0
  %v1120 = vadd.f32 %v545, %v1119
  %v1121 = vpop.f32.mrb[0].mxu0
  %v1122 = vpop.f32.mrb[0].mxu0
  %v1123 = vadd.f32 %v548, %v1122
  %v1124 = vpop.f32.mrb[0].mxu0
  %1125 = vmatprep.mubr.bf16.mxu0 0
  %1126 = vmatmul.mubr.bf16.gmra.mrb[0].mxu0 %v932
  %v1127 = vpop.f32.mrb[0].mxu0
  %v1128 = vadd.f32 %v553, %v1127
  %v1129 = vpop.f32.mrb[0].mxu0
  %v1130 = vpop.f32.mrb[0].mxu0
  %v1131 = vadd.f32 %v556, %v1130
  %v1132 = vpop.f32.mrb[0].mxu0
  %1133 = vmatprep.mubr.bf16.mxu0 0
  %1134 = vmatmul.mubr.bf16.gmra.mrb[0].mxu0 %v935
  %v1135 = vpop.f32.mrb[0].mxu0
  %v1136 = vadd.f32 %v561, %v1135
  %v1137 = vpop.f32.mrb[0].mxu0
  %v1138 = vpop.f32.mrb[0].mxu0
  %v1139 = vadd.f32 %v564, %v1138
  %v1140 = vpop.f32.mrb[0].mxu0
  %1141 = vmatprep.mubr.bf16.mxu0 0
  %1142 = vmatmul.mubr.bf16.gmra.mrb[0].mxu0 %v938
  %v1143 = vpop.f32.mrb[0].mxu0
  %v1144 = vadd.f32 %v569, %v1143
  %v1145 = vpop.f32.mrb[0].mxu0
  %v1146 = vpop.f32.mrb[0].mxu0
  %v1147 = vadd.f32 %v572, %v1146
  %v1148 = vpop.f32.mrb[0].mxu0
  %1149 = vmatprep.mubr.bf16.mxu0 0
  %1150 = vmatmul.mubr.bf16.gmra.mrb[0].mxu0 %v941
  %v1151 = vpop.f32.mrb[0].mxu0
  %v1152 = vadd.f32 %v577, %v1151
  %v1153 = vpop.f32.mrb[0].mxu0
  %v1154 = vpop.f32.mrb[0].mxu0
  %v1155 = vadd.f32 %v580, %v1154
  %v1156 = vpop.f32.mrb[0].mxu0
  %1157 = vmatprep.mubr.bf16.mxu0 0
  %1158 = vmatmul.mubr.bf16.gmra.mrb[0].mxu0 %v944
  %v1159 = vpop.f32.mrb[0].mxu0
  %v1160 = vadd.f32 %v585, %v1159
  %v1161 = vpop.f32.mrb[0].mxu0
  %v1162 = vpop.f32.mrb[0].mxu0
  %v1163 = vadd.f32 %v588, %v1162
  %v1164 = vpop.f32.mrb[0].mxu0
  %1165 = vmatprep.mubr.bf16.mxu0 0
  %1166 = vmatmul.mubr.bf16.gmra.mrb[0].mxu0 %v947
  %v1167 = vpop.f32.mrb[0].mxu0
  %v1168 = vadd.f32 %v593, %v1167
  %v1169 = vpop.f32.mrb[0].mxu0
  %v1170 = vpop.f32.mrb[0].mxu0
  %v1171 = vadd.f32 %v596, %v1170
  %v1172 = vpop.f32.mrb[0].mxu0
  %1173 = vmatprep.mubr.bf16.mxu0 0
  %1174 = vmatmul.mubr.bf16.gmra.mrb[0].mxu0 %v950
  %v1175 = vpop.f32.mrb[0].mxu0
  %v1176 = vadd.f32 %v601, %v1175
  %v1177 = vpop.f32.mrb[0].mxu0
  %v1178 = vpop.f32.mrb[0].mxu0
  %v1179 = vadd.f32 %v604, %v1178
  %v1180 = vpop.f32.mrb[0].mxu0
  %1181 = vmatprep.mubr.bf16.mxu0 0
  %1182 = vmatmul.mubr.bf16.gmra.mrb[0].mxu0 %v953
  %v1183 = vpop.f32.mrb[0].mxu0
  %v1184 = vadd.f32 %v609, %v1183
  %v1185 = vpop.f32.mrb[0].mxu0
  %v1186 = vpop.f32.mrb[0].mxu0
  %v1187 = vadd.f32 %v612, %v1186
  %v1188 = vpop.f32.mrb[0].mxu0
  %1189 = vmatprep.mubr.bf16.mxu0 0
  %1190 = vmatmul.mubr.bf16.gmra.mrb[0].mxu0 %v956
  %v1191 = vpop.f32.mrb[0].mxu0
  %v1192 = vadd.f32 %v617, %v1191
  %v1193 = vpop.f32.mrb[0].mxu0
  %v1194 = vpop.f32.mrb[0].mxu0
  %v1195 = vadd.f32 %v620, %v1194
  %v1196 = vpop.f32.mrb[0].mxu0
  %1197 = vmatprep.mubr.bf16.mxu0 0
  %1198 = vmatmul.mubr.bf16.gmra.mrb[0].mxu0 %v959
  %v1199 = vpop.f32.mrb[0].mxu0
  %v1200 = vadd.f32 %v625, %v1199
  %v1201 = vpop.f32.mrb[0].mxu0
  %v1202 = vpop.f32.mrb[0].mxu0
  %v1203 = vadd.f32 %v628, %v1202
  %v1204 = vpop.f32.mrb[0].mxu0
  %1205 = vmatprep.mubr.bf16.mxu0 0
  %1206 = vmatmul.mubr.bf16.gmra.mrb[0].mxu0 %v962
  %v1207 = vpop.f32.mrb[0].mxu0
  %v1208 = vadd.f32 %v633, %v1207
  %v1209 = vpop.f32.mrb[0].mxu0
  %v1210 = vpop.f32.mrb[0].mxu0
  %v1211 = vadd.f32 %v636, %v1210
  %v1212 = vpop.f32.mrb[0].mxu0
  %1213 = vmatprep.mubr.bf16.mxu0 0
  %1214 = vmatmul.mubr.bf16.gmra.mrb[0].mxu0 %v965
  %v1215 = vpop.f32.mrb[0].mxu0
  %v1216 = vadd.f32 %v641, %v1215
  %v1217 = vpop.f32.mrb[0].mxu0
  %v1218 = vpop.f32.mrb[0].mxu0
  %v1219 = vadd.f32 %v644, %v1218
  %v1220 = vpop.f32.mrb[0].mxu0
  %1221 = vmatprep.mubr.bf16.mxu0 0
  %1222 = vmatmul.mubr.bf16.gmra.mrb[0].mxu0 %v968
  %v1223 = vpop.f32.mrb[0].mxu0
  %v1224 = vadd.f32 %v649, %v1223
  %v1225 = vpop.f32.mrb[0].mxu0
  %v1226 = vpop.f32.mrb[0].mxu0
  %v1227 = vadd.f32 %v652, %v1226
  %v1228 = vpop.f32.mrb[0].mxu0
  %1229 = vmatprep.mubr.bf16.mxu0 0
  %1230 = vmatmul.mubr.bf16.gmra.mrb[0].mxu0 %v971
  %v1231 = vpop.f32.mrb[0].mxu0
  %v1232 = vadd.f32 %v657, %v1231
  %v1233 = vpop.f32.mrb[0].mxu0
  %v1234 = vpop.f32.mrb[0].mxu0
  %v1235 = vadd.f32 %v660, %v1234
  %v1236 = vpop.f32.mrb[0].mxu0
  %1237 = vmatprep.mubr.bf16.mxu0 0
  %1238 = vmatmul.mubr.bf16.gmra.mrb[0].mxu0 %v974
  %v1239 = vpop.f32.mrb[0].mxu0
  %v1240 = vadd.f32 %v665, %v1239
  %v1241 = vpop.f32.mrb[0].mxu0
  %v1242 = vpop.f32.mrb[0].mxu0
  %v1243 = vadd.f32 %v668, %v1242
  %v1244 = vpop.f32.mrb[0].mxu0
  %1245 = vmatprep.mubr.bf16.mxu0 0
  %1246 = vmatmul.mubr.bf16.gmra.mrb[0].mxu0 %v977
  %v1247 = vpop.f32.mrb[0].mxu0
  %v1248 = vadd.f32 %v673, %v1247
  %v1249 = vpop.f32.mrb[0].mxu0
  %v1250 = vpop.f32.mrb[0].mxu0
  %v1251 = vadd.f32 %v676, %v1250
  %v1252 = vpop.f32.mrb[0].mxu0
  %1253 = vmatprep.mubr.bf16.mxu0 0
  %1254 = vmatmul.mubr.bf16.gmra.mrb[0].mxu0 %v980
  %v1255 = vpop.f32.mrb[0].mxu0
  %v1256 = vadd.f32 %v681, %v1255
  %v1257 = vpop.f32.mrb[0].mxu0
  %v1258 = vpop.f32.mrb[0].mxu0
  %v1259 = vadd.f32 %v684, %v1258
  %v1260 = vpop.f32.mrb[0].mxu0
  %1261 = vmatprep.mubr.bf16.mxu0 0
  %1262 = vmatmul.mubr.bf16.gmra.mrb[0].mxu0 %v983
  %v1263 = vpop.f32.mrb[0].mxu0
  %v1264 = vadd.f32 %v689, %v1263
  %v1265 = vpop.f32.mrb[0].mxu0
  %v1266 = vpop.f32.mrb[0].mxu0
  %v1267 = vadd.f32 %v692, %v1266
  %v1268 = vpop.f32.mrb[0].mxu0
  %1269 = vmatprep.mubr.bf16.mxu0 0
  %1270 = vmatmul.mubr.bf16.gmra.mrb[0].mxu0 %v986
  %v1271 = vpop.f32.mrb[0].mxu0
  %v1272 = vadd.f32 %v697, %v1271
  %v1273 = vpop.f32.mrb[0].mxu0
  %v1274 = vpop.f32.mrb[0].mxu0
  %v1275 = vadd.f32 %v700, %v1274
  %v1276 = vpop.f32.mrb[0].mxu0
  %1277 = vmatprep.mubr.bf16.mxu0 0
  %1278 = vmatmul.mubr.bf16.gmra.mrb[0].mxu0 %v989
  %v1279 = vpop.f32.mrb[0].mxu0
  %v1280 = vadd.f32 %v705, %v1279
  %v1281 = vpop.f32.mrb[0].mxu0
  %v1282 = vpop.f32.mrb[0].mxu0
  %v1283 = vadd.f32 %v708, %v1282
  %v1284 = vpop.f32.mrb[0].mxu0
  %1285 = vmatprep.mubr.bf16.mxu0 0
  %1286 = vmatmul.mubr.bf16.gmra.mrb[0].mxu0 %v992
  %v1287 = vpop.f32.mrb[0].mxu0
  %v1288 = vadd.f32 %v713, %v1287
  %v1289 = vpop.f32.mrb[0].mxu0
  %v1290 = vpop.f32.mrb[0].mxu0
  %v1291 = vadd.f32 %v716, %v1290
  %v1292 = vpop.f32.mrb[0].mxu0
  %1293 = vmatprep.mubr.bf16.mxu0 0
  %1294 = vmatmul.mubr.bf16.gmra.mrb[0].mxu0 %v995
  %v1295 = vpop.f32.mrb[0].mxu0
  %v1296 = vadd.f32 %v721, %v1295
  %v1297 = vpop.f32.mrb[0].mxu0
  %v1298 = vpop.f32.mrb[0].mxu0
  %v1299 = vadd.f32 %v724, %v1298
  %v1300 = vpop.f32.mrb[0].mxu0
  %1301 = vmatprep.mubr.bf16.mxu0 0
  %1302 = vmatmul.mubr.bf16.gmra.mrb[0].mxu0 %v998
  %v1303 = vpop.f32.mrb[0].mxu0
  %v1304 = vadd.f32 %v729, %v1303
  %v1305 = vpop.f32.mrb[0].mxu0
  %v1306 = vpop.f32.mrb[0].mxu0
  %v1307 = vadd.f32 %v732, %v1306
  %v1308 = vpop.f32.mrb[0].mxu0
  %1309 = vmatprep.mubr.bf16.mxu0 0
  %1310 = vmatmul.mubr.bf16.gmra.mrb[0].mxu0 %v1001
  %v1311 = vpop.f32.mrb[0].mxu0
  %v1312 = vadd.f32 %v737, %v1311
  %v1313 = vpop.f32.mrb[0].mxu0
  %v1314 = vpop.f32.mrb[0].mxu0
  %v1315 = vadd.f32 %v740, %v1314
  %v1316 = vpop.f32.mrb[0].mxu0
  %1317 = vmatprep.mubr.bf16.mxu0 0
  %1318 = vmatmul.mubr.bf16.gmra.mrb[0].mxu0 %v1004
  %v1319 = vpop.f32.mrb[0].mxu0
  %v1320 = vadd.f32 %v745, %v1319
  %v1321 = vpop.f32.mrb[0].mxu0
  %v1322 = vpop.f32.mrb[0].mxu0
  %v1323 = vadd.f32 %v748, %v1322
  %v1324 = vpop.f32.mrb[0].mxu0
  %1325 = vmatprep.mubr.bf16.mxu0 0
  %1326 = vmatmul.mubr.bf16.gmra.mrb[0].mxu0 %v1007
  %v1327 = vpop.f32.mrb[0].mxu0
  %v1328 = vadd.f32 %v753, %v1327
  %v1329 = vpop.f32.mrb[0].mxu0
  %v1330 = vpop.f32.mrb[0].mxu0
  %v1331 = vadd.f32 %v756, %v1330
  %v1332 = vpop.f32.mrb[0].mxu0
  %1333 = vmatprep.mubr.bf16.mxu0 0
  %1334 = vmatmul.mubr.bf16.gmra.mrb[0].mxu0 %v1010
  %v1335 = vpop.f32.mrb[0].mxu0
  %v1336 = vadd.f32 %v761, %v1335
  %v1337 = vpop.f32.mrb[0].mxu0
  %v1338 = vpop.f32.mrb[0].mxu0
  %v1339 = vadd.f32 %v764, %v1338
  %v1340 = vpop.f32.mrb[0].mxu0
  %1341 = vmatprep.mubr.bf16.mxu0 0
  %1342 = vmatmul.mubr.bf16.gmra.mrb[0].mxu0 %v1013
  %v1343 = vpop.f32.mrb[0].mxu0
  %v1344 = vadd.f32 %v769, %v1343
  %v1345 = vpop.f32.mrb[0].mxu0
  %v1346 = vpop.f32.mrb[0].mxu0
  %v1347 = vadd.f32 %v772, %v1346
  %v1348 = vpop.f32.mrb[0].mxu0
  %1349 = vmatprep.mubr.bf16.mxu0 0
  %1350 = vmatmul.mubr.bf16.gmra.mrb[0].mxu0 %v1016
  %v1351 = vpop.f32.mrb[0].mxu0
  %v1352 = vadd.f32 %v777, %v1351
  %v1353 = vpop.f32.mrb[0].mxu0
  %v1354 = vpop.f32.mrb[0].mxu0
  %v1355 = vadd.f32 %v780, %v1354
  %v1356 = vpop.f32.mrb[0].mxu0
  %1357 = vmatprep.mubr.bf16.mxu0 0
  %1358 = vmatmul.mubr.bf16.gmra.mrb[0].mxu0 %v1019
  %v1359 = vpop.f32.mrb[0].mxu0
  %v1360 = vadd.f32 %v785, %v1359
  %v1361 = vpop.f32.mrb[0].mxu0
  %v1362 = vpop.f32.mrb[0].mxu0
  %v1363 = vadd.f32 %v788, %v1362
  %v1364 = vpop.f32.mrb[0].mxu0
  %1365 = vmatprep.mubr.bf16.mxu0 0
  %1366 = vmatmul.mubr.bf16.gmra.mrb[0].mxu0 %v1022
  %v1367 = vpop.f32.mrb[0].mxu0
  %v1368 = vadd.f32 %v793, %v1367
  %v1369 = vpop.f32.mrb[0].mxu0
  %v1370 = vpop.f32.mrb[0].mxu0
  %v1371 = vadd.f32 %v796, %v1370
  %v1372 = vpop.f32.mrb[0].mxu0
  %1373 = vmatprep.mubr.bf16.mxu0 0
  %1374 = vmatmul.mubr.bf16.gmra.mrb[0].mxu0 %v1025
  %v1375 = vpop.f32.mrb[0].mxu0
  %v1376 = vadd.f32 %v801, %v1375
  %v1377 = vpop.f32.mrb[0].mxu0
  %v1378 = vpop.f32.mrb[0].mxu0
  %v1379 = vadd.f32 %v804, %v1378
  %v1380 = vpop.f32.mrb[0].mxu0
  %1381 = vmatprep.mubr.bf16.mxu0 0
  %1382 = vmatmul.mubr.bf16.gmra.mrb[0].mxu0 %v1028
  %v1383 = vpop.f32.mrb[0].mxu0
  %v1384 = vadd.f32 %v809, %v1383
  %v1385 = vpop.f32.mrb[0].mxu0
  %v1386 = vpop.f32.mrb[0].mxu0
  %v1387 = vadd.f32 %v812, %v1386
  %v1388 = vpop.f32.mrb[0].mxu0
  %1389 = vmatprep.mubr.bf16.mxu0 0
  %1390 = vmatmul.mubr.bf16.gmra.mrb[0].mxu0 %v1031
  %v1391 = vpop.f32.mrb[0].mxu0
  %v1392 = vadd.f32 %v817, %v1391
  %v1393 = vpop.f32.mrb[0].mxu0
  %v1394 = vpop.f32.mrb[0].mxu0
  %v1395 = vadd.f32 %v820, %v1394
  %v1396 = vpop.f32.mrb[0].mxu0
  %1397 = vmatprep.mubr.bf16.mxu0 0
  %1398 = vmatmul.mubr.bf16.gmra.mrb[0].mxu0 %v1034
  %v1399 = vpop.f32.mrb[0].mxu0
  %v1400 = vadd.f32 %v825, %v1399
  %v1401 = vpop.f32.mrb[0].mxu0
  %v1402 = vpop.f32.mrb[0].mxu0
  %v1403 = vadd.f32 %v828, %v1402
  %v1404 = vpop.f32.mrb[0].mxu0
  %1405 = vmatprep.mubr.bf16.mxu0 0
  %1406 = vmatmul.mubr.bf16.gmra.mrb[0].mxu0 %v1037
  %v1407 = vpop.f32.mrb[0].mxu0
  %v1408 = vadd.f32 %v833, %v1407
  %v1409 = vpop.f32.mrb[0].mxu0
  %v1410 = vpop.f32.mrb[0].mxu0
  %v1411 = vadd.f32 %v836, %v1410
  %v1412 = vpop.f32.mrb[0].mxu0
  %1413 = vmatprep.mubr.bf16.mxu0 0
  %1414 = vmatmul.mubr.bf16.gmra.mrb[0].mxu0 %v1040
  %v1415 = vpop.f32.mrb[0].mxu0
  %v1416 = vadd.f32 %v841, %v1415
  %v1417 = vpop.f32.mrb[0].mxu0
  %v1418 = vpop.f32.mrb[0].mxu0
  %v1419 = vadd.f32 %v844, %v1418
  %v1420 = vpop.f32.mrb[0].mxu0
  %1421 = vmatprep.mubr.bf16.mxu0 0
  %1422 = vmatmul.mubr.bf16.gmra.mrb[0].mxu0 %v1043
  %v1423 = vpop.f32.mrb[0].mxu0
  %v1424 = vadd.f32 %v849, %v1423
  %v1425 = vpop.f32.mrb[0].mxu0
  %v1426 = vpop.f32.mrb[0].mxu0
  %v1427 = vadd.f32 %v852, %v1426
  %v1428 = vpop.f32.mrb[0].mxu0
  %1429 = vmatprep.mubr.bf16.mxu0 0
  %1430 = vmatmul.mubr.bf16.gmra.mrb[0].mxu0 %v1046
  %v1431 = vpop.f32.mrb[0].mxu0
  %v1432 = vadd.f32 %v857, %v1431
  %v1433 = vpop.f32.mrb[0].mxu0
  %v1434 = vpop.f32.mrb[0].mxu0
  %v1435 = vadd.f32 %v860, %v1434
  %v1436 = vpop.f32.mrb[0].mxu0
  %1437 = vmatprep.mubr.bf16.mxu0 0
  %1438 = vmatmul.mubr.bf16.gmra.mrb[0].mxu0 %v1049
  %v1439 = vpop.f32.mrb[0].mxu0
  %v1440 = vadd.f32 %v865, %v1439
  %v1441 = vpop.f32.mrb[0].mxu0
  %v1442 = vpop.f32.mrb[0].mxu0
  %v1443 = vadd.f32 %v868, %v1442
  %v1444 = vpop.f32.mrb[0].mxu0
  %1445 = vmatprep.mubr.bf16.mxu0 0
  %1446 = vmatmul.mubr.bf16.gmra.mrb[0].mxu0 %v1052
  %v1447 = vpop.f32.mrb[0].mxu0
  %v1448 = vadd.f32 %v873, %v1447
  %v1449 = vpop.f32.mrb[0].mxu0
  %v1450 = vpop.f32.mrb[0].mxu0
  %v1451 = vadd.f32 %v876, %v1450
  %v1452 = vpop.f32.mrb[0].mxu0
  %1453 = vmatprep.mubr.bf16.mxu0 0
  %1454 = vmatmul.mubr.bf16.gmra.mrb[0].mxu0 %v1055
  %v1455 = vpop.f32.mrb[0].mxu0
  %v1456 = vadd.f32 %v881, %v1455
  %v1457 = vpop.f32.mrb[0].mxu0
  %v1458 = vpop.f32.mrb[0].mxu0
  %v1459 = vadd.f32 %v884, %v1458
  %v1460 = vpop.f32.mrb[0].mxu0
  %1461 = vmatprep.mubr.bf16.mxu0 0
  %1462 = vmatmul.mubr.bf16.gmra.mrb[0].mxu0 %v1058
  %v1463 = vpop.f32.mrb[0].mxu0
  %v1464 = vadd.f32 %v889, %v1463
  %v1465 = vpop.f32.mrb[0].mxu0
  %v1466 = vpop.f32.mrb[0].mxu0
  %v1467 = vadd.f32 %v892, %v1466
  %v1468 = vpop.f32.mrb[0].mxu0
  %1469 = vmatprep.mubr.bf16.mxu0 0
  %1470 = vmatmul.mubr.bf16.gmra.mrb[0].mxu0 %v1061
  %v1471 = vpop.f32.mrb[0].mxu0
  %v1472 = vadd.f32 %v897, %v1471
  %v1473 = vpop.f32.mrb[0].mxu0
  %v1474 = vpop.f32.mrb[0].mxu0
  %v1475 = vadd.f32 %v900, %v1474
  %v1476 = vpop.f32.mrb[0].mxu0
  %1477 = vmatprep.mubr.bf16.mxu0 0
  %1478 = vmatmul.mubr.bf16.gmra.mrb[0].mxu0 %v1064
  %v1479 = vpop.f32.mrb[0].mxu0
  %v1480 = vadd.f32 %v905, %v1479
  %v1481 = vpop.f32.mrb[0].mxu0
  %v1482 = vpop.f32.mrb[0].mxu0
  %v1483 = vadd.f32 %v908, %v1482
  %v1484 = vpop.f32.mrb[0].mxu0
  %1485 = vdwg.mxu0
  %s1486 = scalar_lea.vmem %s2, 16
  %v1487 = vld [vmem:[%s1486] sm:$0xf]
  %v1488 = vld [vmem:[%s1486 + $0x4] sm:$0xf]
  %v1489 = vld [vmem:[%s1486 + $0x8] sm:$0xf]
  %v1490 = vld [vmem:[%s1486 + $0xc] sm:$0x3]
  %v1495 = vunpack.c.l.b16 %v1487
  %v1496 = vunpack.c.l.b16 %v1488
  %v1497 = vunpack.c.l.b16 %v1489
  %v1498 = vunpack.c.l.b16 %v1490
  %v1499 = vpack.c.b16 %v1496, %v1495
  %v1500 = vpack.c.b16 %v1498, %v1497
  %v1503 = vsel %vm490, %v1500, 0
  %1505 = vmatprep.subr.bf16.mxu0 0
  %1506 = vmatpush1.bf16.msra.mxu0 %v1499
  %1507 = vmatprep.subr.bf16.mxu0 0
  %1508 = vmatpush1.bf16.msra.mxu0 %v1503
  %1509 = vmatprep.subr.bf16.mxu0 0
  %1510 = vmatpush1.bf16.msra.mxu0 0
  %1511 = vmatprep.subr.bf16.mxu0 0
  %1512 = vmatpush1.bf16.msra.mxu0 0
  %1513 = vmatprep.subr.bf16.mxu0 0
  %1514 = vmatpush1.bf16.msra.mxu0 0
  %1515 = vmatprep.subr.bf16.mxu0 0
  %1516 = vmatpush1.bf16.msra.mxu0 0
  %1517 = vmatprep.subr.bf16.mxu0 0
  %1518 = vmatpush1.bf16.msra.mxu0 0
  %1519 = vmatprep.subr.bf16.mxu0 0
  %1520 = vmatpush1.bf16.msra.mxu0 0
  %1521 = vmatprep.subr.bf16.mxu0 0
  %1522 = vmatpush1.bf16.msra.mxu0 0
  %1523 = vmatprep.subr.bf16.mxu0 0
  %1524 = vmatpush1.bf16.msra.mxu0 0
  %1525 = vmatprep.subr.bf16.mxu0 0
  %1526 = vmatpush1.bf16.msra.mxu0 0
  %1527 = vmatprep.subr.bf16.mxu0 0
  %1528 = vmatpush1.bf16.msra.mxu0 0
  %1529 = vmatprep.subr.bf16.mxu0 0
  %1530 = vmatpush1.bf16.msra.mxu0 0
  %1531 = vmatprep.subr.bf16.mxu0 0
  %1532 = vmatpush1.bf16.msra.mxu0 0
  %1533 = vmatprep.subr.bf16.mxu0 0
  %1534 = vmatpush1.bf16.msra.mxu0 0
  %1535 = vmatprep.subr.bf16.mxu0 0
  %1536 = vmatpush1.bf16.msra.mxu0 0
  %1537 = vmatprep.mubr.bf16.mxu0 0
  %1538 = vmatmul.mubr.bf16.gmra.mrb[0].mxu0 %v347
  %v1539 = vpop.f32.mrb[0].mxu0
  %v1540 = vadd.f32 0.0, %v1539
  %v1541 = vpop.f32.mrb[0].mxu0
  %v1542 = vpop.f32.mrb[0].mxu0
  %v1543 = vadd.f32 0.0, %v1542
  %v1544 = vpop.f32.mrb[0].mxu0
  %1545 = vmatprep.mubr.bf16.mxu0 0
  %1546 = vmatmul.mubr.bf16.gmra.mrb[0].mxu0 %v350
  %v1547 = vpop.f32.mrb[0].mxu0
  %v1548 = vadd.f32 0.0, %v1547
  %v1549 = vpop.f32.mrb[0].mxu0
  %v1550 = vpop.f32.mrb[0].mxu0
  %v1551 = vadd.f32 0.0, %v1550
  %v1552 = vpop.f32.mrb[0].mxu0
  %1553 = vmatprep.mubr.bf16.mxu0 0
  %1554 = vmatmul.mubr.bf16.gmra.mrb[0].mxu0 %v353
  %v1555 = vpop.f32.mrb[0].mxu0
  %v1556 = vadd.f32 0.0, %v1555
  %v1557 = vpop.f32.mrb[0].mxu0
  %v1558 = vpop.f32.mrb[0].mxu0
  %v1559 = vadd.f32 0.0, %v1558
  %v1560 = vpop.f32.mrb[0].mxu0
  %1561 = vmatprep.mubr.bf16.mxu0 0
  %1562 = vmatmul.mubr.bf16.gmra.mrb[0].mxu0 %v356
  %v1563 = vpop.f32.mrb[0].mxu0
  %v1564 = vadd.f32 0.0, %v1563
  %v1565 = vpop.f32.mrb[0].mxu0
  %v1566 = vpop.f32.mrb[0].mxu0
  %v1567 = vadd.f32 0.0, %v1566
  %v1568 = vpop.f32.mrb[0].mxu0
  %1569 = vmatprep.mubr.bf16.mxu0 0
  %1570 = vmatmul.mubr.bf16.gmra.mrb[0].mxu0 %v359
  %v1571 = vpop.f32.mrb[0].mxu0
  %v1572 = vadd.f32 0.0, %v1571
  %v1573 = vpop.f32.mrb[0].mxu0
  %v1574 = vpop.f32.mrb[0].mxu0
  %v1575 = vadd.f32 0.0, %v1574
  %v1576 = vpop.f32.mrb[0].mxu0
  %1577 = vmatprep.mubr.bf16.mxu0 0
  %1578 = vmatmul.mubr.bf16.gmra.mrb[0].mxu0 %v362
  %v1579 = vpop.f32.mrb[0].mxu0
  %v1580 = vadd.f32 0.0, %v1579
  %v1581 = vpop.f32.mrb[0].mxu0
  %v1582 = vpop.f32.mrb[0].mxu0
  %v1583 = vadd.f32 0.0, %v1582
  %v1584 = vpop.f32.mrb[0].mxu0
  %1585 = vmatprep.mubr.bf16.mxu0 0
  %1586 = vmatmul.mubr.bf16.gmra.mrb[0].mxu0 %v365
  %v1587 = vpop.f32.mrb[0].mxu0
  %v1588 = vadd.f32 0.0, %v1587
  %v1589 = vpop.f32.mrb[0].mxu0
  %v1590 = vpop.f32.mrb[0].mxu0
  %v1591 = vadd.f32 0.0, %v1590
  %v1592 = vpop.f32.mrb[0].mxu0
  %1593 = vmatprep.mubr.bf16.mxu0 0
  %1594 = vmatmul.mubr.bf16.gmra.mrb[0].mxu0 %v368
  %v1595 = vpop.f32.mrb[0].mxu0
  %v1596 = vadd.f32 0.0, %v1595
  %v1597 = vpop.f32.mrb[0].mxu0
  %v1598 = vpop.f32.mrb[0].mxu0
  %v1599 = vadd.f32 0.0, %v1598
  %v1600 = vpop.f32.mrb[0].mxu0
  %1601 = vmatprep.mubr.bf16.mxu0 0
  %1602 = vmatmul.mubr.bf16.gmra.mrb[0].mxu0 %v371
  %v1603 = vpop.f32.mrb[0].mxu0
  %v1604 = vadd.f32 0.0, %v1603
  %v1605 = vpop.f32.mrb[0].mxu0
  %v1606 = vpop.f32.mrb[0].mxu0
  %v1607 = vadd.f32 0.0, %v1606
  %v1608 = vpop.f32.mrb[0].mxu0
  %1609 = vmatprep.mubr.bf16.mxu0 0
  %1610 = vmatmul.mubr.bf16.gmra.mrb[0].mxu0 %v374
  %v1611 = vpop.f32.mrb[0].mxu0
  %v1612 = vadd.f32 0.0, %v1611
  %v1613 = vpop.f32.mrb[0].mxu0
  %v1614 = vpop.f32.mrb[0].mxu0
  %v1615 = vadd.f32 0.0, %v1614
  %v1616 = vpop.f32.mrb[0].mxu0
  %1617 = vmatprep.mubr.bf16.mxu0 0
  %1618 = vmatmul.mubr.bf16.gmra.mrb[0].mxu0 %v377
  %v1619 = vpop.f32.mrb[0].mxu0
  %v1620 = vadd.f32 0.0, %v1619
  %v1621 = vpop.f32.mrb[0].mxu0
  %v1622 = vpop.f32.mrb[0].mxu0
  %v1623 = vadd.f32 0.0, %v1622
  %v1624 = vpop.f32.mrb[0].mxu0
  %1625 = vmatprep.mubr.bf16.mxu0 0
  %1626 = vmatmul.mubr.bf16.gmra.mrb[0].mxu0 %v380
  %v1627 = vpop.f32.mrb[0].mxu0
  %v1628 = vadd.f32 0.0, %v1627
  %v1629 = vpop.f32.mrb[0].mxu0
  %v1630 = vpop.f32.mrb[0].mxu0
  %v1631 = vadd.f32 0.0, %v1630
  %v1632 = vpop.f32.mrb[0].mxu0
  %1633 = vmatprep.mubr.bf16.mxu0 0
  %1634 = vmatmul.mubr.bf16.gmra.mrb[0].mxu0 %v383
  %v1635 = vpop.f32.mrb[0].mxu0
  %v1636 = vadd.f32 0.0, %v1635
  %v1637 = vpop.f32.mrb[0].mxu0
  %v1638 = vpop.f32.mrb[0].mxu0
  %v1639 = vadd.f32 0.0, %v1638
  %v1640 = vpop.f32.mrb[0].mxu0
  %1641 = vmatprep.mubr.bf16.mxu0 0
  %1642 = vmatmul.mubr.bf16.gmra.mrb[0].mxu0 %v386
  %v1643 = vpop.f32.mrb[0].mxu0
  %v1644 = vadd.f32 0.0, %v1643
  %v1645 = vpop.f32.mrb[0].mxu0
  %v1646 = vpop.f32.mrb[0].mxu0
  %v1647 = vadd.f32 0.0, %v1646
  %v1648 = vpop.f32.mrb[0].mxu0
  %1649 = vmatprep.mubr.bf16.mxu0 0
  %1650 = vmatmul.mubr.bf16.gmra.mrb[0].mxu0 %v389
  %v1651 = vpop.f32.mrb[0].mxu0
  %v1652 = vadd.f32 0.0, %v1651
  %v1653 = vpop.f32.mrb[0].mxu0
  %v1654 = vpop.f32.mrb[0].mxu0
  %v1655 = vadd.f32 0.0, %v1654
  %v1656 = vpop.f32.mrb[0].mxu0
  %1657 = vmatprep.mubr.bf16.mxu0 0
  %1658 = vmatmul.mubr.bf16.gmra.mrb[0].mxu0 %v392
  %v1659 = vpop.f32.mrb[0].mxu0
  %v1660 = vadd.f32 0.0, %v1659
  %v1661 = vpop.f32.mrb[0].mxu0
  %v1662 = vpop.f32.mrb[0].mxu0
  %v1663 = vadd.f32 0.0, %v1662
  %v1664 = vpop.f32.mrb[0].mxu0
  %1665 = vmatprep.mubr.bf16.mxu0 0
  %1666 = vmatmul.mubr.bf16.gmra.mrb[0].mxu0 %v395
  %v1667 = vpop.f32.mrb[0].mxu0
  %v1668 = vadd.f32 0.0, %v1667
  %v1669 = vpop.f32.mrb[0].mxu0
  %v1670 = vpop.f32.mrb[0].mxu0
  %v1671 = vadd.f32 0.0, %v1670
  %v1672 = vpop.f32.mrb[0].mxu0
  %1673 = vmatprep.mubr.bf16.mxu0 0
  %1674 = vmatmul.mubr.bf16.gmra.mrb[0].mxu0 %v398
  %v1675 = vpop.f32.mrb[0].mxu0
  %v1676 = vadd.f32 0.0, %v1675
  %v1677 = vpop.f32.mrb[0].mxu0
  %v1678 = vpop.f32.mrb[0].mxu0
  %v1679 = vadd.f32 0.0, %v1678
  %v1680 = vpop.f32.mrb[0].mxu0
  %1681 = vmatprep.mubr.bf16.mxu0 0
  %1682 = vmatmul.mubr.bf16.gmra.mrb[0].mxu0 %v401
  %v1683 = vpop.f32.mrb[0].mxu0
  %v1684 = vadd.f32 0.0, %v1683
  %v1685 = vpop.f32.mrb[0].mxu0
  %v1686 = vpop.f32.mrb[0].mxu0
  %v1687 = vadd.f32 0.0, %v1686
  %v1688 = vpop.f32.mrb[0].mxu0
  %1689 = vmatprep.mubr.bf16.mxu0 0
  %1690 = vmatmul.mubr.bf16.gmra.mrb[0].mxu0 %v404
  %v1691 = vpop.f32.mrb[0].mxu0
  %v1692 = vadd.f32 0.0, %v1691
  %v1693 = vpop.f32.mrb[0].mxu0
  %v1694 = vpop.f32.mrb[0].mxu0
  %v1695 = vadd.f32 0.0, %v1694
  %v1696 = vpop.f32.mrb[0].mxu0
  %1697 = vmatprep.mubr.bf16.mxu0 0
  %1698 = vmatmul.mubr.bf16.gmra.mrb[0].mxu0 %v407
  %v1699 = vpop.f32.mrb[0].mxu0
  %v1700 = vadd.f32 0.0, %v1699
  %v1701 = vpop.f32.mrb[0].mxu0
  %v1702 = vpop.f32.mrb[0].mxu0
  %v1703 = vadd.f32 0.0, %v1702
  %v1704 = vpop.f32.mrb[0].mxu0
  %1705 = vmatprep.mubr.bf16.mxu0 0
  %1706 = vmatmul.mubr.bf16.gmra.mrb[0].mxu0 %v410
  %v1707 = vpop.f32.mrb[0].mxu0
  %v1708 = vadd.f32 0.0, %v1707
  %v1709 = vpop.f32.mrb[0].mxu0
  %v1710 = vpop.f32.mrb[0].mxu0
  %v1711 = vadd.f32 0.0, %v1710
  %v1712 = vpop.f32.mrb[0].mxu0
  %1713 = vmatprep.mubr.bf16.mxu0 0
  %1714 = vmatmul.mubr.bf16.gmra.mrb[0].mxu0 %v413
  %v1715 = vpop.f32.mrb[0].mxu0
  %v1716 = vadd.f32 0.0, %v1715
  %v1717 = vpop.f32.mrb[0].mxu0
  %v1718 = vpop.f32.mrb[0].mxu0
  %v1719 = vadd.f32 0.0, %v1718
  %v1720 = vpop.f32.mrb[0].mxu0
  %1721 = vmatprep.mubr.bf16.mxu0 0
  %1722 = vmatmul.mubr.bf16.gmra.mrb[0].mxu0 %v416
  %v1723 = vpop.f32.mrb[0].mxu0
  %v1724 = vadd.f32 0.0, %v1723
  %v1725 = vpop.f32.mrb[0].mxu0
  %v1726 = vpop.f32.mrb[0].mxu0
  %v1727 = vadd.f32 0.0, %v1726
  %v1728 = vpop.f32.mrb[0].mxu0
  %1729 = vmatprep.mubr.bf16.mxu0 0
  %1730 = vmatmul.mubr.bf16.gmra.mrb[0].mxu0 %v419
  %v1731 = vpop.f32.mrb[0].mxu0
  %v1732 = vadd.f32 0.0, %v1731
  %v1733 = vpop.f32.mrb[0].mxu0
  %v1734 = vpop.f32.mrb[0].mxu0
  %v1735 = vadd.f32 0.0, %v1734
  %v1736 = vpop.f32.mrb[0].mxu0
  %1737 = vmatprep.mubr.bf16.mxu0 0
  %1738 = vmatmul.mubr.bf16.gmra.mrb[0].mxu0 %v422
  %v1739 = vpop.f32.mrb[0].mxu0
  %v1740 = vadd.f32 0.0, %v1739
  %v1741 = vpop.f32.mrb[0].mxu0
  %v1742 = vpop.f32.mrb[0].mxu0
  %v1743 = vadd.f32 0.0, %v1742
  %v1744 = vpop.f32.mrb[0].mxu0
  %1745 = vmatprep.mubr.bf16.mxu0 0
  %1746 = vmatmul.mubr.bf16.gmra.mrb[0].mxu0 %v425
  %v1747 = vpop.f32.mrb[0].mxu0
  %v1748 = vadd.f32 0.0, %v1747
  %v1749 = vpop.f32.mrb[0].mxu0
  %v1750 = vpop.f32.mrb[0].mxu0
  %v1751 = vadd.f32 0.0, %v1750
  %v1752 = vpop.f32.mrb[0].mxu0
  %1753 = vmatprep.mubr.bf16.mxu0 0
  %1754 = vmatmul.mubr.bf16.gmra.mrb[0].mxu0 %v428
  %v1755 = vpop.f32.mrb[0].mxu0
  %v1756 = vadd.f32 0.0, %v1755
  %v1757 = vpop.f32.mrb[0].mxu0
  %v1758 = vpop.f32.mrb[0].mxu0
  %v1759 = vadd.f32 0.0, %v1758
  %v1760 = vpop.f32.mrb[0].mxu0
  %1761 = vmatprep.mubr.bf16.mxu0 0
  %1762 = vmatmul.mubr.bf16.gmra.mrb[0].mxu0 %v431
  %v1763 = vpop.f32.mrb[0].mxu0
  %v1764 = vadd.f32 0.0, %v1763
  %v1765 = vpop.f32.mrb[0].mxu0
  %v1766 = vpop.f32.mrb[0].mxu0
  %v1767 = vadd.f32 0.0, %v1766
  %v1768 = vpop.f32.mrb[0].mxu0
  %1769 = vmatprep.mubr.bf16.mxu0 0
  %1770 = vmatmul.mubr.bf16.gmra.mrb[0].mxu0 %v434
  %v1771 = vpop.f32.mrb[0].mxu0
  %v1772 = vadd.f32 0.0, %v1771
  %v1773 = vpop.f32.mrb[0].mxu0
  %v1774 = vpop.f32.mrb[0].mxu0
  %v1775 = vadd.f32 0.0, %v1774
  %v1776 = vpop.f32.mrb[0].mxu0
  %1777 = vmatprep.mubr.bf16.mxu0 0
  %1778 = vmatmul.mubr.bf16.gmra.mrb[0].mxu0 %v437
  %v1779 = vpop.f32.mrb[0].mxu0
  %v1780 = vadd.f32 0.0, %v1779
  %v1781 = vpop.f32.mrb[0].mxu0
  %v1782 = vpop.f32.mrb[0].mxu0
  %v1783 = vadd.f32 0.0, %v1782
  %v1784 = vpop.f32.mrb[0].mxu0
  %1785 = vmatprep.mubr.bf16.mxu0 0
  %1786 = vmatmul.mubr.bf16.gmra.mrb[0].mxu0 %v440
  %v1787 = vpop.f32.mrb[0].mxu0
  %v1788 = vadd.f32 0.0, %v1787
  %v1789 = vpop.f32.mrb[0].mxu0
  %v1790 = vpop.f32.mrb[0].mxu0
  %v1791 = vadd.f32 0.0, %v1790
  %v1792 = vpop.f32.mrb[0].mxu0
  %1793 = vmatprep.mubr.bf16.mxu0 0
  %1794 = vmatmul.mubr.bf16.gmra.mrb[0].mxu0 %v443
  %v1795 = vpop.f32.mrb[0].mxu0
  %v1796 = vadd.f32 0.0, %v1795
  %v1797 = vpop.f32.mrb[0].mxu0
  %v1798 = vpop.f32.mrb[0].mxu0
  %v1799 = vadd.f32 0.0, %v1798
  %v1800 = vpop.f32.mrb[0].mxu0
  %1801 = vmatprep.mubr.bf16.mxu0 0
  %1802 = vmatmul.mubr.bf16.gmra.mrb[0].mxu0 %v446
  %v1803 = vpop.f32.mrb[0].mxu0
  %v1804 = vadd.f32 0.0, %v1803
  %v1805 = vpop.f32.mrb[0].mxu0
  %v1806 = vpop.f32.mrb[0].mxu0
  %v1807 = vadd.f32 0.0, %v1806
  %v1808 = vpop.f32.mrb[0].mxu0
  %1809 = vmatprep.mubr.bf16.mxu0 0
  %1810 = vmatmul.mubr.bf16.gmra.mrb[0].mxu0 %v449
  %v1811 = vpop.f32.mrb[0].mxu0
  %v1812 = vadd.f32 0.0, %v1811
  %v1813 = vpop.f32.mrb[0].mxu0
  %v1814 = vpop.f32.mrb[0].mxu0
  %v1815 = vadd.f32 0.0, %v1814
  %v1816 = vpop.f32.mrb[0].mxu0
  %1817 = vmatprep.mubr.bf16.mxu0 0
  %1818 = vmatmul.mubr.bf16.gmra.mrb[0].mxu0 %v452
  %v1819 = vpop.f32.mrb[0].mxu0
  %v1820 = vadd.f32 0.0, %v1819
  %v1821 = vpop.f32.mrb[0].mxu0
  %v1822 = vpop.f32.mrb[0].mxu0
  %v1823 = vadd.f32 0.0, %v1822
  %v1824 = vpop.f32.mrb[0].mxu0
  %1825 = vmatprep.mubr.bf16.mxu0 0
  %1826 = vmatmul.mubr.bf16.gmra.mrb[0].mxu0 %v455
  %v1827 = vpop.f32.mrb[0].mxu0
  %v1828 = vadd.f32 0.0, %v1827
  %v1829 = vpop.f32.mrb[0].mxu0
  %v1830 = vpop.f32.mrb[0].mxu0
  %v1831 = vadd.f32 0.0, %v1830
  %v1832 = vpop.f32.mrb[0].mxu0
  %1833 = vmatprep.mubr.bf16.mxu0 0
  %1834 = vmatmul.mubr.bf16.gmra.mrb[0].mxu0 %v458
  %v1835 = vpop.f32.mrb[0].mxu0
  %v1836 = vadd.f32 0.0, %v1835
  %v1837 = vpop.f32.mrb[0].mxu0
  %v1838 = vpop.f32.mrb[0].mxu0
  %v1839 = vadd.f32 0.0, %v1838
  %v1840 = vpop.f32.mrb[0].mxu0
  %1841 = vmatprep.mubr.bf16.mxu0 0
  %1842 = vmatmul.mubr.bf16.gmra.mrb[0].mxu0 %v461
  %v1843 = vpop.f32.mrb[0].mxu0
  %v1844 = vadd.f32 0.0, %v1843
  %v1845 = vpop.f32.mrb[0].mxu0
  %v1846 = vpop.f32.mrb[0].mxu0
  %v1847 = vadd.f32 0.0, %v1846
  %v1848 = vpop.f32.mrb[0].mxu0
  %1849 = vmatprep.mubr.bf16.mxu0 0
  %1850 = vmatmul.mubr.bf16.gmra.mrb[0].mxu0 %v464
  %v1851 = vpop.f32.mrb[0].mxu0
  %v1852 = vadd.f32 0.0, %v1851
  %v1853 = vpop.f32.mrb[0].mxu0
  %v1854 = vpop.f32.mrb[0].mxu0
  %v1855 = vadd.f32 0.0, %v1854
  %v1856 = vpop.f32.mrb[0].mxu0
  %1857 = vmatprep.mubr.bf16.mxu0 0
  %1858 = vmatmul.mubr.bf16.gmra.mrb[0].mxu0 %v467
  %v1859 = vpop.f32.mrb[0].mxu0
  %v1860 = vadd.f32 0.0, %v1859
  %v1861 = vpop.f32.mrb[0].mxu0
  %v1862 = vpop.f32.mrb[0].mxu0
  %v1863 = vadd.f32 0.0, %v1862
  %v1864 = vpop.f32.mrb[0].mxu0
  %1865 = vmatprep.mubr.bf16.mxu0 0
  %1866 = vmatmul.mubr.bf16.gmra.mrb[0].mxu0 %v470
  %v1867 = vpop.f32.mrb[0].mxu0
  %v1868 = vadd.f32 0.0, %v1867
  %v1869 = vpop.f32.mrb[0].mxu0
  %v1870 = vpop.f32.mrb[0].mxu0
  %v1871 = vadd.f32 0.0, %v1870
  %v1872 = vpop.f32.mrb[0].mxu0
  %1873 = vmatprep.mubr.bf16.mxu0 0
  %1874 = vmatmul.mubr.bf16.gmra.mrb[0].mxu0 %v473
  %v1875 = vpop.f32.mrb[0].mxu0
  %v1876 = vadd.f32 0.0, %v1875
  %v1877 = vpop.f32.mrb[0].mxu0
  %v1878 = vpop.f32.mrb[0].mxu0
  %v1879 = vadd.f32 0.0, %v1878
  %v1880 = vpop.f32.mrb[0].mxu0
  %1881 = vmatprep.mubr.bf16.mxu0 0
  %1882 = vmatmul.mubr.bf16.gmra.mrb[0].mxu0 %v476
  %v1883 = vpop.f32.mrb[0].mxu0
  %v1884 = vadd.f32 0.0, %v1883
  %v1885 = vpop.f32.mrb[0].mxu0
  %v1886 = vpop.f32.mrb[0].mxu0
  %v1887 = vadd.f32 0.0, %v1886
  %v1888 = vpop.f32.mrb[0].mxu0
  %1889 = vmatprep.mubr.bf16.mxu0 0
  %1890 = vmatmul.mubr.bf16.gmra.mrb[0].mxu0 %v479
  %v1891 = vpop.f32.mrb[0].mxu0
  %v1892 = vadd.f32 0.0, %v1891
  %v1893 = vpop.f32.mrb[0].mxu0
  %v1894 = vpop.f32.mrb[0].mxu0
  %v1895 = vadd.f32 0.0, %v1894
  %v1896 = vpop.f32.mrb[0].mxu0
  %1897 = vmatprep.mubr.bf16.mxu0 0
  %1898 = vmatmul.mubr.bf16.gmra.mrb[0].mxu0 %v482
  %v1899 = vpop.f32.mrb[0].mxu0
  %v1900 = vadd.f32 0.0, %v1899
  %v1901 = vpop.f32.mrb[0].mxu0
  %v1902 = vpop.f32.mrb[0].mxu0
  %v1903 = vadd.f32 0.0, %v1902
  %v1904 = vpop.f32.mrb[0].mxu0
  %1905 = vmatprep.mubr.bf16.mxu0 0
  %1906 = vmatmul.mubr.bf16.gmra.mrb[0].mxu0 %v485
  %v1907 = vpop.f32.mrb[0].mxu0
  %v1908 = vadd.f32 0.0, %v1907
  %v1909 = vpop.f32.mrb[0].mxu0
  %v1910 = vpop.f32.mrb[0].mxu0
  %v1911 = vadd.f32 0.0, %v1910
  %v1912 = vpop.f32.mrb[0].mxu0
  %1913 = vmatprep.mubr.bf16.mxu0 0
  %1914 = vmatmul.mubr.bf16.gmra.mrb[0].mxu0 %v488
  %v1915 = vpop.f32.mrb[0].mxu0
  %v1916 = vadd.f32 0.0, %v1915
  %v1917 = vpop.f32.mrb[0].mxu0
  %v1918 = vpop.f32.mrb[0].mxu0
  %v1919 = vadd.f32 0.0, %v1918
  %v1920 = vpop.f32.mrb[0].mxu0
  %1921 = vdwg.mxu0
  %v1926 = vunpack.c.l.b16 %v181
  %v1927 = vunpack.c.l.b16 %v182
  %v1928 = vunpack.c.l.b16 %v183
  %v1929 = vunpack.c.l.b16 %v184
  %v1930 = vpack.c.b16 %v1927, %v1926
  %v1931 = vpack.c.b16 %v1929, %v1928
  %v1934 = vsel %vm490, %v1931, 0
  %1936 = vmatprep.subr.bf16.mxu0 0
  %1937 = vmatpush1.bf16.msra.mxu0 %v1930
  %1938 = vmatprep.subr.bf16.mxu0 0
  %1939 = vmatpush1.bf16.msra.mxu0 %v1934
  %1940 = vmatprep.subr.bf16.mxu0 0
  %1941 = vmatpush1.bf16.msra.mxu0 0
  %1942 = vmatprep.subr.bf16.mxu0 0
  %1943 = vmatpush1.bf16.msra.mxu0 0
  %1944 = vmatprep.subr.bf16.mxu0 0
  %1945 = vmatpush1.bf16.msra.mxu0 0
  %1946 = vmatprep.subr.bf16.mxu0 0
  %1947 = vmatpush1.bf16.msra.mxu0 0
  %1948 = vmatprep.subr.bf16.mxu0 0
  %1949 = vmatpush1.bf16.msra.mxu0 0
  %1950 = vmatprep.subr.bf16.mxu0 0
  %1951 = vmatpush1.bf16.msra.mxu0 0
  %1952 = vmatprep.subr.bf16.mxu0 0
  %1953 = vmatpush1.bf16.msra.mxu0 0
  %1954 = vmatprep.subr.bf16.mxu0 0
  %1955 = vmatpush1.bf16.msra.mxu0 0
  %1956 = vmatprep.subr.bf16.mxu0 0
  %1957 = vmatpush1.bf16.msra.mxu0 0
  %1958 = vmatprep.subr.bf16.mxu0 0
  %1959 = vmatpush1.bf16.msra.mxu0 0
  %1960 = vmatprep.subr.bf16.mxu0 0
  %1961 = vmatpush1.bf16.msra.mxu0 0
  %1962 = vmatprep.subr.bf16.mxu0 0
  %1963 = vmatpush1.bf16.msra.mxu0 0
  %1964 = vmatprep.subr.bf16.mxu0 0
  %1965 = vmatpush1.bf16.msra.mxu0 0
  %1966 = vmatprep.subr.bf16.mxu0 0
  %1967 = vmatpush1.bf16.msra.mxu0 0
  %1968 = vmatprep.mubr.bf16.mxu0 0
  %1969 = vmatmul.mubr.bf16.gmra.mrb[0].mxu0 %v923
  %v1970 = vpop.f32.mrb[0].mxu0
  %v1971 = vadd.f32 %v1540, %v1970
  %v1972 = vpop.f32.mrb[0].mxu0
  %v1973 = vpop.f32.mrb[0].mxu0
  %v1974 = vadd.f32 %v1543, %v1973
  %v1975 = vpop.f32.mrb[0].mxu0
  %1976 = vmatprep.mubr.bf16.mxu0 0
  %1977 = vmatmul.mubr.bf16.gmra.mrb[0].mxu0 %v926
  %v1978 = vpop.f32.mrb[0].mxu0
  %v1979 = vadd.f32 %v1548, %v1978
  %v1980 = vpop.f32.mrb[0].mxu0
  %v1981 = vpop.f32.mrb[0].mxu0
  %v1982 = vadd.f32 %v1551, %v1981
  %v1983 = vpop.f32.mrb[0].mxu0
  %1984 = vmatprep.mubr.bf16.mxu0 0
  %1985 = vmatmul.mubr.bf16.gmra.mrb[0].mxu0 %v929
  %v1986 = vpop.f32.mrb[0].mxu0
  %v1987 = vadd.f32 %v1556, %v1986
  %v1988 = vpop.f32.mrb[0].mxu0
  %v1989 = vpop.f32.mrb[0].mxu0
  %v1990 = vadd.f32 %v1559, %v1989
  %v1991 = vpop.f32.mrb[0].mxu0
  %1992 = vmatprep.mubr.bf16.mxu0 0
  %1993 = vmatmul.mubr.bf16.gmra.mrb[0].mxu0 %v932
  %v1994 = vpop.f32.mrb[0].mxu0
  %v1995 = vadd.f32 %v1564, %v1994
  %v1996 = vpop.f32.mrb[0].mxu0
  %v1997 = vpop.f32.mrb[0].mxu0
  %v1998 = vadd.f32 %v1567, %v1997
  %v1999 = vpop.f32.mrb[0].mxu0
  %2000 = vmatprep.mubr.bf16.mxu0 0
  %2001 = vmatmul.mubr.bf16.gmra.mrb[0].mxu0 %v935
  %v2002 = vpop.f32.mrb[0].mxu0
  %v2003 = vadd.f32 %v1572, %v2002
  %v2004 = vpop.f32.mrb[0].mxu0
  %v2005 = vpop.f32.mrb[0].mxu0
  %v2006 = vadd.f32 %v1575, %v2005
  %v2007 = vpop.f32.mrb[0].mxu0
  %2008 = vmatprep.mubr.bf16.mxu0 0
  %2009 = vmatmul.mubr.bf16.gmra.mrb[0].mxu0 %v938
  %v2010 = vpop.f32.mrb[0].mxu0
  %v2011 = vadd.f32 %v1580, %v2010
  %v2012 = vpop.f32.mrb[0].mxu0
  %v2013 = vpop.f32.mrb[0].mxu0
  %v2014 = vadd.f32 %v1583, %v2013
  %v2015 = vpop.f32.mrb[0].mxu0
  %2016 = vmatprep.mubr.bf16.mxu0 0
  %2017 = vmatmul.mubr.bf16.gmra.mrb[0].mxu0 %v941
  %v2018 = vpop.f32.mrb[0].mxu0
  %v2019 = vadd.f32 %v1588, %v2018
  %v2020 = vpop.f32.mrb[0].mxu0
  %v2021 = vpop.f32.mrb[0].mxu0
  %v2022 = vadd.f32 %v1591, %v2021
  %v2023 = vpop.f32.mrb[0].mxu0
  %2024 = vmatprep.mubr.bf16.mxu0 0
  %2025 = vmatmul.mubr.bf16.gmra.mrb[0].mxu0 %v944
  %v2026 = vpop.f32.mrb[0].mxu0
  %v2027 = vadd.f32 %v1596, %v2026
  %v2028 = vpop.f32.mrb[0].mxu0
  %v2029 = vpop.f32.mrb[0].mxu0
  %v2030 = vadd.f32 %v1599, %v2029
  %v2031 = vpop.f32.mrb[0].mxu0
  %2032 = vmatprep.mubr.bf16.mxu0 0
  %2033 = vmatmul.mubr.bf16.gmra.mrb[0].mxu0 %v947
  %v2034 = vpop.f32.mrb[0].mxu0
  %v2035 = vadd.f32 %v1604, %v2034
  %v2036 = vpop.f32.mrb[0].mxu0
  %v2037 = vpop.f32.mrb[0].mxu0
  %v2038 = vadd.f32 %v1607, %v2037
  %v2039 = vpop.f32.mrb[0].mxu0
  %2040 = vmatprep.mubr.bf16.mxu0 0
  %2041 = vmatmul.mubr.bf16.gmra.mrb[0].mxu0 %v950
  %v2042 = vpop.f32.mrb[0].mxu0
  %v2043 = vadd.f32 %v1612, %v2042
  %v2044 = vpop.f32.mrb[0].mxu0
  %v2045 = vpop.f32.mrb[0].mxu0
  %v2046 = vadd.f32 %v1615, %v2045
  %v2047 = vpop.f32.mrb[0].mxu0
  %2048 = vmatprep.mubr.bf16.mxu0 0
  %2049 = vmatmul.mubr.bf16.gmra.mrb[0].mxu0 %v953
  %v2050 = vpop.f32.mrb[0].mxu0
  %v2051 = vadd.f32 %v1620, %v2050
  %v2052 = vpop.f32.mrb[0].mxu0
  %v2053 = vpop.f32.mrb[0].mxu0
  %v2054 = vadd.f32 %v1623, %v2053
  %v2055 = vpop.f32.mrb[0].mxu0
  %2056 = vmatprep.mubr.bf16.mxu0 0
  %2057 = vmatmul.mubr.bf16.gmra.mrb[0].mxu0 %v956
  %v2058 = vpop.f32.mrb[0].mxu0
  %v2059 = vadd.f32 %v1628, %v2058
  %v2060 = vpop.f32.mrb[0].mxu0
  %v2061 = vpop.f32.mrb[0].mxu0
  %v2062 = vadd.f32 %v1631, %v2061
  %v2063 = vpop.f32.mrb[0].mxu0
  %2064 = vmatprep.mubr.bf16.mxu0 0
  %2065 = vmatmul.mubr.bf16.gmra.mrb[0].mxu0 %v959
  %v2066 = vpop.f32.mrb[0].mxu0
  %v2067 = vadd.f32 %v1636, %v2066
  %v2068 = vpop.f32.mrb[0].mxu0
  %v2069 = vpop.f32.mrb[0].mxu0
  %v2070 = vadd.f32 %v1639, %v2069
  %v2071 = vpop.f32.mrb[0].mxu0
  %2072 = vmatprep.mubr.bf16.mxu0 0
  %2073 = vmatmul.mubr.bf16.gmra.mrb[0].mxu0 %v962
  %v2074 = vpop.f32.mrb[0].mxu0
  %v2075 = vadd.f32 %v1644, %v2074
  %v2076 = vpop.f32.mrb[0].mxu0
  %v2077 = vpop.f32.mrb[0].mxu0
  %v2078 = vadd.f32 %v1647, %v2077
  %v2079 = vpop.f32.mrb[0].mxu0
  %2080 = vmatprep.mubr.bf16.mxu0 0
  %2081 = vmatmul.mubr.bf16.gmra.mrb[0].mxu0 %v965
  %v2082 = vpop.f32.mrb[0].mxu0
  %v2083 = vadd.f32 %v1652, %v2082
  %v2084 = vpop.f32.mrb[0].mxu0
  %v2085 = vpop.f32.mrb[0].mxu0
  %v2086 = vadd.f32 %v1655, %v2085
  %v2087 = vpop.f32.mrb[0].mxu0
  %2088 = vmatprep.mubr.bf16.mxu0 0
  %2089 = vmatmul.mubr.bf16.gmra.mrb[0].mxu0 %v968
  %v2090 = vpop.f32.mrb[0].mxu0
  %v2091 = vadd.f32 %v1660, %v2090
  %v2092 = vpop.f32.mrb[0].mxu0
  %v2093 = vpop.f32.mrb[0].mxu0
  %v2094 = vadd.f32 %v1663, %v2093
  %v2095 = vpop.f32.mrb[0].mxu0
  %2096 = vmatprep.mubr.bf16.mxu0 0
  %2097 = vmatmul.mubr.bf16.gmra.mrb[0].mxu0 %v971
  %v2098 = vpop.f32.mrb[0].mxu0
  %v2099 = vadd.f32 %v1668, %v2098
  %v2100 = vpop.f32.mrb[0].mxu0
  %v2101 = vpop.f32.mrb[0].mxu0
  %v2102 = vadd.f32 %v1671, %v2101
  %v2103 = vpop.f32.mrb[0].mxu0
  %2104 = vmatprep.mubr.bf16.mxu0 0
  %2105 = vmatmul.mubr.bf16.gmra.mrb[0].mxu0 %v974
  %v2106 = vpop.f32.mrb[0].mxu0
  %v2107 = vadd.f32 %v1676, %v2106
  %v2108 = vpop.f32.mrb[0].mxu0
  %v2109 = vpop.f32.mrb[0].mxu0
  %v2110 = vadd.f32 %v1679, %v2109
  %v2111 = vpop.f32.mrb[0].mxu0
  %2112 = vmatprep.mubr.bf16.mxu0 0
  %2113 = vmatmul.mubr.bf16.gmra.mrb[0].mxu0 %v977
  %v2114 = vpop.f32.mrb[0].mxu0
  %v2115 = vadd.f32 %v1684, %v2114
  %v2116 = vpop.f32.mrb[0].mxu0
  %v2117 = vpop.f32.mrb[0].mxu0
  %v2118 = vadd.f32 %v1687, %v2117
  %v2119 = vpop.f32.mrb[0].mxu0
  %2120 = vmatprep.mubr.bf16.mxu0 0
  %2121 = vmatmul.mubr.bf16.gmra.mrb[0].mxu0 %v980
  %v2122 = vpop.f32.mrb[0].mxu0
  %v2123 = vadd.f32 %v1692, %v2122
  %v2124 = vpop.f32.mrb[0].mxu0
  %v2125 = vpop.f32.mrb[0].mxu0
  %v2126 = vadd.f32 %v1695, %v2125
  %v2127 = vpop.f32.mrb[0].mxu0
  %2128 = vmatprep.mubr.bf16.mxu0 0
  %2129 = vmatmul.mubr.bf16.gmra.mrb[0].mxu0 %v983
  %v2130 = vpop.f32.mrb[0].mxu0
  %v2131 = vadd.f32 %v1700, %v2130
  %v2132 = vpop.f32.mrb[0].mxu0
  %v2133 = vpop.f32.mrb[0].mxu0
  %v2134 = vadd.f32 %v1703, %v2133
  %v2135 = vpop.f32.mrb[0].mxu0
  %2136 = vmatprep.mubr.bf16.mxu0 0
  %2137 = vmatmul.mubr.bf16.gmra.mrb[0].mxu0 %v986
  %v2138 = vpop.f32.mrb[0].mxu0
  %v2139 = vadd.f32 %v1708, %v2138
  %v2140 = vpop.f32.mrb[0].mxu0
  %v2141 = vpop.f32.mrb[0].mxu0
  %v2142 = vadd.f32 %v1711, %v2141
  %v2143 = vpop.f32.mrb[0].mxu0
  %2144 = vmatprep.mubr.bf16.mxu0 0
  %2145 = vmatmul.mubr.bf16.gmra.mrb[0].mxu0 %v989
  %v2146 = vpop.f32.mrb[0].mxu0
  %v2147 = vadd.f32 %v1716, %v2146
  %v2148 = vpop.f32.mrb[0].mxu0
  %v2149 = vpop.f32.mrb[0].mxu0
  %v2150 = vadd.f32 %v1719, %v2149
  %v2151 = vpop.f32.mrb[0].mxu0
  %2152 = vmatprep.mubr.bf16.mxu0 0
  %2153 = vmatmul.mubr.bf16.gmra.mrb[0].mxu0 %v992
  %v2154 = vpop.f32.mrb[0].mxu0
  %v2155 = vadd.f32 %v1724, %v2154
  %v2156 = vpop.f32.mrb[0].mxu0
  %v2157 = vpop.f32.mrb[0].mxu0
  %v2158 = vadd.f32 %v1727, %v2157
  %v2159 = vpop.f32.mrb[0].mxu0
  %2160 = vmatprep.mubr.bf16.mxu0 0
  %2161 = vmatmul.mubr.bf16.gmra.mrb[0].mxu0 %v995
  %v2162 = vpop.f32.mrb[0].mxu0
  %v2163 = vadd.f32 %v1732, %v2162
  %v2164 = vpop.f32.mrb[0].mxu0
  %v2165 = vpop.f32.mrb[0].mxu0
  %v2166 = vadd.f32 %v1735, %v2165
  %v2167 = vpop.f32.mrb[0].mxu0
  %2168 = vmatprep.mubr.bf16.mxu0 0
  %2169 = vmatmul.mubr.bf16.gmra.mrb[0].mxu0 %v998
  %v2170 = vpop.f32.mrb[0].mxu0
  %v2171 = vadd.f32 %v1740, %v2170
  %v2172 = vpop.f32.mrb[0].mxu0
  %v2173 = vpop.f32.mrb[0].mxu0
  %v2174 = vadd.f32 %v1743, %v2173
  %v2175 = vpop.f32.mrb[0].mxu0
  %2176 = vmatprep.mubr.bf16.mxu0 0
  %2177 = vmatmul.mubr.bf16.gmra.mrb[0].mxu0 %v1001
  %v2178 = vpop.f32.mrb[0].mxu0
  %v2179 = vadd.f32 %v1748, %v2178
  %v2180 = vpop.f32.mrb[0].mxu0
  %v2181 = vpop.f32.mrb[0].mxu0
  %v2182 = vadd.f32 %v1751, %v2181
  %v2183 = vpop.f32.mrb[0].mxu0
  %2184 = vmatprep.mubr.bf16.mxu0 0
  %2185 = vmatmul.mubr.bf16.gmra.mrb[0].mxu0 %v1004
  %v2186 = vpop.f32.mrb[0].mxu0
  %v2187 = vadd.f32 %v1756, %v2186
  %v2188 = vpop.f32.mrb[0].mxu0
  %v2189 = vpop.f32.mrb[0].mxu0
  %v2190 = vadd.f32 %v1759, %v2189
  %v2191 = vpop.f32.mrb[0].mxu0
  %2192 = vmatprep.mubr.bf16.mxu0 0
  %2193 = vmatmul.mubr.bf16.gmra.mrb[0].mxu0 %v1007
  %v2194 = vpop.f32.mrb[0].mxu0
  %v2195 = vadd.f32 %v1764, %v2194
  %v2196 = vpop.f32.mrb[0].mxu0
  %v2197 = vpop.f32.mrb[0].mxu0
  %v2198 = vadd.f32 %v1767, %v2197
  %v2199 = vpop.f32.mrb[0].mxu0
  %2200 = vmatprep.mubr.bf16.mxu0 0
  %2201 = vmatmul.mubr.bf16.gmra.mrb[0].mxu0 %v1010
  %v2202 = vpop.f32.mrb[0].mxu0
  %v2203 = vadd.f32 %v1772, %v2202
  %v2204 = vpop.f32.mrb[0].mxu0
  %v2205 = vpop.f32.mrb[0].mxu0
  %v2206 = vadd.f32 %v1775, %v2205
  %v2207 = vpop.f32.mrb[0].mxu0
  %2208 = vmatprep.mubr.bf16.mxu0 0
  %2209 = vmatmul.mubr.bf16.gmra.mrb[0].mxu0 %v1013
  %v2210 = vpop.f32.mrb[0].mxu0
  %v2211 = vadd.f32 %v1780, %v2210
  %v2212 = vpop.f32.mrb[0].mxu0
  %v2213 = vpop.f32.mrb[0].mxu0
  %v2214 = vadd.f32 %v1783, %v2213
  %v2215 = vpop.f32.mrb[0].mxu0
  %2216 = vmatprep.mubr.bf16.mxu0 0
  %2217 = vmatmul.mubr.bf16.gmra.mrb[0].mxu0 %v1016
  %v2218 = vpop.f32.mrb[0].mxu0
  %v2219 = vadd.f32 %v1788, %v2218
  %v2220 = vpop.f32.mrb[0].mxu0
  %v2221 = vpop.f32.mrb[0].mxu0
  %v2222 = vadd.f32 %v1791, %v2221
  %v2223 = vpop.f32.mrb[0].mxu0
  %2224 = vmatprep.mubr.bf16.mxu0 0
  %2225 = vmatmul.mubr.bf16.gmra.mrb[0].mxu0 %v1019
  %v2226 = vpop.f32.mrb[0].mxu0
  %v2227 = vadd.f32 %v1796, %v2226
  %v2228 = vpop.f32.mrb[0].mxu0
  %v2229 = vpop.f32.mrb[0].mxu0
  %v2230 = vadd.f32 %v1799, %v2229
  %v2231 = vpop.f32.mrb[0].mxu0
  %2232 = vmatprep.mubr.bf16.mxu0 0
  %2233 = vmatmul.mubr.bf16.gmra.mrb[0].mxu0 %v1022
  %v2234 = vpop.f32.mrb[0].mxu0
  %v2235 = vadd.f32 %v1804, %v2234
  %v2236 = vpop.f32.mrb[0].mxu0
  %v2237 = vpop.f32.mrb[0].mxu0
  %v2238 = vadd.f32 %v1807, %v2237
  %v2239 = vpop.f32.mrb[0].mxu0
  %2240 = vmatprep.mubr.bf16.mxu0 0
  %2241 = vmatmul.mubr.bf16.gmra.mrb[0].mxu0 %v1025
  %v2242 = vpop.f32.mrb[0].mxu0
  %v2243 = vadd.f32 %v1812, %v2242
  %v2244 = vpop.f32.mrb[0].mxu0
  %v2245 = vpop.f32.mrb[0].mxu0
  %v2246 = vadd.f32 %v1815, %v2245
  %v2247 = vpop.f32.mrb[0].mxu0
  %2248 = vmatprep.mubr.bf16.mxu0 0
  %2249 = vmatmul.mubr.bf16.gmra.mrb[0].mxu0 %v1028
  %v2250 = vpop.f32.mrb[0].mxu0
  %v2251 = vadd.f32 %v1820, %v2250
  %v2252 = vpop.f32.mrb[0].mxu0
  %v2253 = vpop.f32.mrb[0].mxu0
  %v2254 = vadd.f32 %v1823, %v2253
  %v2255 = vpop.f32.mrb[0].mxu0
  %2256 = vmatprep.mubr.bf16.mxu0 0
  %2257 = vmatmul.mubr.bf16.gmra.mrb[0].mxu0 %v1031
  %v2258 = vpop.f32.mrb[0].mxu0
  %v2259 = vadd.f32 %v1828, %v2258
  %v2260 = vpop.f32.mrb[0].mxu0
  %v2261 = vpop.f32.mrb[0].mxu0
  %v2262 = vadd.f32 %v1831, %v2261
  %v2263 = vpop.f32.mrb[0].mxu0
  %2264 = vmatprep.mubr.bf16.mxu0 0
  %2265 = vmatmul.mubr.bf16.gmra.mrb[0].mxu0 %v1034
  %v2266 = vpop.f32.mrb[0].mxu0
  %v2267 = vadd.f32 %v1836, %v2266
  %v2268 = vpop.f32.mrb[0].mxu0
  %v2269 = vpop.f32.mrb[0].mxu0
  %v2270 = vadd.f32 %v1839, %v2269
  %v2271 = vpop.f32.mrb[0].mxu0
  %2272 = vmatprep.mubr.bf16.mxu0 0
  %2273 = vmatmul.mubr.bf16.gmra.mrb[0].mxu0 %v1037
  %v2274 = vpop.f32.mrb[0].mxu0
  %v2275 = vadd.f32 %v1844, %v2274
  %v2276 = vpop.f32.mrb[0].mxu0
  %v2277 = vpop.f32.mrb[0].mxu0
  %v2278 = vadd.f32 %v1847, %v2277
  %v2279 = vpop.f32.mrb[0].mxu0
  %2280 = vmatprep.mubr.bf16.mxu0 0
  %2281 = vmatmul.mubr.bf16.gmra.mrb[0].mxu0 %v1040
  %v2282 = vpop.f32.mrb[0].mxu0
  %v2283 = vadd.f32 %v1852, %v2282
  %v2284 = vpop.f32.mrb[0].mxu0
  %v2285 = vpop.f32.mrb[0].mxu0
  %v2286 = vadd.f32 %v1855, %v2285
  %v2287 = vpop.f32.mrb[0].mxu0
  %2288 = vmatprep.mubr.bf16.mxu0 0
  %2289 = vmatmul.mubr.bf16.gmra.mrb[0].mxu0 %v1043
  %v2290 = vpop.f32.mrb[0].mxu0
  %v2291 = vadd.f32 %v1860, %v2290
  %v2292 = vpop.f32.mrb[0].mxu0
  %v2293 = vpop.f32.mrb[0].mxu0
  %v2294 = vadd.f32 %v1863, %v2293
  %v2295 = vpop.f32.mrb[0].mxu0
  %2296 = vmatprep.mubr.bf16.mxu0 0
  %2297 = vmatmul.mubr.bf16.gmra.mrb[0].mxu0 %v1046
  %v2298 = vpop.f32.mrb[0].mxu0
  %v2299 = vadd.f32 %v1868, %v2298
  %v2300 = vpop.f32.mrb[0].mxu0
  %v2301 = vpop.f32.mrb[0].mxu0
  %v2302 = vadd.f32 %v1871, %v2301
  %v2303 = vpop.f32.mrb[0].mxu0
  %2304 = vmatprep.mubr.bf16.mxu0 0
  %2305 = vmatmul.mubr.bf16.gmra.mrb[0].mxu0 %v1049
  %v2306 = vpop.f32.mrb[0].mxu0
  %v2307 = vadd.f32 %v1876, %v2306
  %v2308 = vpop.f32.mrb[0].mxu0
  %v2309 = vpop.f32.mrb[0].mxu0
  %v2310 = vadd.f32 %v1879, %v2309
  %v2311 = vpop.f32.mrb[0].mxu0
  %2312 = vmatprep.mubr.bf16.mxu0 0
  %2313 = vmatmul.mubr.bf16.gmra.mrb[0].mxu0 %v1052
  %v2314 = vpop.f32.mrb[0].mxu0
  %v2315 = vadd.f32 %v1884, %v2314
  %v2316 = vpop.f32.mrb[0].mxu0
  %v2317 = vpop.f32.mrb[0].mxu0
  %v2318 = vadd.f32 %v1887, %v2317
  %v2319 = vpop.f32.mrb[0].mxu0
  %2320 = vmatprep.mubr.bf16.mxu0 0
  %2321 = vmatmul.mubr.bf16.gmra.mrb[0].mxu0 %v1055
  %v2322 = vpop.f32.mrb[0].mxu0
  %v2323 = vadd.f32 %v1892, %v2322
  %v2324 = vpop.f32.mrb[0].mxu0
  %v2325 = vpop.f32.mrb[0].mxu0
  %v2326 = vadd.f32 %v1895, %v2325
  %v2327 = vpop.f32.mrb[0].mxu0
  %2328 = vmatprep.mubr.bf16.mxu0 0
  %2329 = vmatmul.mubr.bf16.gmra.mrb[0].mxu0 %v1058
  %v2330 = vpop.f32.mrb[0].mxu0
  %v2331 = vadd.f32 %v1900, %v2330
  %v2332 = vpop.f32.mrb[0].mxu0
  %v2333 = vpop.f32.mrb[0].mxu0
  %v2334 = vadd.f32 %v1903, %v2333
  %v2335 = vpop.f32.mrb[0].mxu0
  %2336 = vmatprep.mubr.bf16.mxu0 0
  %2337 = vmatmul.mubr.bf16.gmra.mrb[0].mxu0 %v1061
  %v2338 = vpop.f32.mrb[0].mxu0
  %v2339 = vadd.f32 %v1908, %v2338
  %v2340 = vpop.f32.mrb[0].mxu0
  %v2341 = vpop.f32.mrb[0].mxu0
  %v2342 = vadd.f32 %v1911, %v2341
  %v2343 = vpop.f32.mrb[0].mxu0
  %2344 = vmatprep.mubr.bf16.mxu0 0
  %2345 = vmatmul.mubr.bf16.gmra.mrb[0].mxu0 %v1064
  %v2346 = vpop.f32.mrb[0].mxu0
  %v2347 = vadd.f32 %v1916, %v2346
  %v2348 = vpop.f32.mrb[0].mxu0
  %v2349 = vpop.f32.mrb[0].mxu0
  %v2350 = vadd.f32 %v1919, %v2349
  %v2351 = vpop.f32.mrb[0].mxu0
  %2352 = vdwg.mxu0
  %v2353 = vld [vmem:[%s0 + $0x2] sm:$0xff]
  %v2354 = vld [vmem:[%s0 + $0xa] sm:$0xff]
  %v2355 = vld [vmem:[%s0 + $0x12] sm:$0xff]
  %v2356 = vld [vmem:[%s0 + $0x22] sm:$0xff]
  %v2357 = vld [vmem:[%s0 + $0x2a] sm:$0xff]
  %v2358 = vld [vmem:[%s0 + $0x32] sm:$0xff]
  %v2359 = vld [vmem:[%s0 + $0x42] sm:$0xff]
  %v2360 = vld [vmem:[%s0 + $0x4a] sm:$0xff]
  %v2361 = vld [vmem:[%s0 + $0x52] sm:$0xff]
  %v2362 = vld [vmem:[%s0 + $0x62] sm:$0xff]
  %v2363 = vld [vmem:[%s0 + $0x6a] sm:$0xff]
  %v2364 = vld [vmem:[%s0 + $0x72] sm:$0xff]
  %v2365 = vld [vmem:[%s0 + $0x82] sm:$0xff]
  %v2366 = vld [vmem:[%s0 + $0x8a] sm:$0xff]
  %v2367 = vld [vmem:[%s0 + $0x92] sm:$0xff]
  %v2368 = vld [vmem:[%s0 + $0xa2] sm:$0xff]
  %v2369 = vld [vmem:[%s0 + $0xaa] sm:$0xff]
  %v2370 = vld [vmem:[%s0 + $0xb2] sm:$0xff]
  %v2371 = vld [vmem:[%s0 + $0xc2] sm:$0xff]
  %v2372 = vld [vmem:[%s0 + $0xca] sm:$0xff]
  %v2373 = vld [vmem:[%s0 + $0xd2] sm:$0xff]
  %v2374 = vld [vmem:[%s0 + $0xe2] sm:$0xff]
  %v2375 = vld [vmem:[%s0 + $0xea] sm:$0xff]
  %v2376 = vld [vmem:[%s0 + $0xf2] sm:$0xff]
  %v2377 = vld [vmem:[%s0 + $0x102] sm:$0xff]
  %v2378 = vld [vmem:[%s0 + $0x10a] sm:$0xff]
  %v2379 = vld [vmem:[%s0 + $0x112] sm:$0xff]
  %v2380 = vld [vmem:[%s0 + $0x122] sm:$0xff]
  %v2381 = vld [vmem:[%s0 + $0x12a] sm:$0xff]
  %v2382 = vld [vmem:[%s0 + $0x132] sm:$0xff]
  %v2383 = vld [vmem:[%s0 + $0x142] sm:$0xff]
  %v2384 = vld [vmem:[%s0 + $0x14a] sm:$0xff]
  %v2385 = vld [vmem:[%s0 + $0x152] sm:$0xff]
  %v2386 = vld [vmem:[%s0 + $0x162] sm:$0xff]
  %v2387 = vld [vmem:[%s0 + $0x16a] sm:$0xff]
  %v2388 = vld [vmem:[%s0 + $0x172] sm:$0xff]
  %v2389 = vld [vmem:[%s0 + $0x182] sm:$0xff]
  %v2390 = vld [vmem:[%s0 + $0x18a] sm:$0xff]
  %v2391 = vld [vmem:[%s0 + $0x192] sm:$0xff]
  %v2392 = vld [vmem:[%s0 + $0x1a2] sm:$0xff]
  %v2393 = vld [vmem:[%s0 + $0x1aa] sm:$0xff]
  %v2394 = vld [vmem:[%s0 + $0x1b2] sm:$0xff]
  %v2395 = vld [vmem:[%s0 + $0x1c2] sm:$0xff]
  %v2396 = vld [vmem:[%s0 + $0x1ca] sm:$0xff]
  %v2397 = vld [vmem:[%s0 + $0x1d2] sm:$0xff]
  %v2398 = vld [vmem:[%s0 + $0x1e2] sm:$0xff]
  %v2399 = vld [vmem:[%s0 + $0x1ea] sm:$0xff]
  %v2400 = vld [vmem:[%s0 + $0x1f2] sm:$0xff]
  %v2401 = vld [vmem:[%s0 + $0x202] sm:$0xff]
  %v2402 = vld [vmem:[%s0 + $0x20a] sm:$0xff]
  %v2403 = vld [vmem:[%s0 + $0x212] sm:$0xff]
  %v2404 = vld [vmem:[%s0 + $0x222] sm:$0xff]
  %v2405 = vld [vmem:[%s0 + $0x22a] sm:$0xff]
  %v2406 = vld [vmem:[%s0 + $0x232] sm:$0xff]
  %v2407 = vld [vmem:[%s0 + $0x242] sm:$0xff]
  %v2408 = vld [vmem:[%s0 + $0x24a] sm:$0xff]
  %v2409 = vld [vmem:[%s0 + $0x252] sm:$0xff]
  %v2410 = vld [vmem:[%s0 + $0x262] sm:$0xff]
  %v2411 = vld [vmem:[%s0 + $0x26a] sm:$0xff]
  %v2412 = vld [vmem:[%s0 + $0x272] sm:$0xff]
  %v2413 = vld [vmem:[%s0 + $0x282] sm:$0xff]
  %v2414 = vld [vmem:[%s0 + $0x28a] sm:$0xff]
  %v2415 = vld [vmem:[%s0 + $0x292] sm:$0xff]
  %v2416 = vld [vmem:[%s0 + $0x2a2] sm:$0xff]
  %v2417 = vld [vmem:[%s0 + $0x2aa] sm:$0xff]
  %v2418 = vld [vmem:[%s0 + $0x2b2] sm:$0xff]
  %v2419 = vld [vmem:[%s0 + $0x2c2] sm:$0xff]
  %v2420 = vld [vmem:[%s0 + $0x2ca] sm:$0xff]
  %v2421 = vld [vmem:[%s0 + $0x2d2] sm:$0xff]
  %v2422 = vld [vmem:[%s0 + $0x2e2] sm:$0xff]
  %v2423 = vld [vmem:[%s0 + $0x2ea] sm:$0xff]
  %v2424 = vld [vmem:[%s0 + $0x2f2] sm:$0xff]
  %v2425 = vld [vmem:[%s0 + $0x302] sm:$0xff]
  %v2426 = vld [vmem:[%s0 + $0x30a] sm:$0xff]
  %v2427 = vld [vmem:[%s0 + $0x312] sm:$0xff]
  %v2428 = vld [vmem:[%s0 + $0x322] sm:$0xff]
  %v2429 = vld [vmem:[%s0 + $0x32a] sm:$0xff]
  %v2430 = vld [vmem:[%s0 + $0x332] sm:$0xff]
  %v2431 = vld [vmem:[%s0 + $0x342] sm:$0xff]
  %v2432 = vld [vmem:[%s0 + $0x34a] sm:$0xff]
  %v2433 = vld [vmem:[%s0 + $0x352] sm:$0xff]
  %v2434 = vld [vmem:[%s0 + $0x362] sm:$0xff]
  %v2435 = vld [vmem:[%s0 + $0x36a] sm:$0xff]
  %v2436 = vld [vmem:[%s0 + $0x372] sm:$0xff]
  %v2437 = vld [vmem:[%s0 + $0x382] sm:$0xff]
  %v2438 = vld [vmem:[%s0 + $0x38a] sm:$0xff]
  %v2439 = vld [vmem:[%s0 + $0x392] sm:$0xff]
  %v2440 = vld [vmem:[%s0 + $0x3a2] sm:$0xff]
  %v2441 = vld [vmem:[%s0 + $0x3aa] sm:$0xff]
  %v2442 = vld [vmem:[%s0 + $0x3b2] sm:$0xff]
  %v2443 = vld [vmem:[%s0 + $0x3c2] sm:$0xff]
  %v2444 = vld [vmem:[%s0 + $0x3ca] sm:$0xff]
  %v2445 = vld [vmem:[%s0 + $0x3d2] sm:$0xff]
  %v2446 = vld [vmem:[%s0 + $0x3e2] sm:$0xff]
  %v2447 = vld [vmem:[%s0 + $0x3ea] sm:$0xff]
  %v2448 = vld [vmem:[%s0 + $0x3f2] sm:$0xff]
  %v2449 = vpack.c.bf16 %v2354, %v2353
  %v2450 = vpack.c.bf16 %v2356, %v2355
  %v2451 = vpack.c.bf16 %v2358, %v2357
  %v2452 = vpack.c.bf16 %v2360, %v2359
  %v2453 = vpack.c.bf16 %v2362, %v2361
  %v2454 = vpack.c.bf16 %v2364, %v2363
  %v2455 = vpack.c.bf16 %v2366, %v2365
  %v2456 = vpack.c.bf16 %v2368, %v2367
  %v2457 = vpack.c.bf16 %v2370, %v2369
  %v2458 = vpack.c.bf16 %v2372, %v2371
  %v2459 = vpack.c.bf16 %v2374, %v2373
  %v2460 = vpack.c.bf16 %v2376, %v2375
  %v2461 = vpack.c.bf16 %v2378, %v2377
  %v2462 = vpack.c.bf16 %v2380, %v2379
  %v2463 = vpack.c.bf16 %v2382, %v2381
  %v2464 = vpack.c.bf16 %v2384, %v2383
  %v2465 = vpack.c.bf16 %v2386, %v2385
  %v2466 = vpack.c.bf16 %v2388, %v2387
  %v2467 = vpack.c.bf16 %v2390, %v2389
  %v2468 = vpack.c.bf16 %v2392, %v2391
  %v2469 = vpack.c.bf16 %v2394, %v2393
  %v2470 = vpack.c.bf16 %v2396, %v2395
  %v2471 = vpack.c.bf16 %v2398, %v2397
  %v2472 = vpack.c.bf16 %v2400, %v2399
  %v2473 = vpack.c.bf16 %v2402, %v2401
  %v2474 = vpack.c.bf16 %v2404, %v2403
  %v2475 = vpack.c.bf16 %v2406, %v2405
  %v2476 = vpack.c.bf16 %v2408, %v2407
  %v2477 = vpack.c.bf16 %v2410, %v2409
  %v2478 = vpack.c.bf16 %v2412, %v2411
  %v2479 = vpack.c.bf16 %v2414, %v2413
  %v2480 = vpack.c.bf16 %v2416, %v2415
  %v2481 = vpack.c.bf16 %v2418, %v2417
  %v2482 = vpack.c.bf16 %v2420, %v2419
  %v2483 = vpack.c.bf16 %v2422, %v2421
  %v2484 = vpack.c.bf16 %v2424, %v2423
  %v2485 = vpack.c.bf16 %v2426, %v2425
  %v2486 = vpack.c.bf16 %v2428, %v2427
  %v2487 = vpack.c.bf16 %v2430, %v2429
  %v2488 = vpack.c.bf16 %v2432, %v2431
  %v2489 = vpack.c.bf16 %v2434, %v2433
  %v2490 = vpack.c.bf16 %v2436, %v2435
  %v2491 = vpack.c.bf16 %v2438, %v2437
  %v2492 = vpack.c.bf16 %v2440, %v2439
  %v2493 = vpack.c.bf16 %v2442, %v2441
  %v2494 = vpack.c.bf16 %v2444, %v2443
  %v2495 = vpack.c.bf16 %v2446, %v2445
  %v2496 = vpack.c.bf16 %v2448, %v2447
  %s2497 = scalar_lea.vmem %s1, 32
  %v2498 = vld [vmem:[%s2497] sm:$0xf]
  %v2499 = vld [vmem:[%s2497 + $0x4] sm:$0xf]
  %v2500 = vld [vmem:[%s2497 + $0x8] sm:$0xf]
  %v2501 = vld [vmem:[%s2497 + $0xc] sm:$0x3]
  %v2506 = vunpack.c.l.b16 %v2498
  %v2507 = vunpack.c.l.b16 %v2499
  %v2508 = vunpack.c.l.b16 %v2500
  %v2509 = vunpack.c.l.b16 %v2501
  %v2510 = vpack.c.b16 %v2507, %v2506
  %v2511 = vpack.c.b16 %v2509, %v2508
  %v2514 = vsel %vm345, %v2449, 0
  %v2517 = vsel %vm345, %v2450, 0
  %v2520 = vsel %vm345, %v2451, 0
  %v2523 = vsel %vm345, %v2452, 0
  %v2526 = vsel %vm345, %v2453, 0
  %v2529 = vsel %vm345, %v2454, 0
  %v2532 = vsel %vm345, %v2455, 0
  %v2535 = vsel %vm345, %v2456, 0
  %v2538 = vsel %vm345, %v2457, 0
  %v2541 = vsel %vm345, %v2458, 0
  %v2544 = vsel %vm345, %v2459, 0
  %v2547 = vsel %vm345, %v2460, 0
  %v2550 = vsel %vm345, %v2461, 0
  %v2553 = vsel %vm345, %v2462, 0
  %v2556 = vsel %vm345, %v2463, 0
  %v2559 = vsel %vm345, %v2464, 0
  %v2562 = vsel %vm345, %v2465, 0
  %v2565 = vsel %vm345, %v2466, 0
  %v2568 = vsel %vm345, %v2467, 0
  %v2571 = vsel %vm345, %v2468, 0
  %v2574 = vsel %vm345, %v2469, 0
  %v2577 = vsel %vm345, %v2470, 0
  %v2580 = vsel %vm345, %v2471, 0
  %v2583 = vsel %vm345, %v2472, 0
  %v2586 = vsel %vm345, %v2473, 0
  %v2589 = vsel %vm345, %v2474, 0
  %v2592 = vsel %vm345, %v2475, 0
  %v2595 = vsel %vm345, %v2476, 0
  %v2598 = vsel %vm345, %v2477, 0
  %v2601 = vsel %vm345, %v2478, 0
  %v2604 = vsel %vm345, %v2479, 0
  %v2607 = vsel %vm345, %v2480, 0
  %v2610 = vsel %vm345, %v2481, 0
  %v2613 = vsel %vm345, %v2482, 0
  %v2616 = vsel %vm345, %v2483, 0
  %v2619 = vsel %vm345, %v2484, 0
  %v2622 = vsel %vm345, %v2485, 0
  %v2625 = vsel %vm345, %v2486, 0
  %v2628 = vsel %vm345, %v2487, 0
  %v2631 = vsel %vm345, %v2488, 0
  %v2634 = vsel %vm345, %v2489, 0
  %v2637 = vsel %vm345, %v2490, 0
  %v2640 = vsel %vm345, %v2491, 0
  %v2643 = vsel %vm345, %v2492, 0
  %v2646 = vsel %vm345, %v2493, 0
  %v2649 = vsel %vm345, %v2494, 0
  %v2652 = vsel %vm345, %v2495, 0
  %v2655 = vsel %vm345, %v2496, 0
  %v2658 = vsel %vm490, %v2511, 0
  %2660 = vmatprep.subr.bf16.mxu0 0
  %2661 = vmatpush1.bf16.msra.mxu0 %v2510
  %2662 = vmatprep.subr.bf16.mxu0 0
  %2663 = vmatpush1.bf16.msra.mxu0 %v2658
  %2664 = vmatprep.subr.bf16.mxu0 0
  %2665 = vmatpush1.bf16.msra.mxu0 0
  %2666 = vmatprep.subr.bf16.mxu0 0
  %2667 = vmatpush1.bf16.msra.mxu0 0
  %2668 = vmatprep.subr.bf16.mxu0 0
  %2669 = vmatpush1.bf16.msra.mxu0 0
  %2670 = vmatprep.subr.bf16.mxu0 0
  %2671 = vmatpush1.bf16.msra.mxu0 0
  %2672 = vmatprep.subr.bf16.mxu0 0
  %2673 = vmatpush1.bf16.msra.mxu0 0
  %2674 = vmatprep.subr.bf16.mxu0 0
  %2675 = vmatpush1.bf16.msra.mxu0 0
  %2676 = vmatprep.subr.bf16.mxu0 0
  %2677 = vmatpush1.bf16.msra.mxu0 0
  %2678 = vmatprep.subr.bf16.mxu0 0
  %2679 = vmatpush1.bf16.msra.mxu0 0
  %2680 = vmatprep.subr.bf16.mxu0 0
  %2681 = vmatpush1.bf16.msra.mxu0 0
  %2682 = vmatprep.subr.bf16.mxu0 0
  %2683 = vmatpush1.bf16.msra.mxu0 0
  %2684 = vmatprep.subr.bf16.mxu0 0
  %2685 = vmatpush1.bf16.msra.mxu0 0
  %2686 = vmatprep.subr.bf16.mxu0 0
  %2687 = vmatpush1.bf16.msra.mxu0 0
  %2688 = vmatprep.subr.bf16.mxu0 0
  %2689 = vmatpush1.bf16.msra.mxu0 0
  %2690 = vmatprep.subr.bf16.mxu0 0
  %2691 = vmatpush1.bf16.msra.mxu0 0
  %2692 = vmatprep.mubr.bf16.mxu0 0
  %2693 = vmatmul.mubr.bf16.gmra.mrb[0].mxu0 %v2514
  %v2694 = vpop.f32.mrb[0].mxu0
  %v2695 = vadd.f32 0.0, %v2694
  %v2696 = vpop.f32.mrb[0].mxu0
  %v2697 = vpop.f32.mrb[0].mxu0
  %v2698 = vadd.f32 0.0, %v2697
  %v2699 = vpop.f32.mrb[0].mxu0
  %2700 = vmatprep.mubr.bf16.mxu0 0
  %2701 = vmatmul.mubr.bf16.gmra.mrb[0].mxu0 %v2517
  %v2702 = vpop.f32.mrb[0].mxu0
  %v2703 = vadd.f32 0.0, %v2702
  %v2704 = vpop.f32.mrb[0].mxu0
  %v2705 = vpop.f32.mrb[0].mxu0
  %v2706 = vadd.f32 0.0, %v2705
  %v2707 = vpop.f32.mrb[0].mxu0
  %2708 = vmatprep.mubr.bf16.mxu0 0
  %2709 = vmatmul.mubr.bf16.gmra.mrb[0].mxu0 %v2520
  %v2710 = vpop.f32.mrb[0].mxu0
  %v2711 = vadd.f32 0.0, %v2710
  %v2712 = vpop.f32.mrb[0].mxu0
  %v2713 = vpop.f32.mrb[0].mxu0
  %v2714 = vadd.f32 0.0, %v2713
  %v2715 = vpop.f32.mrb[0].mxu0
  %2716 = vmatprep.mubr.bf16.mxu0 0
  %2717 = vmatmul.mubr.bf16.gmra.mrb[0].mxu0 %v2523
  %v2718 = vpop.f32.mrb[0].mxu0
  %v2719 = vadd.f32 0.0, %v2718
  %v2720 = vpop.f32.mrb[0].mxu0
  %v2721 = vpop.f32.mrb[0].mxu0
  %v2722 = vadd.f32 0.0, %v2721
  %v2723 = vpop.f32.mrb[0].mxu0
  %2724 = vmatprep.mubr.bf16.mxu0 0
  %2725 = vmatmul.mubr.bf16.gmra.mrb[0].mxu0 %v2526
  %v2726 = vpop.f32.mrb[0].mxu0
  %v2727 = vadd.f32 0.0, %v2726
  %v2728 = vpop.f32.mrb[0].mxu0
  %v2729 = vpop.f32.mrb[0].mxu0
  %v2730 = vadd.f32 0.0, %v2729
  %v2731 = vpop.f32.mrb[0].mxu0
  %2732 = vmatprep.mubr.bf16.mxu0 0
  %2733 = vmatmul.mubr.bf16.gmra.mrb[0].mxu0 %v2529
  %v2734 = vpop.f32.mrb[0].mxu0
  %v2735 = vadd.f32 0.0, %v2734
  %v2736 = vpop.f32.mrb[0].mxu0
  %v2737 = vpop.f32.mrb[0].mxu0
  %v2738 = vadd.f32 0.0, %v2737
  %v2739 = vpop.f32.mrb[0].mxu0
  %2740 = vmatprep.mubr.bf16.mxu0 0
  %2741 = vmatmul.mubr.bf16.gmra.mrb[0].mxu0 %v2532
  %v2742 = vpop.f32.mrb[0].mxu0
  %v2743 = vadd.f32 0.0, %v2742
  %v2744 = vpop.f32.mrb[0].mxu0
  %v2745 = vpop.f32.mrb[0].mxu0
  %v2746 = vadd.f32 0.0, %v2745
  %v2747 = vpop.f32.mrb[0].mxu0
  %2748 = vmatprep.mubr.bf16.mxu0 0
  %2749 = vmatmul.mubr.bf16.gmra.mrb[0].mxu0 %v2535
  %v2750 = vpop.f32.mrb[0].mxu0
  %v2751 = vadd.f32 0.0, %v2750
  %v2752 = vpop.f32.mrb[0].mxu0
  %v2753 = vpop.f32.mrb[0].mxu0
  %v2754 = vadd.f32 0.0, %v2753
  %v2755 = vpop.f32.mrb[0].mxu0
  %2756 = vmatprep.mubr.bf16.mxu0 0
  %2757 = vmatmul.mubr.bf16.gmra.mrb[0].mxu0 %v2538
  %v2758 = vpop.f32.mrb[0].mxu0
  %v2759 = vadd.f32 0.0, %v2758
  %v2760 = vpop.f32.mrb[0].mxu0
  %v2761 = vpop.f32.mrb[0].mxu0
  %v2762 = vadd.f32 0.0, %v2761
  %v2763 = vpop.f32.mrb[0].mxu0
  %2764 = vmatprep.mubr.bf16.mxu0 0
  %2765 = vmatmul.mubr.bf16.gmra.mrb[0].mxu0 %v2541
  %v2766 = vpop.f32.mrb[0].mxu0
  %v2767 = vadd.f32 0.0, %v2766
  %v2768 = vpop.f32.mrb[0].mxu0
  %v2769 = vpop.f32.mrb[0].mxu0
  %v2770 = vadd.f32 0.0, %v2769
  %v2771 = vpop.f32.mrb[0].mxu0
  %2772 = vmatprep.mubr.bf16.mxu0 0
  %2773 = vmatmul.mubr.bf16.gmra.mrb[0].mxu0 %v2544
  %v2774 = vpop.f32.mrb[0].mxu0
  %v2775 = vadd.f32 0.0, %v2774
  %v2776 = vpop.f32.mrb[0].mxu0
  %v2777 = vpop.f32.mrb[0].mxu0
  %v2778 = vadd.f32 0.0, %v2777
  %v2779 = vpop.f32.mrb[0].mxu0
  %2780 = vmatprep.mubr.bf16.mxu0 0
  %2781 = vmatmul.mubr.bf16.gmra.mrb[0].mxu0 %v2547
  %v2782 = vpop.f32.mrb[0].mxu0
  %v2783 = vadd.f32 0.0, %v2782
  %v2784 = vpop.f32.mrb[0].mxu0
  %v2785 = vpop.f32.mrb[0].mxu0
  %v2786 = vadd.f32 0.0, %v2785
  %v2787 = vpop.f32.mrb[0].mxu0
  %2788 = vmatprep.mubr.bf16.mxu0 0
  %2789 = vmatmul.mubr.bf16.gmra.mrb[0].mxu0 %v2550
  %v2790 = vpop.f32.mrb[0].mxu0
  %v2791 = vadd.f32 0.0, %v2790
  %v2792 = vpop.f32.mrb[0].mxu0
  %v2793 = vpop.f32.mrb[0].mxu0
  %v2794 = vadd.f32 0.0, %v2793
  %v2795 = vpop.f32.mrb[0].mxu0
  %2796 = vmatprep.mubr.bf16.mxu0 0
  %2797 = vmatmul.mubr.bf16.gmra.mrb[0].mxu0 %v2553
  %v2798 = vpop.f32.mrb[0].mxu0
  %v2799 = vadd.f32 0.0, %v2798
  %v2800 = vpop.f32.mrb[0].mxu0
  %v2801 = vpop.f32.mrb[0].mxu0
  %v2802 = vadd.f32 0.0, %v2801
  %v2803 = vpop.f32.mrb[0].mxu0
  %2804 = vmatprep.mubr.bf16.mxu0 0
  %2805 = vmatmul.mubr.bf16.gmra.mrb[0].mxu0 %v2556
  %v2806 = vpop.f32.mrb[0].mxu0
  %v2807 = vadd.f32 0.0, %v2806
  %v2808 = vpop.f32.mrb[0].mxu0
  %v2809 = vpop.f32.mrb[0].mxu0
  %v2810 = vadd.f32 0.0, %v2809
  %v2811 = vpop.f32.mrb[0].mxu0
  %2812 = vmatprep.mubr.bf16.mxu0 0
  %2813 = vmatmul.mubr.bf16.gmra.mrb[0].mxu0 %v2559
  %v2814 = vpop.f32.mrb[0].mxu0
  %v2815 = vadd.f32 0.0, %v2814
  %v2816 = vpop.f32.mrb[0].mxu0
  %v2817 = vpop.f32.mrb[0].mxu0
  %v2818 = vadd.f32 0.0, %v2817
  %v2819 = vpop.f32.mrb[0].mxu0
  %2820 = vmatprep.mubr.bf16.mxu0 0
  %2821 = vmatmul.mubr.bf16.gmra.mrb[0].mxu0 %v2562
  %v2822 = vpop.f32.mrb[0].mxu0
  %v2823 = vadd.f32 0.0, %v2822
  %v2824 = vpop.f32.mrb[0].mxu0
  %v2825 = vpop.f32.mrb[0].mxu0
  %v2826 = vadd.f32 0.0, %v2825
  %v2827 = vpop.f32.mrb[0].mxu0
  %2828 = vmatprep.mubr.bf16.mxu0 0
  %2829 = vmatmul.mubr.bf16.gmra.mrb[0].mxu0 %v2565
  %v2830 = vpop.f32.mrb[0].mxu0
  %v2831 = vadd.f32 0.0, %v2830
  %v2832 = vpop.f32.mrb[0].mxu0
  %v2833 = vpop.f32.mrb[0].mxu0
  %v2834 = vadd.f32 0.0, %v2833
  %v2835 = vpop.f32.mrb[0].mxu0
  %2836 = vmatprep.mubr.bf16.mxu0 0
  %2837 = vmatmul.mubr.bf16.gmra.mrb[0].mxu0 %v2568
  %v2838 = vpop.f32.mrb[0].mxu0
  %v2839 = vadd.f32 0.0, %v2838
  %v2840 = vpop.f32.mrb[0].mxu0
  %v2841 = vpop.f32.mrb[0].mxu0
  %v2842 = vadd.f32 0.0, %v2841
  %v2843 = vpop.f32.mrb[0].mxu0
  %2844 = vmatprep.mubr.bf16.mxu0 0
  %2845 = vmatmul.mubr.bf16.gmra.mrb[0].mxu0 %v2571
  %v2846 = vpop.f32.mrb[0].mxu0
  %v2847 = vadd.f32 0.0, %v2846
  %v2848 = vpop.f32.mrb[0].mxu0
  %v2849 = vpop.f32.mrb[0].mxu0
  %v2850 = vadd.f32 0.0, %v2849
  %v2851 = vpop.f32.mrb[0].mxu0
  %2852 = vmatprep.mubr.bf16.mxu0 0
  %2853 = vmatmul.mubr.bf16.gmra.mrb[0].mxu0 %v2574
  %v2854 = vpop.f32.mrb[0].mxu0
  %v2855 = vadd.f32 0.0, %v2854
  %v2856 = vpop.f32.mrb[0].mxu0
  %v2857 = vpop.f32.mrb[0].mxu0
  %v2858 = vadd.f32 0.0, %v2857
  %v2859 = vpop.f32.mrb[0].mxu0
  %2860 = vmatprep.mubr.bf16.mxu0 0
  %2861 = vmatmul.mubr.bf16.gmra.mrb[0].mxu0 %v2577
  %v2862 = vpop.f32.mrb[0].mxu0
  %v2863 = vadd.f32 0.0, %v2862
  %v2864 = vpop.f32.mrb[0].mxu0
  %v2865 = vpop.f32.mrb[0].mxu0
  %v2866 = vadd.f32 0.0, %v2865
  %v2867 = vpop.f32.mrb[0].mxu0
  %2868 = vmatprep.mubr.bf16.mxu0 0
  %2869 = vmatmul.mubr.bf16.gmra.mrb[0].mxu0 %v2580
  %v2870 = vpop.f32.mrb[0].mxu0
  %v2871 = vadd.f32 0.0, %v2870
  %v2872 = vpop.f32.mrb[0].mxu0
  %v2873 = vpop.f32.mrb[0].mxu0
  %v2874 = vadd.f32 0.0, %v2873
  %v2875 = vpop.f32.mrb[0].mxu0
  %2876 = vmatprep.mubr.bf16.mxu0 0
  %2877 = vmatmul.mubr.bf16.gmra.mrb[0].mxu0 %v2583
  %v2878 = vpop.f32.mrb[0].mxu0
  %v2879 = vadd.f32 0.0, %v2878
  %v2880 = vpop.f32.mrb[0].mxu0
  %v2881 = vpop.f32.mrb[0].mxu0
  %v2882 = vadd.f32 0.0, %v2881
  %v2883 = vpop.f32.mrb[0].mxu0
  %2884 = vmatprep.mubr.bf16.mxu0 0
  %2885 = vmatmul.mubr.bf16.gmra.mrb[0].mxu0 %v2586
  %v2886 = vpop.f32.mrb[0].mxu0
  %v2887 = vadd.f32 0.0, %v2886
  %v2888 = vpop.f32.mrb[0].mxu0
  %v2889 = vpop.f32.mrb[0].mxu0
  %v2890 = vadd.f32 0.0, %v2889
  %v2891 = vpop.f32.mrb[0].mxu0
  %2892 = vmatprep.mubr.bf16.mxu0 0
  %2893 = vmatmul.mubr.bf16.gmra.mrb[0].mxu0 %v2589
  %v2894 = vpop.f32.mrb[0].mxu0
  %v2895 = vadd.f32 0.0, %v2894
  %v2896 = vpop.f32.mrb[0].mxu0
  %v2897 = vpop.f32.mrb[0].mxu0
  %v2898 = vadd.f32 0.0, %v2897
  %v2899 = vpop.f32.mrb[0].mxu0
  %2900 = vmatprep.mubr.bf16.mxu0 0
  %2901 = vmatmul.mubr.bf16.gmra.mrb[0].mxu0 %v2592
  %v2902 = vpop.f32.mrb[0].mxu0
  %v2903 = vadd.f32 0.0, %v2902
  %v2904 = vpop.f32.mrb[0].mxu0
  %v2905 = vpop.f32.mrb[0].mxu0
  %v2906 = vadd.f32 0.0, %v2905
  %v2907 = vpop.f32.mrb[0].mxu0
  %2908 = vmatprep.mubr.bf16.mxu0 0
  %2909 = vmatmul.mubr.bf16.gmra.mrb[0].mxu0 %v2595
  %v2910 = vpop.f32.mrb[0].mxu0
  %v2911 = vadd.f32 0.0, %v2910
  %v2912 = vpop.f32.mrb[0].mxu0
  %v2913 = vpop.f32.mrb[0].mxu0
  %v2914 = vadd.f32 0.0, %v2913
  %v2915 = vpop.f32.mrb[0].mxu0
  %2916 = vmatprep.mubr.bf16.mxu0 0
  %2917 = vmatmul.mubr.bf16.gmra.mrb[0].mxu0 %v2598
  %v2918 = vpop.f32.mrb[0].mxu0
  %v2919 = vadd.f32 0.0, %v2918
  %v2920 = vpop.f32.mrb[0].mxu0
  %v2921 = vpop.f32.mrb[0].mxu0
  %v2922 = vadd.f32 0.0, %v2921
  %v2923 = vpop.f32.mrb[0].mxu0
  %2924 = vmatprep.mubr.bf16.mxu0 0
  %2925 = vmatmul.mubr.bf16.gmra.mrb[0].mxu0 %v2601
  %v2926 = vpop.f32.mrb[0].mxu0
  %v2927 = vadd.f32 0.0, %v2926
  %v2928 = vpop.f32.mrb[0].mxu0
  %v2929 = vpop.f32.mrb[0].mxu0
  %v2930 = vadd.f32 0.0, %v2929
  %v2931 = vpop.f32.mrb[0].mxu0
  %2932 = vmatprep.mubr.bf16.mxu0 0
  %2933 = vmatmul.mubr.bf16.gmra.mrb[0].mxu0 %v2604
  %v2934 = vpop.f32.mrb[0].mxu0
  %v2935 = vadd.f32 0.0, %v2934
  %v2936 = vpop.f32.mrb[0].mxu0
  %v2937 = vpop.f32.mrb[0].mxu0
  %v2938 = vadd.f32 0.0, %v2937
  %v2939 = vpop.f32.mrb[0].mxu0
  %2940 = vmatprep.mubr.bf16.mxu0 0
  %2941 = vmatmul.mubr.bf16.gmra.mrb[0].mxu0 %v2607
  %v2942 = vpop.f32.mrb[0].mxu0
  %v2943 = vadd.f32 0.0, %v2942
  %v2944 = vpop.f32.mrb[0].mxu0
  %v2945 = vpop.f32.mrb[0].mxu0
  %v2946 = vadd.f32 0.0, %v2945
  %v2947 = vpop.f32.mrb[0].mxu0
  %2948 = vmatprep.mubr.bf16.mxu0 0
  %2949 = vmatmul.mubr.bf16.gmra.mrb[0].mxu0 %v2610
  %v2950 = vpop.f32.mrb[0].mxu0
  %v2951 = vadd.f32 0.0, %v2950
  %v2952 = vpop.f32.mrb[0].mxu0
  %v2953 = vpop.f32.mrb[0].mxu0
  %v2954 = vadd.f32 0.0, %v2953
  %v2955 = vpop.f32.mrb[0].mxu0
  %2956 = vmatprep.mubr.bf16.mxu0 0
  %2957 = vmatmul.mubr.bf16.gmra.mrb[0].mxu0 %v2613
  %v2958 = vpop.f32.mrb[0].mxu0
  %v2959 = vadd.f32 0.0, %v2958
  %v2960 = vpop.f32.mrb[0].mxu0
  %v2961 = vpop.f32.mrb[0].mxu0
  %v2962 = vadd.f32 0.0, %v2961
  %v2963 = vpop.f32.mrb[0].mxu0
  %2964 = vmatprep.mubr.bf16.mxu0 0
  %2965 = vmatmul.mubr.bf16.gmra.mrb[0].mxu0 %v2616
  %v2966 = vpop.f32.mrb[0].mxu0
  %v2967 = vadd.f32 0.0, %v2966
  %v2968 = vpop.f32.mrb[0].mxu0
  %v2969 = vpop.f32.mrb[0].mxu0
  %v2970 = vadd.f32 0.0, %v2969
  %v2971 = vpop.f32.mrb[0].mxu0
  %2972 = vmatprep.mubr.bf16.mxu0 0
  %2973 = vmatmul.mubr.bf16.gmra.mrb[0].mxu0 %v2619
  %v2974 = vpop.f32.mrb[0].mxu0
  %v2975 = vadd.f32 0.0, %v2974
  %v2976 = vpop.f32.mrb[0].mxu0
  %v2977 = vpop.f32.mrb[0].mxu0
  %v2978 = vadd.f32 0.0, %v2977
  %v2979 = vpop.f32.mrb[0].mxu0
  %2980 = vmatprep.mubr.bf16.mxu0 0
  %2981 = vmatmul.mubr.bf16.gmra.mrb[0].mxu0 %v2622
  %v2982 = vpop.f32.mrb[0].mxu0
  %v2983 = vadd.f32 0.0, %v2982
  %v2984 = vpop.f32.mrb[0].mxu0
  %v2985 = vpop.f32.mrb[0].mxu0
  %v2986 = vadd.f32 0.0, %v2985
  %v2987 = vpop.f32.mrb[0].mxu0
  %2988 = vmatprep.mubr.bf16.mxu0 0
  %2989 = vmatmul.mubr.bf16.gmra.mrb[0].mxu0 %v2625
  %v2990 = vpop.f32.mrb[0].mxu0
  %v2991 = vadd.f32 0.0, %v2990
  %v2992 = vpop.f32.mrb[0].mxu0
  %v2993 = vpop.f32.mrb[0].mxu0
  %v2994 = vadd.f32 0.0, %v2993
  %v2995 = vpop.f32.mrb[0].mxu0
  %2996 = vmatprep.mubr.bf16.mxu0 0
  %2997 = vmatmul.mubr.bf16.gmra.mrb[0].mxu0 %v2628
  %v2998 = vpop.f32.mrb[0].mxu0
  %v2999 = vadd.f32 0.0, %v2998
  %v3000 = vpop.f32.mrb[0].mxu0
  %v3001 = vpop.f32.mrb[0].mxu0
  %v3002 = vadd.f32 0.0, %v3001
  %v3003 = vpop.f32.mrb[0].mxu0
  %3004 = vmatprep.mubr.bf16.mxu0 0
  %3005 = vmatmul.mubr.bf16.gmra.mrb[0].mxu0 %v2631
  %v3006 = vpop.f32.mrb[0].mxu0
  %v3007 = vadd.f32 0.0, %v3006
  %v3008 = vpop.f32.mrb[0].mxu0
  %v3009 = vpop.f32.mrb[0].mxu0
  %v3010 = vadd.f32 0.0, %v3009
  %v3011 = vpop.f32.mrb[0].mxu0
  %3012 = vmatprep.mubr.bf16.mxu0 0
  %3013 = vmatmul.mubr.bf16.gmra.mrb[0].mxu0 %v2634
  %v3014 = vpop.f32.mrb[0].mxu0
  %v3015 = vadd.f32 0.0, %v3014
  %v3016 = vpop.f32.mrb[0].mxu0
  %v3017 = vpop.f32.mrb[0].mxu0
  %v3018 = vadd.f32 0.0, %v3017
  %v3019 = vpop.f32.mrb[0].mxu0
  %3020 = vmatprep.mubr.bf16.mxu0 0
  %3021 = vmatmul.mubr.bf16.gmra.mrb[0].mxu0 %v2637
  %v3022 = vpop.f32.mrb[0].mxu0
  %v3023 = vadd.f32 0.0, %v3022
  %v3024 = vpop.f32.mrb[0].mxu0
  %v3025 = vpop.f32.mrb[0].mxu0
  %v3026 = vadd.f32 0.0, %v3025
  %v3027 = vpop.f32.mrb[0].mxu0
  %3028 = vmatprep.mubr.bf16.mxu0 0
  %3029 = vmatmul.mubr.bf16.gmra.mrb[0].mxu0 %v2640
  %v3030 = vpop.f32.mrb[0].mxu0
  %v3031 = vadd.f32 0.0, %v3030
  %v3032 = vpop.f32.mrb[0].mxu0
  %v3033 = vpop.f32.mrb[0].mxu0
  %v3034 = vadd.f32 0.0, %v3033
  %v3035 = vpop.f32.mrb[0].mxu0
  %3036 = vmatprep.mubr.bf16.mxu0 0
  %3037 = vmatmul.mubr.bf16.gmra.mrb[0].mxu0 %v2643
  %v3038 = vpop.f32.mrb[0].mxu0
  %v3039 = vadd.f32 0.0, %v3038
  %v3040 = vpop.f32.mrb[0].mxu0
  %v3041 = vpop.f32.mrb[0].mxu0
  %v3042 = vadd.f32 0.0, %v3041
  %v3043 = vpop.f32.mrb[0].mxu0
  %3044 = vmatprep.mubr.bf16.mxu0 0
  %3045 = vmatmul.mubr.bf16.gmra.mrb[0].mxu0 %v2646
  %v3046 = vpop.f32.mrb[0].mxu0
  %v3047 = vadd.f32 0.0, %v3046
  %v3048 = vpop.f32.mrb[0].mxu0
  %v3049 = vpop.f32.mrb[0].mxu0
  %v3050 = vadd.f32 0.0, %v3049
  %v3051 = vpop.f32.mrb[0].mxu0
  %3052 = vmatprep.mubr.bf16.mxu0 0
  %3053 = vmatmul.mubr.bf16.gmra.mrb[0].mxu0 %v2649
  %v3054 = vpop.f32.mrb[0].mxu0
  %v3055 = vadd.f32 0.0, %v3054
  %v3056 = vpop.f32.mrb[0].mxu0
  %v3057 = vpop.f32.mrb[0].mxu0
  %v3058 = vadd.f32 0.0, %v3057
  %v3059 = vpop.f32.mrb[0].mxu0
  %3060 = vmatprep.mubr.bf16.mxu0 0
  %3061 = vmatmul.mubr.bf16.gmra.mrb[0].mxu0 %v2652
  %v3062 = vpop.f32.mrb[0].mxu0
  %v3063 = vadd.f32 0.0, %v3062
  %v3064 = vpop.f32.mrb[0].mxu0
  %v3065 = vpop.f32.mrb[0].mxu0
  %v3066 = vadd.f32 0.0, %v3065
  %v3067 = vpop.f32.mrb[0].mxu0
  %3068 = vmatprep.mubr.bf16.mxu0 0
  %3069 = vmatmul.mubr.bf16.gmra.mrb[0].mxu0 %v2655
  %v3070 = vpop.f32.mrb[0].mxu0
  %v3071 = vadd.f32 0.0, %v3070
  %v3072 = vpop.f32.mrb[0].mxu0
  %v3073 = vpop.f32.mrb[0].mxu0
  %v3074 = vadd.f32 0.0, %v3073
  %v3075 = vpop.f32.mrb[0].mxu0
  %3076 = vdwg.mxu0
  %v3077 = vadd.f32 %v1104, %v2695
  %v3078 = vadd.f32 %v1107, %v2698
  %v3079 = vadd.f32 %v1112, %v2703
  %v3080 = vadd.f32 %v1115, %v2706
  %v3081 = vadd.f32 %v1120, %v2711
  %v3082 = vadd.f32 %v1123, %v2714
  %v3083 = vadd.f32 %v1128, %v2719
  %v3084 = vadd.f32 %v1131, %v2722
  %v3085 = vadd.f32 %v1136, %v2727
  %v3086 = vadd.f32 %v1139, %v2730
  %v3087 = vadd.f32 %v1144, %v2735
  %v3088 = vadd.f32 %v1147, %v2738
  %v3089 = vadd.f32 %v1152, %v2743
  %v3090 = vadd.f32 %v1155, %v2746
  %v3091 = vadd.f32 %v1160, %v2751
  %v3092 = vadd.f32 %v1163, %v2754
  %v3093 = vadd.f32 %v1168, %v2759
  %v3094 = vadd.f32 %v1171, %v2762
  %v3095 = vadd.f32 %v1176, %v2767
  %v3096 = vadd.f32 %v1179, %v2770
  %v3097 = vadd.f32 %v1184, %v2775
  %v3098 = vadd.f32 %v1187, %v2778
  %v3099 = vadd.f32 %v1192, %v2783
  %v3100 = vadd.f32 %v1195, %v2786
  %v3101 = vadd.f32 %v1200, %v2791
  %v3102 = vadd.f32 %v1203, %v2794
  %v3103 = vadd.f32 %v1208, %v2799
  %v3104 = vadd.f32 %v1211, %v2802
  %v3105 = vadd.f32 %v1216, %v2807
  %v3106 = vadd.f32 %v1219, %v2810
  %v3107 = vadd.f32 %v1224, %v2815
  %v3108 = vadd.f32 %v1227, %v2818
  %v3109 = vadd.f32 %v1232, %v2823
  %v3110 = vadd.f32 %v1235, %v2826
  %v3111 = vadd.f32 %v1240, %v2831
  %v3112 = vadd.f32 %v1243, %v2834
  %v3113 = vadd.f32 %v1248, %v2839
  %v3114 = vadd.f32 %v1251, %v2842
  %v3115 = vadd.f32 %v1256, %v2847
  %v3116 = vadd.f32 %v1259, %v2850
  %v3117 = vadd.f32 %v1264, %v2855
  %v3118 = vadd.f32 %v1267, %v2858
  %v3119 = vadd.f32 %v1272, %v2863
  %v3120 = vadd.f32 %v1275, %v2866
  %v3121 = vadd.f32 %v1280, %v2871
  %v3122 = vadd.f32 %v1283, %v2874
  %v3123 = vadd.f32 %v1288, %v2879
  %v3124 = vadd.f32 %v1291, %v2882
  %v3125 = vadd.f32 %v1296, %v2887
  %v3126 = vadd.f32 %v1299, %v2890
  %v3127 = vadd.f32 %v1304, %v2895
  %v3128 = vadd.f32 %v1307, %v2898
  %v3129 = vadd.f32 %v1312, %v2903
  %v3130 = vadd.f32 %v1315, %v2906
  %v3131 = vadd.f32 %v1320, %v2911
  %v3132 = vadd.f32 %v1323, %v2914
  %v3133 = vadd.f32 %v1328, %v2919
  %v3134 = vadd.f32 %v1331, %v2922
  %v3135 = vadd.f32 %v1336, %v2927
  %v3136 = vadd.f32 %v1339, %v2930
  %v3137 = vadd.f32 %v1344, %v2935
  %v3138 = vadd.f32 %v1347, %v2938
  %v3139 = vadd.f32 %v1352, %v2943
  %v3140 = vadd.f32 %v1355, %v2946
  %v3141 = vadd.f32 %v1360, %v2951
  %v3142 = vadd.f32 %v1363, %v2954
  %v3143 = vadd.f32 %v1368, %v2959
  %v3144 = vadd.f32 %v1371, %v2962
  %v3145 = vadd.f32 %v1376, %v2967
  %v3146 = vadd.f32 %v1379, %v2970
  %v3147 = vadd.f32 %v1384, %v2975
  %v3148 = vadd.f32 %v1387, %v2978
  %v3149 = vadd.f32 %v1392, %v2983
  %v3150 = vadd.f32 %v1395, %v2986
  %v3151 = vadd.f32 %v1400, %v2991
  %v3152 = vadd.f32 %v1403, %v2994
  %v3153 = vadd.f32 %v1408, %v2999
  %v3154 = vadd.f32 %v1411, %v3002
  %v3155 = vadd.f32 %v1416, %v3007
  %v3156 = vadd.f32 %v1419, %v3010
  %v3157 = vadd.f32 %v1424, %v3015
  %v3158 = vadd.f32 %v1427, %v3018
  %v3159 = vadd.f32 %v1432, %v3023
  %v3160 = vadd.f32 %v1435, %v3026
  %v3161 = vadd.f32 %v1440, %v3031
  %v3162 = vadd.f32 %v1443, %v3034
  %v3163 = vadd.f32 %v1448, %v3039
  %v3164 = vadd.f32 %v1451, %v3042
  %v3165 = vadd.f32 %v1456, %v3047
  %v3166 = vadd.f32 %v1459, %v3050
  %v3167 = vadd.f32 %v1464, %v3055
  %v3168 = vadd.f32 %v1467, %v3058
  %v3169 = vadd.f32 %v1472, %v3063
  %v3170 = vadd.f32 %v1475, %v3066
  %v3171 = vadd.f32 %v1480, %v3071
  %v3172 = vadd.f32 %v1483, %v3074
  %s3173 = scalar_lea.vmem %s2, 32
  %v3174 = vld [vmem:[%s3173] sm:$0xf]
  %v3175 = vld [vmem:[%s3173 + $0x4] sm:$0xf]
  %v3176 = vld [vmem:[%s3173 + $0x8] sm:$0xf]
  %v3177 = vld [vmem:[%s3173 + $0xc] sm:$0x3]
  %v3182 = vunpack.c.l.b16 %v3174
  %v3183 = vunpack.c.l.b16 %v3175
  %v3184 = vunpack.c.l.b16 %v3176
  %v3185 = vunpack.c.l.b16 %v3177
  %v3186 = vpack.c.b16 %v3183, %v3182
  %v3187 = vpack.c.b16 %v3185, %v3184
  %v3190 = vsel %vm490, %v3187, 0
  %3192 = vmatprep.subr.bf16.mxu0 0
  %3193 = vmatpush1.bf16.msra.mxu0 %v3186
  %3194 = vmatprep.subr.bf16.mxu0 0
  %3195 = vmatpush1.bf16.msra.mxu0 %v3190
  %3196 = vmatprep.subr.bf16.mxu0 0
  %3197 = vmatpush1.bf16.msra.mxu0 0
  %3198 = vmatprep.subr.bf16.mxu0 0
  %3199 = vmatpush1.bf16.msra.mxu0 0
  %3200 = vmatprep.subr.bf16.mxu0 0
  %3201 = vmatpush1.bf16.msra.mxu0 0
  %3202 = vmatprep.subr.bf16.mxu0 0
  %3203 = vmatpush1.bf16.msra.mxu0 0
  %3204 = vmatprep.subr.bf16.mxu0 0
  %3205 = vmatpush1.bf16.msra.mxu0 0
  %3206 = vmatprep.subr.bf16.mxu0 0
  %3207 = vmatpush1.bf16.msra.mxu0 0
  %3208 = vmatprep.subr.bf16.mxu0 0
  %3209 = vmatpush1.bf16.msra.mxu0 0
  %3210 = vmatprep.subr.bf16.mxu0 0
  %3211 = vmatpush1.bf16.msra.mxu0 0
  %3212 = vmatprep.subr.bf16.mxu0 0
  %3213 = vmatpush1.bf16.msra.mxu0 0
  %3214 = vmatprep.subr.bf16.mxu0 0
  %3215 = vmatpush1.bf16.msra.mxu0 0
  %3216 = vmatprep.subr.bf16.mxu0 0
  %3217 = vmatpush1.bf16.msra.mxu0 0
  %3218 = vmatprep.subr.bf16.mxu0 0
  %3219 = vmatpush1.bf16.msra.mxu0 0
  %3220 = vmatprep.subr.bf16.mxu0 0
  %3221 = vmatpush1.bf16.msra.mxu0 0
  %3222 = vmatprep.subr.bf16.mxu0 0
  %3223 = vmatpush1.bf16.msra.mxu0 0
  %3224 = vmatprep.mubr.bf16.mxu0 0
  %3225 = vmatmul.mubr.bf16.gmra.mrb[0].mxu0 %v2514
  %v3226 = vpop.f32.mrb[0].mxu0
  %v3227 = vadd.f32 0.0, %v3226
  %v3228 = vpop.f32.mrb[0].mxu0
  %v3229 = vpop.f32.mrb[0].mxu0
  %v3230 = vadd.f32 0.0, %v3229
  %v3231 = vpop.f32.mrb[0].mxu0
  %3232 = vmatprep.mubr.bf16.mxu0 0
  %3233 = vmatmul.mubr.bf16.gmra.mrb[0].mxu0 %v2517
  %v3234 = vpop.f32.mrb[0].mxu0
  %v3235 = vadd.f32 0.0, %v3234
  %v3236 = vpop.f32.mrb[0].mxu0
  %v3237 = vpop.f32.mrb[0].mxu0
  %v3238 = vadd.f32 0.0, %v3237
  %v3239 = vpop.f32.mrb[0].mxu0
  %3240 = vmatprep.mubr.bf16.mxu0 0
  %3241 = vmatmul.mubr.bf16.gmra.mrb[0].mxu0 %v2520
  %v3242 = vpop.f32.mrb[0].mxu0
  %v3243 = vadd.f32 0.0, %v3242
  %v3244 = vpop.f32.mrb[0].mxu0
  %v3245 = vpop.f32.mrb[0].mxu0
  %v3246 = vadd.f32 0.0, %v3245
  %v3247 = vpop.f32.mrb[0].mxu0
  %3248 = vmatprep.mubr.bf16.mxu0 0
  %3249 = vmatmul.mubr.bf16.gmra.mrb[0].mxu0 %v2523
  %v3250 = vpop.f32.mrb[0].mxu0
  %v3251 = vadd.f32 0.0, %v3250
  %v3252 = vpop.f32.mrb[0].mxu0
  %v3253 = vpop.f32.mrb[0].mxu0
  %v3254 = vadd.f32 0.0, %v3253
  %v3255 = vpop.f32.mrb[0].mxu0
  %3256 = vmatprep.mubr.bf16.mxu0 0
  %3257 = vmatmul.mubr.bf16.gmra.mrb[0].mxu0 %v2526
  %v3258 = vpop.f32.mrb[0].mxu0
  %v3259 = vadd.f32 0.0, %v3258
  %v3260 = vpop.f32.mrb[0].mxu0
  %v3261 = vpop.f32.mrb[0].mxu0
  %v3262 = vadd.f32 0.0, %v3261
  %v3263 = vpop.f32.mrb[0].mxu0
  %3264 = vmatprep.mubr.bf16.mxu0 0
  %3265 = vmatmul.mubr.bf16.gmra.mrb[0].mxu0 %v2529
  %v3266 = vpop.f32.mrb[0].mxu0
  %v3267 = vadd.f32 0.0, %v3266
  %v3268 = vpop.f32.mrb[0].mxu0
  %v3269 = vpop.f32.mrb[0].mxu0
  %v3270 = vadd.f32 0.0, %v3269
  %v3271 = vpop.f32.mrb[0].mxu0
  %3272 = vmatprep.mubr.bf16.mxu0 0
  %3273 = vmatmul.mubr.bf16.gmra.mrb[0].mxu0 %v2532
  %v3274 = vpop.f32.mrb[0].mxu0
  %v3275 = vadd.f32 0.0, %v3274
  %v3276 = vpop.f32.mrb[0].mxu0
  %v3277 = vpop.f32.mrb[0].mxu0
  %v3278 = vadd.f32 0.0, %v3277
  %v3279 = vpop.f32.mrb[0].mxu0
  %3280 = vmatprep.mubr.bf16.mxu0 0
  %3281 = vmatmul.mubr.bf16.gmra.mrb[0].mxu0 %v2535
  %v3282 = vpop.f32.mrb[0].mxu0
  %v3283 = vadd.f32 0.0, %v3282
  %v3284 = vpop.f32.mrb[0].mxu0
  %v3285 = vpop.f32.mrb[0].mxu0
  %v3286 = vadd.f32 0.0, %v3285
  %v3287 = vpop.f32.mrb[0].mxu0
  %3288 = vmatprep.mubr.bf16.mxu0 0
  %3289 = vmatmul.mubr.bf16.gmra.mrb[0].mxu0 %v2538
  %v3290 = vpop.f32.mrb[0].mxu0
  %v3291 = vadd.f32 0.0, %v3290
  %v3292 = vpop.f32.mrb[0].mxu0
  %v3293 = vpop.f32.mrb[0].mxu0
  %v3294 = vadd.f32 0.0, %v3293
  %v3295 = vpop.f32.mrb[0].mxu0
  %3296 = vmatprep.mubr.bf16.mxu0 0
  %3297 = vmatmul.mubr.bf16.gmra.mrb[0].mxu0 %v2541
  %v3298 = vpop.f32.mrb[0].mxu0
  %v3299 = vadd.f32 0.0, %v3298
  %v3300 = vpop.f32.mrb[0].mxu0
  %v3301 = vpop.f32.mrb[0].mxu0
  %v3302 = vadd.f32 0.0, %v3301
  %v3303 = vpop.f32.mrb[0].mxu0
  %3304 = vmatprep.mubr.bf16.mxu0 0
  %3305 = vmatmul.mubr.bf16.gmra.mrb[0].mxu0 %v2544
  %v3306 = vpop.f32.mrb[0].mxu0
  %v3307 = vadd.f32 0.0, %v3306
  %v3308 = vpop.f32.mrb[0].mxu0
  %v3309 = vpop.f32.mrb[0].mxu0
  %v3310 = vadd.f32 0.0, %v3309
  %v3311 = vpop.f32.mrb[0].mxu0
  %3312 = vmatprep.mubr.bf16.mxu0 0
  %3313 = vmatmul.mubr.bf16.gmra.mrb[0].mxu0 %v2547
  %v3314 = vpop.f32.mrb[0].mxu0
  %v3315 = vadd.f32 0.0, %v3314
  %v3316 = vpop.f32.mrb[0].mxu0
  %v3317 = vpop.f32.mrb[0].mxu0
  %v3318 = vadd.f32 0.0, %v3317
  %v3319 = vpop.f32.mrb[0].mxu0
  %3320 = vmatprep.mubr.bf16.mxu0 0
  %3321 = vmatmul.mubr.bf16.gmra.mrb[0].mxu0 %v2550
  %v3322 = vpop.f32.mrb[0].mxu0
  %v3323 = vadd.f32 0.0, %v3322
  %v3324 = vpop.f32.mrb[0].mxu0
  %v3325 = vpop.f32.mrb[0].mxu0
  %v3326 = vadd.f32 0.0, %v3325
  %v3327 = vpop.f32.mrb[0].mxu0
  %3328 = vmatprep.mubr.bf16.mxu0 0
  %3329 = vmatmul.mubr.bf16.gmra.mrb[0].mxu0 %v2553
  %v3330 = vpop.f32.mrb[0].mxu0
  %v3331 = vadd.f32 0.0, %v3330
  %v3332 = vpop.f32.mrb[0].mxu0
  %v3333 = vpop.f32.mrb[0].mxu0
  %v3334 = vadd.f32 0.0, %v3333
  %v3335 = vpop.f32.mrb[0].mxu0
  %3336 = vmatprep.mubr.bf16.mxu0 0
  %3337 = vmatmul.mubr.bf16.gmra.mrb[0].mxu0 %v2556
  %v3338 = vpop.f32.mrb[0].mxu0
  %v3339 = vadd.f32 0.0, %v3338
  %v3340 = vpop.f32.mrb[0].mxu0
  %v3341 = vpop.f32.mrb[0].mxu0
  %v3342 = vadd.f32 0.0, %v3341
  %v3343 = vpop.f32.mrb[0].mxu0
  %3344 = vmatprep.mubr.bf16.mxu0 0
  %3345 = vmatmul.mubr.bf16.gmra.mrb[0].mxu0 %v2559
  %v3346 = vpop.f32.mrb[0].mxu0
  %v3347 = vadd.f32 0.0, %v3346
  %v3348 = vpop.f32.mrb[0].mxu0
  %v3349 = vpop.f32.mrb[0].mxu0
  %v3350 = vadd.f32 0.0, %v3349
  %v3351 = vpop.f32.mrb[0].mxu0
  %3352 = vmatprep.mubr.bf16.mxu0 0
  %3353 = vmatmul.mubr.bf16.gmra.mrb[0].mxu0 %v2562
  %v3354 = vpop.f32.mrb[0].mxu0
  %v3355 = vadd.f32 0.0, %v3354
  %v3356 = vpop.f32.mrb[0].mxu0
  %v3357 = vpop.f32.mrb[0].mxu0
  %v3358 = vadd.f32 0.0, %v3357
  %v3359 = vpop.f32.mrb[0].mxu0
  %3360 = vmatprep.mubr.bf16.mxu0 0
  %3361 = vmatmul.mubr.bf16.gmra.mrb[0].mxu0 %v2565
  %v3362 = vpop.f32.mrb[0].mxu0
  %v3363 = vadd.f32 0.0, %v3362
  %v3364 = vpop.f32.mrb[0].mxu0
  %v3365 = vpop.f32.mrb[0].mxu0
  %v3366 = vadd.f32 0.0, %v3365
  %v3367 = vpop.f32.mrb[0].mxu0
  %3368 = vmatprep.mubr.bf16.mxu0 0
  %3369 = vmatmul.mubr.bf16.gmra.mrb[0].mxu0 %v2568
  %v3370 = vpop.f32.mrb[0].mxu0
  %v3371 = vadd.f32 0.0, %v3370
  %v3372 = vpop.f32.mrb[0].mxu0
  %v3373 = vpop.f32.mrb[0].mxu0
  %v3374 = vadd.f32 0.0, %v3373
  %v3375 = vpop.f32.mrb[0].mxu0
  %3376 = vmatprep.mubr.bf16.mxu0 0
  %3377 = vmatmul.mubr.bf16.gmra.mrb[0].mxu0 %v2571
  %v3378 = vpop.f32.mrb[0].mxu0
  %v3379 = vadd.f32 0.0, %v3378
  %v3380 = vpop.f32.mrb[0].mxu0
  %v3381 = vpop.f32.mrb[0].mxu0
  %v3382 = vadd.f32 0.0, %v3381
  %v3383 = vpop.f32.mrb[0].mxu0
  %3384 = vmatprep.mubr.bf16.mxu0 0
  %3385 = vmatmul.mubr.bf16.gmra.mrb[0].mxu0 %v2574
  %v3386 = vpop.f32.mrb[0].mxu0
  %v3387 = vadd.f32 0.0, %v3386
  %v3388 = vpop.f32.mrb[0].mxu0
  %v3389 = vpop.f32.mrb[0].mxu0
  %v3390 = vadd.f32 0.0, %v3389
  %v3391 = vpop.f32.mrb[0].mxu0
  %3392 = vmatprep.mubr.bf16.mxu0 0
  %3393 = vmatmul.mubr.bf16.gmra.mrb[0].mxu0 %v2577
  %v3394 = vpop.f32.mrb[0].mxu0
  %v3395 = vadd.f32 0.0, %v3394
  %v3396 = vpop.f32.mrb[0].mxu0
  %v3397 = vpop.f32.mrb[0].mxu0
  %v3398 = vadd.f32 0.0, %v3397
  %v3399 = vpop.f32.mrb[0].mxu0
  %3400 = vmatprep.mubr.bf16.mxu0 0
  %3401 = vmatmul.mubr.bf16.gmra.mrb[0].mxu0 %v2580
  %v3402 = vpop.f32.mrb[0].mxu0
  %v3403 = vadd.f32 0.0, %v3402
  %v3404 = vpop.f32.mrb[0].mxu0
  %v3405 = vpop.f32.mrb[0].mxu0
  %v3406 = vadd.f32 0.0, %v3405
  %v3407 = vpop.f32.mrb[0].mxu0
  %3408 = vmatprep.mubr.bf16.mxu0 0
  %3409 = vmatmul.mubr.bf16.gmra.mrb[0].mxu0 %v2583
  %v3410 = vpop.f32.mrb[0].mxu0
  %v3411 = vadd.f32 0.0, %v3410
  %v3412 = vpop.f32.mrb[0].mxu0
  %v3413 = vpop.f32.mrb[0].mxu0
  %v3414 = vadd.f32 0.0, %v3413
  %v3415 = vpop.f32.mrb[0].mxu0
  %3416 = vmatprep.mubr.bf16.mxu0 0
  %3417 = vmatmul.mubr.bf16.gmra.mrb[0].mxu0 %v2586
  %v3418 = vpop.f32.mrb[0].mxu0
  %v3419 = vadd.f32 0.0, %v3418
  %v3420 = vpop.f32.mrb[0].mxu0
  %v3421 = vpop.f32.mrb[0].mxu0
  %v3422 = vadd.f32 0.0, %v3421
  %v3423 = vpop.f32.mrb[0].mxu0
  %3424 = vmatprep.mubr.bf16.mxu0 0
  %3425 = vmatmul.mubr.bf16.gmra.mrb[0].mxu0 %v2589
  %v3426 = vpop.f32.mrb[0].mxu0
  %v3427 = vadd.f32 0.0, %v3426
  %v3428 = vpop.f32.mrb[0].mxu0
  %v3429 = vpop.f32.mrb[0].mxu0
  %v3430 = vadd.f32 0.0, %v3429
  %v3431 = vpop.f32.mrb[0].mxu0
  %3432 = vmatprep.mubr.bf16.mxu0 0
  %3433 = vmatmul.mubr.bf16.gmra.mrb[0].mxu0 %v2592
  %v3434 = vpop.f32.mrb[0].mxu0
  %v3435 = vadd.f32 0.0, %v3434
  %v3436 = vpop.f32.mrb[0].mxu0
  %v3437 = vpop.f32.mrb[0].mxu0
  %v3438 = vadd.f32 0.0, %v3437
  %v3439 = vpop.f32.mrb[0].mxu0
  %3440 = vmatprep.mubr.bf16.mxu0 0
  %3441 = vmatmul.mubr.bf16.gmra.mrb[0].mxu0 %v2595
  %v3442 = vpop.f32.mrb[0].mxu0
  %v3443 = vadd.f32 0.0, %v3442
  %v3444 = vpop.f32.mrb[0].mxu0
  %v3445 = vpop.f32.mrb[0].mxu0
  %v3446 = vadd.f32 0.0, %v3445
  %v3447 = vpop.f32.mrb[0].mxu0
  %3448 = vmatprep.mubr.bf16.mxu0 0
  %3449 = vmatmul.mubr.bf16.gmra.mrb[0].mxu0 %v2598
  %v3450 = vpop.f32.mrb[0].mxu0
  %v3451 = vadd.f32 0.0, %v3450
  %v3452 = vpop.f32.mrb[0].mxu0
  %v3453 = vpop.f32.mrb[0].mxu0
  %v3454 = vadd.f32 0.0, %v3453
  %v3455 = vpop.f32.mrb[0].mxu0
  %3456 = vmatprep.mubr.bf16.mxu0 0
  %3457 = vmatmul.mubr.bf16.gmra.mrb[0].mxu0 %v2601
  %v3458 = vpop.f32.mrb[0].mxu0
  %v3459 = vadd.f32 0.0, %v3458
  %v3460 = vpop.f32.mrb[0].mxu0
  %v3461 = vpop.f32.mrb[0].mxu0
  %v3462 = vadd.f32 0.0, %v3461
  %v3463 = vpop.f32.mrb[0].mxu0
  %3464 = vmatprep.mubr.bf16.mxu0 0
  %3465 = vmatmul.mubr.bf16.gmra.mrb[0].mxu0 %v2604
  %v3466 = vpop.f32.mrb[0].mxu0
  %v3467 = vadd.f32 0.0, %v3466
  %v3468 = vpop.f32.mrb[0].mxu0
  %v3469 = vpop.f32.mrb[0].mxu0
  %v3470 = vadd.f32 0.0, %v3469
  %v3471 = vpop.f32.mrb[0].mxu0
  %3472 = vmatprep.mubr.bf16.mxu0 0
  %3473 = vmatmul.mubr.bf16.gmra.mrb[0].mxu0 %v2607
  %v3474 = vpop.f32.mrb[0].mxu0
  %v3475 = vadd.f32 0.0, %v3474
  %v3476 = vpop.f32.mrb[0].mxu0
  %v3477 = vpop.f32.mrb[0].mxu0
  %v3478 = vadd.f32 0.0, %v3477
  %v3479 = vpop.f32.mrb[0].mxu0
  %3480 = vmatprep.mubr.bf16.mxu0 0
  %3481 = vmatmul.mubr.bf16.gmra.mrb[0].mxu0 %v2610
  %v3482 = vpop.f32.mrb[0].mxu0
  %v3483 = vadd.f32 0.0, %v3482
  %v3484 = vpop.f32.mrb[0].mxu0
  %v3485 = vpop.f32.mrb[0].mxu0
  %v3486 = vadd.f32 0.0, %v3485
  %v3487 = vpop.f32.mrb[0].mxu0
  %3488 = vmatprep.mubr.bf16.mxu0 0
  %3489 = vmatmul.mubr.bf16.gmra.mrb[0].mxu0 %v2613
  %v3490 = vpop.f32.mrb[0].mxu0
  %v3491 = vadd.f32 0.0, %v3490
  %v3492 = vpop.f32.mrb[0].mxu0
  %v3493 = vpop.f32.mrb[0].mxu0
  %v3494 = vadd.f32 0.0, %v3493
  %v3495 = vpop.f32.mrb[0].mxu0
  %3496 = vmatprep.mubr.bf16.mxu0 0
  %3497 = vmatmul.mubr.bf16.gmra.mrb[0].mxu0 %v2616
  %v3498 = vpop.f32.mrb[0].mxu0
  %v3499 = vadd.f32 0.0, %v3498
  %v3500 = vpop.f32.mrb[0].mxu0
  %v3501 = vpop.f32.mrb[0].mxu0
  %v3502 = vadd.f32 0.0, %v3501
  %v3503 = vpop.f32.mrb[0].mxu0
  %3504 = vmatprep.mubr.bf16.mxu0 0
  %3505 = vmatmul.mubr.bf16.gmra.mrb[0].mxu0 %v2619
  %v3506 = vpop.f32.mrb[0].mxu0
  %v3507 = vadd.f32 0.0, %v3506
  %v3508 = vpop.f32.mrb[0].mxu0
  %v3509 = vpop.f32.mrb[0].mxu0
  %v3510 = vadd.f32 0.0, %v3509
  %v3511 = vpop.f32.mrb[0].mxu0
  %3512 = vmatprep.mubr.bf16.mxu0 0
  %3513 = vmatmul.mubr.bf16.gmra.mrb[0].mxu0 %v2622
  %v3514 = vpop.f32.mrb[0].mxu0
  %v3515 = vadd.f32 0.0, %v3514
  %v3516 = vpop.f32.mrb[0].mxu0
  %v3517 = vpop.f32.mrb[0].mxu0
  %v3518 = vadd.f32 0.0, %v3517
  %v3519 = vpop.f32.mrb[0].mxu0
  %3520 = vmatprep.mubr.bf16.mxu0 0
  %3521 = vmatmul.mubr.bf16.gmra.mrb[0].mxu0 %v2625
  %v3522 = vpop.f32.mrb[0].mxu0
  %v3523 = vadd.f32 0.0, %v3522
  %v3524 = vpop.f32.mrb[0].mxu0
  %v3525 = vpop.f32.mrb[0].mxu0
  %v3526 = vadd.f32 0.0, %v3525
  %v3527 = vpop.f32.mrb[0].mxu0
  %3528 = vmatprep.mubr.bf16.mxu0 0
  %3529 = vmatmul.mubr.bf16.gmra.mrb[0].mxu0 %v2628
  %v3530 = vpop.f32.mrb[0].mxu0
  %v3531 = vadd.f32 0.0, %v3530
  %v3532 = vpop.f32.mrb[0].mxu0
  %v3533 = vpop.f32.mrb[0].mxu0
  %v3534 = vadd.f32 0.0, %v3533
  %v3535 = vpop.f32.mrb[0].mxu0
  %3536 = vmatprep.mubr.bf16.mxu0 0
  %3537 = vmatmul.mubr.bf16.gmra.mrb[0].mxu0 %v2631
  %v3538 = vpop.f32.mrb[0].mxu0
  %v3539 = vadd.f32 0.0, %v3538
  %v3540 = vpop.f32.mrb[0].mxu0
  %v3541 = vpop.f32.mrb[0].mxu0
  %v3542 = vadd.f32 0.0, %v3541
  %v3543 = vpop.f32.mrb[0].mxu0
  %3544 = vmatprep.mubr.bf16.mxu0 0
  %3545 = vmatmul.mubr.bf16.gmra.mrb[0].mxu0 %v2634
  %v3546 = vpop.f32.mrb[0].mxu0
  %v3547 = vadd.f32 0.0, %v3546
  %v3548 = vpop.f32.mrb[0].mxu0
  %v3549 = vpop.f32.mrb[0].mxu0
  %v3550 = vadd.f32 0.0, %v3549
  %v3551 = vpop.f32.mrb[0].mxu0
  %3552 = vmatprep.mubr.bf16.mxu0 0
  %3553 = vmatmul.mubr.bf16.gmra.mrb[0].mxu0 %v2637
  %v3554 = vpop.f32.mrb[0].mxu0
  %v3555 = vadd.f32 0.0, %v3554
  %v3556 = vpop.f32.mrb[0].mxu0
  %v3557 = vpop.f32.mrb[0].mxu0
  %v3558 = vadd.f32 0.0, %v3557
  %v3559 = vpop.f32.mrb[0].mxu0
  %3560 = vmatprep.mubr.bf16.mxu0 0
  %3561 = vmatmul.mubr.bf16.gmra.mrb[0].mxu0 %v2640
  %v3562 = vpop.f32.mrb[0].mxu0
  %v3563 = vadd.f32 0.0, %v3562
  %v3564 = vpop.f32.mrb[0].mxu0
  %v3565 = vpop.f32.mrb[0].mxu0
  %v3566 = vadd.f32 0.0, %v3565
  %v3567 = vpop.f32.mrb[0].mxu0
  %3568 = vmatprep.mubr.bf16.mxu0 0
  %3569 = vmatmul.mubr.bf16.gmra.mrb[0].mxu0 %v2643
  %v3570 = vpop.f32.mrb[0].mxu0
  %v3571 = vadd.f32 0.0, %v3570
  %v3572 = vpop.f32.mrb[0].mxu0
  %v3573 = vpop.f32.mrb[0].mxu0
  %v3574 = vadd.f32 0.0, %v3573
  %v3575 = vpop.f32.mrb[0].mxu0
  %3576 = vmatprep.mubr.bf16.mxu0 0
  %3577 = vmatmul.mubr.bf16.gmra.mrb[0].mxu0 %v2646
  %v3578 = vpop.f32.mrb[0].mxu0
  %v3579 = vadd.f32 0.0, %v3578
  %v3580 = vpop.f32.mrb[0].mxu0
  %v3581 = vpop.f32.mrb[0].mxu0
  %v3582 = vadd.f32 0.0, %v3581
  %v3583 = vpop.f32.mrb[0].mxu0
  %3584 = vmatprep.mubr.bf16.mxu0 0
  %3585 = vmatmul.mubr.bf16.gmra.mrb[0].mxu0 %v2649
  %v3586 = vpop.f32.mrb[0].mxu0
  %v3587 = vadd.f32 0.0, %v3586
  %v3588 = vpop.f32.mrb[0].mxu0
  %v3589 = vpop.f32.mrb[0].mxu0
  %v3590 = vadd.f32 0.0, %v3589
  %v3591 = vpop.f32.mrb[0].mxu0
  %3592 = vmatprep.mubr.bf16.mxu0 0
  %3593 = vmatmul.mubr.bf16.gmra.mrb[0].mxu0 %v2652
  %v3594 = vpop.f32.mrb[0].mxu0
  %v3595 = vadd.f32 0.0, %v3594
  %v3596 = vpop.f32.mrb[0].mxu0
  %v3597 = vpop.f32.mrb[0].mxu0
  %v3598 = vadd.f32 0.0, %v3597
  %v3599 = vpop.f32.mrb[0].mxu0
  %3600 = vmatprep.mubr.bf16.mxu0 0
  %3601 = vmatmul.mubr.bf16.gmra.mrb[0].mxu0 %v2655
  %v3602 = vpop.f32.mrb[0].mxu0
  %v3603 = vadd.f32 0.0, %v3602
  %v3604 = vpop.f32.mrb[0].mxu0
  %v3605 = vpop.f32.mrb[0].mxu0
  %v3606 = vadd.f32 0.0, %v3605
  %v3607 = vpop.f32.mrb[0].mxu0
  %3608 = vdwg.mxu0
  %v3609 = vadd.f32 %v1971, %v3227
  %v3610 = vadd.f32 %v1974, %v3230
  %v3611 = vadd.f32 %v1979, %v3235
  %v3612 = vadd.f32 %v1982, %v3238
  %v3613 = vadd.f32 %v1987, %v3243
  %v3614 = vadd.f32 %v1990, %v3246
  %v3615 = vadd.f32 %v1995, %v3251
  %v3616 = vadd.f32 %v1998, %v3254
  %v3617 = vadd.f32 %v2003, %v3259
  %v3618 = vadd.f32 %v2006, %v3262
  %v3619 = vadd.f32 %v2011, %v3267
  %v3620 = vadd.f32 %v2014, %v3270
  %v3621 = vadd.f32 %v2019, %v3275
  %v3622 = vadd.f32 %v2022, %v3278
  %v3623 = vadd.f32 %v2027, %v3283
  %v3624 = vadd.f32 %v2030, %v3286
  %v3625 = vadd.f32 %v2035, %v3291
  %v3626 = vadd.f32 %v2038, %v3294
  %v3627 = vadd.f32 %v2043, %v3299
  %v3628 = vadd.f32 %v2046, %v3302
  %v3629 = vadd.f32 %v2051, %v3307
  %v3630 = vadd.f32 %v2054, %v3310
  %v3631 = vadd.f32 %v2059, %v3315
  %v3632 = vadd.f32 %v2062, %v3318
  %v3633 = vadd.f32 %v2067, %v3323
  %v3634 = vadd.f32 %v2070, %v3326
  %v3635 = vadd.f32 %v2075, %v3331
  %v3636 = vadd.f32 %v2078, %v3334
  %v3637 = vadd.f32 %v2083, %v3339
  %v3638 = vadd.f32 %v2086, %v3342
  %v3639 = vadd.f32 %v2091, %v3347
  %v3640 = vadd.f32 %v2094, %v3350
  %v3641 = vadd.f32 %v2099, %v3355
  %v3642 = vadd.f32 %v2102, %v3358
  %v3643 = vadd.f32 %v2107, %v3363
  %v3644 = vadd.f32 %v2110, %v3366
  %v3645 = vadd.f32 %v2115, %v3371
  %v3646 = vadd.f32 %v2118, %v3374
  %v3647 = vadd.f32 %v2123, %v3379
  %v3648 = vadd.f32 %v2126, %v3382
  %v3649 = vadd.f32 %v2131, %v3387
  %v3650 = vadd.f32 %v2134, %v3390
  %v3651 = vadd.f32 %v2139, %v3395
  %v3652 = vadd.f32 %v2142, %v3398
  %v3653 = vadd.f32 %v2147, %v3403
  %v3654 = vadd.f32 %v2150, %v3406
  %v3655 = vadd.f32 %v2155, %v3411
  %v3656 = vadd.f32 %v2158, %v3414
  %v3657 = vadd.f32 %v2163, %v3419
  %v3658 = vadd.f32 %v2166, %v3422
  %v3659 = vadd.f32 %v2171, %v3427
  %v3660 = vadd.f32 %v2174, %v3430
  %v3661 = vadd.f32 %v2179, %v3435
  %v3662 = vadd.f32 %v2182, %v3438
  %v3663 = vadd.f32 %v2187, %v3443
  %v3664 = vadd.f32 %v2190, %v3446
  %v3665 = vadd.f32 %v2195, %v3451
  %v3666 = vadd.f32 %v2198, %v3454
  %v3667 = vadd.f32 %v2203, %v3459
  %v3668 = vadd.f32 %v2206, %v3462
  %v3669 = vadd.f32 %v2211, %v3467
  %v3670 = vadd.f32 %v2214, %v3470
  %v3671 = vadd.f32 %v2219, %v3475
  %v3672 = vadd.f32 %v2222, %v3478
  %v3673 = vadd.f32 %v2227, %v3483
  %v3674 = vadd.f32 %v2230, %v3486
  %v3675 = vadd.f32 %v2235, %v3491
  %v3676 = vadd.f32 %v2238, %v3494
  %v3677 = vadd.f32 %v2243, %v3499
  %v3678 = vadd.f32 %v2246, %v3502
  %v3679 = vadd.f32 %v2251, %v3507
  %v3680 = vadd.f32 %v2254, %v3510
  %v3681 = vadd.f32 %v2259, %v3515
  %v3682 = vadd.f32 %v2262, %v3518
  %v3683 = vadd.f32 %v2267, %v3523
  %v3684 = vadd.f32 %v2270, %v3526
  %v3685 = vadd.f32 %v2275, %v3531
  %v3686 = vadd.f32 %v2278, %v3534
  %v3687 = vadd.f32 %v2283, %v3539
  %v3688 = vadd.f32 %v2286, %v3542
  %v3689 = vadd.f32 %v2291, %v3547
  %v3690 = vadd.f32 %v2294, %v3550
  %v3691 = vadd.f32 %v2299, %v3555
  %v3692 = vadd.f32 %v2302, %v3558
  %v3693 = vadd.f32 %v2307, %v3563
  %v3694 = vadd.f32 %v2310, %v3566
  %v3695 = vadd.f32 %v2315, %v3571
  %v3696 = vadd.f32 %v2318, %v3574
  %v3697 = vadd.f32 %v2323, %v3579
  %v3698 = vadd.f32 %v2326, %v3582
  %v3699 = vadd.f32 %v2331, %v3587
  %v3700 = vadd.f32 %v2334, %v3590
  %v3701 = vadd.f32 %v2339, %v3595
  %v3702 = vadd.f32 %v2342, %v3598
  %v3703 = vadd.f32 %v2347, %v3603
  %v3704 = vadd.f32 %v2350, %v3606
  %v3705 = vld [vmem:[%s0 + $0x3] sm:$0xff]
  %v3706 = vld [vmem:[%s0 + $0xb] sm:$0xff]
  %v3707 = vld [vmem:[%s0 + $0x13] sm:$0xff]
  %v3708 = vld [vmem:[%s0 + $0x23] sm:$0xff]
  %v3709 = vld [vmem:[%s0 + $0x2b] sm:$0xff]
  %v3710 = vld [vmem:[%s0 + $0x33] sm:$0xff]
  %v3711 = vld [vmem:[%s0 + $0x43] sm:$0xff]
  %v3712 = vld [vmem:[%s0 + $0x4b] sm:$0xff]
  %v3713 = vld [vmem:[%s0 + $0x53] sm:$0xff]
  %v3714 = vld [vmem:[%s0 + $0x63] sm:$0xff]
  %v3715 = vld [vmem:[%s0 + $0x6b] sm:$0xff]
  %v3716 = vld [vmem:[%s0 + $0x73] sm:$0xff]
  %v3717 = vld [vmem:[%s0 + $0x83] sm:$0xff]
  %v3718 = vld [vmem:[%s0 + $0x8b] sm:$0xff]
  %v3719 = vld [vmem:[%s0 + $0x93] sm:$0xff]
  %v3720 = vld [vmem:[%s0 + $0xa3] sm:$0xff]
  %v3721 = vld [vmem:[%s0 + $0xab] sm:$0xff]
  %v3722 = vld [vmem:[%s0 + $0xb3] sm:$0xff]
  %v3723 = vld [vmem:[%s0 + $0xc3] sm:$0xff]
  %v3724 = vld [vmem:[%s0 + $0xcb] sm:$0xff]
  %v3725 = vld [vmem:[%s0 + $0xd3] sm:$0xff]
  %v3726 = vld [vmem:[%s0 + $0xe3] sm:$0xff]
  %v3727 = vld [vmem:[%s0 + $0xeb] sm:$0xff]
  %v3728 = vld [vmem:[%s0 + $0xf3] sm:$0xff]
  %v3729 = vld [vmem:[%s0 + $0x103] sm:$0xff]
  %v3730 = vld [vmem:[%s0 + $0x10b] sm:$0xff]
  %v3731 = vld [vmem:[%s0 + $0x113] sm:$0xff]
  %v3732 = vld [vmem:[%s0 + $0x123] sm:$0xff]
  %v3733 = vld [vmem:[%s0 + $0x12b] sm:$0xff]
  %v3734 = vld [vmem:[%s0 + $0x133] sm:$0xff]
  %v3735 = vld [vmem:[%s0 + $0x143] sm:$0xff]
  %v3736 = vld [vmem:[%s0 + $0x14b] sm:$0xff]
  %v3737 = vld [vmem:[%s0 + $0x153] sm:$0xff]
  %v3738 = vld [vmem:[%s0 + $0x163] sm:$0xff]
  %v3739 = vld [vmem:[%s0 + $0x16b] sm:$0xff]
  %v3740 = vld [vmem:[%s0 + $0x173] sm:$0xff]
  %v3741 = vld [vmem:[%s0 + $0x183] sm:$0xff]
  %v3742 = vld [vmem:[%s0 + $0x18b] sm:$0xff]
  %v3743 = vld [vmem:[%s0 + $0x193] sm:$0xff]
  %v3744 = vld [vmem:[%s0 + $0x1a3] sm:$0xff]
  %v3745 = vld [vmem:[%s0 + $0x1ab] sm:$0xff]
  %v3746 = vld [vmem:[%s0 + $0x1b3] sm:$0xff]
  %v3747 = vld [vmem:[%s0 + $0x1c3] sm:$0xff]
  %v3748 = vld [vmem:[%s0 + $0x1cb] sm:$0xff]
  %v3749 = vld [vmem:[%s0 + $0x1d3] sm:$0xff]
  %v3750 = vld [vmem:[%s0 + $0x1e3] sm:$0xff]
  %v3751 = vld [vmem:[%s0 + $0x1eb] sm:$0xff]
  %v3752 = vld [vmem:[%s0 + $0x1f3] sm:$0xff]
  %v3753 = vld [vmem:[%s0 + $0x203] sm:$0xff]
  %v3754 = vld [vmem:[%s0 + $0x20b] sm:$0xff]
  %v3755 = vld [vmem:[%s0 + $0x213] sm:$0xff]
  %v3756 = vld [vmem:[%s0 + $0x223] sm:$0xff]
  %v3757 = vld [vmem:[%s0 + $0x22b] sm:$0xff]
  %v3758 = vld [vmem:[%s0 + $0x233] sm:$0xff]
  %v3759 = vld [vmem:[%s0 + $0x243] sm:$0xff]
  %v3760 = vld [vmem:[%s0 + $0x24b] sm:$0xff]
  %v3761 = vld [vmem:[%s0 + $0x253] sm:$0xff]
  %v3762 = vld [vmem:[%s0 + $0x263] sm:$0xff]
  %v3763 = vld [vmem:[%s0 + $0x26b] sm:$0xff]
  %v3764 = vld [vmem:[%s0 + $0x273] sm:$0xff]
  %v3765 = vld [vmem:[%s0 + $0x283] sm:$0xff]
  %v3766 = vld [vmem:[%s0 + $0x28b] sm:$0xff]
  %v3767 = vld [vmem:[%s0 + $0x293] sm:$0xff]
  %v3768 = vld [vmem:[%s0 + $0x2a3] sm:$0xff]
  %v3769 = vld [vmem:[%s0 + $0x2ab] sm:$0xff]
  %v3770 = vld [vmem:[%s0 + $0x2b3] sm:$0xff]
  %v3771 = vld [vmem:[%s0 + $0x2c3] sm:$0xff]
  %v3772 = vld [vmem:[%s0 + $0x2cb] sm:$0xff]
  %v3773 = vld [vmem:[%s0 + $0x2d3] sm:$0xff]
  %v3774 = vld [vmem:[%s0 + $0x2e3] sm:$0xff]
  %v3775 = vld [vmem:[%s0 + $0x2eb] sm:$0xff]
  %v3776 = vld [vmem:[%s0 + $0x2f3] sm:$0xff]
  %v3777 = vld [vmem:[%s0 + $0x303] sm:$0xff]
  %v3778 = vld [vmem:[%s0 + $0x30b] sm:$0xff]
  %v3779 = vld [vmem:[%s0 + $0x313] sm:$0xff]
  %v3780 = vld [vmem:[%s0 + $0x323] sm:$0xff]
  %v3781 = vld [vmem:[%s0 + $0x32b] sm:$0xff]
  %v3782 = vld [vmem:[%s0 + $0x333] sm:$0xff]
  %v3783 = vld [vmem:[%s0 + $0x343] sm:$0xff]
  %v3784 = vld [vmem:[%s0 + $0x34b] sm:$0xff]
  %v3785 = vld [vmem:[%s0 + $0x353] sm:$0xff]
  %v3786 = vld [vmem:[%s0 + $0x363] sm:$0xff]
  %v3787 = vld [vmem:[%s0 + $0x36b] sm:$0xff]
  %v3788 = vld [vmem:[%s0 + $0x373] sm:$0xff]
  %v3789 = vld [vmem:[%s0 + $0x383] sm:$0xff]
  %v3790 = vld [vmem:[%s0 + $0x38b] sm:$0xff]
  %v3791 = vld [vmem:[%s0 + $0x393] sm:$0xff]
  %v3792 = vld [vmem:[%s0 + $0x3a3] sm:$0xff]
  %v3793 = vld [vmem:[%s0 + $0x3ab] sm:$0xff]
  %v3794 = vld [vmem:[%s0 + $0x3b3] sm:$0xff]
  %v3795 = vld [vmem:[%s0 + $0x3c3] sm:$0xff]
  %v3796 = vld [vmem:[%s0 + $0x3cb] sm:$0xff]
  %v3797 = vld [vmem:[%s0 + $0x3d3] sm:$0xff]
  %v3798 = vld [vmem:[%s0 + $0x3e3] sm:$0xff]
  %v3799 = vld [vmem:[%s0 + $0x3eb] sm:$0xff]
  %v3800 = vld [vmem:[%s0 + $0x3f3] sm:$0xff]
  %v3801 = vpack.c.bf16 %v3706, %v3705
  %v3802 = vpack.c.bf16 %v3708, %v3707
  %v3803 = vpack.c.bf16 %v3710, %v3709
  %v3804 = vpack.c.bf16 %v3712, %v3711
  %v3805 = vpack.c.bf16 %v3714, %v3713
  %v3806 = vpack.c.bf16 %v3716, %v3715
  %v3807 = vpack.c.bf16 %v3718, %v3717
  %v3808 = vpack.c.bf16 %v3720, %v3719
  %v3809 = vpack.c.bf16 %v3722, %v3721
  %v3810 = vpack.c.bf16 %v3724, %v3723
  %v3811 = vpack.c.bf16 %v3726, %v3725
  %v3812 = vpack.c.bf16 %v3728, %v3727
  %v3813 = vpack.c.bf16 %v3730, %v3729
  %v3814 = vpack.c.bf16 %v3732, %v3731
  %v3815 = vpack.c.bf16 %v3734, %v3733
  %v3816 = vpack.c.bf16 %v3736, %v3735
  %v3817 = vpack.c.bf16 %v3738, %v3737
  %v3818 = vpack.c.bf16 %v3740, %v3739
  %v3819 = vpack.c.bf16 %v3742, %v3741
  %v3820 = vpack.c.bf16 %v3744, %v3743
  %v3821 = vpack.c.bf16 %v3746, %v3745
  %v3822 = vpack.c.bf16 %v3748, %v3747
  %v3823 = vpack.c.bf16 %v3750, %v3749
  %v3824 = vpack.c.bf16 %v3752, %v3751
  %v3825 = vpack.c.bf16 %v3754, %v3753
  %v3826 = vpack.c.bf16 %v3756, %v3755
  %v3827 = vpack.c.bf16 %v3758, %v3757
  %v3828 = vpack.c.bf16 %v3760, %v3759
  %v3829 = vpack.c.bf16 %v3762, %v3761
  %v3830 = vpack.c.bf16 %v3764, %v3763
  %v3831 = vpack.c.bf16 %v3766, %v3765
  %v3832 = vpack.c.bf16 %v3768, %v3767
  %v3833 = vpack.c.bf16 %v3770, %v3769
  %v3834 = vpack.c.bf16 %v3772, %v3771
  %v3835 = vpack.c.bf16 %v3774, %v3773
  %v3836 = vpack.c.bf16 %v3776, %v3775
  %v3837 = vpack.c.bf16 %v3778, %v3777
  %v3838 = vpack.c.bf16 %v3780, %v3779
  %v3839 = vpack.c.bf16 %v3782, %v3781
  %v3840 = vpack.c.bf16 %v3784, %v3783
  %v3841 = vpack.c.bf16 %v3786, %v3785
  %v3842 = vpack.c.bf16 %v3788, %v3787
  %v3843 = vpack.c.bf16 %v3790, %v3789
  %v3844 = vpack.c.bf16 %v3792, %v3791
  %v3845 = vpack.c.bf16 %v3794, %v3793
  %v3846 = vpack.c.bf16 %v3796, %v3795
  %v3847 = vpack.c.bf16 %v3798, %v3797
  %v3848 = vpack.c.bf16 %v3800, %v3799
  %s3849 = scalar_lea.vmem %s1, 48
  %v3850 = vld [vmem:[%s3849] sm:$0xf]
  %v3851 = vld [vmem:[%s3849 + $0x4] sm:$0xf]
  %v3852 = vld [vmem:[%s3849 + $0x8] sm:$0xf]
  %v3853 = vld [vmem:[%s3849 + $0xc] sm:$0x3]
  %v3858 = vunpack.c.l.b16 %v3850
  %v3859 = vunpack.c.l.b16 %v3851
  %v3860 = vunpack.c.l.b16 %v3852
  %v3861 = vunpack.c.l.b16 %v3853
  %v3862 = vpack.c.b16 %v3859, %v3858
  %v3863 = vpack.c.b16 %v3861, %v3860
  %v3866 = vsel %vm345, %v3801, 0
  %v3869 = vsel %vm345, %v3802, 0
  %v3872 = vsel %vm345, %v3803, 0
  %v3875 = vsel %vm345, %v3804, 0
  %v3878 = vsel %vm345, %v3805, 0
  %v3881 = vsel %vm345, %v3806, 0
  %v3884 = vsel %vm345, %v3807, 0
  %v3887 = vsel %vm345, %v3808, 0
  %v3890 = vsel %vm345, %v3809, 0
  %v3893 = vsel %vm345, %v3810, 0
  %v3896 = vsel %vm345, %v3811, 0
  %v3899 = vsel %vm345, %v3812, 0
  %v3902 = vsel %vm345, %v3813, 0
  %v3905 = vsel %vm345, %v3814, 0
  %v3908 = vsel %vm345, %v3815, 0
  %v3911 = vsel %vm345, %v3816, 0
  %v3914 = vsel %vm345, %v3817, 0
  %v3917 = vsel %vm345, %v3818, 0
  %v3920 = vsel %vm345, %v3819, 0
  %v3923 = vsel %vm345, %v3820, 0
  %v3926 = vsel %vm345, %v3821, 0
  %v3929 = vsel %vm345, %v3822, 0
  %v3932 = vsel %vm345, %v3823, 0
  %v3935 = vsel %vm345, %v3824, 0
  %v3938 = vsel %vm345, %v3825, 0
  %v3941 = vsel %vm345, %v3826, 0
  %v3944 = vsel %vm345, %v3827, 0
  %v3947 = vsel %vm345, %v3828, 0
  %v3950 = vsel %vm345, %v3829, 0
  %v3953 = vsel %vm345, %v3830, 0
  %v3956 = vsel %vm345, %v3831, 0
  %v3959 = vsel %vm345, %v3832, 0
  %v3962 = vsel %vm345, %v3833, 0
  %v3965 = vsel %vm345, %v3834, 0
  %v3968 = vsel %vm345, %v3835, 0
  %v3971 = vsel %vm345, %v3836, 0
  %v3974 = vsel %vm345, %v3837, 0
  %v3977 = vsel %vm345, %v3838, 0
  %v3980 = vsel %vm345, %v3839, 0
  %v3983 = vsel %vm345, %v3840, 0
  %v3986 = vsel %vm345, %v3841, 0
  %v3989 = vsel %vm345, %v3842, 0
  %v3992 = vsel %vm345, %v3843, 0
  %v3995 = vsel %vm345, %v3844, 0
  %v3998 = vsel %vm345, %v3845, 0
  %v4001 = vsel %vm345, %v3846, 0
  %v4004 = vsel %vm345, %v3847, 0
  %v4007 = vsel %vm345, %v3848, 0
  %v4010 = vsel %vm490, %v3863, 0
  %4012 = vmatprep.subr.bf16.mxu0 0
  %4013 = vmatpush1.bf16.msra.mxu0 %v3862
  %4014 = vmatprep.subr.bf16.mxu0 0
  %4015 = vmatpush1.bf16.msra.mxu0 %v4010
  %4016 = vmatprep.subr.bf16.mxu0 0
  %4017 = vmatpush1.bf16.msra.mxu0 0
  %4018 = vmatprep.subr.bf16.mxu0 0
  %4019 = vmatpush1.bf16.msra.mxu0 0
  %4020 = vmatprep.subr.bf16.mxu0 0
  %4021 = vmatpush1.bf16.msra.mxu0 0
  %4022 = vmatprep.subr.bf16.mxu0 0
  %4023 = vmatpush1.bf16.msra.mxu0 0
  %4024 = vmatprep.subr.bf16.mxu0 0
  %4025 = vmatpush1.bf16.msra.mxu0 0
  %4026 = vmatprep.subr.bf16.mxu0 0
  %4027 = vmatpush1.bf16.msra.mxu0 0
  %4028 = vmatprep.subr.bf16.mxu0 0
  %4029 = vmatpush1.bf16.msra.mxu0 0
  %4030 = vmatprep.subr.bf16.mxu0 0
  %4031 = vmatpush1.bf16.msra.mxu0 0
  %4032 = vmatprep.subr.bf16.mxu0 0
  %4033 = vmatpush1.bf16.msra.mxu0 0
  %4034 = vmatprep.subr.bf16.mxu0 0
  %4035 = vmatpush1.bf16.msra.mxu0 0
  %4036 = vmatprep.subr.bf16.mxu0 0
  %4037 = vmatpush1.bf16.msra.mxu0 0
  %4038 = vmatprep.subr.bf16.mxu0 0
  %4039 = vmatpush1.bf16.msra.mxu0 0
  %4040 = vmatprep.subr.bf16.mxu0 0
  %4041 = vmatpush1.bf16.msra.mxu0 0
  %4042 = vmatprep.subr.bf16.mxu0 0
  %4043 = vmatpush1.bf16.msra.mxu0 0
  %4044 = vmatprep.mubr.bf16.mxu0 0
  %4045 = vmatmul.mubr.bf16.gmra.mrb[0].mxu0 %v3866
  %v4046 = vpop.f32.mrb[0].mxu0
  %v4047 = vadd.f32 0.0, %v4046
  %v4048 = vpop.f32.mrb[0].mxu0
  %v4049 = vpop.f32.mrb[0].mxu0
  %v4050 = vadd.f32 0.0, %v4049
  %v4051 = vpop.f32.mrb[0].mxu0
  %4052 = vmatprep.mubr.bf16.mxu0 0
  %4053 = vmatmul.mubr.bf16.gmra.mrb[0].mxu0 %v3869
  %v4054 = vpop.f32.mrb[0].mxu0
  %v4055 = vadd.f32 0.0, %v4054
  %v4056 = vpop.f32.mrb[0].mxu0
  %v4057 = vpop.f32.mrb[0].mxu0
  %v4058 = vadd.f32 0.0, %v4057
  %v4059 = vpop.f32.mrb[0].mxu0
  %4060 = vmatprep.mubr.bf16.mxu0 0
  %4061 = vmatmul.mubr.bf16.gmra.mrb[0].mxu0 %v3872
  %v4062 = vpop.f32.mrb[0].mxu0
  %v4063 = vadd.f32 0.0, %v4062
  %v4064 = vpop.f32.mrb[0].mxu0
  %v4065 = vpop.f32.mrb[0].mxu0
  %v4066 = vadd.f32 0.0, %v4065
  %v4067 = vpop.f32.mrb[0].mxu0
  %4068 = vmatprep.mubr.bf16.mxu0 0
  %4069 = vmatmul.mubr.bf16.gmra.mrb[0].mxu0 %v3875
  %v4070 = vpop.f32.mrb[0].mxu0
  %v4071 = vadd.f32 0.0, %v4070
  %v4072 = vpop.f32.mrb[0].mxu0
  %v4073 = vpop.f32.mrb[0].mxu0
  %v4074 = vadd.f32 0.0, %v4073
  %v4075 = vpop.f32.mrb[0].mxu0
  %4076 = vmatprep.mubr.bf16.mxu0 0
  %4077 = vmatmul.mubr.bf16.gmra.mrb[0].mxu0 %v3878
  %v4078 = vpop.f32.mrb[0].mxu0
  %v4079 = vadd.f32 0.0, %v4078
  %v4080 = vpop.f32.mrb[0].mxu0
  %v4081 = vpop.f32.mrb[0].mxu0
  %v4082 = vadd.f32 0.0, %v4081
  %v4083 = vpop.f32.mrb[0].mxu0
  %4084 = vmatprep.mubr.bf16.mxu0 0
  %4085 = vmatmul.mubr.bf16.gmra.mrb[0].mxu0 %v3881
  %v4086 = vpop.f32.mrb[0].mxu0
  %v4087 = vadd.f32 0.0, %v4086
  %v4088 = vpop.f32.mrb[0].mxu0
  %v4089 = vpop.f32.mrb[0].mxu0
  %v4090 = vadd.f32 0.0, %v4089
  %v4091 = vpop.f32.mrb[0].mxu0
  %4092 = vmatprep.mubr.bf16.mxu0 0
  %4093 = vmatmul.mubr.bf16.gmra.mrb[0].mxu0 %v3884
  %v4094 = vpop.f32.mrb[0].mxu0
  %v4095 = vadd.f32 0.0, %v4094
  %v4096 = vpop.f32.mrb[0].mxu0
  %v4097 = vpop.f32.mrb[0].mxu0
  %v4098 = vadd.f32 0.0, %v4097
  %v4099 = vpop.f32.mrb[0].mxu0
  %4100 = vmatprep.mubr.bf16.mxu0 0
  %4101 = vmatmul.mubr.bf16.gmra.mrb[0].mxu0 %v3887
  %v4102 = vpop.f32.mrb[0].mxu0
  %v4103 = vadd.f32 0.0, %v4102
  %v4104 = vpop.f32.mrb[0].mxu0
  %v4105 = vpop.f32.mrb[0].mxu0
  %v4106 = vadd.f32 0.0, %v4105
  %v4107 = vpop.f32.mrb[0].mxu0
  %4108 = vmatprep.mubr.bf16.mxu0 0
  %4109 = vmatmul.mubr.bf16.gmra.mrb[0].mxu0 %v3890
  %v4110 = vpop.f32.mrb[0].mxu0
  %v4111 = vadd.f32 0.0, %v4110
  %v4112 = vpop.f32.mrb[0].mxu0
  %v4113 = vpop.f32.mrb[0].mxu0
  %v4114 = vadd.f32 0.0, %v4113
  %v4115 = vpop.f32.mrb[0].mxu0
  %4116 = vmatprep.mubr.bf16.mxu0 0
  %4117 = vmatmul.mubr.bf16.gmra.mrb[0].mxu0 %v3893
  %v4118 = vpop.f32.mrb[0].mxu0
  %v4119 = vadd.f32 0.0, %v4118
  %v4120 = vpop.f32.mrb[0].mxu0
  %v4121 = vpop.f32.mrb[0].mxu0
  %v4122 = vadd.f32 0.0, %v4121
  %v4123 = vpop.f32.mrb[0].mxu0
  %4124 = vmatprep.mubr.bf16.mxu0 0
  %4125 = vmatmul.mubr.bf16.gmra.mrb[0].mxu0 %v3896
  %v4126 = vpop.f32.mrb[0].mxu0
  %v4127 = vadd.f32 0.0, %v4126
  %v4128 = vpop.f32.mrb[0].mxu0
  %v4129 = vpop.f32.mrb[0].mxu0
  %v4130 = vadd.f32 0.0, %v4129
  %v4131 = vpop.f32.mrb[0].mxu0
  %4132 = vmatprep.mubr.bf16.mxu0 0
  %4133 = vmatmul.mubr.bf16.gmra.mrb[0].mxu0 %v3899
  %v4134 = vpop.f32.mrb[0].mxu0
  %v4135 = vadd.f32 0.0, %v4134
  %v4136 = vpop.f32.mrb[0].mxu0
  %v4137 = vpop.f32.mrb[0].mxu0
  %v4138 = vadd.f32 0.0, %v4137
  %v4139 = vpop.f32.mrb[0].mxu0
  %4140 = vmatprep.mubr.bf16.mxu0 0
  %4141 = vmatmul.mubr.bf16.gmra.mrb[0].mxu0 %v3902
  %v4142 = vpop.f32.mrb[0].mxu0
  %v4143 = vadd.f32 0.0, %v4142
  %v4144 = vpop.f32.mrb[0].mxu0
  %v4145 = vpop.f32.mrb[0].mxu0
  %v4146 = vadd.f32 0.0, %v4145
  %v4147 = vpop.f32.mrb[0].mxu0
  %4148 = vmatprep.mubr.bf16.mxu0 0
  %4149 = vmatmul.mubr.bf16.gmra.mrb[0].mxu0 %v3905
  %v4150 = vpop.f32.mrb[0].mxu0
  %v4151 = vadd.f32 0.0, %v4150
  %v4152 = vpop.f32.mrb[0].mxu0
  %v4153 = vpop.f32.mrb[0].mxu0
  %v4154 = vadd.f32 0.0, %v4153
  %v4155 = vpop.f32.mrb[0].mxu0
  %4156 = vmatprep.mubr.bf16.mxu0 0
  %4157 = vmatmul.mubr.bf16.gmra.mrb[0].mxu0 %v3908
  %v4158 = vpop.f32.mrb[0].mxu0
  %v4159 = vadd.f32 0.0, %v4158
  %v4160 = vpop.f32.mrb[0].mxu0
  %v4161 = vpop.f32.mrb[0].mxu0
  %v4162 = vadd.f32 0.0, %v4161
  %v4163 = vpop.f32.mrb[0].mxu0
  %4164 = vmatprep.mubr.bf16.mxu0 0
  %4165 = vmatmul.mubr.bf16.gmra.mrb[0].mxu0 %v3911
  %v4166 = vpop.f32.mrb[0].mxu0
  %v4167 = vadd.f32 0.0, %v4166
  %v4168 = vpop.f32.mrb[0].mxu0
  %v4169 = vpop.f32.mrb[0].mxu0
  %v4170 = vadd.f32 0.0, %v4169
  %v4171 = vpop.f32.mrb[0].mxu0
  %4172 = vmatprep.mubr.bf16.mxu0 0
  %4173 = vmatmul.mubr.bf16.gmra.mrb[0].mxu0 %v3914
  %v4174 = vpop.f32.mrb[0].mxu0
  %v4175 = vadd.f32 0.0, %v4174
  %v4176 = vpop.f32.mrb[0].mxu0
  %v4177 = vpop.f32.mrb[0].mxu0
  %v4178 = vadd.f32 0.0, %v4177
  %v4179 = vpop.f32.mrb[0].mxu0
  %4180 = vmatprep.mubr.bf16.mxu0 0
  %4181 = vmatmul.mubr.bf16.gmra.mrb[0].mxu0 %v3917
  %v4182 = vpop.f32.mrb[0].mxu0
  %v4183 = vadd.f32 0.0, %v4182
  %v4184 = vpop.f32.mrb[0].mxu0
  %v4185 = vpop.f32.mrb[0].mxu0
  %v4186 = vadd.f32 0.0, %v4185
  %v4187 = vpop.f32.mrb[0].mxu0
  %4188 = vmatprep.mubr.bf16.mxu0 0
  %4189 = vmatmul.mubr.bf16.gmra.mrb[0].mxu0 %v3920
  %v4190 = vpop.f32.mrb[0].mxu0
  %v4191 = vadd.f32 0.0, %v4190
  %v4192 = vpop.f32.mrb[0].mxu0
  %v4193 = vpop.f32.mrb[0].mxu0
  %v4194 = vadd.f32 0.0, %v4193
  %v4195 = vpop.f32.mrb[0].mxu0
  %4196 = vmatprep.mubr.bf16.mxu0 0
  %4197 = vmatmul.mubr.bf16.gmra.mrb[0].mxu0 %v3923
  %v4198 = vpop.f32.mrb[0].mxu0
  %v4199 = vadd.f32 0.0, %v4198
  %v4200 = vpop.f32.mrb[0].mxu0
  %v4201 = vpop.f32.mrb[0].mxu0
  %v4202 = vadd.f32 0.0, %v4201
  %v4203 = vpop.f32.mrb[0].mxu0
  %4204 = vmatprep.mubr.bf16.mxu0 0
  %4205 = vmatmul.mubr.bf16.gmra.mrb[0].mxu0 %v3926
  %v4206 = vpop.f32.mrb[0].mxu0
  %v4207 = vadd.f32 0.0, %v4206
  %v4208 = vpop.f32.mrb[0].mxu0
  %v4209 = vpop.f32.mrb[0].mxu0
  %v4210 = vadd.f32 0.0, %v4209
  %v4211 = vpop.f32.mrb[0].mxu0
  %4212 = vmatprep.mubr.bf16.mxu0 0
  %4213 = vmatmul.mubr.bf16.gmra.mrb[0].mxu0 %v3929
  %v4214 = vpop.f32.mrb[0].mxu0
  %v4215 = vadd.f32 0.0, %v4214
  %v4216 = vpop.f32.mrb[0].mxu0
  %v4217 = vpop.f32.mrb[0].mxu0
  %v4218 = vadd.f32 0.0, %v4217
  %v4219 = vpop.f32.mrb[0].mxu0
  %4220 = vmatprep.mubr.bf16.mxu0 0
  %4221 = vmatmul.mubr.bf16.gmra.mrb[0].mxu0 %v3932
  %v4222 = vpop.f32.mrb[0].mxu0
  %v4223 = vadd.f32 0.0, %v4222
  %v4224 = vpop.f32.mrb[0].mxu0
  %v4225 = vpop.f32.mrb[0].mxu0
  %v4226 = vadd.f32 0.0, %v4225
  %v4227 = vpop.f32.mrb[0].mxu0
  %4228 = vmatprep.mubr.bf16.mxu0 0
  %4229 = vmatmul.mubr.bf16.gmra.mrb[0].mxu0 %v3935
  %v4230 = vpop.f32.mrb[0].mxu0
  %v4231 = vadd.f32 0.0, %v4230
  %v4232 = vpop.f32.mrb[0].mxu0
  %v4233 = vpop.f32.mrb[0].mxu0
  %v4234 = vadd.f32 0.0, %v4233
  %v4235 = vpop.f32.mrb[0].mxu0
  %4236 = vmatprep.mubr.bf16.mxu0 0
  %4237 = vmatmul.mubr.bf16.gmra.mrb[0].mxu0 %v3938
  %v4238 = vpop.f32.mrb[0].mxu0
  %v4239 = vadd.f32 0.0, %v4238
  %v4240 = vpop.f32.mrb[0].mxu0
  %v4241 = vpop.f32.mrb[0].mxu0
  %v4242 = vadd.f32 0.0, %v4241
  %v4243 = vpop.f32.mrb[0].mxu0
  %4244 = vmatprep.mubr.bf16.mxu0 0
  %4245 = vmatmul.mubr.bf16.gmra.mrb[0].mxu0 %v3941
  %v4246 = vpop.f32.mrb[0].mxu0
  %v4247 = vadd.f32 0.0, %v4246
  %v4248 = vpop.f32.mrb[0].mxu0
  %v4249 = vpop.f32.mrb[0].mxu0
  %v4250 = vadd.f32 0.0, %v4249
  %v4251 = vpop.f32.mrb[0].mxu0
  %4252 = vmatprep.mubr.bf16.mxu0 0
  %4253 = vmatmul.mubr.bf16.gmra.mrb[0].mxu0 %v3944
  %v4254 = vpop.f32.mrb[0].mxu0
  %v4255 = vadd.f32 0.0, %v4254
  %v4256 = vpop.f32.mrb[0].mxu0
  %v4257 = vpop.f32.mrb[0].mxu0
  %v4258 = vadd.f32 0.0, %v4257
  %v4259 = vpop.f32.mrb[0].mxu0
  %4260 = vmatprep.mubr.bf16.mxu0 0
  %4261 = vmatmul.mubr.bf16.gmra.mrb[0].mxu0 %v3947
  %v4262 = vpop.f32.mrb[0].mxu0
  %v4263 = vadd.f32 0.0, %v4262
  %v4264 = vpop.f32.mrb[0].mxu0
  %v4265 = vpop.f32.mrb[0].mxu0
  %v4266 = vadd.f32 0.0, %v4265
  %v4267 = vpop.f32.mrb[0].mxu0
  %4268 = vmatprep.mubr.bf16.mxu0 0
  %4269 = vmatmul.mubr.bf16.gmra.mrb[0].mxu0 %v3950
  %v4270 = vpop.f32.mrb[0].mxu0
  %v4271 = vadd.f32 0.0, %v4270
  %v4272 = vpop.f32.mrb[0].mxu0
  %v4273 = vpop.f32.mrb[0].mxu0
  %v4274 = vadd.f32 0.0, %v4273
  %v4275 = vpop.f32.mrb[0].mxu0
  %4276 = vmatprep.mubr.bf16.mxu0 0
  %4277 = vmatmul.mubr.bf16.gmra.mrb[0].mxu0 %v3953
  %v4278 = vpop.f32.mrb[0].mxu0
  %v4279 = vadd.f32 0.0, %v4278
  %v4280 = vpop.f32.mrb[0].mxu0
  %v4281 = vpop.f32.mrb[0].mxu0
  %v4282 = vadd.f32 0.0, %v4281
  %v4283 = vpop.f32.mrb[0].mxu0
  %4284 = vmatprep.mubr.bf16.mxu0 0
  %4285 = vmatmul.mubr.bf16.gmra.mrb[0].mxu0 %v3956
  %v4286 = vpop.f32.mrb[0].mxu0
  %v4287 = vadd.f32 0.0, %v4286
  %v4288 = vpop.f32.mrb[0].mxu0
  %v4289 = vpop.f32.mrb[0].mxu0
  %v4290 = vadd.f32 0.0, %v4289
  %v4291 = vpop.f32.mrb[0].mxu0
  %4292 = vmatprep.mubr.bf16.mxu0 0
  %4293 = vmatmul.mubr.bf16.gmra.mrb[0].mxu0 %v3959
  %v4294 = vpop.f32.mrb[0].mxu0
  %v4295 = vadd.f32 0.0, %v4294
  %v4296 = vpop.f32.mrb[0].mxu0
  %v4297 = vpop.f32.mrb[0].mxu0
  %v4298 = vadd.f32 0.0, %v4297
  %v4299 = vpop.f32.mrb[0].mxu0
  %4300 = vmatprep.mubr.bf16.mxu0 0
  %4301 = vmatmul.mubr.bf16.gmra.mrb[0].mxu0 %v3962
  %v4302 = vpop.f32.mrb[0].mxu0
  %v4303 = vadd.f32 0.0, %v4302
  %v4304 = vpop.f32.mrb[0].mxu0
  %v4305 = vpop.f32.mrb[0].mxu0
  %v4306 = vadd.f32 0.0, %v4305
  %v4307 = vpop.f32.mrb[0].mxu0
  %4308 = vmatprep.mubr.bf16.mxu0 0
  %4309 = vmatmul.mubr.bf16.gmra.mrb[0].mxu0 %v3965
  %v4310 = vpop.f32.mrb[0].mxu0
  %v4311 = vadd.f32 0.0, %v4310
  %v4312 = vpop.f32.mrb[0].mxu0
  %v4313 = vpop.f32.mrb[0].mxu0
  %v4314 = vadd.f32 0.0, %v4313
  %v4315 = vpop.f32.mrb[0].mxu0
  %4316 = vmatprep.mubr.bf16.mxu0 0
  %4317 = vmatmul.mubr.bf16.gmra.mrb[0].mxu0 %v3968
  %v4318 = vpop.f32.mrb[0].mxu0
  %v4319 = vadd.f32 0.0, %v4318
  %v4320 = vpop.f32.mrb[0].mxu0
  %v4321 = vpop.f32.mrb[0].mxu0
  %v4322 = vadd.f32 0.0, %v4321
  %v4323 = vpop.f32.mrb[0].mxu0
  %4324 = vmatprep.mubr.bf16.mxu0 0
  %4325 = vmatmul.mubr.bf16.gmra.mrb[0].mxu0 %v3971
  %v4326 = vpop.f32.mrb[0].mxu0
  %v4327 = vadd.f32 0.0, %v4326
  %v4328 = vpop.f32.mrb[0].mxu0
  %v4329 = vpop.f32.mrb[0].mxu0
  %v4330 = vadd.f32 0.0, %v4329
  %v4331 = vpop.f32.mrb[0].mxu0
  %4332 = vmatprep.mubr.bf16.mxu0 0
  %4333 = vmatmul.mubr.bf16.gmra.mrb[0].mxu0 %v3974
  %v4334 = vpop.f32.mrb[0].mxu0
  %v4335 = vadd.f32 0.0, %v4334
  %v4336 = vpop.f32.mrb[0].mxu0
  %v4337 = vpop.f32.mrb[0].mxu0
  %v4338 = vadd.f32 0.0, %v4337
  %v4339 = vpop.f32.mrb[0].mxu0
  %4340 = vmatprep.mubr.bf16.mxu0 0
  %4341 = vmatmul.mubr.bf16.gmra.mrb[0].mxu0 %v3977
  %v4342 = vpop.f32.mrb[0].mxu0
  %v4343 = vadd.f32 0.0, %v4342
  %v4344 = vpop.f32.mrb[0].mxu0
  %v4345 = vpop.f32.mrb[0].mxu0
  %v4346 = vadd.f32 0.0, %v4345
  %v4347 = vpop.f32.mrb[0].mxu0
  %4348 = vmatprep.mubr.bf16.mxu0 0
  %4349 = vmatmul.mubr.bf16.gmra.mrb[0].mxu0 %v3980
  %v4350 = vpop.f32.mrb[0].mxu0
  %v4351 = vadd.f32 0.0, %v4350
  %v4352 = vpop.f32.mrb[0].mxu0
  %v4353 = vpop.f32.mrb[0].mxu0
  %v4354 = vadd.f32 0.0, %v4353
  %v4355 = vpop.f32.mrb[0].mxu0
  %4356 = vmatprep.mubr.bf16.mxu0 0
  %4357 = vmatmul.mubr.bf16.gmra.mrb[0].mxu0 %v3983
  %v4358 = vpop.f32.mrb[0].mxu0
  %v4359 = vadd.f32 0.0, %v4358
  %v4360 = vpop.f32.mrb[0].mxu0
  %v4361 = vpop.f32.mrb[0].mxu0
  %v4362 = vadd.f32 0.0, %v4361
  %v4363 = vpop.f32.mrb[0].mxu0
  %4364 = vmatprep.mubr.bf16.mxu0 0
  %4365 = vmatmul.mubr.bf16.gmra.mrb[0].mxu0 %v3986
  %v4366 = vpop.f32.mrb[0].mxu0
  %v4367 = vadd.f32 0.0, %v4366
  %v4368 = vpop.f32.mrb[0].mxu0
  %v4369 = vpop.f32.mrb[0].mxu0
  %v4370 = vadd.f32 0.0, %v4369
  %v4371 = vpop.f32.mrb[0].mxu0
  %4372 = vmatprep.mubr.bf16.mxu0 0
  %4373 = vmatmul.mubr.bf16.gmra.mrb[0].mxu0 %v3989
  %v4374 = vpop.f32.mrb[0].mxu0
  %v4375 = vadd.f32 0.0, %v4374
  %v4376 = vpop.f32.mrb[0].mxu0
  %v4377 = vpop.f32.mrb[0].mxu0
  %v4378 = vadd.f32 0.0, %v4377
  %v4379 = vpop.f32.mrb[0].mxu0
  %4380 = vmatprep.mubr.bf16.mxu0 0
  %4381 = vmatmul.mubr.bf16.gmra.mrb[0].mxu0 %v3992
  %v4382 = vpop.f32.mrb[0].mxu0
  %v4383 = vadd.f32 0.0, %v4382
  %v4384 = vpop.f32.mrb[0].mxu0
  %v4385 = vpop.f32.mrb[0].mxu0
  %v4386 = vadd.f32 0.0, %v4385
  %v4387 = vpop.f32.mrb[0].mxu0
  %4388 = vmatprep.mubr.bf16.mxu0 0
  %4389 = vmatmul.mubr.bf16.gmra.mrb[0].mxu0 %v3995
  %v4390 = vpop.f32.mrb[0].mxu0
  %v4391 = vadd.f32 0.0, %v4390
  %v4392 = vpop.f32.mrb[0].mxu0
  %v4393 = vpop.f32.mrb[0].mxu0
  %v4394 = vadd.f32 0.0, %v4393
  %v4395 = vpop.f32.mrb[0].mxu0
  %4396 = vmatprep.mubr.bf16.mxu0 0
  %4397 = vmatmul.mubr.bf16.gmra.mrb[0].mxu0 %v3998
  %v4398 = vpop.f32.mrb[0].mxu0
  %v4399 = vadd.f32 0.0, %v4398
  %v4400 = vpop.f32.mrb[0].mxu0
  %v4401 = vpop.f32.mrb[0].mxu0
  %v4402 = vadd.f32 0.0, %v4401
  %v4403 = vpop.f32.mrb[0].mxu0
  %4404 = vmatprep.mubr.bf16.mxu0 0
  %4405 = vmatmul.mubr.bf16.gmra.mrb[0].mxu0 %v4001
  %v4406 = vpop.f32.mrb[0].mxu0
  %v4407 = vadd.f32 0.0, %v4406
  %v4408 = vpop.f32.mrb[0].mxu0
  %v4409 = vpop.f32.mrb[0].mxu0
  %v4410 = vadd.f32 0.0, %v4409
  %v4411 = vpop.f32.mrb[0].mxu0
  %4412 = vmatprep.mubr.bf16.mxu0 0
  %4413 = vmatmul.mubr.bf16.gmra.mrb[0].mxu0 %v4004
  %v4414 = vpop.f32.mrb[0].mxu0
  %v4415 = vadd.f32 0.0, %v4414
  %v4416 = vpop.f32.mrb[0].mxu0
  %v4417 = vpop.f32.mrb[0].mxu0
  %v4418 = vadd.f32 0.0, %v4417
  %v4419 = vpop.f32.mrb[0].mxu0
  %4420 = vmatprep.mubr.bf16.mxu0 0
  %4421 = vmatmul.mubr.bf16.gmra.mrb[0].mxu0 %v4007
  %v4422 = vpop.f32.mrb[0].mxu0
  %v4423 = vadd.f32 0.0, %v4422
  %v4424 = vpop.f32.mrb[0].mxu0
  %v4425 = vpop.f32.mrb[0].mxu0
  %v4426 = vadd.f32 0.0, %v4425
  %v4427 = vpop.f32.mrb[0].mxu0
  %4428 = vdwg.mxu0
  %v4429 = vadd.f32 %v3077, %v4047
  %v4430 = vadd.f32 %v3078, %v4050
  %v4431 = vadd.f32 %v3079, %v4055
  %v4432 = vadd.f32 %v3080, %v4058
  %v4433 = vadd.f32 %v3081, %v4063
  %v4434 = vadd.f32 %v3082, %v4066
  %v4435 = vadd.f32 %v3083, %v4071
  %v4436 = vadd.f32 %v3084, %v4074
  %v4437 = vadd.f32 %v3085, %v4079
  %v4438 = vadd.f32 %v3086, %v4082
  %v4439 = vadd.f32 %v3087, %v4087
  %v4440 = vadd.f32 %v3088, %v4090
  %v4441 = vadd.f32 %v3089, %v4095
  %v4442 = vadd.f32 %v3090, %v4098
  %v4443 = vadd.f32 %v3091, %v4103
  %v4444 = vadd.f32 %v3092, %v4106
  %v4445 = vadd.f32 %v3093, %v4111
  %v4446 = vadd.f32 %v3094, %v4114
  %v4447 = vadd.f32 %v3095, %v4119
  %v4448 = vadd.f32 %v3096, %v4122
  %v4449 = vadd.f32 %v3097, %v4127
  %v4450 = vadd.f32 %v3098, %v4130
  %v4451 = vadd.f32 %v3099, %v4135
  %v4452 = vadd.f32 %v3100, %v4138
  %v4453 = vadd.f32 %v3101, %v4143
  %v4454 = vadd.f32 %v3102, %v4146
  %v4455 = vadd.f32 %v3103, %v4151
  %v4456 = vadd.f32 %v3104, %v4154
  %v4457 = vadd.f32 %v3105, %v4159
  %v4458 = vadd.f32 %v3106, %v4162
  %v4459 = vadd.f32 %v3107, %v4167
  %v4460 = vadd.f32 %v3108, %v4170
  %v4461 = vadd.f32 %v3109, %v4175
  %v4462 = vadd.f32 %v3110, %v4178
  %v4463 = vadd.f32 %v3111, %v4183
  %v4464 = vadd.f32 %v3112, %v4186
  %v4465 = vadd.f32 %v3113, %v4191
  %v4466 = vadd.f32 %v3114, %v4194
  %v4467 = vadd.f32 %v3115, %v4199
  %v4468 = vadd.f32 %v3116, %v4202
  %v4469 = vadd.f32 %v3117, %v4207
  %v4470 = vadd.f32 %v3118, %v4210
  %v4471 = vadd.f32 %v3119, %v4215
  %v4472 = vadd.f32 %v3120, %v4218
  %v4473 = vadd.f32 %v3121, %v4223
  %v4474 = vadd.f32 %v3122, %v4226
  %v4475 = vadd.f32 %v3123, %v4231
  %v4476 = vadd.f32 %v3124, %v4234
  %v4477 = vadd.f32 %v3125, %v4239
  %v4478 = vadd.f32 %v3126, %v4242
  %v4479 = vadd.f32 %v3127, %v4247
  %v4480 = vadd.f32 %v3128, %v4250
  %v4481 = vadd.f32 %v3129, %v4255
  %v4482 = vadd.f32 %v3130, %v4258
  %v4483 = vadd.f32 %v3131, %v4263
  %v4484 = vadd.f32 %v3132, %v4266
  %v4485 = vadd.f32 %v3133, %v4271
  %v4486 = vadd.f32 %v3134, %v4274
  %v4487 = vadd.f32 %v3135, %v4279
  %v4488 = vadd.f32 %v3136, %v4282
  %v4489 = vadd.f32 %v3137, %v4287
  %v4490 = vadd.f32 %v3138, %v4290
  %v4491 = vadd.f32 %v3139, %v4295
  %v4492 = vadd.f32 %v3140, %v4298
  %v4493 = vadd.f32 %v3141, %v4303
  %v4494 = vadd.f32 %v3142, %v4306
  %v4495 = vadd.f32 %v3143, %v4311
  %v4496 = vadd.f32 %v3144, %v4314
  %v4497 = vadd.f32 %v3145, %v4319
  %v4498 = vadd.f32 %v3146, %v4322
  %v4499 = vadd.f32 %v3147, %v4327
  %v4500 = vadd.f32 %v3148, %v4330
  %v4501 = vadd.f32 %v3149, %v4335
  %v4502 = vadd.f32 %v3150, %v4338
  %v4503 = vadd.f32 %v3151, %v4343
  %v4504 = vadd.f32 %v3152, %v4346
  %v4505 = vadd.f32 %v3153, %v4351
  %v4506 = vadd.f32 %v3154, %v4354
  %v4507 = vadd.f32 %v3155, %v4359
  %v4508 = vadd.f32 %v3156, %v4362
  %v4509 = vadd.f32 %v3157, %v4367
  %v4510 = vadd.f32 %v3158, %v4370
  %v4511 = vadd.f32 %v3159, %v4375
  %v4512 = vadd.f32 %v3160, %v4378
  %v4513 = vadd.f32 %v3161, %v4383
  %v4514 = vadd.f32 %v3162, %v4386
  %v4515 = vadd.f32 %v3163, %v4391
  %v4516 = vadd.f32 %v3164, %v4394
  %v4517 = vadd.f32 %v3165, %v4399
  %v4518 = vadd.f32 %v3166, %v4402
  %v4519 = vadd.f32 %v3167, %v4407
  %v4520 = vadd.f32 %v3168, %v4410
  %v4521 = vadd.f32 %v3169, %v4415
  %v4522 = vadd.f32 %v3170, %v4418
  %v4523 = vadd.f32 %v3171, %v4423
  %v4524 = vadd.f32 %v3172, %v4426
  %s4525 = scalar_lea.vmem %s2, 48
  %v4526 = vld [vmem:[%s4525] sm:$0xf]
  %v4527 = vld [vmem:[%s4525 + $0x4] sm:$0xf]
  %v4528 = vld [vmem:[%s4525 + $0x8] sm:$0xf]
  %v4529 = vld [vmem:[%s4525 + $0xc] sm:$0x3]
  %v4534 = vunpack.c.l.b16 %v4526
  %v4535 = vunpack.c.l.b16 %v4527
  %v4536 = vunpack.c.l.b16 %v4528
  %v4537 = vunpack.c.l.b16 %v4529
  %v4538 = vpack.c.b16 %v4535, %v4534
  %v4539 = vpack.c.b16 %v4537, %v4536
  %v4542 = vsel %vm490, %v4539, 0
  %4544 = vmatprep.subr.bf16.mxu0 0
  %4545 = vmatpush1.bf16.msra.mxu0 %v4538
  %4546 = vmatprep.subr.bf16.mxu0 0
  %4547 = vmatpush1.bf16.msra.mxu0 %v4542
  %4548 = vmatprep.subr.bf16.mxu0 0
  %4549 = vmatpush1.bf16.msra.mxu0 0
  %4550 = vmatprep.subr.bf16.mxu0 0
  %4551 = vmatpush1.bf16.msra.mxu0 0
  %4552 = vmatprep.subr.bf16.mxu0 0
  %4553 = vmatpush1.bf16.msra.mxu0 0
  %4554 = vmatprep.subr.bf16.mxu0 0
  %4555 = vmatpush1.bf16.msra.mxu0 0
  %4556 = vmatprep.subr.bf16.mxu0 0
  %4557 = vmatpush1.bf16.msra.mxu0 0
  %4558 = vmatprep.subr.bf16.mxu0 0
  %4559 = vmatpush1.bf16.msra.mxu0 0
  %4560 = vmatprep.subr.bf16.mxu0 0
  %4561 = vmatpush1.bf16.msra.mxu0 0
  %4562 = vmatprep.subr.bf16.mxu0 0
  %4563 = vmatpush1.bf16.msra.mxu0 0
  %4564 = vmatprep.subr.bf16.mxu0 0
  %4565 = vmatpush1.bf16.msra.mxu0 0
  %4566 = vmatprep.subr.bf16.mxu0 0
  %4567 = vmatpush1.bf16.msra.mxu0 0
  %4568 = vmatprep.subr.bf16.mxu0 0
  %4569 = vmatpush1.bf16.msra.mxu0 0
  %4570 = vmatprep.subr.bf16.mxu0 0
  %4571 = vmatpush1.bf16.msra.mxu0 0
  %4572 = vmatprep.subr.bf16.mxu0 0
  %4573 = vmatpush1.bf16.msra.mxu0 0
  %4574 = vmatprep.subr.bf16.mxu0 0
  %4575 = vmatpush1.bf16.msra.mxu0 0
  %4576 = vmatprep.mubr.bf16.mxu0 0
  %4577 = vmatmul.mubr.bf16.gmra.mrb[0].mxu0 %v3866
  %v4578 = vpop.f32.mrb[0].mxu0
  %v4579 = vadd.f32 0.0, %v4578
  %v4580 = vpop.f32.mrb[0].mxu0
  %v4581 = vpop.f32.mrb[0].mxu0
  %v4582 = vadd.f32 0.0, %v4581
  %v4583 = vpop.f32.mrb[0].mxu0
  %4584 = vmatprep.mubr.bf16.mxu0 0
  %4585 = vmatmul.mubr.bf16.gmra.mrb[0].mxu0 %v3869
  %v4586 = vpop.f32.mrb[0].mxu0
  %v4587 = vadd.f32 0.0, %v4586
  %v4588 = vpop.f32.mrb[0].mxu0
  %v4589 = vpop.f32.mrb[0].mxu0
  %v4590 = vadd.f32 0.0, %v4589
  %v4591 = vpop.f32.mrb[0].mxu0
  %4592 = vmatprep.mubr.bf16.mxu0 0
  %4593 = vmatmul.mubr.bf16.gmra.mrb[0].mxu0 %v3872
  %v4594 = vpop.f32.mrb[0].mxu0
  %v4595 = vadd.f32 0.0, %v4594
  %v4596 = vpop.f32.mrb[0].mxu0
  %v4597 = vpop.f32.mrb[0].mxu0
  %v4598 = vadd.f32 0.0, %v4597
  %v4599 = vpop.f32.mrb[0].mxu0
  %4600 = vmatprep.mubr.bf16.mxu0 0
  %4601 = vmatmul.mubr.bf16.gmra.mrb[0].mxu0 %v3875
  %v4602 = vpop.f32.mrb[0].mxu0
  %v4603 = vadd.f32 0.0, %v4602
  %v4604 = vpop.f32.mrb[0].mxu0
  %v4605 = vpop.f32.mrb[0].mxu0
  %v4606 = vadd.f32 0.0, %v4605
  %v4607 = vpop.f32.mrb[0].mxu0
  %4608 = vmatprep.mubr.bf16.mxu0 0
  %4609 = vmatmul.mubr.bf16.gmra.mrb[0].mxu0 %v3878
  %v4610 = vpop.f32.mrb[0].mxu0
  %v4611 = vadd.f32 0.0, %v4610
  %v4612 = vpop.f32.mrb[0].mxu0
  %v4613 = vpop.f32.mrb[0].mxu0
  %v4614 = vadd.f32 0.0, %v4613
  %v4615 = vpop.f32.mrb[0].mxu0
  %4616 = vmatprep.mubr.bf16.mxu0 0
  %4617 = vmatmul.mubr.bf16.gmra.mrb[0].mxu0 %v3881
  %v4618 = vpop.f32.mrb[0].mxu0
  %v4619 = vadd.f32 0.0, %v4618
  %v4620 = vpop.f32.mrb[0].mxu0
  %v4621 = vpop.f32.mrb[0].mxu0
  %v4622 = vadd.f32 0.0, %v4621
  %v4623 = vpop.f32.mrb[0].mxu0
  %4624 = vmatprep.mubr.bf16.mxu0 0
  %4625 = vmatmul.mubr.bf16.gmra.mrb[0].mxu0 %v3884
  %v4626 = vpop.f32.mrb[0].mxu0
  %v4627 = vadd.f32 0.0, %v4626
  %v4628 = vpop.f32.mrb[0].mxu0
  %v4629 = vpop.f32.mrb[0].mxu0
  %v4630 = vadd.f32 0.0, %v4629
  %v4631 = vpop.f32.mrb[0].mxu0
  %4632 = vmatprep.mubr.bf16.mxu0 0
  %4633 = vmatmul.mubr.bf16.gmra.mrb[0].mxu0 %v3887
  %v4634 = vpop.f32.mrb[0].mxu0
  %v4635 = vadd.f32 0.0, %v4634
  %v4636 = vpop.f32.mrb[0].mxu0
  %v4637 = vpop.f32.mrb[0].mxu0
  %v4638 = vadd.f32 0.0, %v4637
  %v4639 = vpop.f32.mrb[0].mxu0
  %4640 = vmatprep.mubr.bf16.mxu0 0
  %4641 = vmatmul.mubr.bf16.gmra.mrb[0].mxu0 %v3890
  %v4642 = vpop.f32.mrb[0].mxu0
  %v4643 = vadd.f32 0.0, %v4642
  %v4644 = vpop.f32.mrb[0].mxu0
  %v4645 = vpop.f32.mrb[0].mxu0
  %v4646 = vadd.f32 0.0, %v4645
  %v4647 = vpop.f32.mrb[0].mxu0
  %4648 = vmatprep.mubr.bf16.mxu0 0
  %4649 = vmatmul.mubr.bf16.gmra.mrb[0].mxu0 %v3893
  %v4650 = vpop.f32.mrb[0].mxu0
  %v4651 = vadd.f32 0.0, %v4650
  %v4652 = vpop.f32.mrb[0].mxu0
  %v4653 = vpop.f32.mrb[0].mxu0
  %v4654 = vadd.f32 0.0, %v4653
  %v4655 = vpop.f32.mrb[0].mxu0
  %4656 = vmatprep.mubr.bf16.mxu0 0
  %4657 = vmatmul.mubr.bf16.gmra.mrb[0].mxu0 %v3896
  %v4658 = vpop.f32.mrb[0].mxu0
  %v4659 = vadd.f32 0.0, %v4658
  %v4660 = vpop.f32.mrb[0].mxu0
  %v4661 = vpop.f32.mrb[0].mxu0
  %v4662 = vadd.f32 0.0, %v4661
  %v4663 = vpop.f32.mrb[0].mxu0
  %4664 = vmatprep.mubr.bf16.mxu0 0
  %4665 = vmatmul.mubr.bf16.gmra.mrb[0].mxu0 %v3899
  %v4666 = vpop.f32.mrb[0].mxu0
  %v4667 = vadd.f32 0.0, %v4666
  %v4668 = vpop.f32.mrb[0].mxu0
  %v4669 = vpop.f32.mrb[0].mxu0
  %v4670 = vadd.f32 0.0, %v4669
  %v4671 = vpop.f32.mrb[0].mxu0
  %4672 = vmatprep.mubr.bf16.mxu0 0
  %4673 = vmatmul.mubr.bf16.gmra.mrb[0].mxu0 %v3902
  %v4674 = vpop.f32.mrb[0].mxu0
  %v4675 = vadd.f32 0.0, %v4674
  %v4676 = vpop.f32.mrb[0].mxu0
  %v4677 = vpop.f32.mrb[0].mxu0
  %v4678 = vadd.f32 0.0, %v4677
  %v4679 = vpop.f32.mrb[0].mxu0
  %4680 = vmatprep.mubr.bf16.mxu0 0
  %4681 = vmatmul.mubr.bf16.gmra.mrb[0].mxu0 %v3905
  %v4682 = vpop.f32.mrb[0].mxu0
  %v4683 = vadd.f32 0.0, %v4682
  %v4684 = vpop.f32.mrb[0].mxu0
  %v4685 = vpop.f32.mrb[0].mxu0
  %v4686 = vadd.f32 0.0, %v4685
  %v4687 = vpop.f32.mrb[0].mxu0
  %4688 = vmatprep.mubr.bf16.mxu0 0
  %4689 = vmatmul.mubr.bf16.gmra.mrb[0].mxu0 %v3908
  %v4690 = vpop.f32.mrb[0].mxu0
  %v4691 = vadd.f32 0.0, %v4690
  %v4692 = vpop.f32.mrb[0].mxu0
  %v4693 = vpop.f32.mrb[0].mxu0
  %v4694 = vadd.f32 0.0, %v4693
  %v4695 = vpop.f32.mrb[0].mxu0
  %4696 = vmatprep.mubr.bf16.mxu0 0
  %4697 = vmatmul.mubr.bf16.gmra.mrb[0].mxu0 %v3911
  %v4698 = vpop.f32.mrb[0].mxu0
  %v4699 = vadd.f32 0.0, %v4698
  %v4700 = vpop.f32.mrb[0].mxu0
  %v4701 = vpop.f32.mrb[0].mxu0
  %v4702 = vadd.f32 0.0, %v4701
  %v4703 = vpop.f32.mrb[0].mxu0
  %4704 = vmatprep.mubr.bf16.mxu0 0
  %4705 = vmatmul.mubr.bf16.gmra.mrb[0].mxu0 %v3914
  %v4706 = vpop.f32.mrb[0].mxu0
  %v4707 = vadd.f32 0.0, %v4706
  %v4708 = vpop.f32.mrb[0].mxu0
  %v4709 = vpop.f32.mrb[0].mxu0
  %v4710 = vadd.f32 0.0, %v4709
  %v4711 = vpop.f32.mrb[0].mxu0
  %4712 = vmatprep.mubr.bf16.mxu0 0
  %4713 = vmatmul.mubr.bf16.gmra.mrb[0].mxu0 %v3917
  %v4714 = vpop.f32.mrb[0].mxu0
  %v4715 = vadd.f32 0.0, %v4714
  %v4716 = vpop.f32.mrb[0].mxu0
  %v4717 = vpop.f32.mrb[0].mxu0
  %v4718 = vadd.f32 0.0, %v4717
  %v4719 = vpop.f32.mrb[0].mxu0
  %4720 = vmatprep.mubr.bf16.mxu0 0
  %4721 = vmatmul.mubr.bf16.gmra.mrb[0].mxu0 %v3920
  %v4722 = vpop.f32.mrb[0].mxu0
  %v4723 = vadd.f32 0.0, %v4722
  %v4724 = vpop.f32.mrb[0].mxu0
  %v4725 = vpop.f32.mrb[0].mxu0
  %v4726 = vadd.f32 0.0, %v4725
  %v4727 = vpop.f32.mrb[0].mxu0
  %4728 = vmatprep.mubr.bf16.mxu0 0
  %4729 = vmatmul.mubr.bf16.gmra.mrb[0].mxu0 %v3923
  %v4730 = vpop.f32.mrb[0].mxu0
  %v4731 = vadd.f32 0.0, %v4730
  %v4732 = vpop.f32.mrb[0].mxu0
  %v4733 = vpop.f32.mrb[0].mxu0
  %v4734 = vadd.f32 0.0, %v4733
  %v4735 = vpop.f32.mrb[0].mxu0
  %4736 = vmatprep.mubr.bf16.mxu0 0
  %4737 = vmatmul.mubr.bf16.gmra.mrb[0].mxu0 %v3926
  %v4738 = vpop.f32.mrb[0].mxu0
  %v4739 = vadd.f32 0.0, %v4738
  %v4740 = vpop.f32.mrb[0].mxu0
  %v4741 = vpop.f32.mrb[0].mxu0
  %v4742 = vadd.f32 0.0, %v4741
  %v4743 = vpop.f32.mrb[0].mxu0
  %4744 = vmatprep.mubr.bf16.mxu0 0
  %4745 = vmatmul.mubr.bf16.gmra.mrb[0].mxu0 %v3929
  %v4746 = vpop.f32.mrb[0].mxu0
  %v4747 = vadd.f32 0.0, %v4746
  %v4748 = vpop.f32.mrb[0].mxu0
  %v4749 = vpop.f32.mrb[0].mxu0
  %v4750 = vadd.f32 0.0, %v4749
  %v4751 = vpop.f32.mrb[0].mxu0
  %4752 = vmatprep.mubr.bf16.mxu0 0
  %4753 = vmatmul.mubr.bf16.gmra.mrb[0].mxu0 %v3932
  %v4754 = vpop.f32.mrb[0].mxu0
  %v4755 = vadd.f32 0.0, %v4754
  %v4756 = vpop.f32.mrb[0].mxu0
  %v4757 = vpop.f32.mrb[0].mxu0
  %v4758 = vadd.f32 0.0, %v4757
  %v4759 = vpop.f32.mrb[0].mxu0
  %4760 = vmatprep.mubr.bf16.mxu0 0
  %4761 = vmatmul.mubr.bf16.gmra.mrb[0].mxu0 %v3935
  %v4762 = vpop.f32.mrb[0].mxu0
  %v4763 = vadd.f32 0.0, %v4762
  %v4764 = vpop.f32.mrb[0].mxu0
  %v4765 = vpop.f32.mrb[0].mxu0
  %v4766 = vadd.f32 0.0, %v4765
  %v4767 = vpop.f32.mrb[0].mxu0
  %4768 = vmatprep.mubr.bf16.mxu0 0
  %4769 = vmatmul.mubr.bf16.gmra.mrb[0].mxu0 %v3938
  %v4770 = vpop.f32.mrb[0].mxu0
  %v4771 = vadd.f32 0.0, %v4770
  %v4772 = vpop.f32.mrb[0].mxu0
  %v4773 = vpop.f32.mrb[0].mxu0
  %v4774 = vadd.f32 0.0, %v4773
  %v4775 = vpop.f32.mrb[0].mxu0
  %4776 = vmatprep.mubr.bf16.mxu0 0
  %4777 = vmatmul.mubr.bf16.gmra.mrb[0].mxu0 %v3941
  %v4778 = vpop.f32.mrb[0].mxu0
  %v4779 = vadd.f32 0.0, %v4778
  %v4780 = vpop.f32.mrb[0].mxu0
  %v4781 = vpop.f32.mrb[0].mxu0
  %v4782 = vadd.f32 0.0, %v4781
  %v4783 = vpop.f32.mrb[0].mxu0
  %4784 = vmatprep.mubr.bf16.mxu0 0
  %4785 = vmatmul.mubr.bf16.gmra.mrb[0].mxu0 %v3944
  %v4786 = vpop.f32.mrb[0].mxu0
  %v4787 = vadd.f32 0.0, %v4786
  %v4788 = vpop.f32.mrb[0].mxu0
  %v4789 = vpop.f32.mrb[0].mxu0
  %v4790 = vadd.f32 0.0, %v4789
  %v4791 = vpop.f32.mrb[0].mxu0
  %4792 = vmatprep.mubr.bf16.mxu0 0
  %4793 = vmatmul.mubr.bf16.gmra.mrb[0].mxu0 %v3947
  %v4794 = vpop.f32.mrb[0].mxu0
  %v4795 = vadd.f32 0.0, %v4794
  %v4796 = vpop.f32.mrb[0].mxu0
  %v4797 = vpop.f32.mrb[0].mxu0
  %v4798 = vadd.f32 0.0, %v4797
  %v4799 = vpop.f32.mrb[0].mxu0
  %4800 = vmatprep.mubr.bf16.mxu0 0
  %4801 = vmatmul.mubr.bf16.gmra.mrb[0].mxu0 %v3950
  %v4802 = vpop.f32.mrb[0].mxu0
  %v4803 = vadd.f32 0.0, %v4802
  %v4804 = vpop.f32.mrb[0].mxu0
  %v4805 = vpop.f32.mrb[0].mxu0
  %v4806 = vadd.f32 0.0, %v4805
  %v4807 = vpop.f32.mrb[0].mxu0
  %4808 = vmatprep.mubr.bf16.mxu0 0
  %4809 = vmatmul.mubr.bf16.gmra.mrb[0].mxu0 %v3953
  %v4810 = vpop.f32.mrb[0].mxu0
  %v4811 = vadd.f32 0.0, %v4810
  %v4812 = vpop.f32.mrb[0].mxu0
  %v4813 = vpop.f32.mrb[0].mxu0
  %v4814 = vadd.f32 0.0, %v4813
  %v4815 = vpop.f32.mrb[0].mxu0
  %4816 = vmatprep.mubr.bf16.mxu0 0
  %4817 = vmatmul.mubr.bf16.gmra.mrb[0].mxu0 %v3956
  %v4818 = vpop.f32.mrb[0].mxu0
  %v4819 = vadd.f32 0.0, %v4818
  %v4820 = vpop.f32.mrb[0].mxu0
  %v4821 = vpop.f32.mrb[0].mxu0
  %v4822 = vadd.f32 0.0, %v4821
  %v4823 = vpop.f32.mrb[0].mxu0
  %4824 = vmatprep.mubr.bf16.mxu0 0
  %4825 = vmatmul.mubr.bf16.gmra.mrb[0].mxu0 %v3959
  %v4826 = vpop.f32.mrb[0].mxu0
  %v4827 = vadd.f32 0.0, %v4826
  %v4828 = vpop.f32.mrb[0].mxu0
  %v4829 = vpop.f32.mrb[0].mxu0
  %v4830 = vadd.f32 0.0, %v4829
  %v4831 = vpop.f32.mrb[0].mxu0
  %4832 = vmatprep.mubr.bf16.mxu0 0
  %4833 = vmatmul.mubr.bf16.gmra.mrb[0].mxu0 %v3962
  %v4834 = vpop.f32.mrb[0].mxu0
  %v4835 = vadd.f32 0.0, %v4834
  %v4836 = vpop.f32.mrb[0].mxu0
  %v4837 = vpop.f32.mrb[0].mxu0
  %v4838 = vadd.f32 0.0, %v4837
  %v4839 = vpop.f32.mrb[0].mxu0
  %4840 = vmatprep.mubr.bf16.mxu0 0
  %4841 = vmatmul.mubr.bf16.gmra.mrb[0].mxu0 %v3965
  %v4842 = vpop.f32.mrb[0].mxu0
  %v4843 = vadd.f32 0.0, %v4842
  %v4844 = vpop.f32.mrb[0].mxu0
  %v4845 = vpop.f32.mrb[0].mxu0
  %v4846 = vadd.f32 0.0, %v4845
  %v4847 = vpop.f32.mrb[0].mxu0
  %4848 = vmatprep.mubr.bf16.mxu0 0
  %4849 = vmatmul.mubr.bf16.gmra.mrb[0].mxu0 %v3968
  %v4850 = vpop.f32.mrb[0].mxu0
  %v4851 = vadd.f32 0.0, %v4850
  %v4852 = vpop.f32.mrb[0].mxu0
  %v4853 = vpop.f32.mrb[0].mxu0
  %v4854 = vadd.f32 0.0, %v4853
  %v4855 = vpop.f32.mrb[0].mxu0
  %4856 = vmatprep.mubr.bf16.mxu0 0
  %4857 = vmatmul.mubr.bf16.gmra.mrb[0].mxu0 %v3971
  %v4858 = vpop.f32.mrb[0].mxu0
  %v4859 = vadd.f32 0.0, %v4858
  %v4860 = vpop.f32.mrb[0].mxu0
  %v4861 = vpop.f32.mrb[0].mxu0
  %v4862 = vadd.f32 0.0, %v4861
  %v4863 = vpop.f32.mrb[0].mxu0
  %4864 = vmatprep.mubr.bf16.mxu0 0
  %4865 = vmatmul.mubr.bf16.gmra.mrb[0].mxu0 %v3974
  %v4866 = vpop.f32.mrb[0].mxu0
  %v4867 = vadd.f32 0.0, %v4866
  %v4868 = vpop.f32.mrb[0].mxu0
  %v4869 = vpop.f32.mrb[0].mxu0
  %v4870 = vadd.f32 0.0, %v4869
  %v4871 = vpop.f32.mrb[0].mxu0
  %4872 = vmatprep.mubr.bf16.mxu0 0
  %4873 = vmatmul.mubr.bf16.gmra.mrb[0].mxu0 %v3977
  %v4874 = vpop.f32.mrb[0].mxu0
  %v4875 = vadd.f32 0.0, %v4874
  %v4876 = vpop.f32.mrb[0].mxu0
  %v4877 = vpop.f32.mrb[0].mxu0
  %v4878 = vadd.f32 0.0, %v4877
  %v4879 = vpop.f32.mrb[0].mxu0
  %4880 = vmatprep.mubr.bf16.mxu0 0
  %4881 = vmatmul.mubr.bf16.gmra.mrb[0].mxu0 %v3980
  %v4882 = vpop.f32.mrb[0].mxu0
  %v4883 = vadd.f32 0.0, %v4882
  %v4884 = vpop.f32.mrb[0].mxu0
  %v4885 = vpop.f32.mrb[0].mxu0
  %v4886 = vadd.f32 0.0, %v4885
  %v4887 = vpop.f32.mrb[0].mxu0
  %4888 = vmatprep.mubr.bf16.mxu0 0
  %4889 = vmatmul.mubr.bf16.gmra.mrb[0].mxu0 %v3983
  %v4890 = vpop.f32.mrb[0].mxu0
  %v4891 = vadd.f32 0.0, %v4890
  %v4892 = vpop.f32.mrb[0].mxu0
  %v4893 = vpop.f32.mrb[0].mxu0
  %v4894 = vadd.f32 0.0, %v4893
  %v4895 = vpop.f32.mrb[0].mxu0
  %4896 = vmatprep.mubr.bf16.mxu0 0
  %4897 = vmatmul.mubr.bf16.gmra.mrb[0].mxu0 %v3986
  %v4898 = vpop.f32.mrb[0].mxu0
  %v4899 = vadd.f32 0.0, %v4898
  %v4900 = vpop.f32.mrb[0].mxu0
  %v4901 = vpop.f32.mrb[0].mxu0
  %v4902 = vadd.f32 0.0, %v4901
  %v4903 = vpop.f32.mrb[0].mxu0
  %4904 = vmatprep.mubr.bf16.mxu0 0
  %4905 = vmatmul.mubr.bf16.gmra.mrb[0].mxu0 %v3989
  %v4906 = vpop.f32.mrb[0].mxu0
  %v4907 = vadd.f32 0.0, %v4906
  %v4908 = vpop.f32.mrb[0].mxu0
  %v4909 = vpop.f32.mrb[0].mxu0
  %v4910 = vadd.f32 0.0, %v4909
  %v4911 = vpop.f32.mrb[0].mxu0
  %4912 = vmatprep.mubr.bf16.mxu0 0
  %4913 = vmatmul.mubr.bf16.gmra.mrb[0].mxu0 %v3992
  %v4914 = vpop.f32.mrb[0].mxu0
  %v4915 = vadd.f32 0.0, %v4914
  %v4916 = vpop.f32.mrb[0].mxu0
  %v4917 = vpop.f32.mrb[0].mxu0
  %v4918 = vadd.f32 0.0, %v4917
  %v4919 = vpop.f32.mrb[0].mxu0
  %4920 = vmatprep.mubr.bf16.mxu0 0
  %4921 = vmatmul.mubr.bf16.gmra.mrb[0].mxu0 %v3995
  %v4922 = vpop.f32.mrb[0].mxu0
  %v4923 = vadd.f32 0.0, %v4922
  %v4924 = vpop.f32.mrb[0].mxu0
  %v4925 = vpop.f32.mrb[0].mxu0
  %v4926 = vadd.f32 0.0, %v4925
  %v4927 = vpop.f32.mrb[0].mxu0
  %4928 = vmatprep.mubr.bf16.mxu0 0
  %4929 = vmatmul.mubr.bf16.gmra.mrb[0].mxu0 %v3998
  %v4930 = vpop.f32.mrb[0].mxu0
  %v4931 = vadd.f32 0.0, %v4930
  %v4932 = vpop.f32.mrb[0].mxu0
  %v4933 = vpop.f32.mrb[0].mxu0
  %v4934 = vadd.f32 0.0, %v4933
  %v4935 = vpop.f32.mrb[0].mxu0
  %4936 = vmatprep.mubr.bf16.mxu0 0
  %4937 = vmatmul.mubr.bf16.gmra.mrb[0].mxu0 %v4001
  %v4938 = vpop.f32.mrb[0].mxu0
  %v4939 = vadd.f32 0.0, %v4938
  %v4940 = vpop.f32.mrb[0].mxu0
  %v4941 = vpop.f32.mrb[0].mxu0
  %v4942 = vadd.f32 0.0, %v4941
  %v4943 = vpop.f32.mrb[0].mxu0
  %4944 = vmatprep.mubr.bf16.mxu0 0
  %4945 = vmatmul.mubr.bf16.gmra.mrb[0].mxu0 %v4004
  %v4946 = vpop.f32.mrb[0].mxu0
  %v4947 = vadd.f32 0.0, %v4946
  %v4948 = vpop.f32.mrb[0].mxu0
  %v4949 = vpop.f32.mrb[0].mxu0
  %v4950 = vadd.f32 0.0, %v4949
  %v4951 = vpop.f32.mrb[0].mxu0
  %4952 = vmatprep.mubr.bf16.mxu0 0
  %4953 = vmatmul.mubr.bf16.gmra.mrb[0].mxu0 %v4007
  %v4954 = vpop.f32.mrb[0].mxu0
  %v4955 = vadd.f32 0.0, %v4954
  %v4956 = vpop.f32.mrb[0].mxu0
  %v4957 = vpop.f32.mrb[0].mxu0
  %v4958 = vadd.f32 0.0, %v4957
  %v4959 = vpop.f32.mrb[0].mxu0
  %4960 = vdwg.mxu0
  %v4961 = vadd.f32 %v3609, %v4579
  %v4962 = vadd.f32 %v3610, %v4582
  %v4963 = vadd.f32 %v3611, %v4587
  %v4964 = vadd.f32 %v3612, %v4590
  %v4965 = vadd.f32 %v3613, %v4595
  %v4966 = vadd.f32 %v3614, %v4598
  %v4967 = vadd.f32 %v3615, %v4603
  %v4968 = vadd.f32 %v3616, %v4606
  %v4969 = vadd.f32 %v3617, %v4611
  %v4970 = vadd.f32 %v3618, %v4614
  %v4971 = vadd.f32 %v3619, %v4619
  %v4972 = vadd.f32 %v3620, %v4622
  %v4973 = vadd.f32 %v3621, %v4627
  %v4974 = vadd.f32 %v3622, %v4630
  %v4975 = vadd.f32 %v3623, %v4635
  %v4976 = vadd.f32 %v3624, %v4638
  %v4977 = vadd.f32 %v3625, %v4643
  %v4978 = vadd.f32 %v3626, %v4646
  %v4979 = vadd.f32 %v3627, %v4651
  %v4980 = vadd.f32 %v3628, %v4654
  %v4981 = vadd.f32 %v3629, %v4659
  %v4982 = vadd.f32 %v3630, %v4662
  %v4983 = vadd.f32 %v3631, %v4667
  %v4984 = vadd.f32 %v3632, %v4670
  %v4985 = vadd.f32 %v3633, %v4675
  %v4986 = vadd.f32 %v3634, %v4678
  %v4987 = vadd.f32 %v3635, %v4683
  %v4988 = vadd.f32 %v3636, %v4686
  %v4989 = vadd.f32 %v3637, %v4691
  %v4990 = vadd.f32 %v3638, %v4694
  %v4991 = vadd.f32 %v3639, %v4699
  %v4992 = vadd.f32 %v3640, %v4702
  %v4993 = vadd.f32 %v3641, %v4707
  %v4994 = vadd.f32 %v3642, %v4710
  %v4995 = vadd.f32 %v3643, %v4715
  %v4996 = vadd.f32 %v3644, %v4718
  %v4997 = vadd.f32 %v3645, %v4723
  %v4998 = vadd.f32 %v3646, %v4726
  %v4999 = vadd.f32 %v3647, %v4731
  %v5000 = vadd.f32 %v3648, %v4734
  %v5001 = vadd.f32 %v3649, %v4739
  %v5002 = vadd.f32 %v3650, %v4742
  %v5003 = vadd.f32 %v3651, %v4747
  %v5004 = vadd.f32 %v3652, %v4750
  %v5005 = vadd.f32 %v3653, %v4755
  %v5006 = vadd.f32 %v3654, %v4758
  %v5007 = vadd.f32 %v3655, %v4763
  %v5008 = vadd.f32 %v3656, %v4766
  %v5009 = vadd.f32 %v3657, %v4771
  %v5010 = vadd.f32 %v3658, %v4774
  %v5011 = vadd.f32 %v3659, %v4779
  %v5012 = vadd.f32 %v3660, %v4782
  %v5013 = vadd.f32 %v3661, %v4787
  %v5014 = vadd.f32 %v3662, %v4790
  %v5015 = vadd.f32 %v3663, %v4795
  %v5016 = vadd.f32 %v3664, %v4798
  %v5017 = vadd.f32 %v3665, %v4803
  %v5018 = vadd.f32 %v3666, %v4806
  %v5019 = vadd.f32 %v3667, %v4811
  %v5020 = vadd.f32 %v3668, %v4814
  %v5021 = vadd.f32 %v3669, %v4819
  %v5022 = vadd.f32 %v3670, %v4822
  %v5023 = vadd.f32 %v3671, %v4827
  %v5024 = vadd.f32 %v3672, %v4830
  %v5025 = vadd.f32 %v3673, %v4835
  %v5026 = vadd.f32 %v3674, %v4838
  %v5027 = vadd.f32 %v3675, %v4843
  %v5028 = vadd.f32 %v3676, %v4846
  %v5029 = vadd.f32 %v3677, %v4851
  %v5030 = vadd.f32 %v3678, %v4854
  %v5031 = vadd.f32 %v3679, %v4859
  %v5032 = vadd.f32 %v3680, %v4862
  %v5033 = vadd.f32 %v3681, %v4867
  %v5034 = vadd.f32 %v3682, %v4870
  %v5035 = vadd.f32 %v3683, %v4875
  %v5036 = vadd.f32 %v3684, %v4878
  %v5037 = vadd.f32 %v3685, %v4883
  %v5038 = vadd.f32 %v3686, %v4886
  %v5039 = vadd.f32 %v3687, %v4891
  %v5040 = vadd.f32 %v3688, %v4894
  %v5041 = vadd.f32 %v3689, %v4899
  %v5042 = vadd.f32 %v3690, %v4902
  %v5043 = vadd.f32 %v3691, %v4907
  %v5044 = vadd.f32 %v3692, %v4910
  %v5045 = vadd.f32 %v3693, %v4915
  %v5046 = vadd.f32 %v3694, %v4918
  %v5047 = vadd.f32 %v3695, %v4923
  %v5048 = vadd.f32 %v3696, %v4926
  %v5049 = vadd.f32 %v3697, %v4931
  %v5050 = vadd.f32 %v3698, %v4934
  %v5051 = vadd.f32 %v3699, %v4939
  %v5052 = vadd.f32 %v3700, %v4942
  %v5053 = vadd.f32 %v3701, %v4947
  %v5054 = vadd.f32 %v3702, %v4950
  %v5055 = vadd.f32 %v3703, %v4955
  %v5056 = vadd.f32 %v3704, %v4958
  %v5057 = vld [vmem:[%s0 + $0x4] sm:$0xff]
  %v5058 = vld [vmem:[%s0 + $0xc] sm:$0xff]
  %v5059 = vld [vmem:[%s0 + $0x14] sm:$0xff]
  %v5060 = vld [vmem:[%s0 + $0x24] sm:$0xff]
  %v5061 = vld [vmem:[%s0 + $0x2c] sm:$0xff]
  %v5062 = vld [vmem:[%s0 + $0x34] sm:$0xff]
  %v5063 = vld [vmem:[%s0 + $0x44] sm:$0xff]
  %v5064 = vld [vmem:[%s0 + $0x4c] sm:$0xff]
  %v5065 = vld [vmem:[%s0 + $0x54] sm:$0xff]
  %v5066 = vld [vmem:[%s0 + $0x64] sm:$0xff]
  %v5067 = vld [vmem:[%s0 + $0x6c] sm:$0xff]
  %v5068 = vld [vmem:[%s0 + $0x74] sm:$0xff]
  %v5069 = vld [vmem:[%s0 + $0x84] sm:$0xff]
  %v5070 = vld [vmem:[%s0 + $0x8c] sm:$0xff]
  %v5071 = vld [vmem:[%s0 + $0x94] sm:$0xff]
  %v5072 = vld [vmem:[%s0 + $0xa4] sm:$0xff]
  %v5073 = vld [vmem:[%s0 + $0xac] sm:$0xff]
  %v5074 = vld [vmem:[%s0 + $0xb4] sm:$0xff]
  %v5075 = vld [vmem:[%s0 + $0xc4] sm:$0xff]
  %v5076 = vld [vmem:[%s0 + $0xcc] sm:$0xff]
  %v5077 = vld [vmem:[%s0 + $0xd4] sm:$0xff]
  %v5078 = vld [vmem:[%s0 + $0xe4] sm:$0xff]
  %v5079 = vld [vmem:[%s0 + $0xec] sm:$0xff]
  %v5080 = vld [vmem:[%s0 + $0xf4] sm:$0xff]
  %v5081 = vld [vmem:[%s0 + $0x104] sm:$0xff]
  %v5082 = vld [vmem:[%s0 + $0x10c] sm:$0xff]
  %v5083 = vld [vmem:[%s0 + $0x114] sm:$0xff]
  %v5084 = vld [vmem:[%s0 + $0x124] sm:$0xff]
  %v5085 = vld [vmem:[%s0 + $0x12c] sm:$0xff]
  %v5086 = vld [vmem:[%s0 + $0x134] sm:$0xff]
  %v5087 = vld [vmem:[%s0 + $0x144] sm:$0xff]
  %v5088 = vld [vmem:[%s0 + $0x14c] sm:$0xff]
  %v5089 = vld [vmem:[%s0 + $0x154] sm:$0xff]
  %v5090 = vld [vmem:[%s0 + $0x164] sm:$0xff]
  %v5091 = vld [vmem:[%s0 + $0x16c] sm:$0xff]
  %v5092 = vld [vmem:[%s0 + $0x174] sm:$0xff]
  %v5093 = vld [vmem:[%s0 + $0x184] sm:$0xff]
  %v5094 = vld [vmem:[%s0 + $0x18c] sm:$0xff]
  %v5095 = vld [vmem:[%s0 + $0x194] sm:$0xff]
  %v5096 = vld [vmem:[%s0 + $0x1a4] sm:$0xff]
  %v5097 = vld [vmem:[%s0 + $0x1ac] sm:$0xff]
  %v5098 = vld [vmem:[%s0 + $0x1b4] sm:$0xff]
  %v5099 = vld [vmem:[%s0 + $0x1c4] sm:$0xff]
  %v5100 = vld [vmem:[%s0 + $0x1cc] sm:$0xff]
  %v5101 = vld [vmem:[%s0 + $0x1d4] sm:$0xff]
  %v5102 = vld [vmem:[%s0 + $0x1e4] sm:$0xff]
  %v5103 = vld [vmem:[%s0 + $0x1ec] sm:$0xff]
  %v5104 = vld [vmem:[%s0 + $0x1f4] sm:$0xff]
  %v5105 = vld [vmem:[%s0 + $0x204] sm:$0xff]
  %v5106 = vld [vmem:[%s0 + $0x20c] sm:$0xff]
  %v5107 = vld [vmem:[%s0 + $0x214] sm:$0xff]
  %v5108 = vld [vmem:[%s0 + $0x224] sm:$0xff]
  %v5109 = vld [vmem:[%s0 + $0x22c] sm:$0xff]
  %v5110 = vld [vmem:[%s0 + $0x234] sm:$0xff]
  %v5111 = vld [vmem:[%s0 + $0x244] sm:$0xff]
  %v5112 = vld [vmem:[%s0 + $0x24c] sm:$0xff]
  %v5113 = vld [vmem:[%s0 + $0x254] sm:$0xff]
  %v5114 = vld [vmem:[%s0 + $0x264] sm:$0xff]
  %v5115 = vld [vmem:[%s0 + $0x26c] sm:$0xff]
  %v5116 = vld [vmem:[%s0 + $0x274] sm:$0xff]
  %v5117 = vld [vmem:[%s0 + $0x284] sm:$0xff]
  %v5118 = vld [vmem:[%s0 + $0x28c] sm:$0xff]
  %v5119 = vld [vmem:[%s0 + $0x294] sm:$0xff]
  %v5120 = vld [vmem:[%s0 + $0x2a4] sm:$0xff]
  %v5121 = vld [vmem:[%s0 + $0x2ac] sm:$0xff]
  %v5122 = vld [vmem:[%s0 + $0x2b4] sm:$0xff]
  %v5123 = vld [vmem:[%s0 + $0x2c4] sm:$0xff]
  %v5124 = vld [vmem:[%s0 + $0x2cc] sm:$0xff]
  %v5125 = vld [vmem:[%s0 + $0x2d4] sm:$0xff]
  %v5126 = vld [vmem:[%s0 + $0x2e4] sm:$0xff]
  %v5127 = vld [vmem:[%s0 + $0x2ec] sm:$0xff]
  %v5128 = vld [vmem:[%s0 + $0x2f4] sm:$0xff]
  %v5129 = vld [vmem:[%s0 + $0x304] sm:$0xff]
  %v5130 = vld [vmem:[%s0 + $0x30c] sm:$0xff]
  %v5131 = vld [vmem:[%s0 + $0x314] sm:$0xff]
  %v5132 = vld [vmem:[%s0 + $0x324] sm:$0xff]
  %v5133 = vld [vmem:[%s0 + $0x32c] sm:$0xff]
  %v5134 = vld [vmem:[%s0 + $0x334] sm:$0xff]
  %v5135 = vld [vmem:[%s0 + $0x344] sm:$0xff]
  %v5136 = vld [vmem:[%s0 + $0x34c] sm:$0xff]
  %v5137 = vld [vmem:[%s0 + $0x354] sm:$0xff]
  %v5138 = vld [vmem:[%s0 + $0x364] sm:$0xff]
  %v5139 = vld [vmem:[%s0 + $0x36c] sm:$0xff]
  %v5140 = vld [vmem:[%s0 + $0x374] sm:$0xff]
  %v5141 = vld [vmem:[%s0 + $0x384] sm:$0xff]
  %v5142 = vld [vmem:[%s0 + $0x38c] sm:$0xff]
  %v5143 = vld [vmem:[%s0 + $0x394] sm:$0xff]
  %v5144 = vld [vmem:[%s0 + $0x3a4] sm:$0xff]
  %v5145 = vld [vmem:[%s0 + $0x3ac] sm:$0xff]
  %v5146 = vld [vmem:[%s0 + $0x3b4] sm:$0xff]
  %v5147 = vld [vmem:[%s0 + $0x3c4] sm:$0xff]
  %v5148 = vld [vmem:[%s0 + $0x3cc] sm:$0xff]
  %v5149 = vld [vmem:[%s0 + $0x3d4] sm:$0xff]
  %v5150 = vld [vmem:[%s0 + $0x3e4] sm:$0xff]
  %v5151 = vld [vmem:[%s0 + $0x3ec] sm:$0xff]
  %v5152 = vld [vmem:[%s0 + $0x3f4] sm:$0xff]
  %v5153 = vpack.c.bf16 %v5058, %v5057
  %v5154 = vpack.c.bf16 %v5060, %v5059
  %v5155 = vpack.c.bf16 %v5062, %v5061
  %v5156 = vpack.c.bf16 %v5064, %v5063
  %v5157 = vpack.c.bf16 %v5066, %v5065
  %v5158 = vpack.c.bf16 %v5068, %v5067
  %v5159 = vpack.c.bf16 %v5070, %v5069
  %v5160 = vpack.c.bf16 %v5072, %v5071
  %v5161 = vpack.c.bf16 %v5074, %v5073
  %v5162 = vpack.c.bf16 %v5076, %v5075
  %v5163 = vpack.c.bf16 %v5078, %v5077
  %v5164 = vpack.c.bf16 %v5080, %v5079
  %v5165 = vpack.c.bf16 %v5082, %v5081
  %v5166 = vpack.c.bf16 %v5084, %v5083
  %v5167 = vpack.c.bf16 %v5086, %v5085
  %v5168 = vpack.c.bf16 %v5088, %v5087
  %v5169 = vpack.c.bf16 %v5090, %v5089
  %v5170 = vpack.c.bf16 %v5092, %v5091
  %v5171 = vpack.c.bf16 %v5094, %v5093
  %v5172 = vpack.c.bf16 %v5096, %v5095
  %v5173 = vpack.c.bf16 %v5098, %v5097
  %v5174 = vpack.c.bf16 %v5100, %v5099
  %v5175 = vpack.c.bf16 %v5102, %v5101
  %v5176 = vpack.c.bf16 %v5104, %v5103
  %v5177 = vpack.c.bf16 %v5106, %v5105
  %v5178 = vpack.c.bf16 %v5108, %v5107
  %v5179 = vpack.c.bf16 %v5110, %v5109
  %v5180 = vpack.c.bf16 %v5112, %v5111
  %v5181 = vpack.c.bf16 %v5114, %v5113
  %v5182 = vpack.c.bf16 %v5116, %v5115
  %v5183 = vpack.c.bf16 %v5118, %v5117
  %v5184 = vpack.c.bf16 %v5120, %v5119
  %v5185 = vpack.c.bf16 %v5122, %v5121
  %v5186 = vpack.c.bf16 %v5124, %v5123
  %v5187 = vpack.c.bf16 %v5126, %v5125
  %v5188 = vpack.c.bf16 %v5128, %v5127
  %v5189 = vpack.c.bf16 %v5130, %v5129
  %v5190 = vpack.c.bf16 %v5132, %v5131
  %v5191 = vpack.c.bf16 %v5134, %v5133
  %v5192 = vpack.c.bf16 %v5136, %v5135
  %v5193 = vpack.c.bf16 %v5138, %v5137
  %v5194 = vpack.c.bf16 %v5140, %v5139
  %v5195 = vpack.c.bf16 %v5142, %v5141
  %v5196 = vpack.c.bf16 %v5144, %v5143
  %v5197 = vpack.c.bf16 %v5146, %v5145
  %v5198 = vpack.c.bf16 %v5148, %v5147
  %v5199 = vpack.c.bf16 %v5150, %v5149
  %v5200 = vpack.c.bf16 %v5152, %v5151
  %s5201 = scalar_lea.vmem %s1, 64
  %v5202 = vld [vmem:[%s5201] sm:$0xf]
  %v5203 = vld [vmem:[%s5201 + $0x4] sm:$0xf]
  %v5204 = vld [vmem:[%s5201 + $0x8] sm:$0xf]
  %v5205 = vld [vmem:[%s5201 + $0xc] sm:$0x3]
  %v5210 = vunpack.c.l.b16 %v5202
  %v5211 = vunpack.c.l.b16 %v5203
  %v5212 = vunpack.c.l.b16 %v5204
  %v5213 = vunpack.c.l.b16 %v5205
  %v5214 = vpack.c.b16 %v5211, %v5210
  %v5215 = vpack.c.b16 %v5213, %v5212
  %v5218 = vsel %vm345, %v5153, 0
  %v5221 = vsel %vm345, %v5154, 0
  %v5224 = vsel %vm345, %v5155, 0
  %v5227 = vsel %vm345, %v5156, 0
  %v5230 = vsel %vm345, %v5157, 0
  %v5233 = vsel %vm345, %v5158, 0
  %v5236 = vsel %vm345, %v5159, 0
  %v5239 = vsel %vm345, %v5160, 0
  %v5242 = vsel %vm345, %v5161, 0
  %v5245 = vsel %vm345, %v5162, 0
  %v5248 = vsel %vm345, %v5163, 0
  %v5251 = vsel %vm345, %v5164, 0
  %v5254 = vsel %vm345, %v5165, 0
  %v5257 = vsel %vm345, %v5166, 0
  %v5260 = vsel %vm345, %v5167, 0
  %v5263 = vsel %vm345, %v5168, 0
  %v5266 = vsel %vm345, %v5169, 0
  %v5269 = vsel %vm345, %v5170, 0
  %v5272 = vsel %vm345, %v5171, 0
  %v5275 = vsel %vm345, %v5172, 0
  %v5278 = vsel %vm345, %v5173, 0
  %v5281 = vsel %vm345, %v5174, 0
  %v5284 = vsel %vm345, %v5175, 0
  %v5287 = vsel %vm345, %v5176, 0
  %v5290 = vsel %vm345, %v5177, 0
  %v5293 = vsel %vm345, %v5178, 0
  %v5296 = vsel %vm345, %v5179, 0
  %v5299 = vsel %vm345, %v5180, 0
  %v5302 = vsel %vm345, %v5181, 0
  %v5305 = vsel %vm345, %v5182, 0
  %v5308 = vsel %vm345, %v5183, 0
  %v5311 = vsel %vm345, %v5184, 0
  %v5314 = vsel %vm345, %v5185, 0
  %v5317 = vsel %vm345, %v5186, 0
  %v5320 = vsel %vm345, %v5187, 0
  %v5323 = vsel %vm345, %v5188, 0
  %v5326 = vsel %vm345, %v5189, 0
  %v5329 = vsel %vm345, %v5190, 0
  %v5332 = vsel %vm345, %v5191, 0
  %v5335 = vsel %vm345, %v5192, 0
  %v5338 = vsel %vm345, %v5193, 0
  %v5341 = vsel %vm345, %v5194, 0
  %v5344 = vsel %vm345, %v5195, 0
  %v5347 = vsel %vm345, %v5196, 0
  %v5350 = vsel %vm345, %v5197, 0
  %v5353 = vsel %vm345, %v5198, 0
  %v5356 = vsel %vm345, %v5199, 0
  %v5359 = vsel %vm345, %v5200, 0
  %v5362 = vsel %vm490, %v5215, 0
  %5364 = vmatprep.subr.bf16.mxu0 0
  %5365 = vmatpush1.bf16.msra.mxu0 %v5214
  %5366 = vmatprep.subr.bf16.mxu0 0
  %5367 = vmatpush1.bf16.msra.mxu0 %v5362
  %5368 = vmatprep.subr.bf16.mxu0 0
  %5369 = vmatpush1.bf16.msra.mxu0 0
  %5370 = vmatprep.subr.bf16.mxu0 0
  %5371 = vmatpush1.bf16.msra.mxu0 0
  %5372 = vmatprep.subr.bf16.mxu0 0
  %5373 = vmatpush1.bf16.msra.mxu0 0
  %5374 = vmatprep.subr.bf16.mxu0 0
  %5375 = vmatpush1.bf16.msra.mxu0 0
  %5376 = vmatprep.subr.bf16.mxu0 0
  %5377 = vmatpush1.bf16.msra.mxu0 0
  %5378 = vmatprep.subr.bf16.mxu0 0
  %5379 = vmatpush1.bf16.msra.mxu0 0
  %5380 = vmatprep.subr.bf16.mxu0 0
  %5381 = vmatpush1.bf16.msra.mxu0 0
  %5382 = vmatprep.subr.bf16.mxu0 0
  %5383 = vmatpush1.bf16.msra.mxu0 0
  %5384 = vmatprep.subr.bf16.mxu0 0
  %5385 = vmatpush1.bf16.msra.mxu0 0
  %5386 = vmatprep.subr.bf16.mxu0 0
  %5387 = vmatpush1.bf16.msra.mxu0 0
  %5388 = vmatprep.subr.bf16.mxu0 0
  %5389 = vmatpush1.bf16.msra.mxu0 0
  %5390 = vmatprep.subr.bf16.mxu0 0
  %5391 = vmatpush1.bf16.msra.mxu0 0
  %5392 = vmatprep.subr.bf16.mxu0 0
  %5393 = vmatpush1.bf16.msra.mxu0 0
  %5394 = vmatprep.subr.bf16.mxu0 0
  %5395 = vmatpush1.bf16.msra.mxu0 0
  %5396 = vmatprep.mubr.bf16.mxu0 0
  %5397 = vmatmul.mubr.bf16.gmra.mrb[0].mxu0 %v5218
  %v5398 = vpop.f32.mrb[0].mxu0
  %v5399 = vadd.f32 0.0, %v5398
  %v5400 = vpop.f32.mrb[0].mxu0
  %v5401 = vpop.f32.mrb[0].mxu0
  %v5402 = vadd.f32 0.0, %v5401
  %v5403 = vpop.f32.mrb[0].mxu0
  %5404 = vmatprep.mubr.bf16.mxu0 0
  %5405 = vmatmul.mubr.bf16.gmra.mrb[0].mxu0 %v5221
  %v5406 = vpop.f32.mrb[0].mxu0
  %v5407 = vadd.f32 0.0, %v5406
  %v5408 = vpop.f32.mrb[0].mxu0
  %v5409 = vpop.f32.mrb[0].mxu0
  %v5410 = vadd.f32 0.0, %v5409
  %v5411 = vpop.f32.mrb[0].mxu0
  %5412 = vmatprep.mubr.bf16.mxu0 0
  %5413 = vmatmul.mubr.bf16.gmra.mrb[0].mxu0 %v5224
  %v5414 = vpop.f32.mrb[0].mxu0
  %v5415 = vadd.f32 0.0, %v5414
  %v5416 = vpop.f32.mrb[0].mxu0
  %v5417 = vpop.f32.mrb[0].mxu0
  %v5418 = vadd.f32 0.0, %v5417
  %v5419 = vpop.f32.mrb[0].mxu0
  %5420 = vmatprep.mubr.bf16.mxu0 0
  %5421 = vmatmul.mubr.bf16.gmra.mrb[0].mxu0 %v5227
  %v5422 = vpop.f32.mrb[0].mxu0
  %v5423 = vadd.f32 0.0, %v5422
  %v5424 = vpop.f32.mrb[0].mxu0
  %v5425 = vpop.f32.mrb[0].mxu0
  %v5426 = vadd.f32 0.0, %v5425
  %v5427 = vpop.f32.mrb[0].mxu0
  %5428 = vmatprep.mubr.bf16.mxu0 0
  %5429 = vmatmul.mubr.bf16.gmra.mrb[0].mxu0 %v5230
  %v5430 = vpop.f32.mrb[0].mxu0
  %v5431 = vadd.f32 0.0, %v5430
  %v5432 = vpop.f32.mrb[0].mxu0
  %v5433 = vpop.f32.mrb[0].mxu0
  %v5434 = vadd.f32 0.0, %v5433
  %v5435 = vpop.f32.mrb[0].mxu0
  %5436 = vmatprep.mubr.bf16.mxu0 0
  %5437 = vmatmul.mubr.bf16.gmra.mrb[0].mxu0 %v5233
  %v5438 = vpop.f32.mrb[0].mxu0
  %v5439 = vadd.f32 0.0, %v5438
  %v5440 = vpop.f32.mrb[0].mxu0
  %v5441 = vpop.f32.mrb[0].mxu0
  %v5442 = vadd.f32 0.0, %v5441
  %v5443 = vpop.f32.mrb[0].mxu0
  %5444 = vmatprep.mubr.bf16.mxu0 0
  %5445 = vmatmul.mubr.bf16.gmra.mrb[0].mxu0 %v5236
  %v5446 = vpop.f32.mrb[0].mxu0
  %v5447 = vadd.f32 0.0, %v5446
  %v5448 = vpop.f32.mrb[0].mxu0
  %v5449 = vpop.f32.mrb[0].mxu0
  %v5450 = vadd.f32 0.0, %v5449
  %v5451 = vpop.f32.mrb[0].mxu0
  %5452 = vmatprep.mubr.bf16.mxu0 0
  %5453 = vmatmul.mubr.bf16.gmra.mrb[0].mxu0 %v5239
  %v5454 = vpop.f32.mrb[0].mxu0
  %v5455 = vadd.f32 0.0, %v5454
  %v5456 = vpop.f32.mrb[0].mxu0
  %v5457 = vpop.f32.mrb[0].mxu0
  %v5458 = vadd.f32 0.0, %v5457
  %v5459 = vpop.f32.mrb[0].mxu0
  %5460 = vmatprep.mubr.bf16.mxu0 0
  %5461 = vmatmul.mubr.bf16.gmra.mrb[0].mxu0 %v5242
  %v5462 = vpop.f32.mrb[0].mxu0
  %v5463 = vadd.f32 0.0, %v5462
  %v5464 = vpop.f32.mrb[0].mxu0
  %v5465 = vpop.f32.mrb[0].mxu0
  %v5466 = vadd.f32 0.0, %v5465
  %v5467 = vpop.f32.mrb[0].mxu0
  %5468 = vmatprep.mubr.bf16.mxu0 0
  %5469 = vmatmul.mubr.bf16.gmra.mrb[0].mxu0 %v5245
  %v5470 = vpop.f32.mrb[0].mxu0
  %v5471 = vadd.f32 0.0, %v5470
  %v5472 = vpop.f32.mrb[0].mxu0
  %v5473 = vpop.f32.mrb[0].mxu0
  %v5474 = vadd.f32 0.0, %v5473
  %v5475 = vpop.f32.mrb[0].mxu0
  %5476 = vmatprep.mubr.bf16.mxu0 0
  %5477 = vmatmul.mubr.bf16.gmra.mrb[0].mxu0 %v5248
  %v5478 = vpop.f32.mrb[0].mxu0
  %v5479 = vadd.f32 0.0, %v5478
  %v5480 = vpop.f32.mrb[0].mxu0
  %v5481 = vpop.f32.mrb[0].mxu0
  %v5482 = vadd.f32 0.0, %v5481
  %v5483 = vpop.f32.mrb[0].mxu0
  %5484 = vmatprep.mubr.bf16.mxu0 0
  %5485 = vmatmul.mubr.bf16.gmra.mrb[0].mxu0 %v5251
  %v5486 = vpop.f32.mrb[0].mxu0
  %v5487 = vadd.f32 0.0, %v5486
  %v5488 = vpop.f32.mrb[0].mxu0
  %v5489 = vpop.f32.mrb[0].mxu0
  %v5490 = vadd.f32 0.0, %v5489
  %v5491 = vpop.f32.mrb[0].mxu0
  %5492 = vmatprep.mubr.bf16.mxu0 0
  %5493 = vmatmul.mubr.bf16.gmra.mrb[0].mxu0 %v5254
  %v5494 = vpop.f32.mrb[0].mxu0
  %v5495 = vadd.f32 0.0, %v5494
  %v5496 = vpop.f32.mrb[0].mxu0
  %v5497 = vpop.f32.mrb[0].mxu0
  %v5498 = vadd.f32 0.0, %v5497
  %v5499 = vpop.f32.mrb[0].mxu0
  %5500 = vmatprep.mubr.bf16.mxu0 0
  %5501 = vmatmul.mubr.bf16.gmra.mrb[0].mxu0 %v5257
  %v5502 = vpop.f32.mrb[0].mxu0
  %v5503 = vadd.f32 0.0, %v5502
  %v5504 = vpop.f32.mrb[0].mxu0
  %v5505 = vpop.f32.mrb[0].mxu0
  %v5506 = vadd.f32 0.0, %v5505
  %v5507 = vpop.f32.mrb[0].mxu0
  %5508 = vmatprep.mubr.bf16.mxu0 0
  %5509 = vmatmul.mubr.bf16.gmra.mrb[0].mxu0 %v5260
  %v5510 = vpop.f32.mrb[0].mxu0
  %v5511 = vadd.f32 0.0, %v5510
  %v5512 = vpop.f32.mrb[0].mxu0
  %v5513 = vpop.f32.mrb[0].mxu0
  %v5514 = vadd.f32 0.0, %v5513
  %v5515 = vpop.f32.mrb[0].mxu0
  %5516 = vmatprep.mubr.bf16.mxu0 0
  %5517 = vmatmul.mubr.bf16.gmra.mrb[0].mxu0 %v5263
  %v5518 = vpop.f32.mrb[0].mxu0
  %v5519 = vadd.f32 0.0, %v5518
  %v5520 = vpop.f32.mrb[0].mxu0
  %v5521 = vpop.f32.mrb[0].mxu0
  %v5522 = vadd.f32 0.0, %v5521
  %v5523 = vpop.f32.mrb[0].mxu0
  %5524 = vmatprep.mubr.bf16.mxu0 0
  %5525 = vmatmul.mubr.bf16.gmra.mrb[0].mxu0 %v5266
  %v5526 = vpop.f32.mrb[0].mxu0
  %v5527 = vadd.f32 0.0, %v5526
  %v5528 = vpop.f32.mrb[0].mxu0
  %v5529 = vpop.f32.mrb[0].mxu0
  %v5530 = vadd.f32 0.0, %v5529
  %v5531 = vpop.f32.mrb[0].mxu0
  %5532 = vmatprep.mubr.bf16.mxu0 0
  %5533 = vmatmul.mubr.bf16.gmra.mrb[0].mxu0 %v5269
  %v5534 = vpop.f32.mrb[0].mxu0
  %v5535 = vadd.f32 0.0, %v5534
  %v5536 = vpop.f32.mrb[0].mxu0
  %v5537 = vpop.f32.mrb[0].mxu0
  %v5538 = vadd.f32 0.0, %v5537
  %v5539 = vpop.f32.mrb[0].mxu0
  %5540 = vmatprep.mubr.bf16.mxu0 0
  %5541 = vmatmul.mubr.bf16.gmra.mrb[0].mxu0 %v5272
  %v5542 = vpop.f32.mrb[0].mxu0
  %v5543 = vadd.f32 0.0, %v5542
  %v5544 = vpop.f32.mrb[0].mxu0
  %v5545 = vpop.f32.mrb[0].mxu0
  %v5546 = vadd.f32 0.0, %v5545
  %v5547 = vpop.f32.mrb[0].mxu0
  %5548 = vmatprep.mubr.bf16.mxu0 0
  %5549 = vmatmul.mubr.bf16.gmra.mrb[0].mxu0 %v5275
  %v5550 = vpop.f32.mrb[0].mxu0
  %v5551 = vadd.f32 0.0, %v5550
  %v5552 = vpop.f32.mrb[0].mxu0
  %v5553 = vpop.f32.mrb[0].mxu0
  %v5554 = vadd.f32 0.0, %v5553
  %v5555 = vpop.f32.mrb[0].mxu0
  %5556 = vmatprep.mubr.bf16.mxu0 0
  %5557 = vmatmul.mubr.bf16.gmra.mrb[0].mxu0 %v5278
  %v5558 = vpop.f32.mrb[0].mxu0
  %v5559 = vadd.f32 0.0, %v5558
  %v5560 = vpop.f32.mrb[0].mxu0
  %v5561 = vpop.f32.mrb[0].mxu0
  %v5562 = vadd.f32 0.0, %v5561
  %v5563 = vpop.f32.mrb[0].mxu0
  %5564 = vmatprep.mubr.bf16.mxu0 0
  %5565 = vmatmul.mubr.bf16.gmra.mrb[0].mxu0 %v5281
  %v5566 = vpop.f32.mrb[0].mxu0
  %v5567 = vadd.f32 0.0, %v5566
  %v5568 = vpop.f32.mrb[0].mxu0
  %v5569 = vpop.f32.mrb[0].mxu0
  %v5570 = vadd.f32 0.0, %v5569
  %v5571 = vpop.f32.mrb[0].mxu0
  %5572 = vmatprep.mubr.bf16.mxu0 0
  %5573 = vmatmul.mubr.bf16.gmra.mrb[0].mxu0 %v5284
  %v5574 = vpop.f32.mrb[0].mxu0
  %v5575 = vadd.f32 0.0, %v5574
  %v5576 = vpop.f32.mrb[0].mxu0
  %v5577 = vpop.f32.mrb[0].mxu0
  %v5578 = vadd.f32 0.0, %v5577
  %v5579 = vpop.f32.mrb[0].mxu0
  %5580 = vmatprep.mubr.bf16.mxu0 0
  %5581 = vmatmul.mubr.bf16.gmra.mrb[0].mxu0 %v5287
  %v5582 = vpop.f32.mrb[0].mxu0
  %v5583 = vadd.f32 0.0, %v5582
  %v5584 = vpop.f32.mrb[0].mxu0
  %v5585 = vpop.f32.mrb[0].mxu0
  %v5586 = vadd.f32 0.0, %v5585
  %v5587 = vpop.f32.mrb[0].mxu0
  %5588 = vmatprep.mubr.bf16.mxu0 0
  %5589 = vmatmul.mubr.bf16.gmra.mrb[0].mxu0 %v5290
  %v5590 = vpop.f32.mrb[0].mxu0
  %v5591 = vadd.f32 0.0, %v5590
  %v5592 = vpop.f32.mrb[0].mxu0
  %v5593 = vpop.f32.mrb[0].mxu0
  %v5594 = vadd.f32 0.0, %v5593
  %v5595 = vpop.f32.mrb[0].mxu0
  %5596 = vmatprep.mubr.bf16.mxu0 0
  %5597 = vmatmul.mubr.bf16.gmra.mrb[0].mxu0 %v5293
  %v5598 = vpop.f32.mrb[0].mxu0
  %v5599 = vadd.f32 0.0, %v5598
  %v5600 = vpop.f32.mrb[0].mxu0
  %v5601 = vpop.f32.mrb[0].mxu0
  %v5602 = vadd.f32 0.0, %v5601
  %v5603 = vpop.f32.mrb[0].mxu0
  %5604 = vmatprep.mubr.bf16.mxu0 0
  %5605 = vmatmul.mubr.bf16.gmra.mrb[0].mxu0 %v5296
  %v5606 = vpop.f32.mrb[0].mxu0
  %v5607 = vadd.f32 0.0, %v5606
  %v5608 = vpop.f32.mrb[0].mxu0
  %v5609 = vpop.f32.mrb[0].mxu0
  %v5610 = vadd.f32 0.0, %v5609
  %v5611 = vpop.f32.mrb[0].mxu0
  %5612 = vmatprep.mubr.bf16.mxu0 0
  %5613 = vmatmul.mubr.bf16.gmra.mrb[0].mxu0 %v5299
  %v5614 = vpop.f32.mrb[0].mxu0
  %v5615 = vadd.f32 0.0, %v5614
  %v5616 = vpop.f32.mrb[0].mxu0
  %v5617 = vpop.f32.mrb[0].mxu0
  %v5618 = vadd.f32 0.0, %v5617
  %v5619 = vpop.f32.mrb[0].mxu0
  %5620 = vmatprep.mubr.bf16.mxu0 0
  %5621 = vmatmul.mubr.bf16.gmra.mrb[0].mxu0 %v5302
  %v5622 = vpop.f32.mrb[0].mxu0
  %v5623 = vadd.f32 0.0, %v5622
  %v5624 = vpop.f32.mrb[0].mxu0
  %v5625 = vpop.f32.mrb[0].mxu0
  %v5626 = vadd.f32 0.0, %v5625
  %v5627 = vpop.f32.mrb[0].mxu0
  %5628 = vmatprep.mubr.bf16.mxu0 0
  %5629 = vmatmul.mubr.bf16.gmra.mrb[0].mxu0 %v5305
  %v5630 = vpop.f32.mrb[0].mxu0
  %v5631 = vadd.f32 0.0, %v5630
  %v5632 = vpop.f32.mrb[0].mxu0
  %v5633 = vpop.f32.mrb[0].mxu0
  %v5634 = vadd.f32 0.0, %v5633
  %v5635 = vpop.f32.mrb[0].mxu0
  %5636 = vmatprep.mubr.bf16.mxu0 0
  %5637 = vmatmul.mubr.bf16.gmra.mrb[0].mxu0 %v5308
  %v5638 = vpop.f32.mrb[0].mxu0
  %v5639 = vadd.f32 0.0, %v5638
  %v5640 = vpop.f32.mrb[0].mxu0
  %v5641 = vpop.f32.mrb[0].mxu0
  %v5642 = vadd.f32 0.0, %v5641
  %v5643 = vpop.f32.mrb[0].mxu0
  %5644 = vmatprep.mubr.bf16.mxu0 0
  %5645 = vmatmul.mubr.bf16.gmra.mrb[0].mxu0 %v5311
  %v5646 = vpop.f32.mrb[0].mxu0
  %v5647 = vadd.f32 0.0, %v5646
  %v5648 = vpop.f32.mrb[0].mxu0
  %v5649 = vpop.f32.mrb[0].mxu0
  %v5650 = vadd.f32 0.0, %v5649
  %v5651 = vpop.f32.mrb[0].mxu0
  %5652 = vmatprep.mubr.bf16.mxu0 0
  %5653 = vmatmul.mubr.bf16.gmra.mrb[0].mxu0 %v5314
  %v5654 = vpop.f32.mrb[0].mxu0
  %v5655 = vadd.f32 0.0, %v5654
  %v5656 = vpop.f32.mrb[0].mxu0
  %v5657 = vpop.f32.mrb[0].mxu0
  %v5658 = vadd.f32 0.0, %v5657
  %v5659 = vpop.f32.mrb[0].mxu0
  %5660 = vmatprep.mubr.bf16.mxu0 0
  %5661 = vmatmul.mubr.bf16.gmra.mrb[0].mxu0 %v5317
  %v5662 = vpop.f32.mrb[0].mxu0
  %v5663 = vadd.f32 0.0, %v5662
  %v5664 = vpop.f32.mrb[0].mxu0
  %v5665 = vpop.f32.mrb[0].mxu0
  %v5666 = vadd.f32 0.0, %v5665
  %v5667 = vpop.f32.mrb[0].mxu0
  %5668 = vmatprep.mubr.bf16.mxu0 0
  %5669 = vmatmul.mubr.bf16.gmra.mrb[0].mxu0 %v5320
  %v5670 = vpop.f32.mrb[0].mxu0
  %v5671 = vadd.f32 0.0, %v5670
  %v5672 = vpop.f32.mrb[0].mxu0
  %v5673 = vpop.f32.mrb[0].mxu0
  %v5674 = vadd.f32 0.0, %v5673
  %v5675 = vpop.f32.mrb[0].mxu0
  %5676 = vmatprep.mubr.bf16.mxu0 0
  %5677 = vmatmul.mubr.bf16.gmra.mrb[0].mxu0 %v5323
  %v5678 = vpop.f32.mrb[0].mxu0
  %v5679 = vadd.f32 0.0, %v5678
  %v5680 = vpop.f32.mrb[0].mxu0
  %v5681 = vpop.f32.mrb[0].mxu0
  %v5682 = vadd.f32 0.0, %v5681
  %v5683 = vpop.f32.mrb[0].mxu0
  %5684 = vmatprep.mubr.bf16.mxu0 0
  %5685 = vmatmul.mubr.bf16.gmra.mrb[0].mxu0 %v5326
  %v5686 = vpop.f32.mrb[0].mxu0
  %v5687 = vadd.f32 0.0, %v5686
  %v5688 = vpop.f32.mrb[0].mxu0
  %v5689 = vpop.f32.mrb[0].mxu0
  %v5690 = vadd.f32 0.0, %v5689
  %v5691 = vpop.f32.mrb[0].mxu0
  %5692 = vmatprep.mubr.bf16.mxu0 0
  %5693 = vmatmul.mubr.bf16.gmra.mrb[0].mxu0 %v5329
  %v5694 = vpop.f32.mrb[0].mxu0
  %v5695 = vadd.f32 0.0, %v5694
  %v5696 = vpop.f32.mrb[0].mxu0
  %v5697 = vpop.f32.mrb[0].mxu0
  %v5698 = vadd.f32 0.0, %v5697
  %v5699 = vpop.f32.mrb[0].mxu0
  %5700 = vmatprep.mubr.bf16.mxu0 0
  %5701 = vmatmul.mubr.bf16.gmra.mrb[0].mxu0 %v5332
  %v5702 = vpop.f32.mrb[0].mxu0
  %v5703 = vadd.f32 0.0, %v5702
  %v5704 = vpop.f32.mrb[0].mxu0
  %v5705 = vpop.f32.mrb[0].mxu0
  %v5706 = vadd.f32 0.0, %v5705
  %v5707 = vpop.f32.mrb[0].mxu0
  %5708 = vmatprep.mubr.bf16.mxu0 0
  %5709 = vmatmul.mubr.bf16.gmra.mrb[0].mxu0 %v5335
  %v5710 = vpop.f32.mrb[0].mxu0
  %v5711 = vadd.f32 0.0, %v5710
  %v5712 = vpop.f32.mrb[0].mxu0
  %v5713 = vpop.f32.mrb[0].mxu0
  %v5714 = vadd.f32 0.0, %v5713
  %v5715 = vpop.f32.mrb[0].mxu0
  %5716 = vmatprep.mubr.bf16.mxu0 0
  %5717 = vmatmul.mubr.bf16.gmra.mrb[0].mxu0 %v5338
  %v5718 = vpop.f32.mrb[0].mxu0
  %v5719 = vadd.f32 0.0, %v5718
  %v5720 = vpop.f32.mrb[0].mxu0
  %v5721 = vpop.f32.mrb[0].mxu0
  %v5722 = vadd.f32 0.0, %v5721
  %v5723 = vpop.f32.mrb[0].mxu0
  %5724 = vmatprep.mubr.bf16.mxu0 0
  %5725 = vmatmul.mubr.bf16.gmra.mrb[0].mxu0 %v5341
  %v5726 = vpop.f32.mrb[0].mxu0
  %v5727 = vadd.f32 0.0, %v5726
  %v5728 = vpop.f32.mrb[0].mxu0
  %v5729 = vpop.f32.mrb[0].mxu0
  %v5730 = vadd.f32 0.0, %v5729
  %v5731 = vpop.f32.mrb[0].mxu0
  %5732 = vmatprep.mubr.bf16.mxu0 0
  %5733 = vmatmul.mubr.bf16.gmra.mrb[0].mxu0 %v5344
  %v5734 = vpop.f32.mrb[0].mxu0
  %v5735 = vadd.f32 0.0, %v5734
  %v5736 = vpop.f32.mrb[0].mxu0
  %v5737 = vpop.f32.mrb[0].mxu0
  %v5738 = vadd.f32 0.0, %v5737
  %v5739 = vpop.f32.mrb[0].mxu0
  %5740 = vmatprep.mubr.bf16.mxu0 0
  %5741 = vmatmul.mubr.bf16.gmra.mrb[0].mxu0 %v5347
  %v5742 = vpop.f32.mrb[0].mxu0
  %v5743 = vadd.f32 0.0, %v5742
  %v5744 = vpop.f32.mrb[0].mxu0
  %v5745 = vpop.f32.mrb[0].mxu0
  %v5746 = vadd.f32 0.0, %v5745
  %v5747 = vpop.f32.mrb[0].mxu0
  %5748 = vmatprep.mubr.bf16.mxu0 0
  %5749 = vmatmul.mubr.bf16.gmra.mrb[0].mxu0 %v5350
  %v5750 = vpop.f32.mrb[0].mxu0
  %v5751 = vadd.f32 0.0, %v5750
  %v5752 = vpop.f32.mrb[0].mxu0
  %v5753 = vpop.f32.mrb[0].mxu0
  %v5754 = vadd.f32 0.0, %v5753
  %v5755 = vpop.f32.mrb[0].mxu0
  %5756 = vmatprep.mubr.bf16.mxu0 0
  %5757 = vmatmul.mubr.bf16.gmra.mrb[0].mxu0 %v5353
  %v5758 = vpop.f32.mrb[0].mxu0
  %v5759 = vadd.f32 0.0, %v5758
  %v5760 = vpop.f32.mrb[0].mxu0
  %v5761 = vpop.f32.mrb[0].mxu0
  %v5762 = vadd.f32 0.0, %v5761
  %v5763 = vpop.f32.mrb[0].mxu0
  %5764 = vmatprep.mubr.bf16.mxu0 0
  %5765 = vmatmul.mubr.bf16.gmra.mrb[0].mxu0 %v5356
  %v5766 = vpop.f32.mrb[0].mxu0
  %v5767 = vadd.f32 0.0, %v5766
  %v5768 = vpop.f32.mrb[0].mxu0
  %v5769 = vpop.f32.mrb[0].mxu0
  %v5770 = vadd.f32 0.0, %v5769
  %v5771 = vpop.f32.mrb[0].mxu0
  %5772 = vmatprep.mubr.bf16.mxu0 0
  %5773 = vmatmul.mubr.bf16.gmra.mrb[0].mxu0 %v5359
  %v5774 = vpop.f32.mrb[0].mxu0
  %v5775 = vadd.f32 0.0, %v5774
  %v5776 = vpop.f32.mrb[0].mxu0
  %v5777 = vpop.f32.mrb[0].mxu0
  %v5778 = vadd.f32 0.0, %v5777
  %v5779 = vpop.f32.mrb[0].mxu0
  %5780 = vdwg.mxu0
  %v5781 = vadd.f32 %v4429, %v5399
  %v5782 = vadd.f32 %v4430, %v5402
  %v5783 = vadd.f32 %v4431, %v5407
  %v5784 = vadd.f32 %v4432, %v5410
  %v5785 = vadd.f32 %v4433, %v5415
  %v5786 = vadd.f32 %v4434, %v5418
  %v5787 = vadd.f32 %v4435, %v5423
  %v5788 = vadd.f32 %v4436, %v5426
  %v5789 = vadd.f32 %v4437, %v5431
  %v5790 = vadd.f32 %v4438, %v5434
  %v5791 = vadd.f32 %v4439, %v5439
  %v5792 = vadd.f32 %v4440, %v5442
  %v5793 = vadd.f32 %v4441, %v5447
  %v5794 = vadd.f32 %v4442, %v5450
  %v5795 = vadd.f32 %v4443, %v5455
  %v5796 = vadd.f32 %v4444, %v5458
  %v5797 = vadd.f32 %v4445, %v5463
  %v5798 = vadd.f32 %v4446, %v5466
  %v5799 = vadd.f32 %v4447, %v5471
  %v5800 = vadd.f32 %v4448, %v5474
  %v5801 = vadd.f32 %v4449, %v5479
  %v5802 = vadd.f32 %v4450, %v5482
  %v5803 = vadd.f32 %v4451, %v5487
  %v5804 = vadd.f32 %v4452, %v5490
  %v5805 = vadd.f32 %v4453, %v5495
  %v5806 = vadd.f32 %v4454, %v5498
  %v5807 = vadd.f32 %v4455, %v5503
  %v5808 = vadd.f32 %v4456, %v5506
  %v5809 = vadd.f32 %v4457, %v5511
  %v5810 = vadd.f32 %v4458, %v5514
  %v5811 = vadd.f32 %v4459, %v5519
  %v5812 = vadd.f32 %v4460, %v5522
  %v5813 = vadd.f32 %v4461, %v5527
  %v5814 = vadd.f32 %v4462, %v5530
  %v5815 = vadd.f32 %v4463, %v5535
  %v5816 = vadd.f32 %v4464, %v5538
  %v5817 = vadd.f32 %v4465, %v5543
  %v5818 = vadd.f32 %v4466, %v5546
  %v5819 = vadd.f32 %v4467, %v5551
  %v5820 = vadd.f32 %v4468, %v5554
  %v5821 = vadd.f32 %v4469, %v5559
  %v5822 = vadd.f32 %v4470, %v5562
  %v5823 = vadd.f32 %v4471, %v5567
  %v5824 = vadd.f32 %v4472, %v5570
  %v5825 = vadd.f32 %v4473, %v5575
  %v5826 = vadd.f32 %v4474, %v5578
  %v5827 = vadd.f32 %v4475, %v5583
  %v5828 = vadd.f32 %v4476, %v5586
  %v5829 = vadd.f32 %v4477, %v5591
  %v5830 = vadd.f32 %v4478, %v5594
  %v5831 = vadd.f32 %v4479, %v5599
  %v5832 = vadd.f32 %v4480, %v5602
  %v5833 = vadd.f32 %v4481, %v5607
  %v5834 = vadd.f32 %v4482, %v5610
  %v5835 = vadd.f32 %v4483, %v5615
  %v5836 = vadd.f32 %v4484, %v5618
  %v5837 = vadd.f32 %v4485, %v5623
  %v5838 = vadd.f32 %v4486, %v5626
  %v5839 = vadd.f32 %v4487, %v5631
  %v5840 = vadd.f32 %v4488, %v5634
  %v5841 = vadd.f32 %v4489, %v5639
  %v5842 = vadd.f32 %v4490, %v5642
  %v5843 = vadd.f32 %v4491, %v5647
  %v5844 = vadd.f32 %v4492, %v5650
  %v5845 = vadd.f32 %v4493, %v5655
  %v5846 = vadd.f32 %v4494, %v5658
  %v5847 = vadd.f32 %v4495, %v5663
  %v5848 = vadd.f32 %v4496, %v5666
  %v5849 = vadd.f32 %v4497, %v5671
  %v5850 = vadd.f32 %v4498, %v5674
  %v5851 = vadd.f32 %v4499, %v5679
  %v5852 = vadd.f32 %v4500, %v5682
  %v5853 = vadd.f32 %v4501, %v5687
  %v5854 = vadd.f32 %v4502, %v5690
  %v5855 = vadd.f32 %v4503, %v5695
  %v5856 = vadd.f32 %v4504, %v5698
  %v5857 = vadd.f32 %v4505, %v5703
  %v5858 = vadd.f32 %v4506, %v5706
  %v5859 = vadd.f32 %v4507, %v5711
  %v5860 = vadd.f32 %v4508, %v5714
  %v5861 = vadd.f32 %v4509, %v5719
  %v5862 = vadd.f32 %v4510, %v5722
  %v5863 = vadd.f32 %v4511, %v5727
  %v5864 = vadd.f32 %v4512, %v5730
  %v5865 = vadd.f32 %v4513, %v5735
  %v5866 = vadd.f32 %v4514, %v5738
  %v5867 = vadd.f32 %v4515, %v5743
  %v5868 = vadd.f32 %v4516, %v5746
  %v5869 = vadd.f32 %v4517, %v5751
  %v5870 = vadd.f32 %v4518, %v5754
  %v5871 = vadd.f32 %v4519, %v5759
  %v5872 = vadd.f32 %v4520, %v5762
  %v5873 = vadd.f32 %v4521, %v5767
  %v5874 = vadd.f32 %v4522, %v5770
  %v5875 = vadd.f32 %v4523, %v5775
  %v5876 = vadd.f32 %v4524, %v5778
  %s5877 = scalar_lea.vmem %s2, 64
  %v5878 = vld [vmem:[%s5877] sm:$0xf]
  %v5879 = vld [vmem:[%s5877 + $0x4] sm:$0xf]
  %v5880 = vld [vmem:[%s5877 + $0x8] sm:$0xf]
  %v5881 = vld [vmem:[%s5877 + $0xc] sm:$0x3]
  %v5886 = vunpack.c.l.b16 %v5878
  %v5887 = vunpack.c.l.b16 %v5879
  %v5888 = vunpack.c.l.b16 %v5880
  %v5889 = vunpack.c.l.b16 %v5881
  %v5890 = vpack.c.b16 %v5887, %v5886
  %v5891 = vpack.c.b16 %v5889, %v5888
  %v5894 = vsel %vm490, %v5891, 0
  %5896 = vmatprep.subr.bf16.mxu0 0
  %5897 = vmatpush1.bf16.msra.mxu0 %v5890
  %5898 = vmatprep.subr.bf16.mxu0 0
  %5899 = vmatpush1.bf16.msra.mxu0 %v5894
  %5900 = vmatprep.subr.bf16.mxu0 0
  %5901 = vmatpush1.bf16.msra.mxu0 0
  %5902 = vmatprep.subr.bf16.mxu0 0
  %5903 = vmatpush1.bf16.msra.mxu0 0
  %5904 = vmatprep.subr.bf16.mxu0 0
  %5905 = vmatpush1.bf16.msra.mxu0 0
  %5906 = vmatprep.subr.bf16.mxu0 0
  %5907 = vmatpush1.bf16.msra.mxu0 0
  %5908 = vmatprep.subr.bf16.mxu0 0
  %5909 = vmatpush1.bf16.msra.mxu0 0
  %5910 = vmatprep.subr.bf16.mxu0 0
  %5911 = vmatpush1.bf16.msra.mxu0 0
  %5912 = vmatprep.subr.bf16.mxu0 0
  %5913 = vmatpush1.bf16.msra.mxu0 0
  %5914 = vmatprep.subr.bf16.mxu0 0
  %5915 = vmatpush1.bf16.msra.mxu0 0
  %5916 = vmatprep.subr.bf16.mxu0 0
  %5917 = vmatpush1.bf16.msra.mxu0 0
  %5918 = vmatprep.subr.bf16.mxu0 0
  %5919 = vmatpush1.bf16.msra.mxu0 0
  %5920 = vmatprep.subr.bf16.mxu0 0
  %5921 = vmatpush1.bf16.msra.mxu0 0
  %5922 = vmatprep.subr.bf16.mxu0 0
  %5923 = vmatpush1.bf16.msra.mxu0 0
  %5924 = vmatprep.subr.bf16.mxu0 0
  %5925 = vmatpush1.bf16.msra.mxu0 0
  %5926 = vmatprep.subr.bf16.mxu0 0
  %5927 = vmatpush1.bf16.msra.mxu0 0
  %5928 = vmatprep.mubr.bf16.mxu0 0
  %5929 = vmatmul.mubr.bf16.gmra.mrb[0].mxu0 %v5218
  %v5930 = vpop.f32.mrb[0].mxu0
  %v5931 = vadd.f32 0.0, %v5930
  %v5932 = vpop.f32.mrb[0].mxu0
  %v5933 = vpop.f32.mrb[0].mxu0
  %v5934 = vadd.f32 0.0, %v5933
  %v5935 = vpop.f32.mrb[0].mxu0
  %5936 = vmatprep.mubr.bf16.mxu0 0
  %5937 = vmatmul.mubr.bf16.gmra.mrb[0].mxu0 %v5221
  %v5938 = vpop.f32.mrb[0].mxu0
  %v5939 = vadd.f32 0.0, %v5938
  %v5940 = vpop.f32.mrb[0].mxu0
  %v5941 = vpop.f32.mrb[0].mxu0
  %v5942 = vadd.f32 0.0, %v5941
  %v5943 = vpop.f32.mrb[0].mxu0
  %5944 = vmatprep.mubr.bf16.mxu0 0
  %5945 = vmatmul.mubr.bf16.gmra.mrb[0].mxu0 %v5224
  %v5946 = vpop.f32.mrb[0].mxu0
  %v5947 = vadd.f32 0.0, %v5946
  %v5948 = vpop.f32.mrb[0].mxu0
  %v5949 = vpop.f32.mrb[0].mxu0
  %v5950 = vadd.f32 0.0, %v5949
  %v5951 = vpop.f32.mrb[0].mxu0
  %5952 = vmatprep.mubr.bf16.mxu0 0
  %5953 = vmatmul.mubr.bf16.gmra.mrb[0].mxu0 %v5227
  %v5954 = vpop.f32.mrb[0].mxu0
  %v5955 = vadd.f32 0.0, %v5954
  %v5956 = vpop.f32.mrb[0].mxu0
  %v5957 = vpop.f32.mrb[0].mxu0
  %v5958 = vadd.f32 0.0, %v5957
  %v5959 = vpop.f32.mrb[0].mxu0
  %5960 = vmatprep.mubr.bf16.mxu0 0
  %5961 = vmatmul.mubr.bf16.gmra.mrb[0].mxu0 %v5230
  %v5962 = vpop.f32.mrb[0].mxu0
  %v5963 = vadd.f32 0.0, %v5962
  %v5964 = vpop.f32.mrb[0].mxu0
  %v5965 = vpop.f32.mrb[0].mxu0
  %v5966 = vadd.f32 0.0, %v5965
  %v5967 = vpop.f32.mrb[0].mxu0
  %5968 = vmatprep.mubr.bf16.mxu0 0
  %5969 = vmatmul.mubr.bf16.gmra.mrb[0].mxu0 %v5233
  %v5970 = vpop.f32.mrb[0].mxu0
  %v5971 = vadd.f32 0.0, %v5970
  %v5972 = vpop.f32.mrb[0].mxu0
  %v5973 = vpop.f32.mrb[0].mxu0
  %v5974 = vadd.f32 0.0, %v5973
  %v5975 = vpop.f32.mrb[0].mxu0
  %5976 = vmatprep.mubr.bf16.mxu0 0
  %5977 = vmatmul.mubr.bf16.gmra.mrb[0].mxu0 %v5236
  %v5978 = vpop.f32.mrb[0].mxu0
  %v5979 = vadd.f32 0.0, %v5978
  %v5980 = vpop.f32.mrb[0].mxu0
  %v5981 = vpop.f32.mrb[0].mxu0
  %v5982 = vadd.f32 0.0, %v5981
  %v5983 = vpop.f32.mrb[0].mxu0
  %5984 = vmatprep.mubr.bf16.mxu0 0
  %5985 = vmatmul.mubr.bf16.gmra.mrb[0].mxu0 %v5239
  %v5986 = vpop.f32.mrb[0].mxu0
  %v5987 = vadd.f32 0.0, %v5986
  %v5988 = vpop.f32.mrb[0].mxu0
  %v5989 = vpop.f32.mrb[0].mxu0
  %v5990 = vadd.f32 0.0, %v5989
  %v5991 = vpop.f32.mrb[0].mxu0
  %5992 = vmatprep.mubr.bf16.mxu0 0
  %5993 = vmatmul.mubr.bf16.gmra.mrb[0].mxu0 %v5242
  %v5994 = vpop.f32.mrb[0].mxu0
  %v5995 = vadd.f32 0.0, %v5994
  %v5996 = vpop.f32.mrb[0].mxu0
  %v5997 = vpop.f32.mrb[0].mxu0
  %v5998 = vadd.f32 0.0, %v5997
  %v5999 = vpop.f32.mrb[0].mxu0
  %6000 = vmatprep.mubr.bf16.mxu0 0
  %6001 = vmatmul.mubr.bf16.gmra.mrb[0].mxu0 %v5245
  %v6002 = vpop.f32.mrb[0].mxu0
  %v6003 = vadd.f32 0.0, %v6002
  %v6004 = vpop.f32.mrb[0].mxu0
  %v6005 = vpop.f32.mrb[0].mxu0
  %v6006 = vadd.f32 0.0, %v6005
  %v6007 = vpop.f32.mrb[0].mxu0
  %6008 = vmatprep.mubr.bf16.mxu0 0
  %6009 = vmatmul.mubr.bf16.gmra.mrb[0].mxu0 %v5248
  %v6010 = vpop.f32.mrb[0].mxu0
  %v6011 = vadd.f32 0.0, %v6010
  %v6012 = vpop.f32.mrb[0].mxu0
  %v6013 = vpop.f32.mrb[0].mxu0
  %v6014 = vadd.f32 0.0, %v6013
  %v6015 = vpop.f32.mrb[0].mxu0
  %6016 = vmatprep.mubr.bf16.mxu0 0
  %6017 = vmatmul.mubr.bf16.gmra.mrb[0].mxu0 %v5251
  %v6018 = vpop.f32.mrb[0].mxu0
  %v6019 = vadd.f32 0.0, %v6018
  %v6020 = vpop.f32.mrb[0].mxu0
  %v6021 = vpop.f32.mrb[0].mxu0
  %v6022 = vadd.f32 0.0, %v6021
  %v6023 = vpop.f32.mrb[0].mxu0
  %6024 = vmatprep.mubr.bf16.mxu0 0
  %6025 = vmatmul.mubr.bf16.gmra.mrb[0].mxu0 %v5254
  %v6026 = vpop.f32.mrb[0].mxu0
  %v6027 = vadd.f32 0.0, %v6026
  %v6028 = vpop.f32.mrb[0].mxu0
  %v6029 = vpop.f32.mrb[0].mxu0
  %v6030 = vadd.f32 0.0, %v6029
  %v6031 = vpop.f32.mrb[0].mxu0
  %6032 = vmatprep.mubr.bf16.mxu0 0
  %6033 = vmatmul.mubr.bf16.gmra.mrb[0].mxu0 %v5257
  %v6034 = vpop.f32.mrb[0].mxu0
  %v6035 = vadd.f32 0.0, %v6034
  %v6036 = vpop.f32.mrb[0].mxu0
  %v6037 = vpop.f32.mrb[0].mxu0
  %v6038 = vadd.f32 0.0, %v6037
  %v6039 = vpop.f32.mrb[0].mxu0
  %6040 = vmatprep.mubr.bf16.mxu0 0
  %6041 = vmatmul.mubr.bf16.gmra.mrb[0].mxu0 %v5260
  %v6042 = vpop.f32.mrb[0].mxu0
  %v6043 = vadd.f32 0.0, %v6042
  %v6044 = vpop.f32.mrb[0].mxu0
  %v6045 = vpop.f32.mrb[0].mxu0
  %v6046 = vadd.f32 0.0, %v6045
  %v6047 = vpop.f32.mrb[0].mxu0
  %6048 = vmatprep.mubr.bf16.mxu0 0
  %6049 = vmatmul.mubr.bf16.gmra.mrb[0].mxu0 %v5263
  %v6050 = vpop.f32.mrb[0].mxu0
  %v6051 = vadd.f32 0.0, %v6050
  %v6052 = vpop.f32.mrb[0].mxu0
  %v6053 = vpop.f32.mrb[0].mxu0
  %v6054 = vadd.f32 0.0, %v6053
  %v6055 = vpop.f32.mrb[0].mxu0
  %6056 = vmatprep.mubr.bf16.mxu0 0
  %6057 = vmatmul.mubr.bf16.gmra.mrb[0].mxu0 %v5266
  %v6058 = vpop.f32.mrb[0].mxu0
  %v6059 = vadd.f32 0.0, %v6058
  %v6060 = vpop.f32.mrb[0].mxu0
  %v6061 = vpop.f32.mrb[0].mxu0
  %v6062 = vadd.f32 0.0, %v6061
  %v6063 = vpop.f32.mrb[0].mxu0
  %6064 = vmatprep.mubr.bf16.mxu0 0
  %6065 = vmatmul.mubr.bf16.gmra.mrb[0].mxu0 %v5269
  %v6066 = vpop.f32.mrb[0].mxu0
  %v6067 = vadd.f32 0.0, %v6066
  %v6068 = vpop.f32.mrb[0].mxu0
  %v6069 = vpop.f32.mrb[0].mxu0
  %v6070 = vadd.f32 0.0, %v6069
  %v6071 = vpop.f32.mrb[0].mxu0
  %6072 = vmatprep.mubr.bf16.mxu0 0
  %6073 = vmatmul.mubr.bf16.gmra.mrb[0].mxu0 %v5272
  %v6074 = vpop.f32.mrb[0].mxu0
  %v6075 = vadd.f32 0.0, %v6074
  %v6076 = vpop.f32.mrb[0].mxu0
  %v6077 = vpop.f32.mrb[0].mxu0
  %v6078 = vadd.f32 0.0, %v6077
  %v6079 = vpop.f32.mrb[0].mxu0
  %6080 = vmatprep.mubr.bf16.mxu0 0
  %6081 = vmatmul.mubr.bf16.gmra.mrb[0].mxu0 %v5275
  %v6082 = vpop.f32.mrb[0].mxu0
  %v6083 = vadd.f32 0.0, %v6082
  %v6084 = vpop.f32.mrb[0].mxu0
  %v6085 = vpop.f32.mrb[0].mxu0
  %v6086 = vadd.f32 0.0, %v6085
  %v6087 = vpop.f32.mrb[0].mxu0
  %6088 = vmatprep.mubr.bf16.mxu0 0
  %6089 = vmatmul.mubr.bf16.gmra.mrb[0].mxu0 %v5278
  %v6090 = vpop.f32.mrb[0].mxu0
  %v6091 = vadd.f32 0.0, %v6090
  %v6092 = vpop.f32.mrb[0].mxu0
  %v6093 = vpop.f32.mrb[0].mxu0
  %v6094 = vadd.f32 0.0, %v6093
  %v6095 = vpop.f32.mrb[0].mxu0
  %6096 = vmatprep.mubr.bf16.mxu0 0
  %6097 = vmatmul.mubr.bf16.gmra.mrb[0].mxu0 %v5281
  %v6098 = vpop.f32.mrb[0].mxu0
  %v6099 = vadd.f32 0.0, %v6098
  %v6100 = vpop.f32.mrb[0].mxu0
  %v6101 = vpop.f32.mrb[0].mxu0
  %v6102 = vadd.f32 0.0, %v6101
  %v6103 = vpop.f32.mrb[0].mxu0
  %6104 = vmatprep.mubr.bf16.mxu0 0
  %6105 = vmatmul.mubr.bf16.gmra.mrb[0].mxu0 %v5284
  %v6106 = vpop.f32.mrb[0].mxu0
  %v6107 = vadd.f32 0.0, %v6106
  %v6108 = vpop.f32.mrb[0].mxu0
  %v6109 = vpop.f32.mrb[0].mxu0
  %v6110 = vadd.f32 0.0, %v6109
  %v6111 = vpop.f32.mrb[0].mxu0
  %6112 = vmatprep.mubr.bf16.mxu0 0
  %6113 = vmatmul.mubr.bf16.gmra.mrb[0].mxu0 %v5287
  %v6114 = vpop.f32.mrb[0].mxu0
  %v6115 = vadd.f32 0.0, %v6114
  %v6116 = vpop.f32.mrb[0].mxu0
  %v6117 = vpop.f32.mrb[0].mxu0
  %v6118 = vadd.f32 0.0, %v6117
  %v6119 = vpop.f32.mrb[0].mxu0
  %6120 = vmatprep.mubr.bf16.mxu0 0
  %6121 = vmatmul.mubr.bf16.gmra.mrb[0].mxu0 %v5290
  %v6122 = vpop.f32.mrb[0].mxu0
  %v6123 = vadd.f32 0.0, %v6122
  %v6124 = vpop.f32.mrb[0].mxu0
  %v6125 = vpop.f32.mrb[0].mxu0
  %v6126 = vadd.f32 0.0, %v6125
  %v6127 = vpop.f32.mrb[0].mxu0
  %6128 = vmatprep.mubr.bf16.mxu0 0
  %6129 = vmatmul.mubr.bf16.gmra.mrb[0].mxu0 %v5293
  %v6130 = vpop.f32.mrb[0].mxu0
  %v6131 = vadd.f32 0.0, %v6130
  %v6132 = vpop.f32.mrb[0].mxu0
  %v6133 = vpop.f32.mrb[0].mxu0
  %v6134 = vadd.f32 0.0, %v6133
  %v6135 = vpop.f32.mrb[0].mxu0
  %6136 = vmatprep.mubr.bf16.mxu0 0
  %6137 = vmatmul.mubr.bf16.gmra.mrb[0].mxu0 %v5296
  %v6138 = vpop.f32.mrb[0].mxu0
  %v6139 = vadd.f32 0.0, %v6138
  %v6140 = vpop.f32.mrb[0].mxu0
  %v6141 = vpop.f32.mrb[0].mxu0
  %v6142 = vadd.f32 0.0, %v6141
  %v6143 = vpop.f32.mrb[0].mxu0
  %6144 = vmatprep.mubr.bf16.mxu0 0
  %6145 = vmatmul.mubr.bf16.gmra.mrb[0].mxu0 %v5299
  %v6146 = vpop.f32.mrb[0].mxu0
  %v6147 = vadd.f32 0.0, %v6146
  %v6148 = vpop.f32.mrb[0].mxu0
  %v6149 = vpop.f32.mrb[0].mxu0
  %v6150 = vadd.f32 0.0, %v6149
  %v6151 = vpop.f32.mrb[0].mxu0
  %6152 = vmatprep.mubr.bf16.mxu0 0
  %6153 = vmatmul.mubr.bf16.gmra.mrb[0].mxu0 %v5302
  %v6154 = vpop.f32.mrb[0].mxu0
  %v6155 = vadd.f32 0.0, %v6154
  %v6156 = vpop.f32.mrb[0].mxu0
  %v6157 = vpop.f32.mrb[0].mxu0
  %v6158 = vadd.f32 0.0, %v6157
  %v6159 = vpop.f32.mrb[0].mxu0
  %6160 = vmatprep.mubr.bf16.mxu0 0
  %6161 = vmatmul.mubr.bf16.gmra.mrb[0].mxu0 %v5305
  %v6162 = vpop.f32.mrb[0].mxu0
  %v6163 = vadd.f32 0.0, %v6162
  %v6164 = vpop.f32.mrb[0].mxu0
  %v6165 = vpop.f32.mrb[0].mxu0
  %v6166 = vadd.f32 0.0, %v6165
  %v6167 = vpop.f32.mrb[0].mxu0
  %6168 = vmatprep.mubr.bf16.mxu0 0
  %6169 = vmatmul.mubr.bf16.gmra.mrb[0].mxu0 %v5308
  %v6170 = vpop.f32.mrb[0].mxu0
  %v6171 = vadd.f32 0.0, %v6170
  %v6172 = vpop.f32.mrb[0].mxu0
  %v6173 = vpop.f32.mrb[0].mxu0
  %v6174 = vadd.f32 0.0, %v6173
  %v6175 = vpop.f32.mrb[0].mxu0
  %6176 = vmatprep.mubr.bf16.mxu0 0
  %6177 = vmatmul.mubr.bf16.gmra.mrb[0].mxu0 %v5311
  %v6178 = vpop.f32.mrb[0].mxu0
  %v6179 = vadd.f32 0.0, %v6178
  %v6180 = vpop.f32.mrb[0].mxu0
  %v6181 = vpop.f32.mrb[0].mxu0
  %v6182 = vadd.f32 0.0, %v6181
  %v6183 = vpop.f32.mrb[0].mxu0
  %6184 = vmatprep.mubr.bf16.mxu0 0
  %6185 = vmatmul.mubr.bf16.gmra.mrb[0].mxu0 %v5314
  %v6186 = vpop.f32.mrb[0].mxu0
  %v6187 = vadd.f32 0.0, %v6186
  %v6188 = vpop.f32.mrb[0].mxu0
  %v6189 = vpop.f32.mrb[0].mxu0
  %v6190 = vadd.f32 0.0, %v6189
  %v6191 = vpop.f32.mrb[0].mxu0
  %6192 = vmatprep.mubr.bf16.mxu0 0
  %6193 = vmatmul.mubr.bf16.gmra.mrb[0].mxu0 %v5317
  %v6194 = vpop.f32.mrb[0].mxu0
  %v6195 = vadd.f32 0.0, %v6194
  %v6196 = vpop.f32.mrb[0].mxu0
  %v6197 = vpop.f32.mrb[0].mxu0
  %v6198 = vadd.f32 0.0, %v6197
  %v6199 = vpop.f32.mrb[0].mxu0
  %6200 = vmatprep.mubr.bf16.mxu0 0
  %6201 = vmatmul.mubr.bf16.gmra.mrb[0].mxu0 %v5320
  %v6202 = vpop.f32.mrb[0].mxu0
  %v6203 = vadd.f32 0.0, %v6202
  %v6204 = vpop.f32.mrb[0].mxu0
  %v6205 = vpop.f32.mrb[0].mxu0
  %v6206 = vadd.f32 0.0, %v6205
  %v6207 = vpop.f32.mrb[0].mxu0
  %6208 = vmatprep.mubr.bf16.mxu0 0
  %6209 = vmatmul.mubr.bf16.gmra.mrb[0].mxu0 %v5323
  %v6210 = vpop.f32.mrb[0].mxu0
  %v6211 = vadd.f32 0.0, %v6210
  %v6212 = vpop.f32.mrb[0].mxu0
  %v6213 = vpop.f32.mrb[0].mxu0
  %v6214 = vadd.f32 0.0, %v6213
  %v6215 = vpop.f32.mrb[0].mxu0
  %6216 = vmatprep.mubr.bf16.mxu0 0
  %6217 = vmatmul.mubr.bf16.gmra.mrb[0].mxu0 %v5326
  %v6218 = vpop.f32.mrb[0].mxu0
  %v6219 = vadd.f32 0.0, %v6218
  %v6220 = vpop.f32.mrb[0].mxu0
  %v6221 = vpop.f32.mrb[0].mxu0
  %v6222 = vadd.f32 0.0, %v6221
  %v6223 = vpop.f32.mrb[0].mxu0
  %6224 = vmatprep.mubr.bf16.mxu0 0
  %6225 = vmatmul.mubr.bf16.gmra.mrb[0].mxu0 %v5329
  %v6226 = vpop.f32.mrb[0].mxu0
  %v6227 = vadd.f32 0.0, %v6226
  %v6228 = vpop.f32.mrb[0].mxu0
  %v6229 = vpop.f32.mrb[0].mxu0
  %v6230 = vadd.f32 0.0, %v6229
  %v6231 = vpop.f32.mrb[0].mxu0
  %6232 = vmatprep.mubr.bf16.mxu0 0
  %6233 = vmatmul.mubr.bf16.gmra.mrb[0].mxu0 %v5332
  %v6234 = vpop.f32.mrb[0].mxu0
  %v6235 = vadd.f32 0.0, %v6234
  %v6236 = vpop.f32.mrb[0].mxu0
  %v6237 = vpop.f32.mrb[0].mxu0
  %v6238 = vadd.f32 0.0, %v6237
  %v6239 = vpop.f32.mrb[0].mxu0
  %6240 = vmatprep.mubr.bf16.mxu0 0
  %6241 = vmatmul.mubr.bf16.gmra.mrb[0].mxu0 %v5335
  %v6242 = vpop.f32.mrb[0].mxu0
  %v6243 = vadd.f32 0.0, %v6242
  %v6244 = vpop.f32.mrb[0].mxu0
  %v6245 = vpop.f32.mrb[0].mxu0
  %v6246 = vadd.f32 0.0, %v6245
  %v6247 = vpop.f32.mrb[0].mxu0
  %6248 = vmatprep.mubr.bf16.mxu0 0
  %6249 = vmatmul.mubr.bf16.gmra.mrb[0].mxu0 %v5338
  %v6250 = vpop.f32.mrb[0].mxu0
  %v6251 = vadd.f32 0.0, %v6250
  %v6252 = vpop.f32.mrb[0].mxu0
  %v6253 = vpop.f32.mrb[0].mxu0
  %v6254 = vadd.f32 0.0, %v6253
  %v6255 = vpop.f32.mrb[0].mxu0
  %6256 = vmatprep.mubr.bf16.mxu0 0
  %6257 = vmatmul.mubr.bf16.gmra.mrb[0].mxu0 %v5341
  %v6258 = vpop.f32.mrb[0].mxu0
  %v6259 = vadd.f32 0.0, %v6258
  %v6260 = vpop.f32.mrb[0].mxu0
  %v6261 = vpop.f32.mrb[0].mxu0
  %v6262 = vadd.f32 0.0, %v6261
  %v6263 = vpop.f32.mrb[0].mxu0
  %6264 = vmatprep.mubr.bf16.mxu0 0
  %6265 = vmatmul.mubr.bf16.gmra.mrb[0].mxu0 %v5344
  %v6266 = vpop.f32.mrb[0].mxu0
  %v6267 = vadd.f32 0.0, %v6266
  %v6268 = vpop.f32.mrb[0].mxu0
  %v6269 = vpop.f32.mrb[0].mxu0
  %v6270 = vadd.f32 0.0, %v6269
  %v6271 = vpop.f32.mrb[0].mxu0
  %6272 = vmatprep.mubr.bf16.mxu0 0
  %6273 = vmatmul.mubr.bf16.gmra.mrb[0].mxu0 %v5347
  %v6274 = vpop.f32.mrb[0].mxu0
  %v6275 = vadd.f32 0.0, %v6274
  %v6276 = vpop.f32.mrb[0].mxu0
  %v6277 = vpop.f32.mrb[0].mxu0
  %v6278 = vadd.f32 0.0, %v6277
  %v6279 = vpop.f32.mrb[0].mxu0
  %6280 = vmatprep.mubr.bf16.mxu0 0
  %6281 = vmatmul.mubr.bf16.gmra.mrb[0].mxu0 %v5350
  %v6282 = vpop.f32.mrb[0].mxu0
  %v6283 = vadd.f32 0.0, %v6282
  %v6284 = vpop.f32.mrb[0].mxu0
  %v6285 = vpop.f32.mrb[0].mxu0
  %v6286 = vadd.f32 0.0, %v6285
  %v6287 = vpop.f32.mrb[0].mxu0
  %6288 = vmatprep.mubr.bf16.mxu0 0
  %6289 = vmatmul.mubr.bf16.gmra.mrb[0].mxu0 %v5353
  %v6290 = vpop.f32.mrb[0].mxu0
  %v6291 = vadd.f32 0.0, %v6290
  %v6292 = vpop.f32.mrb[0].mxu0
  %v6293 = vpop.f32.mrb[0].mxu0
  %v6294 = vadd.f32 0.0, %v6293
  %v6295 = vpop.f32.mrb[0].mxu0
  %6296 = vmatprep.mubr.bf16.mxu0 0
  %6297 = vmatmul.mubr.bf16.gmra.mrb[0].mxu0 %v5356
  %v6298 = vpop.f32.mrb[0].mxu0
  %v6299 = vadd.f32 0.0, %v6298
  %v6300 = vpop.f32.mrb[0].mxu0
  %v6301 = vpop.f32.mrb[0].mxu0
  %v6302 = vadd.f32 0.0, %v6301
  %v6303 = vpop.f32.mrb[0].mxu0
  %6304 = vmatprep.mubr.bf16.mxu0 0
  %6305 = vmatmul.mubr.bf16.gmra.mrb[0].mxu0 %v5359
  %v6306 = vpop.f32.mrb[0].mxu0
  %v6307 = vadd.f32 0.0, %v6306
  %v6308 = vpop.f32.mrb[0].mxu0
  %v6309 = vpop.f32.mrb[0].mxu0
  %v6310 = vadd.f32 0.0, %v6309
  %v6311 = vpop.f32.mrb[0].mxu0
  %6312 = vdwg.mxu0
  %v6313 = vadd.f32 %v4961, %v5931
  %v6314 = vadd.f32 %v4962, %v5934
  %v6315 = vadd.f32 %v4963, %v5939
  %v6316 = vadd.f32 %v4964, %v5942
  %v6317 = vadd.f32 %v4965, %v5947
  %v6318 = vadd.f32 %v4966, %v5950
  %v6319 = vadd.f32 %v4967, %v5955
  %v6320 = vadd.f32 %v4968, %v5958
  %v6321 = vadd.f32 %v4969, %v5963
  %v6322 = vadd.f32 %v4970, %v5966
  %v6323 = vadd.f32 %v4971, %v5971
  %v6324 = vadd.f32 %v4972, %v5974
  %v6325 = vadd.f32 %v4973, %v5979
  %v6326 = vadd.f32 %v4974, %v5982
  %v6327 = vadd.f32 %v4975, %v5987
  %v6328 = vadd.f32 %v4976, %v5990
  %v6329 = vadd.f32 %v4977, %v5995
  %v6330 = vadd.f32 %v4978, %v5998
  %v6331 = vadd.f32 %v4979, %v6003
  %v6332 = vadd.f32 %v4980, %v6006
  %v6333 = vadd.f32 %v4981, %v6011
  %v6334 = vadd.f32 %v4982, %v6014
  %v6335 = vadd.f32 %v4983, %v6019
  %v6336 = vadd.f32 %v4984, %v6022
  %v6337 = vadd.f32 %v4985, %v6027
  %v6338 = vadd.f32 %v4986, %v6030
  %v6339 = vadd.f32 %v4987, %v6035
  %v6340 = vadd.f32 %v4988, %v6038
  %v6341 = vadd.f32 %v4989, %v6043
  %v6342 = vadd.f32 %v4990, %v6046
  %v6343 = vadd.f32 %v4991, %v6051
  %v6344 = vadd.f32 %v4992, %v6054
  %v6345 = vadd.f32 %v4993, %v6059
  %v6346 = vadd.f32 %v4994, %v6062
  %v6347 = vadd.f32 %v4995, %v6067
  %v6348 = vadd.f32 %v4996, %v6070
  %v6349 = vadd.f32 %v4997, %v6075
  %v6350 = vadd.f32 %v4998, %v6078
  %v6351 = vadd.f32 %v4999, %v6083
  %v6352 = vadd.f32 %v5000, %v6086
  %v6353 = vadd.f32 %v5001, %v6091
  %v6354 = vadd.f32 %v5002, %v6094
  %v6355 = vadd.f32 %v5003, %v6099
  %v6356 = vadd.f32 %v5004, %v6102
  %v6357 = vadd.f32 %v5005, %v6107
  %v6358 = vadd.f32 %v5006, %v6110
  %v6359 = vadd.f32 %v5007, %v6115
  %v6360 = vadd.f32 %v5008, %v6118
  %v6361 = vadd.f32 %v5009, %v6123
  %v6362 = vadd.f32 %v5010, %v6126
  %v6363 = vadd.f32 %v5011, %v6131
  %v6364 = vadd.f32 %v5012, %v6134
  %v6365 = vadd.f32 %v5013, %v6139
  %v6366 = vadd.f32 %v5014, %v6142
  %v6367 = vadd.f32 %v5015, %v6147
  %v6368 = vadd.f32 %v5016, %v6150
  %v6369 = vadd.f32 %v5017, %v6155
  %v6370 = vadd.f32 %v5018, %v6158
  %v6371 = vadd.f32 %v5019, %v6163
  %v6372 = vadd.f32 %v5020, %v6166
  %v6373 = vadd.f32 %v5021, %v6171
  %v6374 = vadd.f32 %v5022, %v6174
  %v6375 = vadd.f32 %v5023, %v6179
  %v6376 = vadd.f32 %v5024, %v6182
  %v6377 = vadd.f32 %v5025, %v6187
  %v6378 = vadd.f32 %v5026, %v6190
  %v6379 = vadd.f32 %v5027, %v6195
  %v6380 = vadd.f32 %v5028, %v6198
  %v6381 = vadd.f32 %v5029, %v6203
  %v6382 = vadd.f32 %v5030, %v6206
  %v6383 = vadd.f32 %v5031, %v6211
  %v6384 = vadd.f32 %v5032, %v6214
  %v6385 = vadd.f32 %v5033, %v6219
  %v6386 = vadd.f32 %v5034, %v6222
  %v6387 = vadd.f32 %v5035, %v6227
  %v6388 = vadd.f32 %v5036, %v6230
  %v6389 = vadd.f32 %v5037, %v6235
  %v6390 = vadd.f32 %v5038, %v6238
  %v6391 = vadd.f32 %v5039, %v6243
  %v6392 = vadd.f32 %v5040, %v6246
  %v6393 = vadd.f32 %v5041, %v6251
  %v6394 = vadd.f32 %v5042, %v6254
  %v6395 = vadd.f32 %v5043, %v6259
  %v6396 = vadd.f32 %v5044, %v6262
  %v6397 = vadd.f32 %v5045, %v6267
  %v6398 = vadd.f32 %v5046, %v6270
  %v6399 = vadd.f32 %v5047, %v6275
  %v6400 = vadd.f32 %v5048, %v6278
  %v6401 = vadd.f32 %v5049, %v6283
  %v6402 = vadd.f32 %v5050, %v6286
  %v6403 = vadd.f32 %v5051, %v6291
  %v6404 = vadd.f32 %v5052, %v6294
  %v6405 = vadd.f32 %v5053, %v6299
  %v6406 = vadd.f32 %v5054, %v6302
  %v6407 = vadd.f32 %v5055, %v6307
  %v6408 = vadd.f32 %v5056, %v6310
  %v6409 = vmax.f32 %v5781, %v6313
  %v6410 = vmax.f32 %v5782, %v6314
  %v6411 = vmax.f32 %v5783, %v6315
  %v6412 = vmax.f32 %v5784, %v6316
  %v6413 = vmax.f32 %v5785, %v6317
  %v6414 = vmax.f32 %v5786, %v6318
  %v6415 = vmax.f32 %v5787, %v6319
  %v6416 = vmax.f32 %v5788, %v6320
  %v6417 = vmax.f32 %v5789, %v6321
  %v6418 = vmax.f32 %v5790, %v6322
  %v6419 = vmax.f32 %v5791, %v6323
  %v6420 = vmax.f32 %v5792, %v6324
  %v6421 = vmax.f32 %v5793, %v6325
  %v6422 = vmax.f32 %v5794, %v6326
  %v6423 = vmax.f32 %v5795, %v6327
  %v6424 = vmax.f32 %v5796, %v6328
  %v6425 = vmax.f32 %v5797, %v6329
  %v6426 = vmax.f32 %v5798, %v6330
  %v6427 = vmax.f32 %v5799, %v6331
  %v6428 = vmax.f32 %v5800, %v6332
  %v6429 = vmax.f32 %v5801, %v6333
  %v6430 = vmax.f32 %v5802, %v6334
  %v6431 = vmax.f32 %v5803, %v6335
  %v6432 = vmax.f32 %v5804, %v6336
  %v6433 = vmax.f32 %v5805, %v6337
  %v6434 = vmax.f32 %v5806, %v6338
  %v6435 = vmax.f32 %v5807, %v6339
  %v6436 = vmax.f32 %v5808, %v6340
  %v6437 = vmax.f32 %v5809, %v6341
  %v6438 = vmax.f32 %v5810, %v6342
  %v6439 = vmax.f32 %v5811, %v6343
  %v6440 = vmax.f32 %v5812, %v6344
  %v6441 = vmax.f32 %v5813, %v6345
  %v6442 = vmax.f32 %v5814, %v6346
  %v6443 = vmax.f32 %v5815, %v6347
  %v6444 = vmax.f32 %v5816, %v6348
  %v6445 = vmax.f32 %v5817, %v6349
  %v6446 = vmax.f32 %v5818, %v6350
  %v6447 = vmax.f32 %v5819, %v6351
  %v6448 = vmax.f32 %v5820, %v6352
  %v6449 = vmax.f32 %v5821, %v6353
  %v6450 = vmax.f32 %v5822, %v6354
  %v6451 = vmax.f32 %v5823, %v6355
  %v6452 = vmax.f32 %v5824, %v6356
  %v6453 = vmax.f32 %v5825, %v6357
  %v6454 = vmax.f32 %v5826, %v6358
  %v6455 = vmax.f32 %v5827, %v6359
  %v6456 = vmax.f32 %v5828, %v6360
  %v6457 = vmax.f32 %v5829, %v6361
  %v6458 = vmax.f32 %v5830, %v6362
  %v6459 = vmax.f32 %v5831, %v6363
  %v6460 = vmax.f32 %v5832, %v6364
  %v6461 = vmax.f32 %v5833, %v6365
  %v6462 = vmax.f32 %v5834, %v6366
  %v6463 = vmax.f32 %v5835, %v6367
  %v6464 = vmax.f32 %v5836, %v6368
  %v6465 = vmax.f32 %v5837, %v6369
  %v6466 = vmax.f32 %v5838, %v6370
  %v6467 = vmax.f32 %v5839, %v6371
  %v6468 = vmax.f32 %v5840, %v6372
  %v6469 = vmax.f32 %v5841, %v6373
  %v6470 = vmax.f32 %v5842, %v6374
  %v6471 = vmax.f32 %v5843, %v6375
  %v6472 = vmax.f32 %v5844, %v6376
  %v6473 = vmax.f32 %v5845, %v6377
  %v6474 = vmax.f32 %v5846, %v6378
  %v6475 = vmax.f32 %v5847, %v6379
  %v6476 = vmax.f32 %v5848, %v6380
  %v6477 = vmax.f32 %v5849, %v6381
  %v6478 = vmax.f32 %v5850, %v6382
  %v6479 = vmax.f32 %v5851, %v6383
  %v6480 = vmax.f32 %v5852, %v6384
  %v6481 = vmax.f32 %v5853, %v6385
  %v6482 = vmax.f32 %v5854, %v6386
  %v6483 = vmax.f32 %v5855, %v6387
  %v6484 = vmax.f32 %v5856, %v6388
  %v6485 = vmax.f32 %v5857, %v6389
  %v6486 = vmax.f32 %v5858, %v6390
  %v6487 = vmax.f32 %v5859, %v6391
  %v6488 = vmax.f32 %v5860, %v6392
  %v6489 = vmax.f32 %v5861, %v6393
  %v6490 = vmax.f32 %v5862, %v6394
  %v6491 = vmax.f32 %v5863, %v6395
  %v6492 = vmax.f32 %v5864, %v6396
  %v6493 = vmax.f32 %v5865, %v6397
  %v6494 = vmax.f32 %v5866, %v6398
  %v6495 = vmax.f32 %v5867, %v6399
  %v6496 = vmax.f32 %v5868, %v6400
  %v6497 = vmax.f32 %v5869, %v6401
  %v6498 = vmax.f32 %v5870, %v6402
  %v6499 = vmax.f32 %v5871, %v6403
  %v6500 = vmax.f32 %v5872, %v6404
  %v6501 = vmax.f32 %v5873, %v6405
  %v6502 = vmax.f32 %v5874, %v6406
  %v6503 = vmax.f32 %v5875, %v6407
  %v6504 = vmax.f32 %v5876, %v6408
  %vm6505 = vcmask 982016
  %6506 = vst.msk [vmem:[#allocation2] sm:$0xff] %vm6505, %v6409
  %6507 = vst.msk [vmem:[#allocation2 + $0x8] sm:$0xff] %vm6505, %v6410
  %6508 = vst.msk [vmem:[#allocation2 + $0x10] sm:$0xff] %vm6505, %v6411
  %6509 = vst.msk [vmem:[#allocation2 + $0x18] sm:$0xff] %vm6505, %v6412
  %6510 = vst.msk [vmem:[#allocation2 + $0x20] sm:$0xff] %vm6505, %v6413
  %6511 = vst.msk [vmem:[#allocation2 + $0x28] sm:$0xff] %vm6505, %v6414
  %6512 = vst.msk [vmem:[#allocation2 + $0x30] sm:$0xff] %vm6505, %v6415
  %6513 = vst.msk [vmem:[#allocation2 + $0x38] sm:$0xff] %vm6505, %v6416
  %6514 = vst.msk [vmem:[#allocation2 + $0x40] sm:$0xff] %vm6505, %v6417
  %6515 = vst.msk [vmem:[#allocation2 + $0x48] sm:$0xff] %vm6505, %v6418
  %6516 = vst.msk [vmem:[#allocation2 + $0x50] sm:$0xff] %vm6505, %v6419
  %6517 = vst.msk [vmem:[#allocation2 + $0x58] sm:$0xff] %vm6505, %v6420
  %6518 = vst.msk [vmem:[#allocation2 + $0x60] sm:$0xff] %vm6505, %v6421
  %6519 = vst.msk [vmem:[#allocation2 + $0x68] sm:$0xff] %vm6505, %v6422
  %6520 = vst.msk [vmem:[#allocation2 + $0x70] sm:$0xff] %vm6505, %v6423
  %6521 = vst.msk [vmem:[#allocation2 + $0x78] sm:$0xff] %vm6505, %v6424
  %6522 = vst.msk [vmem:[#allocation2 + $0x80] sm:$0xff] %vm6505, %v6425
  %6523 = vst.msk [vmem:[#allocation2 + $0x88] sm:$0xff] %vm6505, %v6426
  %6524 = vst.msk [vmem:[#allocation2 + $0x90] sm:$0xff] %vm6505, %v6427
  %6525 = vst.msk [vmem:[#allocation2 + $0x98] sm:$0xff] %vm6505, %v6428
  %6526 = vst.msk [vmem:[#allocation2 + $0xa0] sm:$0xff] %vm6505, %v6429
  %6527 = vst.msk [vmem:[#allocation2 + $0xa8] sm:$0xff] %vm6505, %v6430
  %6528 = vst.msk [vmem:[#allocation2 + $0xb0] sm:$0xff] %vm6505, %v6431
  %6529 = vst.msk [vmem:[#allocation2 + $0xb8] sm:$0xff] %vm6505, %v6432
  %6530 = vst.msk [vmem:[#allocation2 + $0xc0] sm:$0xff] %vm6505, %v6433
  %6531 = vst.msk [vmem:[#allocation2 + $0xc8] sm:$0xff] %vm6505, %v6434
  %6532 = vst.msk [vmem:[#allocation2 + $0xd0] sm:$0xff] %vm6505, %v6435
  %6533 = vst.msk [vmem:[#allocation2 + $0xd8] sm:$0xff] %vm6505, %v6436
  %6534 = vst.msk [vmem:[#allocation2 + $0xe0] sm:$0xff] %vm6505, %v6437
  %6535 = vst.msk [vmem:[#allocation2 + $0xe8] sm:$0xff] %vm6505, %v6438
  %6536 = vst.msk [vmem:[#allocation2 + $0xf0] sm:$0xff] %vm6505, %v6439
  %6537 = vst.msk [vmem:[#allocation2 + $0xf8] sm:$0xff] %vm6505, %v6440
  %6538 = vst.msk [vmem:[#allocation2 + $0x100] sm:$0xff] %vm6505, %v6441
  %6539 = vst.msk [vmem:[#allocation2 + $0x108] sm:$0xff] %vm6505, %v6442
  %6540 = vst.msk [vmem:[#allocation2 + $0x110] sm:$0xff] %vm6505, %v6443
  %6541 = vst.msk [vmem:[#allocation2 + $0x118] sm:$0xff] %vm6505, %v6444
  %6542 = vst.msk [vmem:[#allocation2 + $0x120] sm:$0xff] %vm6505, %v6445
  %6543 = vst.msk [vmem:[#allocation2 + $0x128] sm:$0xff] %vm6505, %v6446
  %6544 = vst.msk [vmem:[#allocation2 + $0x130] sm:$0xff] %vm6505, %v6447
  %6545 = vst.msk [vmem:[#allocation2 + $0x138] sm:$0xff] %vm6505, %v6448
  %6546 = vst.msk [vmem:[#allocation2 + $0x140] sm:$0xff] %vm6505, %v6449
  %6547 = vst.msk [vmem:[#allocation2 + $0x148] sm:$0xff] %vm6505, %v6450
  %6548 = vst.msk [vmem:[#allocation2 + $0x150] sm:$0xff] %vm6505, %v6451
  %6549 = vst.msk [vmem:[#allocation2 + $0x158] sm:$0xff] %vm6505, %v6452
  %6550 = vst.msk [vmem:[#allocation2 + $0x160] sm:$0xff] %vm6505, %v6453
  %6551 = vst.msk [vmem:[#allocation2 + $0x168] sm:$0xff] %vm6505, %v6454
  %6552 = vst.msk [vmem:[#allocation2 + $0x170] sm:$0xff] %vm6505, %v6455
  %6553 = vst.msk [vmem:[#allocation2 + $0x178] sm:$0xff] %vm6505, %v6456
  %6554 = vst.msk [vmem:[#allocation2 + $0x180] sm:$0xff] %vm6505, %v6457
  %6555 = vst.msk [vmem:[#allocation2 + $0x188] sm:$0xff] %vm6505, %v6458
  %6556 = vst.msk [vmem:[#allocation2 + $0x190] sm:$0xff] %vm6505, %v6459
  %6557 = vst.msk [vmem:[#allocation2 + $0x198] sm:$0xff] %vm6505, %v6460
  %6558 = vst.msk [vmem:[#allocation2 + $0x1a0] sm:$0xff] %vm6505, %v6461
  %6559 = vst.msk [vmem:[#allocation2 + $0x1a8] sm:$0xff] %vm6505, %v6462
  %6560 = vst.msk [vmem:[#allocation2 + $0x1b0] sm:$0xff] %vm6505, %v6463
  %6561 = vst.msk [vmem:[#allocation2 + $0x1b8] sm:$0xff] %vm6505, %v6464
  %6562 = vst.msk [vmem:[#allocation2 + $0x1c0] sm:$0xff] %vm6505, %v6465
  %6563 = vst.msk [vmem:[#allocation2 + $0x1c8] sm:$0xff] %vm6505, %v6466
  %6564 = vst.msk [vmem:[#allocation2 + $0x1d0] sm:$0xff] %vm6505, %v6467
  %6565 = vst.msk [vmem:[#allocation2 + $0x1d8] sm:$0xff] %vm6505, %v6468
  %6566 = vst.msk [vmem:[#allocation2 + $0x1e0] sm:$0xff] %vm6505, %v6469
  %6567 = vst.msk [vmem:[#allocation2 + $0x1e8] sm:$0xff] %vm6505, %v6470
  %6568 = vst.msk [vmem:[#allocation2 + $0x1f0] sm:$0xff] %vm6505, %v6471
  %6569 = vst.msk [vmem:[#allocation2 + $0x1f8] sm:$0xff] %vm6505, %v6472
  %6570 = vst.msk [vmem:[#allocation2 + $0x200] sm:$0xff] %vm6505, %v6473
  %6571 = vst.msk [vmem:[#allocation2 + $0x208] sm:$0xff] %vm6505, %v6474
  %6572 = vst.msk [vmem:[#allocation2 + $0x210] sm:$0xff] %vm6505, %v6475
  %6573 = vst.msk [vmem:[#allocation2 + $0x218] sm:$0xff] %vm6505, %v6476
  %6574 = vst.msk [vmem:[#allocation2 + $0x220] sm:$0xff] %vm6505, %v6477
  %6575 = vst.msk [vmem:[#allocation2 + $0x228] sm:$0xff] %vm6505, %v6478
  %6576 = vst.msk [vmem:[#allocation2 + $0x230] sm:$0xff] %vm6505, %v6479
  %6577 = vst.msk [vmem:[#allocation2 + $0x238] sm:$0xff] %vm6505, %v6480
  %6578 = vst.msk [vmem:[#allocation2 + $0x240] sm:$0xff] %vm6505, %v6481
  %6579 = vst.msk [vmem:[#allocation2 + $0x248] sm:$0xff] %vm6505, %v6482
  %6580 = vst.msk [vmem:[#allocation2 + $0x250] sm:$0xff] %vm6505, %v6483
  %6581 = vst.msk [vmem:[#allocation2 + $0x258] sm:$0xff] %vm6505, %v6484
  %6582 = vst.msk [vmem:[#allocation2 + $0x260] sm:$0xff] %vm6505, %v6485
  %6583 = vst.msk [vmem:[#allocation2 + $0x268] sm:$0xff] %vm6505, %v6486
  %6584 = vst.msk [vmem:[#allocation2 + $0x270] sm:$0xff] %vm6505, %v6487
  %6585 = vst.msk [vmem:[#allocation2 + $0x278] sm:$0xff] %vm6505, %v6488
  %6586 = vst.msk [vmem:[#allocation2 + $0x280] sm:$0xff] %vm6505, %v6489
  %6587 = vst.msk [vmem:[#allocation2 + $0x288] sm:$0xff] %vm6505, %v6490
  %6588 = vst.msk [vmem:[#allocation2 + $0x290] sm:$0xff] %vm6505, %v6491
  %6589 = vst.msk [vmem:[#allocation2 + $0x298] sm:$0xff] %vm6505, %v6492
  %6590 = vst.msk [vmem:[#allocation2 + $0x2a0] sm:$0xff] %vm6505, %v6493
  %6591 = vst.msk [vmem:[#allocation2 + $0x2a8] sm:$0xff] %vm6505, %v6494
  %6592 = vst.msk [vmem:[#allocation2 + $0x2b0] sm:$0xff] %vm6505, %v6495
  %6593 = vst.msk [vmem:[#allocation2 + $0x2b8] sm:$0xff] %vm6505, %v6496
  %6594 = vst.msk [vmem:[#allocation2 + $0x2c0] sm:$0xff] %vm6505, %v6497
  %6595 = vst.msk [vmem:[#allocation2 + $0x2c8] sm:$0xff] %vm6505, %v6498
  %6596 = vst.msk [vmem:[#allocation2 + $0x2d0] sm:$0xff] %vm6505, %v6499
  %6597 = vst.msk [vmem:[#allocation2 + $0x2d8] sm:$0xff] %vm6505, %v6500
  %6598 = vst.msk [vmem:[#allocation2 + $0x2e0] sm:$0xff] %vm6505, %v6501
  %6599 = vst.msk [vmem:[#allocation2 + $0x2e8] sm:$0xff] %vm6505, %v6502
  %6600 = vst.msk [vmem:[#allocation2 + $0x2f0] sm:$0xff] %vm6505, %v6503
  %6601 = vst.msk [vmem:[#allocation2 + $0x2f8] sm:$0xff] %vm6505, %v6504
  %v6602 = vld [vmem:[#allocation2] ss:$2 sm:$0xff]
  %s6603 = scalar_lea.vmem [#allocation2], 16
  %v6604 = vld [vmem:[%s6603] ss:$2 sm:$0xf]
  %s6605 = scalar_lea.vmem [#allocation2], 24
  %v6606 = vld [vmem:[%s6605] ss:$2 sm:$0xff]
  %s6607 = scalar_lea.vmem [#allocation2], 40
  %v6608 = vld [vmem:[%s6607] ss:$2 sm:$0xf]
  %s6609 = scalar_lea.vmem [#allocation2], 48
  %v6610 = vld [vmem:[%s6609] ss:$2 sm:$0xff]
  %s6611 = scalar_lea.vmem [#allocation2], 64
  %v6612 = vld [vmem:[%s6611] ss:$2 sm:$0xf]
  %s6613 = scalar_lea.vmem [#allocation2], 72
  %v6614 = vld [vmem:[%s6613] ss:$2 sm:$0xff]
  %s6615 = scalar_lea.vmem [#allocation2], 88
  %v6616 = vld [vmem:[%s6615] ss:$2 sm:$0xf]
  %s6617 = scalar_lea.vmem [#allocation2], 96
  %v6618 = vld [vmem:[%s6617] ss:$2 sm:$0xff]
  %s6619 = scalar_lea.vmem [#allocation2], 112
  %v6620 = vld [vmem:[%s6619] ss:$2 sm:$0xf]
  %s6621 = scalar_lea.vmem [#allocation2], 120
  %v6622 = vld [vmem:[%s6621] ss:$2 sm:$0xff]
  %s6623 = scalar_lea.vmem [#allocation2], 136
  %v6624 = vld [vmem:[%s6623] ss:$2 sm:$0xf]
  %s6625 = scalar_lea.vmem [#allocation2], 144
  %v6626 = vld [vmem:[%s6625] ss:$2 sm:$0xff]
  %s6627 = scalar_lea.vmem [#allocation2], 160
  %v6628 = vld [vmem:[%s6627] ss:$2 sm:$0xf]
  %s6629 = scalar_lea.vmem [#allocation2], 168
  %v6630 = vld [vmem:[%s6629] ss:$2 sm:$0xff]
  %s6631 = scalar_lea.vmem [#allocation2], 184
  %v6632 = vld [vmem:[%s6631] ss:$2 sm:$0xf]
  %s6633 = scalar_lea.vmem [#allocation2], 192
  %v6634 = vld [vmem:[%s6633] ss:$2 sm:$0xff]
  %s6635 = scalar_lea.vmem [#allocation2], 208
  %v6636 = vld [vmem:[%s6635] ss:$2 sm:$0xf]
  %s6637 = scalar_lea.vmem [#allocation2], 216
  %v6638 = vld [vmem:[%s6637] ss:$2 sm:$0xff]
  %s6639 = scalar_lea.vmem [#allocation2], 232
  %v6640 = vld [vmem:[%s6639] ss:$2 sm:$0xf]
  %s6641 = scalar_lea.vmem [#allocation2], 240
  %v6642 = vld [vmem:[%s6641] ss:$2 sm:$0xff]
  %s6643 = scalar_lea.vmem [#allocation2], 256
  %v6644 = vld [vmem:[%s6643] ss:$2 sm:$0xf]
  %s6645 = scalar_lea.vmem [#allocation2], 264
  %v6646 = vld [vmem:[%s6645] ss:$2 sm:$0xff]
  %s6647 = scalar_lea.vmem [#allocation2], 280
  %v6648 = vld [vmem:[%s6647] ss:$2 sm:$0xf]
  %s6649 = scalar_lea.vmem [#allocation2], 288
  %v6650 = vld [vmem:[%s6649] ss:$2 sm:$0xff]
  %s6651 = scalar_lea.vmem [#allocation2], 304
  %v6652 = vld [vmem:[%s6651] ss:$2 sm:$0xf]
  %s6653 = scalar_lea.vmem [#allocation2], 312
  %v6654 = vld [vmem:[%s6653] ss:$2 sm:$0xff]
  %s6655 = scalar_lea.vmem [#allocation2], 328
  %v6656 = vld [vmem:[%s6655] ss:$2 sm:$0xf]
  %s6657 = scalar_lea.vmem [#allocation2], 336
  %v6658 = vld [vmem:[%s6657] ss:$2 sm:$0xff]
  %s6659 = scalar_lea.vmem [#allocation2], 352
  %v6660 = vld [vmem:[%s6659] ss:$2 sm:$0xf]
  %s6661 = scalar_lea.vmem [#allocation2], 360
  %v6662 = vld [vmem:[%s6661] ss:$2 sm:$0xff]
  %s6663 = scalar_lea.vmem [#allocation2], 376
  %v6664 = vld [vmem:[%s6663] ss:$2 sm:$0xf]
  %s6665 = scalar_lea.vmem [#allocation2], 384
  %v6666 = vld [vmem:[%s6665] ss:$2 sm:$0xff]
  %s6667 = scalar_lea.vmem [#allocation2], 400
  %v6668 = vld [vmem:[%s6667] ss:$2 sm:$0xf]
  %s6669 = scalar_lea.vmem [#allocation2], 408
  %v6670 = vld [vmem:[%s6669] ss:$2 sm:$0xff]
  %s6671 = scalar_lea.vmem [#allocation2], 424
  %v6672 = vld [vmem:[%s6671] ss:$2 sm:$0xf]
  %s6673 = scalar_lea.vmem [#allocation2], 432
  %v6674 = vld [vmem:[%s6673] ss:$2 sm:$0xff]
  %s6675 = scalar_lea.vmem [#allocation2], 448
  %v6676 = vld [vmem:[%s6675] ss:$2 sm:$0xf]
  %s6677 = scalar_lea.vmem [#allocation2], 456
  %v6678 = vld [vmem:[%s6677] ss:$2 sm:$0xff]
  %s6679 = scalar_lea.vmem [#allocation2], 472
  %v6680 = vld [vmem:[%s6679] ss:$2 sm:$0xf]
  %s6681 = scalar_lea.vmem [#allocation2], 480
  %v6682 = vld [vmem:[%s6681] ss:$2 sm:$0xff]
  %s6683 = scalar_lea.vmem [#allocation2], 496
  %v6684 = vld [vmem:[%s6683] ss:$2 sm:$0xf]
  %s6685 = scalar_lea.vmem [#allocation2], 504
  %v6686 = vld [vmem:[%s6685] ss:$2 sm:$0xff]
  %s6687 = scalar_lea.vmem [#allocation2], 520
  %v6688 = vld [vmem:[%s6687] ss:$2 sm:$0xf]
  %s6689 = scalar_lea.vmem [#allocation2], 528
  %v6690 = vld [vmem:[%s6689] ss:$2 sm:$0xff]
  %s6691 = scalar_lea.vmem [#allocation2], 544
  %v6692 = vld [vmem:[%s6691] ss:$2 sm:$0xf]
  %s6693 = scalar_lea.vmem [#allocation2], 552
  %v6694 = vld [vmem:[%s6693] ss:$2 sm:$0xff]
  %s6695 = scalar_lea.vmem [#allocation2], 568
  %v6696 = vld [vmem:[%s6695] ss:$2 sm:$0xf]
  %s6697 = scalar_lea.vmem [#allocation2], 576
  %v6698 = vld [vmem:[%s6697] ss:$2 sm:$0xff]
  %s6699 = scalar_lea.vmem [#allocation2], 592
  %v6700 = vld [vmem:[%s6699] ss:$2 sm:$0xf]
  %s6701 = scalar_lea.vmem [#allocation2], 600
  %v6702 = vld [vmem:[%s6701] ss:$2 sm:$0xff]
  %s6703 = scalar_lea.vmem [#allocation2], 616
  %v6704 = vld [vmem:[%s6703] ss:$2 sm:$0xf]
  %s6705 = scalar_lea.vmem [#allocation2], 624
  %v6706 = vld [vmem:[%s6705] ss:$2 sm:$0xff]
  %s6707 = scalar_lea.vmem [#allocation2], 640
  %v6708 = vld [vmem:[%s6707] ss:$2 sm:$0xf]
  %s6709 = scalar_lea.vmem [#allocation2], 648
  %v6710 = vld [vmem:[%s6709] ss:$2 sm:$0xff]
  %s6711 = scalar_lea.vmem [#allocation2], 664
  %v6712 = vld [vmem:[%s6711] ss:$2 sm:$0xf]
  %s6713 = scalar_lea.vmem [#allocation2], 672
  %v6714 = vld [vmem:[%s6713] ss:$2 sm:$0xff]
  %s6715 = scalar_lea.vmem [#allocation2], 688
  %v6716 = vld [vmem:[%s6715] ss:$2 sm:$0xf]
  %s6717 = scalar_lea.vmem [#allocation2], 696
  %v6718 = vld [vmem:[%s6717] ss:$2 sm:$0xff]
  %s6719 = scalar_lea.vmem [#allocation2], 712
  %v6720 = vld [vmem:[%s6719] ss:$2 sm:$0xf]
  %s6721 = scalar_lea.vmem [#allocation2], 720
  %v6722 = vld [vmem:[%s6721] ss:$2 sm:$0xff]
  %s6723 = scalar_lea.vmem [#allocation2], 736
  %v6724 = vld [vmem:[%s6723] ss:$2 sm:$0xf]
  %s6725 = scalar_lea.vmem [#allocation2], 744
  %v6726 = vld [vmem:[%s6725] ss:$2 sm:$0xff]
  %s6727 = scalar_lea.vmem [#allocation2], 760
  %v6728 = vld [vmem:[%s6727] ss:$2 sm:$0xf]
  %s6729 = scalar_lea.vmem [#allocation2], 1
  %v6730 = vld [vmem:[%s6729] ss:$2 sm:$0xff]
  %s6731 = scalar_lea.vmem [#allocation2], 17
  %v6732 = vld [vmem:[%s6731] ss:$2 sm:$0xf]
  %s6733 = scalar_lea.vmem [#allocation2], 25
  %v6734 = vld [vmem:[%s6733] ss:$2 sm:$0xff]
  %s6735 = scalar_lea.vmem [#allocation2], 41
  %v6736 = vld [vmem:[%s6735] ss:$2 sm:$0xf]
  %s6737 = scalar_lea.vmem [#allocation2], 49
  %v6738 = vld [vmem:[%s6737] ss:$2 sm:$0xff]
  %s6739 = scalar_lea.vmem [#allocation2], 65
  %v6740 = vld [vmem:[%s6739] ss:$2 sm:$0xf]
  %s6741 = scalar_lea.vmem [#allocation2], 73
  %v6742 = vld [vmem:[%s6741] ss:$2 sm:$0xff]
  %s6743 = scalar_lea.vmem [#allocation2], 89
  %v6744 = vld [vmem:[%s6743] ss:$2 sm:$0xf]
  %s6745 = scalar_lea.vmem [#allocation2], 97
  %v6746 = vld [vmem:[%s6745] ss:$2 sm:$0xff]
  %s6747 = scalar_lea.vmem [#allocation2], 113
  %v6748 = vld [vmem:[%s6747] ss:$2 sm:$0xf]
  %s6749 = scalar_lea.vmem [#allocation2], 121
  %v6750 = vld [vmem:[%s6749] ss:$2 sm:$0xff]
  %s6751 = scalar_lea.vmem [#allocation2], 137
  %v6752 = vld [vmem:[%s6751] ss:$2 sm:$0xf]
  %s6753 = scalar_lea.vmem [#allocation2], 145
  %v6754 = vld [vmem:[%s6753] ss:$2 sm:$0xff]
  %s6755 = scalar_lea.vmem [#allocation2], 161
  %v6756 = vld [vmem:[%s6755] ss:$2 sm:$0xf]
  %s6757 = scalar_lea.vmem [#allocation2], 169
  %v6758 = vld [vmem:[%s6757] ss:$2 sm:$0xff]
  %s6759 = scalar_lea.vmem [#allocation2], 185
  %v6760 = vld [vmem:[%s6759] ss:$2 sm:$0xf]
  %s6761 = scalar_lea.vmem [#allocation2], 193
  %v6762 = vld [vmem:[%s6761] ss:$2 sm:$0xff]
  %s6763 = scalar_lea.vmem [#allocation2], 209
  %v6764 = vld [vmem:[%s6763] ss:$2 sm:$0xf]
  %s6765 = scalar_lea.vmem [#allocation2], 217
  %v6766 = vld [vmem:[%s6765] ss:$2 sm:$0xff]
  %s6767 = scalar_lea.vmem [#allocation2], 233
  %v6768 = vld [vmem:[%s6767] ss:$2 sm:$0xf]
  %s6769 = scalar_lea.vmem [#allocation2], 241
  %v6770 = vld [vmem:[%s6769] ss:$2 sm:$0xff]
  %s6771 = scalar_lea.vmem [#allocation2], 257
  %v6772 = vld [vmem:[%s6771] ss:$2 sm:$0xf]
  %s6773 = scalar_lea.vmem [#allocation2], 265
  %v6774 = vld [vmem:[%s6773] ss:$2 sm:$0xff]
  %s6775 = scalar_lea.vmem [#allocation2], 281
  %v6776 = vld [vmem:[%s6775] ss:$2 sm:$0xf]
  %s6777 = scalar_lea.vmem [#allocation2], 289
  %v6778 = vld [vmem:[%s6777] ss:$2 sm:$0xff]
  %s6779 = scalar_lea.vmem [#allocation2], 305
  %v6780 = vld [vmem:[%s6779] ss:$2 sm:$0xf]
  %s6781 = scalar_lea.vmem [#allocation2], 313
  %v6782 = vld [vmem:[%s6781] ss:$2 sm:$0xff]
  %s6783 = scalar_lea.vmem [#allocation2], 329
  %v6784 = vld [vmem:[%s6783] ss:$2 sm:$0xf]
  %s6785 = scalar_lea.vmem [#allocation2], 337
  %v6786 = vld [vmem:[%s6785] ss:$2 sm:$0xff]
  %s6787 = scalar_lea.vmem [#allocation2], 353
  %v6788 = vld [vmem:[%s6787] ss:$2 sm:$0xf]
  %s6789 = scalar_lea.vmem [#allocation2], 361
  %v6790 = vld [vmem:[%s6789] ss:$2 sm:$0xff]
  %s6791 = scalar_lea.vmem [#allocation2], 377
  %v6792 = vld [vmem:[%s6791] ss:$2 sm:$0xf]
  %s6793 = scalar_lea.vmem [#allocation2], 385
  %v6794 = vld [vmem:[%s6793] ss:$2 sm:$0xff]
  %s6795 = scalar_lea.vmem [#allocation2], 401
  %v6796 = vld [vmem:[%s6795] ss:$2 sm:$0xf]
  %s6797 = scalar_lea.vmem [#allocation2], 409
  %v6798 = vld [vmem:[%s6797] ss:$2 sm:$0xff]
  %s6799 = scalar_lea.vmem [#allocation2], 425
  %v6800 = vld [vmem:[%s6799] ss:$2 sm:$0xf]
  %s6801 = scalar_lea.vmem [#allocation2], 433
  %v6802 = vld [vmem:[%s6801] ss:$2 sm:$0xff]
  %s6803 = scalar_lea.vmem [#allocation2], 449
  %v6804 = vld [vmem:[%s6803] ss:$2 sm:$0xf]
  %s6805 = scalar_lea.vmem [#allocation2], 457
  %v6806 = vld [vmem:[%s6805] ss:$2 sm:$0xff]
  %s6807 = scalar_lea.vmem [#allocation2], 473
  %v6808 = vld [vmem:[%s6807] ss:$2 sm:$0xf]
  %s6809 = scalar_lea.vmem [#allocation2], 481
  %v6810 = vld [vmem:[%s6809] ss:$2 sm:$0xff]
  %s6811 = scalar_lea.vmem [#allocation2], 497
  %v6812 = vld [vmem:[%s6811] ss:$2 sm:$0xf]
  %s6813 = scalar_lea.vmem [#allocation2], 505
  %v6814 = vld [vmem:[%s6813] ss:$2 sm:$0xff]
  %s6815 = scalar_lea.vmem [#allocation2], 521
  %v6816 = vld [vmem:[%s6815] ss:$2 sm:$0xf]
  %s6817 = scalar_lea.vmem [#allocation2], 529
  %v6818 = vld [vmem:[%s6817] ss:$2 sm:$0xff]
  %s6819 = scalar_lea.vmem [#allocation2], 545
  %v6820 = vld [vmem:[%s6819] ss:$2 sm:$0xf]
  %s6821 = scalar_lea.vmem [#allocation2], 553
  %v6822 = vld [vmem:[%s6821] ss:$2 sm:$0xff]
  %s6823 = scalar_lea.vmem [#allocation2], 569
  %v6824 = vld [vmem:[%s6823] ss:$2 sm:$0xf]
  %s6825 = scalar_lea.vmem [#allocation2], 577
  %v6826 = vld [vmem:[%s6825] ss:$2 sm:$0xff]
  %s6827 = scalar_lea.vmem [#allocation2], 593
  %v6828 = vld [vmem:[%s6827] ss:$2 sm:$0xf]
  %s6829 = scalar_lea.vmem [#allocation2], 601
  %v6830 = vld [vmem:[%s6829] ss:$2 sm:$0xff]
  %s6831 = scalar_lea.vmem [#allocation2], 617
  %v6832 = vld [vmem:[%s6831] ss:$2 sm:$0xf]
  %s6833 = scalar_lea.vmem [#allocation2], 625
  %v6834 = vld [vmem:[%s6833] ss:$2 sm:$0xff]
  %s6835 = scalar_lea.vmem [#allocation2], 641
  %v6836 = vld [vmem:[%s6835] ss:$2 sm:$0xf]
  %s6837 = scalar_lea.vmem [#allocation2], 649
  %v6838 = vld [vmem:[%s6837] ss:$2 sm:$0xff]
  %s6839 = scalar_lea.vmem [#allocation2], 665
  %v6840 = vld [vmem:[%s6839] ss:$2 sm:$0xf]
  %s6841 = scalar_lea.vmem [#allocation2], 673
  %v6842 = vld [vmem:[%s6841] ss:$2 sm:$0xff]
  %s6843 = scalar_lea.vmem [#allocation2], 689
  %v6844 = vld [vmem:[%s6843] ss:$2 sm:$0xf]
  %s6845 = scalar_lea.vmem [#allocation2], 697
  %v6846 = vld [vmem:[%s6845] ss:$2 sm:$0xff]
  %s6847 = scalar_lea.vmem [#allocation2], 713
  %v6848 = vld [vmem:[%s6847] ss:$2 sm:$0xf]
  %s6849 = scalar_lea.vmem [#allocation2], 721
  %v6850 = vld [vmem:[%s6849] ss:$2 sm:$0xff]
  %s6851 = scalar_lea.vmem [#allocation2], 737
  %v6852 = vld [vmem:[%s6851] ss:$2 sm:$0xf]
  %s6853 = scalar_lea.vmem [#allocation2], 745
  %v6854 = vld [vmem:[%s6853] ss:$2 sm:$0xff]
  %s6855 = scalar_lea.vmem [#allocation2], 761
  %v6856 = vld [vmem:[%s6855] ss:$2 sm:$0xf]
  %v6857 = vmax.f32 %v6602, %v6730
  %v6858 = vmax.f32 %v6604, %v6732
  %v6859 = vmax.f32 %v6606, %v6734
  %v6860 = vmax.f32 %v6608, %v6736
  %v6861 = vmax.f32 %v6610, %v6738
  %v6862 = vmax.f32 %v6612, %v6740
  %v6863 = vmax.f32 %v6614, %v6742
  %v6864 = vmax.f32 %v6616, %v6744
  %v6865 = vmax.f32 %v6618, %v6746
  %v6866 = vmax.f32 %v6620, %v6748
  %v6867 = vmax.f32 %v6622, %v6750
  %v6868 = vmax.f32 %v6624, %v6752
  %v6869 = vmax.f32 %v6626, %v6754
  %v6870 = vmax.f32 %v6628, %v6756
  %v6871 = vmax.f32 %v6630, %v6758
  %v6872 = vmax.f32 %v6632, %v6760
  %v6873 = vmax.f32 %v6634, %v6762
  %v6874 = vmax.f32 %v6636, %v6764
  %v6875 = vmax.f32 %v6638, %v6766
  %v6876 = vmax.f32 %v6640, %v6768
  %v6877 = vmax.f32 %v6642, %v6770
  %v6878 = vmax.f32 %v6644, %v6772
  %v6879 = vmax.f32 %v6646, %v6774
  %v6880 = vmax.f32 %v6648, %v6776
  %v6881 = vmax.f32 %v6650, %v6778
  %v6882 = vmax.f32 %v6652, %v6780
  %v6883 = vmax.f32 %v6654, %v6782
  %v6884 = vmax.f32 %v6656, %v6784
  %v6885 = vmax.f32 %v6658, %v6786
  %v6886 = vmax.f32 %v6660, %v6788
  %v6887 = vmax.f32 %v6662, %v6790
  %v6888 = vmax.f32 %v6664, %v6792
  %v6889 = vmax.f32 %v6666, %v6794
  %v6890 = vmax.f32 %v6668, %v6796
  %v6891 = vmax.f32 %v6670, %v6798
  %v6892 = vmax.f32 %v6672, %v6800
  %v6893 = vmax.f32 %v6674, %v6802
  %v6894 = vmax.f32 %v6676, %v6804
  %v6895 = vmax.f32 %v6678, %v6806
  %v6896 = vmax.f32 %v6680, %v6808
  %v6897 = vmax.f32 %v6682, %v6810
  %v6898 = vmax.f32 %v6684, %v6812
  %v6899 = vmax.f32 %v6686, %v6814
  %v6900 = vmax.f32 %v6688, %v6816
  %v6901 = vmax.f32 %v6690, %v6818
  %v6902 = vmax.f32 %v6692, %v6820
  %v6903 = vmax.f32 %v6694, %v6822
  %v6904 = vmax.f32 %v6696, %v6824
  %v6905 = vmax.f32 %v6698, %v6826
  %v6906 = vmax.f32 %v6700, %v6828
  %v6907 = vmax.f32 %v6702, %v6830
  %v6908 = vmax.f32 %v6704, %v6832
  %v6909 = vmax.f32 %v6706, %v6834
  %v6910 = vmax.f32 %v6708, %v6836
  %v6911 = vmax.f32 %v6710, %v6838
  %v6912 = vmax.f32 %v6712, %v6840
  %v6913 = vmax.f32 %v6714, %v6842
  %v6914 = vmax.f32 %v6716, %v6844
  %v6915 = vmax.f32 %v6718, %v6846
  %v6916 = vmax.f32 %v6720, %v6848
  %v6917 = vmax.f32 %v6722, %v6850
  %v6918 = vmax.f32 %v6724, %v6852
  %v6919 = vmax.f32 %v6726, %v6854
  %v6920 = vmax.f32 %v6728, %v6856
  %v6921 = vld [vmem:[%s3] sm:$0x1]
  %v6923 = vlaneseq
  %v6924 = vshrl.u32 %v6923, 7
  %v6925 = vsub.s32 0, %v6924
  %v6926 = vrot.slane %v6921, %v6925
  %v6928 = vadd.f32 %v6857, %v6926
  %v6929 = vadd.f32 %v6858, %v6926
  %v6930 = vadd.f32 %v6859, %v6926
  %v6931 = vadd.f32 %v6860, %v6926
  %v6932 = vadd.f32 %v6861, %v6926
  %v6933 = vadd.f32 %v6862, %v6926
  %v6934 = vadd.f32 %v6863, %v6926
  %v6935 = vadd.f32 %v6864, %v6926
  %v6936 = vadd.f32 %v6865, %v6926
  %v6937 = vadd.f32 %v6866, %v6926
  %v6938 = vadd.f32 %v6867, %v6926
  %v6939 = vadd.f32 %v6868, %v6926
  %v6940 = vadd.f32 %v6869, %v6926
  %v6941 = vadd.f32 %v6870, %v6926
  %v6942 = vadd.f32 %v6871, %v6926
  %v6943 = vadd.f32 %v6872, %v6926
  %v6944 = vadd.f32 %v6873, %v6926
  %v6945 = vadd.f32 %v6874, %v6926
  %v6946 = vadd.f32 %v6875, %v6926
  %v6947 = vadd.f32 %v6876, %v6926
  %v6948 = vadd.f32 %v6877, %v6926
  %v6949 = vadd.f32 %v6878, %v6926
  %v6950 = vadd.f32 %v6879, %v6926
  %v6951 = vadd.f32 %v6880, %v6926
  %v6952 = vadd.f32 %v6881, %v6926
  %v6953 = vadd.f32 %v6882, %v6926
  %v6954 = vadd.f32 %v6883, %v6926
  %v6955 = vadd.f32 %v6884, %v6926
  %v6956 = vadd.f32 %v6885, %v6926
  %v6957 = vadd.f32 %v6886, %v6926
  %v6958 = vadd.f32 %v6887, %v6926
  %v6959 = vadd.f32 %v6888, %v6926
  %v6960 = vadd.f32 %v6889, %v6926
  %v6961 = vadd.f32 %v6890, %v6926
  %v6962 = vadd.f32 %v6891, %v6926
  %v6963 = vadd.f32 %v6892, %v6926
  %v6964 = vadd.f32 %v6893, %v6926
  %v6965 = vadd.f32 %v6894, %v6926
  %v6966 = vadd.f32 %v6895, %v6926
  %v6967 = vadd.f32 %v6896, %v6926
  %v6968 = vadd.f32 %v6897, %v6926
  %v6969 = vadd.f32 %v6898, %v6926
  %v6970 = vadd.f32 %v6899, %v6926
  %v6971 = vadd.f32 %v6900, %v6926
  %v6972 = vadd.f32 %v6901, %v6926
  %v6973 = vadd.f32 %v6902, %v6926
  %v6974 = vadd.f32 %v6903, %v6926
  %v6975 = vadd.f32 %v6904, %v6926
  %v6976 = vadd.f32 %v6905, %v6926
  %v6977 = vadd.f32 %v6906, %v6926
  %v6978 = vadd.f32 %v6907, %v6926
  %v6979 = vadd.f32 %v6908, %v6926
  %v6980 = vadd.f32 %v6909, %v6926
  %v6981 = vadd.f32 %v6910, %v6926
  %v6982 = vadd.f32 %v6911, %v6926
  %v6983 = vadd.f32 %v6912, %v6926
  %v6984 = vadd.f32 %v6913, %v6926
  %v6985 = vadd.f32 %v6914, %v6926
  %v6986 = vadd.f32 %v6915, %v6926
  %v6987 = vadd.f32 %v6916, %v6926
  %v6988 = vadd.f32 %v6917, %v6926
  %v6989 = vadd.f32 %v6918, %v6926
  %v6990 = vadd.f32 %v6919, %v6926
  %v6991 = vadd.f32 %v6920, %v6926
  %v6992 = vmax.f32 %v6928, 0.0
  %v6993 = vmax.f32 %v6929, 0.0
  %v6994 = vmax.f32 %v6930, 0.0
  %v6995 = vmax.f32 %v6931, 0.0
  %v6996 = vmax.f32 %v6932, 0.0
  %v6997 = vmax.f32 %v6933, 0.0
  %v6998 = vmax.f32 %v6934, 0.0
  %v6999 = vmax.f32 %v6935, 0.0
  %v7000 = vmax.f32 %v6936, 0.0
  %v7001 = vmax.f32 %v6937, 0.0
  %v7002 = vmax.f32 %v6938, 0.0
  %v7003 = vmax.f32 %v6939, 0.0
  %v7004 = vmax.f32 %v6940, 0.0
  %v7005 = vmax.f32 %v6941, 0.0
  %v7006 = vmax.f32 %v6942, 0.0
  %v7007 = vmax.f32 %v6943, 0.0
  %v7008 = vmax.f32 %v6944, 0.0
  %v7009 = vmax.f32 %v6945, 0.0
  %v7010 = vmax.f32 %v6946, 0.0
  %v7011 = vmax.f32 %v6947, 0.0
  %v7012 = vmax.f32 %v6948, 0.0
  %v7013 = vmax.f32 %v6949, 0.0
  %v7014 = vmax.f32 %v6950, 0.0
  %v7015 = vmax.f32 %v6951, 0.0
  %v7016 = vmax.f32 %v6952, 0.0
  %v7017 = vmax.f32 %v6953, 0.0
  %v7018 = vmax.f32 %v6954, 0.0
  %v7019 = vmax.f32 %v6955, 0.0
  %v7020 = vmax.f32 %v6956, 0.0
  %v7021 = vmax.f32 %v6957, 0.0
  %v7022 = vmax.f32 %v6958, 0.0
  %v7023 = vmax.f32 %v6959, 0.0
  %v7024 = vmax.f32 %v6960, 0.0
  %v7025 = vmax.f32 %v6961, 0.0
  %v7026 = vmax.f32 %v6962, 0.0
  %v7027 = vmax.f32 %v6963, 0.0
  %v7028 = vmax.f32 %v6964, 0.0
  %v7029 = vmax.f32 %v6965, 0.0
  %v7030 = vmax.f32 %v6966, 0.0
  %v7031 = vmax.f32 %v6967, 0.0
  %v7032 = vmax.f32 %v6968, 0.0
  %v7033 = vmax.f32 %v6969, 0.0
  %v7034 = vmax.f32 %v6970, 0.0
  %v7035 = vmax.f32 %v6971, 0.0
  %v7036 = vmax.f32 %v6972, 0.0
  %v7037 = vmax.f32 %v6973, 0.0
  %v7038 = vmax.f32 %v6974, 0.0
  %v7039 = vmax.f32 %v6975, 0.0
  %v7040 = vmax.f32 %v6976, 0.0
  %v7041 = vmax.f32 %v6977, 0.0
  %v7042 = vmax.f32 %v6978, 0.0
  %v7043 = vmax.f32 %v6979, 0.0
  %v7044 = vmax.f32 %v6980, 0.0
  %v7045 = vmax.f32 %v6981, 0.0
  %v7046 = vmax.f32 %v6982, 0.0
  %v7047 = vmax.f32 %v6983, 0.0
  %v7048 = vmax.f32 %v6984, 0.0
  %v7049 = vmax.f32 %v6985, 0.0
  %v7050 = vmax.f32 %v6986, 0.0
  %v7051 = vmax.f32 %v6987, 0.0
  %v7052 = vmax.f32 %v6988, 0.0
  %v7053 = vmax.f32 %v6989, 0.0
  %v7054 = vmax.f32 %v6990, 0.0
  %v7055 = vmax.f32 %v6991, 0.0
  %v7056 = vpack.c.bf16 %v6994, %v6992
  %v7057 = vpack.c.bf16 %v6998, %v6996
  %v7058 = vpack.c.bf16 %v7002, %v7000
  %v7059 = vpack.c.bf16 %v7006, %v7004
  %v7060 = vpack.c.bf16 %v7010, %v7008
  %v7061 = vpack.c.bf16 %v7014, %v7012
  %v7062 = vpack.c.bf16 %v7018, %v7016
  %v7063 = vpack.c.bf16 %v7022, %v7020
  %v7064 = vpack.c.bf16 %v7026, %v7024
  %v7065 = vpack.c.bf16 %v7030, %v7028
  %v7066 = vpack.c.bf16 %v7034, %v7032
  %v7067 = vpack.c.bf16 %v7038, %v7036
  %v7068 = vpack.c.bf16 %v7042, %v7040
  %v7069 = vpack.c.bf16 %v7046, %v7044
  %v7070 = vpack.c.bf16 %v7050, %v7048
  %v7071 = vpack.c.bf16 %v7054, %v7052
  %v7072 = vld [vmem:[%s4] sm:$0xf]
  %v7073 = vld [vmem:[%s4 + $0x4] sm:$0xf]
  %v7074 = vld [vmem:[%s4 + $0x8] sm:$0xf]
  %v7075 = vld [vmem:[%s4 + $0xc] sm:$0xf]
  %v7076 = vld [vmem:[%s4 + $0x10] sm:$0xf]
  %v7077 = vld [vmem:[%s4 + $0x14] sm:$0xf]
  %v7078 = vld [vmem:[%s4 + $0x18] sm:$0xf]
  %v7079 = vld [vmem:[%s4 + $0x1c] sm:$0xf]
  %v7080 = vld [vmem:[%s4 + $0x20] sm:$0xf]
  %v7081 = vld [vmem:[%s4 + $0x24] sm:$0xf]
  %v7082 = vld [vmem:[%s4 + $0x28] sm:$0xf]
  %v7083 = vld [vmem:[%s4 + $0x2c] sm:$0xf]
  %v7084 = vld [vmem:[%s4 + $0x30] sm:$0xf]
  %v7085 = vld [vmem:[%s4 + $0x34] sm:$0xf]
  %v7086 = vld [vmem:[%s4 + $0x38] sm:$0xf]
  %v7087 = vld [vmem:[%s5] sm:$0xf]
  %v7088 = vld [vmem:[%s5 + $0x4] sm:$0xf]
  %v7089 = vld [vmem:[%s5 + $0x8] sm:$0xf]
  %v7090 = vld [vmem:[%s5 + $0xc] sm:$0xf]
  %v7091 = vld [vmem:[%s5 + $0x10] sm:$0xf]
  %v7092 = vld [vmem:[%s5 + $0x14] sm:$0xf]
  %v7093 = vld [vmem:[%s5 + $0x18] sm:$0xf]
  %v7094 = vld [vmem:[%s5 + $0x1c] sm:$0xf]
  %v7095 = vld [vmem:[%s5 + $0x20] sm:$0xf]
  %v7096 = vld [vmem:[%s5 + $0x24] sm:$0xf]
  %v7097 = vld [vmem:[%s5 + $0x28] sm:$0xf]
  %v7098 = vld [vmem:[%s5 + $0x2c] sm:$0xf]
  %v7099 = vld [vmem:[%s5 + $0x30] sm:$0xf]
  %v7100 = vld [vmem:[%s5 + $0x34] sm:$0xf]
  %v7101 = vld [vmem:[%s5 + $0x38] sm:$0xf]
  %vm7166 = vcmask 1046528
  %v7167 = vrot.slane %v6992, 1
  %v7168 = vrot.slane %v6993, 1
  %v7169 = vsel %vm7166, %v7167, %v7168
  %v7170 = vrot.slane %v6994, 1
  %v7171 = vrot.slane %v6995, 1
  %v7172 = vsel %vm7166, %v7170, %v7171
  %v7173 = vrot.slane %v6996, 1
  %v7174 = vrot.slane %v6997, 1
  %v7175 = vsel %vm7166, %v7173, %v7174
  %v7176 = vrot.slane %v6998, 1
  %v7177 = vrot.slane %v6999, 1
  %v7178 = vsel %vm7166, %v7176, %v7177
  %v7179 = vrot.slane %v7000, 1
  %v7180 = vrot.slane %v7001, 1
  %v7181 = vsel %vm7166, %v7179, %v7180
  %v7182 = vrot.slane %v7002, 1
  %v7183 = vrot.slane %v7003, 1
  %v7184 = vsel %vm7166, %v7182, %v7183
  %v7185 = vrot.slane %v7004, 1
  %v7186 = vrot.slane %v7005, 1
  %v7187 = vsel %vm7166, %v7185, %v7186
  %v7188 = vrot.slane %v7006, 1
  %v7189 = vrot.slane %v7007, 1
  %v7190 = vsel %vm7166, %v7188, %v7189
  %v7191 = vrot.slane %v7008, 1
  %v7192 = vrot.slane %v7009, 1
  %v7193 = vsel %vm7166, %v7191, %v7192
  %v7194 = vrot.slane %v7010, 1
  %v7195 = vrot.slane %v7011, 1
  %v7196 = vsel %vm7166, %v7194, %v7195
  %v7197 = vrot.slane %v7012, 1
  %v7198 = vrot.slane %v7013, 1
  %v7199 = vsel %vm7166, %v7197, %v7198
  %v7200 = vrot.slane %v7014, 1
  %v7201 = vrot.slane %v7015, 1
  %v7202 = vsel %vm7166, %v7200, %v7201
  %v7203 = vrot.slane %v7016, 1
  %v7204 = vrot.slane %v7017, 1
  %v7205 = vsel %vm7166, %v7203, %v7204
  %v7206 = vrot.slane %v7018, 1
  %v7207 = vrot.slane %v7019, 1
  %v7208 = vsel %vm7166, %v7206, %v7207
  %v7209 = vrot.slane %v7020, 1
  %v7210 = vrot.slane %v7021, 1
  %v7211 = vsel %vm7166, %v7209, %v7210
  %v7212 = vrot.slane %v7022, 1
  %v7213 = vrot.slane %v7023, 1
  %v7214 = vsel %vm7166, %v7212, %v7213
  %v7215 = vrot.slane %v7024, 1
  %v7216 = vrot.slane %v7025, 1
  %v7217 = vsel %vm7166, %v7215, %v7216
  %v7218 = vrot.slane %v7026, 1
  %v7219 = vrot.slane %v7027, 1
  %v7220 = vsel %vm7166, %v7218, %v7219
  %v7221 = vrot.slane %v7028, 1
  %v7222 = vrot.slane %v7029, 1
  %v7223 = vsel %vm7166, %v7221, %v7222
  %v7224 = vrot.slane %v7030, 1
  %v7225 = vrot.slane %v7031, 1
  %v7226 = vsel %vm7166, %v7224, %v7225
  %v7227 = vrot.slane %v7032, 1
  %v7228 = vrot.slane %v7033, 1
  %v7229 = vsel %vm7166, %v7227, %v7228
  %v7230 = vrot.slane %v7034, 1
  %v7231 = vrot.slane %v7035, 1
  %v7232 = vsel %vm7166, %v7230, %v7231
  %v7233 = vrot.slane %v7036, 1
  %v7234 = vrot.slane %v7037, 1
  %v7235 = vsel %vm7166, %v7233, %v7234
  %v7236 = vrot.slane %v7038, 1
  %v7237 = vrot.slane %v7039, 1
  %v7238 = vsel %vm7166, %v7236, %v7237
  %v7239 = vrot.slane %v7040, 1
  %v7240 = vrot.slane %v7041, 1
  %v7241 = vsel %vm7166, %v7239, %v7240
  %v7242 = vrot.slane %v7042, 1
  %v7243 = vrot.slane %v7043, 1
  %v7244 = vsel %vm7166, %v7242, %v7243
  %v7245 = vrot.slane %v7044, 1
  %v7246 = vrot.slane %v7045, 1
  %v7247 = vsel %vm7166, %v7245, %v7246
  %v7248 = vrot.slane %v7046, 1
  %v7249 = vrot.slane %v7047, 1
  %v7250 = vsel %vm7166, %v7248, %v7249
  %v7251 = vrot.slane %v7048, 1
  %v7252 = vrot.slane %v7049, 1
  %v7253 = vsel %vm7166, %v7251, %v7252
  %v7254 = vrot.slane %v7050, 1
  %v7255 = vrot.slane %v7051, 1
  %v7256 = vsel %vm7166, %v7254, %v7255
  %v7257 = vrot.slane %v7052, 1
  %v7258 = vrot.slane %v7053, 1
  %v7259 = vsel %vm7166, %v7257, %v7258
  %v7260 = vrot.slane %v7054, 1
  %v7261 = vrot.slane %v7055, 1
  %v7262 = vsel %vm7166, %v7260, %v7261
  %v7295 = vpack.c.bf16 %v7172, %v7169
  %v7296 = vpack.c.bf16 %v7178, %v7175
  %v7297 = vpack.c.bf16 %v7184, %v7181
  %v7298 = vpack.c.bf16 %v7190, %v7187
  %v7299 = vpack.c.bf16 %v7196, %v7193
  %v7300 = vpack.c.bf16 %v7202, %v7199
  %v7301 = vpack.c.bf16 %v7208, %v7205
  %v7302 = vpack.c.bf16 %v7214, %v7211
  %v7303 = vpack.c.bf16 %v7220, %v7217
  %v7304 = vpack.c.bf16 %v7226, %v7223
  %v7305 = vpack.c.bf16 %v7232, %v7229
  %v7306 = vpack.c.bf16 %v7238, %v7235
  %v7307 = vpack.c.bf16 %v7244, %v7241
  %v7308 = vpack.c.bf16 %v7250, %v7247
  %v7309 = vpack.c.bf16 %v7256, %v7253
  %v7310 = vpack.c.bf16 %v7262, %v7259
  %s7311 = scalar_lea.vmem %s4, 60
  %v7312 = vld [vmem:[%s7311] sm:$0xf]
  %v7313 = vld [vmem:[%s7311 + $0x4] sm:$0xf]
  %v7314 = vld [vmem:[%s7311 + $0x8] sm:$0xf]
  %v7315 = vld [vmem:[%s7311 + $0xc] sm:$0xf]
  %v7316 = vld [vmem:[%s7311 + $0x10] sm:$0xf]
  %v7317 = vld [vmem:[%s7311 + $0x14] sm:$0xf]
  %v7318 = vld [vmem:[%s7311 + $0x18] sm:$0xf]
  %v7319 = vld [vmem:[%s7311 + $0x1c] sm:$0xf]
  %v7320 = vld [vmem:[%s7311 + $0x20] sm:$0xf]
  %v7321 = vld [vmem:[%s7311 + $0x24] sm:$0xf]
  %v7322 = vld [vmem:[%s7311 + $0x28] sm:$0xf]
  %v7323 = vld [vmem:[%s7311 + $0x2c] sm:$0xf]
  %v7324 = vld [vmem:[%s7311 + $0x30] sm:$0xf]
  %v7325 = vld [vmem:[%s7311 + $0x34] sm:$0xf]
  %v7326 = vld [vmem:[%s7311 + $0x38] sm:$0xf]
  %v7342 = vunpack.c.l.b16 %v7312
  %v7343 = vunpack.c.l.b16 %v7313
  %v7344 = vunpack.c.l.b16 %v7314
  %v7345 = vunpack.c.l.b16 %v7315
  %v7346 = vunpack.c.l.b16 %v7316
  %v7347 = vunpack.c.l.b16 %v7317
  %v7348 = vunpack.c.l.b16 %v7318
  %v7349 = vunpack.c.l.b16 %v7319
  %v7350 = vunpack.c.l.b16 %v7320
  %v7351 = vunpack.c.l.b16 %v7321
  %v7352 = vunpack.c.l.b16 %v7322
  %v7353 = vunpack.c.l.b16 %v7323
  %v7354 = vunpack.c.l.b16 %v7324
  %v7355 = vunpack.c.l.b16 %v7325
  %v7356 = vunpack.c.l.b16 %v7326
  %v7357 = vpack.c.b16 %v7343, %v7342
  %v7358 = vpack.c.b16 %v7345, %v7344
  %v7359 = vpack.c.b16 %v7347, %v7346
  %v7360 = vpack.c.b16 %v7349, %v7348
  %v7361 = vpack.c.b16 %v7351, %v7350
  %v7362 = vpack.c.b16 %v7353, %v7352
  %v7363 = vpack.c.b16 %v7355, %v7354
  %v7364 = vpack.c.b16 %v7356, %v7356
  %v7373 = vsel %vm6505, %v7295, 0
  %v7376 = vsel %vm6505, %v7296, 0
  %v7379 = vsel %vm6505, %v7297, 0
  %v7382 = vsel %vm6505, %v7298, 0
  %v7385 = vsel %vm6505, %v7299, 0
  %v7388 = vsel %vm6505, %v7300, 0
  %v7391 = vsel %vm6505, %v7301, 0
  %v7394 = vsel %vm6505, %v7302, 0
  %v7397 = vsel %vm6505, %v7303, 0
  %v7400 = vsel %vm6505, %v7304, 0
  %v7403 = vsel %vm6505, %v7305, 0
  %v7406 = vsel %vm6505, %v7306, 0
  %v7409 = vsel %vm6505, %v7307, 0
  %v7412 = vsel %vm6505, %v7308, 0
  %v7415 = vsel %vm6505, %v7309, 0
  %v7418 = vsel %vm6505, %v7310, 0
  %vm7420 = vcmask 1043456
  %v7422 = vsel %vm7420, %v7364, 0
  %7424 = vmatprep.subr.bf16.mxu0 0
  %7425 = vmatpush1.bf16.msra.mxu0 %v7357
  %7426 = vmatprep.subr.bf16.mxu0 0
  %7427 = vmatpush1.bf16.msra.mxu0 %v7358
  %7428 = vmatprep.subr.bf16.mxu0 0
  %7429 = vmatpush1.bf16.msra.mxu0 %v7359
  %7430 = vmatprep.subr.bf16.mxu0 0
  %7431 = vmatpush1.bf16.msra.mxu0 %v7360
  %7432 = vmatprep.subr.bf16.mxu0 0
  %7433 = vmatpush1.bf16.msra.mxu0 %v7361
  %7434 = vmatprep.subr.bf16.mxu0 0
  %7435 = vmatpush1.bf16.msra.mxu0 %v7362
  %7436 = vmatprep.subr.bf16.mxu0 0
  %7437 = vmatpush1.bf16.msra.mxu0 %v7363
  %7438 = vmatprep.subr.bf16.mxu0 0
  %7439 = vmatpush1.bf16.msra.mxu0 %v7422
  %7440 = vmatprep.subr.bf16.mxu0 0
  %7441 = vmatpush1.bf16.msra.mxu0 0
  %7442 = vmatprep.subr.bf16.mxu0 0
  %7443 = vmatpush1.bf16.msra.mxu0 0
  %7444 = vmatprep.subr.bf16.mxu0 0
  %7445 = vmatpush1.bf16.msra.mxu0 0
  %7446 = vmatprep.subr.bf16.mxu0 0
  %7447 = vmatpush1.bf16.msra.mxu0 0
  %7448 = vmatprep.subr.bf16.mxu0 0
  %7449 = vmatpush1.bf16.msra.mxu0 0
  %7450 = vmatprep.subr.bf16.mxu0 0
  %7451 = vmatpush1.bf16.msra.mxu0 0
  %7452 = vmatprep.subr.bf16.mxu0 0
  %7453 = vmatpush1.bf16.msra.mxu0 0
  %7454 = vmatprep.subr.bf16.mxu0 0
  %7455 = vmatpush1.bf16.msra.mxu0 0
  %7456 = vmatprep.mubr.bf16.mxu0 0
  %7457 = vmatmul.mubr.bf16.gmra.mrb[0].mxu0 %v7373
  %v7458 = vpop.f32.mrb[0].mxu0
  %v7459 = vadd.f32 0.0, %v7458
  %v7460 = vpop.f32.mrb[0].mxu0
  %v7461 = vpop.f32.mrb[0].mxu0
  %v7462 = vadd.f32 0.0, %v7461
  %v7463 = vpop.f32.mrb[0].mxu0
  %7464 = vmatprep.mubr.bf16.mxu0 0
  %7465 = vmatmul.mubr.bf16.gmra.mrb[0].mxu0 %v7376
  %v7466 = vpop.f32.mrb[0].mxu0
  %v7467 = vadd.f32 0.0, %v7466
  %v7468 = vpop.f32.mrb[0].mxu0
  %v7469 = vpop.f32.mrb[0].mxu0
  %v7470 = vadd.f32 0.0, %v7469
  %v7471 = vpop.f32.mrb[0].mxu0
  %7472 = vmatprep.mubr.bf16.mxu0 0
  %7473 = vmatmul.mubr.bf16.gmra.mrb[0].mxu0 %v7379
  %v7474 = vpop.f32.mrb[0].mxu0
  %v7475 = vadd.f32 0.0, %v7474
  %v7476 = vpop.f32.mrb[0].mxu0
  %v7477 = vpop.f32.mrb[0].mxu0
  %v7478 = vadd.f32 0.0, %v7477
  %v7479 = vpop.f32.mrb[0].mxu0
  %7480 = vmatprep.mubr.bf16.mxu0 0
  %7481 = vmatmul.mubr.bf16.gmra.mrb[0].mxu0 %v7382
  %v7482 = vpop.f32.mrb[0].mxu0
  %v7483 = vadd.f32 0.0, %v7482
  %v7484 = vpop.f32.mrb[0].mxu0
  %v7485 = vpop.f32.mrb[0].mxu0
  %v7486 = vadd.f32 0.0, %v7485
  %v7487 = vpop.f32.mrb[0].mxu0
  %7488 = vmatprep.mubr.bf16.mxu0 0
  %7489 = vmatmul.mubr.bf16.gmra.mrb[0].mxu0 %v7385
  %v7490 = vpop.f32.mrb[0].mxu0
  %v7491 = vadd.f32 0.0, %v7490
  %v7492 = vpop.f32.mrb[0].mxu0
  %v7493 = vpop.f32.mrb[0].mxu0
  %v7494 = vadd.f32 0.0, %v7493
  %v7495 = vpop.f32.mrb[0].mxu0
  %7496 = vmatprep.mubr.bf16.mxu0 0
  %7497 = vmatmul.mubr.bf16.gmra.mrb[0].mxu0 %v7388
  %v7498 = vpop.f32.mrb[0].mxu0
  %v7499 = vadd.f32 0.0, %v7498
  %v7500 = vpop.f32.mrb[0].mxu0
  %v7501 = vpop.f32.mrb[0].mxu0
  %v7502 = vadd.f32 0.0, %v7501
  %v7503 = vpop.f32.mrb[0].mxu0
  %7504 = vmatprep.mubr.bf16.mxu0 0
  %7505 = vmatmul.mubr.bf16.gmra.mrb[0].mxu0 %v7391
  %v7506 = vpop.f32.mrb[0].mxu0
  %v7507 = vadd.f32 0.0, %v7506
  %v7508 = vpop.f32.mrb[0].mxu0
  %v7509 = vpop.f32.mrb[0].mxu0
  %v7510 = vadd.f32 0.0, %v7509
  %v7511 = vpop.f32.mrb[0].mxu0
  %7512 = vmatprep.mubr.bf16.mxu0 0
  %7513 = vmatmul.mubr.bf16.gmra.mrb[0].mxu0 %v7394
  %v7514 = vpop.f32.mrb[0].mxu0
  %v7515 = vadd.f32 0.0, %v7514
  %v7516 = vpop.f32.mrb[0].mxu0
  %v7517 = vpop.f32.mrb[0].mxu0
  %v7518 = vadd.f32 0.0, %v7517
  %v7519 = vpop.f32.mrb[0].mxu0
  %7520 = vmatprep.mubr.bf16.mxu0 0
  %7521 = vmatmul.mubr.bf16.gmra.mrb[0].mxu0 %v7397
  %v7522 = vpop.f32.mrb[0].mxu0
  %v7523 = vadd.f32 0.0, %v7522
  %v7524 = vpop.f32.mrb[0].mxu0
  %v7525 = vpop.f32.mrb[0].mxu0
  %v7526 = vadd.f32 0.0, %v7525
  %v7527 = vpop.f32.mrb[0].mxu0
  %7528 = vmatprep.mubr.bf16.mxu0 0
  %7529 = vmatmul.mubr.bf16.gmra.mrb[0].mxu0 %v7400
  %v7530 = vpop.f32.mrb[0].mxu0
  %v7531 = vadd.f32 0.0, %v7530
  %v7532 = vpop.f32.mrb[0].mxu0
  %v7533 = vpop.f32.mrb[0].mxu0
  %v7534 = vadd.f32 0.0, %v7533
  %v7535 = vpop.f32.mrb[0].mxu0
  %7536 = vmatprep.mubr.bf16.mxu0 0
  %7537 = vmatmul.mubr.bf16.gmra.mrb[0].mxu0 %v7403
  %v7538 = vpop.f32.mrb[0].mxu0
  %v7539 = vadd.f32 0.0, %v7538
  %v7540 = vpop.f32.mrb[0].mxu0
  %v7541 = vpop.f32.mrb[0].mxu0
  %v7542 = vadd.f32 0.0, %v7541
  %v7543 = vpop.f32.mrb[0].mxu0
  %7544 = vmatprep.mubr.bf16.mxu0 0
  %7545 = vmatmul.mubr.bf16.gmra.mrb[0].mxu0 %v7406
  %v7546 = vpop.f32.mrb[0].mxu0
  %v7547 = vadd.f32 0.0, %v7546
  %v7548 = vpop.f32.mrb[0].mxu0
  %v7549 = vpop.f32.mrb[0].mxu0
  %v7550 = vadd.f32 0.0, %v7549
  %v7551 = vpop.f32.mrb[0].mxu0
  %7552 = vmatprep.mubr.bf16.mxu0 0
  %7553 = vmatmul.mubr.bf16.gmra.mrb[0].mxu0 %v7409
  %v7554 = vpop.f32.mrb[0].mxu0
  %v7555 = vadd.f32 0.0, %v7554
  %v7556 = vpop.f32.mrb[0].mxu0
  %v7557 = vpop.f32.mrb[0].mxu0
  %v7558 = vadd.f32 0.0, %v7557
  %v7559 = vpop.f32.mrb[0].mxu0
  %7560 = vmatprep.mubr.bf16.mxu0 0
  %7561 = vmatmul.mubr.bf16.gmra.mrb[0].mxu0 %v7412
  %v7562 = vpop.f32.mrb[0].mxu0
  %v7563 = vadd.f32 0.0, %v7562
  %v7564 = vpop.f32.mrb[0].mxu0
  %v7565 = vpop.f32.mrb[0].mxu0
  %v7566 = vadd.f32 0.0, %v7565
  %v7567 = vpop.f32.mrb[0].mxu0
  %7568 = vmatprep.mubr.bf16.mxu0 0
  %7569 = vmatmul.mubr.bf16.gmra.mrb[0].mxu0 %v7415
  %v7570 = vpop.f32.mrb[0].mxu0
  %v7571 = vadd.f32 0.0, %v7570
  %v7572 = vpop.f32.mrb[0].mxu0
  %v7573 = vpop.f32.mrb[0].mxu0
  %v7574 = vadd.f32 0.0, %v7573
  %v7575 = vpop.f32.mrb[0].mxu0
  %7576 = vmatprep.mubr.bf16.mxu0 0
  %7577 = vmatmul.mubr.bf16.gmra.mrb[0].mxu0 %v7418
  %v7578 = vpop.f32.mrb[0].mxu0
  %v7579 = vadd.f32 0.0, %v7578
  %v7580 = vpop.f32.mrb[0].mxu0
  %v7581 = vpop.f32.mrb[0].mxu0
  %v7582 = vadd.f32 0.0, %v7581
  %v7583 = vpop.f32.mrb[0].mxu0
  %7584 = vdwg.mxu0
  %v7600 = vunpack.c.l.b16 %v7072
  %v7601 = vunpack.c.l.b16 %v7073
  %v7602 = vunpack.c.l.b16 %v7074
  %v7603 = vunpack.c.l.b16 %v7075
  %v7604 = vunpack.c.l.b16 %v7076
  %v7605 = vunpack.c.l.b16 %v7077
  %v7606 = vunpack.c.l.b16 %v7078
  %v7607 = vunpack.c.l.b16 %v7079
  %v7608 = vunpack.c.l.b16 %v7080
  %v7609 = vunpack.c.l.b16 %v7081
  %v7610 = vunpack.c.l.b16 %v7082
  %v7611 = vunpack.c.l.b16 %v7083
  %v7612 = vunpack.c.l.b16 %v7084
  %v7613 = vunpack.c.l.b16 %v7085
  %v7614 = vunpack.c.l.b16 %v7086
  %v7615 = vpack.c.b16 %v7601, %v7600
  %v7616 = vpack.c.b16 %v7603, %v7602
  %v7617 = vpack.c.b16 %v7605, %v7604
  %v7618 = vpack.c.b16 %v7607, %v7606
  %v7619 = vpack.c.b16 %v7609, %v7608
  %v7620 = vpack.c.b16 %v7611, %v7610
  %v7621 = vpack.c.b16 %v7613, %v7612
  %v7622 = vpack.c.b16 %v7614, %v7614
  %v7631 = vsel %vm6505, %v7056, 0
  %v7634 = vsel %vm6505, %v7057, 0
  %v7637 = vsel %vm6505, %v7058, 0
  %v7640 = vsel %vm6505, %v7059, 0
  %v7643 = vsel %vm6505, %v7060, 0
  %v7646 = vsel %vm6505, %v7061, 0
  %v7649 = vsel %vm6505, %v7062, 0
  %v7652 = vsel %vm6505, %v7063, 0
  %v7655 = vsel %vm6505, %v7064, 0
  %v7658 = vsel %vm6505, %v7065, 0
  %v7661 = vsel %vm6505, %v7066, 0
  %v7664 = vsel %vm6505, %v7067, 0
  %v7667 = vsel %vm6505, %v7068, 0
  %v7670 = vsel %vm6505, %v7069, 0
  %v7673 = vsel %vm6505, %v7070, 0
  %v7676 = vsel %vm6505, %v7071, 0
  %v7679 = vsel %vm7420, %v7622, 0
  %7681 = vmatprep.subr.bf16.mxu0 0
  %7682 = vmatpush1.bf16.msra.mxu0 %v7615
  %7683 = vmatprep.subr.bf16.mxu0 0
  %7684 = vmatpush1.bf16.msra.mxu0 %v7616
  %7685 = vmatprep.subr.bf16.mxu0 0
  %7686 = vmatpush1.bf16.msra.mxu0 %v7617
  %7687 = vmatprep.subr.bf16.mxu0 0
  %7688 = vmatpush1.bf16.msra.mxu0 %v7618
  %7689 = vmatprep.subr.bf16.mxu0 0
  %7690 = vmatpush1.bf16.msra.mxu0 %v7619
  %7691 = vmatprep.subr.bf16.mxu0 0
  %7692 = vmatpush1.bf16.msra.mxu0 %v7620
  %7693 = vmatprep.subr.bf16.mxu0 0
  %7694 = vmatpush1.bf16.msra.mxu0 %v7621
  %7695 = vmatprep.subr.bf16.mxu0 0
  %7696 = vmatpush1.bf16.msra.mxu0 %v7679
  %7697 = vmatprep.subr.bf16.mxu0 0
  %7698 = vmatpush1.bf16.msra.mxu0 0
  %7699 = vmatprep.subr.bf16.mxu0 0
  %7700 = vmatpush1.bf16.msra.mxu0 0
  %7701 = vmatprep.subr.bf16.mxu0 0
  %7702 = vmatpush1.bf16.msra.mxu0 0
  %7703 = vmatprep.subr.bf16.mxu0 0
  %7704 = vmatpush1.bf16.msra.mxu0 0
  %7705 = vmatprep.subr.bf16.mxu0 0
  %7706 = vmatpush1.bf16.msra.mxu0 0
  %7707 = vmatprep.subr.bf16.mxu0 0
  %7708 = vmatpush1.bf16.msra.mxu0 0
  %7709 = vmatprep.subr.bf16.mxu0 0
  %7710 = vmatpush1.bf16.msra.mxu0 0
  %7711 = vmatprep.subr.bf16.mxu0 0
  %7712 = vmatpush1.bf16.msra.mxu0 0
  %7713 = vmatprep.mubr.bf16.mxu0 0
  %7714 = vmatmul.mubr.bf16.gmra.mrb[0].mxu0 %v7631
  %v7715 = vpop.f32.mrb[0].mxu0
  %v7716 = vadd.f32 %v7459, %v7715
  %v7717 = vpop.f32.mrb[0].mxu0
  %v7718 = vpop.f32.mrb[0].mxu0
  %v7719 = vadd.f32 %v7462, %v7718
  %v7720 = vpop.f32.mrb[0].mxu0
  %7721 = vmatprep.mubr.bf16.mxu0 0
  %7722 = vmatmul.mubr.bf16.gmra.mrb[0].mxu0 %v7634
  %v7723 = vpop.f32.mrb[0].mxu0
  %v7724 = vadd.f32 %v7467, %v7723
  %v7725 = vpop.f32.mrb[0].mxu0
  %v7726 = vpop.f32.mrb[0].mxu0
  %v7727 = vadd.f32 %v7470, %v7726
  %v7728 = vpop.f32.mrb[0].mxu0
  %7729 = vmatprep.mubr.bf16.mxu0 0
  %7730 = vmatmul.mubr.bf16.gmra.mrb[0].mxu0 %v7637
  %v7731 = vpop.f32.mrb[0].mxu0
  %v7732 = vadd.f32 %v7475, %v7731
  %v7733 = vpop.f32.mrb[0].mxu0
  %v7734 = vpop.f32.mrb[0].mxu0
  %v7735 = vadd.f32 %v7478, %v7734
  %v7736 = vpop.f32.mrb[0].mxu0
  %7737 = vmatprep.mubr.bf16.mxu0 0
  %7738 = vmatmul.mubr.bf16.gmra.mrb[0].mxu0 %v7640
  %v7739 = vpop.f32.mrb[0].mxu0
  %v7740 = vadd.f32 %v7483, %v7739
  %v7741 = vpop.f32.mrb[0].mxu0
  %v7742 = vpop.f32.mrb[0].mxu0
  %v7743 = vadd.f32 %v7486, %v7742
  %v7744 = vpop.f32.mrb[0].mxu0
  %7745 = vmatprep.mubr.bf16.mxu0 0
  %7746 = vmatmul.mubr.bf16.gmra.mrb[0].mxu0 %v7643
  %v7747 = vpop.f32.mrb[0].mxu0
  %v7748 = vadd.f32 %v7491, %v7747
  %v7749 = vpop.f32.mrb[0].mxu0
  %v7750 = vpop.f32.mrb[0].mxu0
  %v7751 = vadd.f32 %v7494, %v7750
  %v7752 = vpop.f32.mrb[0].mxu0
  %7753 = vmatprep.mubr.bf16.mxu0 0
  %7754 = vmatmul.mubr.bf16.gmra.mrb[0].mxu0 %v7646
  %v7755 = vpop.f32.mrb[0].mxu0
  %v7756 = vadd.f32 %v7499, %v7755
  %v7757 = vpop.f32.mrb[0].mxu0
  %v7758 = vpop.f32.mrb[0].mxu0
  %v7759 = vadd.f32 %v7502, %v7758
  %v7760 = vpop.f32.mrb[0].mxu0
  %7761 = vmatprep.mubr.bf16.mxu0 0
  %7762 = vmatmul.mubr.bf16.gmra.mrb[0].mxu0 %v7649
  %v7763 = vpop.f32.mrb[0].mxu0
  %v7764 = vadd.f32 %v7507, %v7763
  %v7765 = vpop.f32.mrb[0].mxu0
  %v7766 = vpop.f32.mrb[0].mxu0
  %v7767 = vadd.f32 %v7510, %v7766
  %v7768 = vpop.f32.mrb[0].mxu0
  %7769 = vmatprep.mubr.bf16.mxu0 0
  %7770 = vmatmul.mubr.bf16.gmra.mrb[0].mxu0 %v7652
  %v7771 = vpop.f32.mrb[0].mxu0
  %v7772 = vadd.f32 %v7515, %v7771
  %v7773 = vpop.f32.mrb[0].mxu0
  %v7774 = vpop.f32.mrb[0].mxu0
  %v7775 = vadd.f32 %v7518, %v7774
  %v7776 = vpop.f32.mrb[0].mxu0
  %7777 = vmatprep.mubr.bf16.mxu0 0
  %7778 = vmatmul.mubr.bf16.gmra.mrb[0].mxu0 %v7655
  %v7779 = vpop.f32.mrb[0].mxu0
  %v7780 = vadd.f32 %v7523, %v7779
  %v7781 = vpop.f32.mrb[0].mxu0
  %v7782 = vpop.f32.mrb[0].mxu0
  %v7783 = vadd.f32 %v7526, %v7782
  %v7784 = vpop.f32.mrb[0].mxu0
  %7785 = vmatprep.mubr.bf16.mxu0 0
  %7786 = vmatmul.mubr.bf16.gmra.mrb[0].mxu0 %v7658
  %v7787 = vpop.f32.mrb[0].mxu0
  %v7788 = vadd.f32 %v7531, %v7787
  %v7789 = vpop.f32.mrb[0].mxu0
  %v7790 = vpop.f32.mrb[0].mxu0
  %v7791 = vadd.f32 %v7534, %v7790
  %v7792 = vpop.f32.mrb[0].mxu0
  %7793 = vmatprep.mubr.bf16.mxu0 0
  %7794 = vmatmul.mubr.bf16.gmra.mrb[0].mxu0 %v7661
  %v7795 = vpop.f32.mrb[0].mxu0
  %v7796 = vadd.f32 %v7539, %v7795
  %v7797 = vpop.f32.mrb[0].mxu0
  %v7798 = vpop.f32.mrb[0].mxu0
  %v7799 = vadd.f32 %v7542, %v7798
  %v7800 = vpop.f32.mrb[0].mxu0
  %7801 = vmatprep.mubr.bf16.mxu0 0
  %7802 = vmatmul.mubr.bf16.gmra.mrb[0].mxu0 %v7664
  %v7803 = vpop.f32.mrb[0].mxu0
  %v7804 = vadd.f32 %v7547, %v7803
  %v7805 = vpop.f32.mrb[0].mxu0
  %v7806 = vpop.f32.mrb[0].mxu0
  %v7807 = vadd.f32 %v7550, %v7806
  %v7808 = vpop.f32.mrb[0].mxu0
  %7809 = vmatprep.mubr.bf16.mxu0 0
  %7810 = vmatmul.mubr.bf16.gmra.mrb[0].mxu0 %v7667
  %v7811 = vpop.f32.mrb[0].mxu0
  %v7812 = vadd.f32 %v7555, %v7811
  %v7813 = vpop.f32.mrb[0].mxu0
  %v7814 = vpop.f32.mrb[0].mxu0
  %v7815 = vadd.f32 %v7558, %v7814
  %v7816 = vpop.f32.mrb[0].mxu0
  %7817 = vmatprep.mubr.bf16.mxu0 0
  %7818 = vmatmul.mubr.bf16.gmra.mrb[0].mxu0 %v7670
  %v7819 = vpop.f32.mrb[0].mxu0
  %v7820 = vadd.f32 %v7563, %v7819
  %v7821 = vpop.f32.mrb[0].mxu0
  %v7822 = vpop.f32.mrb[0].mxu0
  %v7823 = vadd.f32 %v7566, %v7822
  %v7824 = vpop.f32.mrb[0].mxu0
  %7825 = vmatprep.mubr.bf16.mxu0 0
  %7826 = vmatmul.mubr.bf16.gmra.mrb[0].mxu0 %v7673
  %v7827 = vpop.f32.mrb[0].mxu0
  %v7828 = vadd.f32 %v7571, %v7827
  %v7829 = vpop.f32.mrb[0].mxu0
  %v7830 = vpop.f32.mrb[0].mxu0
  %v7831 = vadd.f32 %v7574, %v7830
  %v7832 = vpop.f32.mrb[0].mxu0
  %7833 = vmatprep.mubr.bf16.mxu0 0
  %7834 = vmatmul.mubr.bf16.gmra.mrb[0].mxu0 %v7676
  %v7835 = vpop.f32.mrb[0].mxu0
  %v7836 = vadd.f32 %v7579, %v7835
  %v7837 = vpop.f32.mrb[0].mxu0
  %v7838 = vpop.f32.mrb[0].mxu0
  %v7839 = vadd.f32 %v7582, %v7838
  %v7840 = vpop.f32.mrb[0].mxu0
  %7841 = vdwg.mxu0
  %s7842 = scalar_lea.vmem %s5, 60
  %v7843 = vld [vmem:[%s7842] sm:$0xf]
  %v7844 = vld [vmem:[%s7842 + $0x4] sm:$0xf]
  %v7845 = vld [vmem:[%s7842 + $0x8] sm:$0xf]
  %v7846 = vld [vmem:[%s7842 + $0xc] sm:$0xf]
  %v7847 = vld [vmem:[%s7842 + $0x10] sm:$0xf]
  %v7848 = vld [vmem:[%s7842 + $0x14] sm:$0xf]
  %v7849 = vld [vmem:[%s7842 + $0x18] sm:$0xf]
  %v7850 = vld [vmem:[%s7842 + $0x1c] sm:$0xf]
  %v7851 = vld [vmem:[%s7842 + $0x20] sm:$0xf]
  %v7852 = vld [vmem:[%s7842 + $0x24] sm:$0xf]
  %v7853 = vld [vmem:[%s7842 + $0x28] sm:$0xf]
  %v7854 = vld [vmem:[%s7842 + $0x2c] sm:$0xf]
  %v7855 = vld [vmem:[%s7842 + $0x30] sm:$0xf]
  %v7856 = vld [vmem:[%s7842 + $0x34] sm:$0xf]
  %v7857 = vld [vmem:[%s7842 + $0x38] sm:$0xf]
  %v7873 = vunpack.c.l.b16 %v7843
  %v7874 = vunpack.c.l.b16 %v7844
  %v7875 = vunpack.c.l.b16 %v7845
  %v7876 = vunpack.c.l.b16 %v7846
  %v7877 = vunpack.c.l.b16 %v7847
  %v7878 = vunpack.c.l.b16 %v7848
  %v7879 = vunpack.c.l.b16 %v7849
  %v7880 = vunpack.c.l.b16 %v7850
  %v7881 = vunpack.c.l.b16 %v7851
  %v7882 = vunpack.c.l.b16 %v7852
  %v7883 = vunpack.c.l.b16 %v7853
  %v7884 = vunpack.c.l.b16 %v7854
  %v7885 = vunpack.c.l.b16 %v7855
  %v7886 = vunpack.c.l.b16 %v7856
  %v7887 = vunpack.c.l.b16 %v7857
  %v7888 = vpack.c.b16 %v7874, %v7873
  %v7889 = vpack.c.b16 %v7876, %v7875
  %v7890 = vpack.c.b16 %v7878, %v7877
  %v7891 = vpack.c.b16 %v7880, %v7879
  %v7892 = vpack.c.b16 %v7882, %v7881
  %v7893 = vpack.c.b16 %v7884, %v7883
  %v7894 = vpack.c.b16 %v7886, %v7885
  %v7895 = vpack.c.b16 %v7887, %v7887
  %v7904 = vsel %vm7420, %v7895, 0
  %7906 = vmatprep.subr.bf16.mxu0 0
  %7907 = vmatpush1.bf16.msra.mxu0 %v7888
  %7908 = vmatprep.subr.bf16.mxu0 0
  %7909 = vmatpush1.bf16.msra.mxu0 %v7889
  %7910 = vmatprep.subr.bf16.mxu0 0
  %7911 = vmatpush1.bf16.msra.mxu0 %v7890
  %7912 = vmatprep.subr.bf16.mxu0 0
  %7913 = vmatpush1.bf16.msra.mxu0 %v7891
  %7914 = vmatprep.subr.bf16.mxu0 0
  %7915 = vmatpush1.bf16.msra.mxu0 %v7892
  %7916 = vmatprep.subr.bf16.mxu0 0
  %7917 = vmatpush1.bf16.msra.mxu0 %v7893
  %7918 = vmatprep.subr.bf16.mxu0 0
  %7919 = vmatpush1.bf16.msra.mxu0 %v7894
  %7920 = vmatprep.subr.bf16.mxu0 0
  %7921 = vmatpush1.bf16.msra.mxu0 %v7904
  %7922 = vmatprep.subr.bf16.mxu0 0
  %7923 = vmatpush1.bf16.msra.mxu0 0
  %7924 = vmatprep.subr.bf16.mxu0 0
  %7925 = vmatpush1.bf16.msra.mxu0 0
  %7926 = vmatprep.subr.bf16.mxu0 0
  %7927 = vmatpush1.bf16.msra.mxu0 0
  %7928 = vmatprep.subr.bf16.mxu0 0
  %7929 = vmatpush1.bf16.msra.mxu0 0
  %7930 = vmatprep.subr.bf16.mxu0 0
  %7931 = vmatpush1.bf16.msra.mxu0 0
  %7932 = vmatprep.subr.bf16.mxu0 0
  %7933 = vmatpush1.bf16.msra.mxu0 0
  %7934 = vmatprep.subr.bf16.mxu0 0
  %7935 = vmatpush1.bf16.msra.mxu0 0
  %7936 = vmatprep.subr.bf16.mxu0 0
  %7937 = vmatpush1.bf16.msra.mxu0 0
  %7938 = vmatprep.mubr.bf16.mxu0 0
  %7939 = vmatmul.mubr.bf16.gmra.mrb[0].mxu0 %v7373
  %v7940 = vpop.f32.mrb[0].mxu0
  %v7941 = vadd.f32 0.0, %v7940
  %v7942 = vpop.f32.mrb[0].mxu0
  %v7943 = vpop.f32.mrb[0].mxu0
  %v7944 = vadd.f32 0.0, %v7943
  %v7945 = vpop.f32.mrb[0].mxu0
  %7946 = vmatprep.mubr.bf16.mxu0 0
  %7947 = vmatmul.mubr.bf16.gmra.mrb[0].mxu0 %v7376
  %v7948 = vpop.f32.mrb[0].mxu0
  %v7949 = vadd.f32 0.0, %v7948
  %v7950 = vpop.f32.mrb[0].mxu0
  %v7951 = vpop.f32.mrb[0].mxu0
  %v7952 = vadd.f32 0.0, %v7951
  %v7953 = vpop.f32.mrb[0].mxu0
  %7954 = vmatprep.mubr.bf16.mxu0 0
  %7955 = vmatmul.mubr.bf16.gmra.mrb[0].mxu0 %v7379
  %v7956 = vpop.f32.mrb[0].mxu0
  %v7957 = vadd.f32 0.0, %v7956
  %v7958 = vpop.f32.mrb[0].mxu0
  %v7959 = vpop.f32.mrb[0].mxu0
  %v7960 = vadd.f32 0.0, %v7959
  %v7961 = vpop.f32.mrb[0].mxu0
  %7962 = vmatprep.mubr.bf16.mxu0 0
  %7963 = vmatmul.mubr.bf16.gmra.mrb[0].mxu0 %v7382
  %v7964 = vpop.f32.mrb[0].mxu0
  %v7965 = vadd.f32 0.0, %v7964
  %v7966 = vpop.f32.mrb[0].mxu0
  %v7967 = vpop.f32.mrb[0].mxu0
  %v7968 = vadd.f32 0.0, %v7967
  %v7969 = vpop.f32.mrb[0].mxu0
  %7970 = vmatprep.mubr.bf16.mxu0 0
  %7971 = vmatmul.mubr.bf16.gmra.mrb[0].mxu0 %v7385
  %v7972 = vpop.f32.mrb[0].mxu0
  %v7973 = vadd.f32 0.0, %v7972
  %v7974 = vpop.f32.mrb[0].mxu0
  %v7975 = vpop.f32.mrb[0].mxu0
  %v7976 = vadd.f32 0.0, %v7975
  %v7977 = vpop.f32.mrb[0].mxu0
  %7978 = vmatprep.mubr.bf16.mxu0 0
  %7979 = vmatmul.mubr.bf16.gmra.mrb[0].mxu0 %v7388
  %v7980 = vpop.f32.mrb[0].mxu0
  %v7981 = vadd.f32 0.0, %v7980
  %v7982 = vpop.f32.mrb[0].mxu0
  %v7983 = vpop.f32.mrb[0].mxu0
  %v7984 = vadd.f32 0.0, %v7983
  %v7985 = vpop.f32.mrb[0].mxu0
  %7986 = vmatprep.mubr.bf16.mxu0 0
  %7987 = vmatmul.mubr.bf16.gmra.mrb[0].mxu0 %v7391
  %v7988 = vpop.f32.mrb[0].mxu0
  %v7989 = vadd.f32 0.0, %v7988
  %v7990 = vpop.f32.mrb[0].mxu0
  %v7991 = vpop.f32.mrb[0].mxu0
  %v7992 = vadd.f32 0.0, %v7991
  %v7993 = vpop.f32.mrb[0].mxu0
  %7994 = vmatprep.mubr.bf16.mxu0 0
  %7995 = vmatmul.mubr.bf16.gmra.mrb[0].mxu0 %v7394
  %v7996 = vpop.f32.mrb[0].mxu0
  %v7997 = vadd.f32 0.0, %v7996
  %v7998 = vpop.f32.mrb[0].mxu0
  %v7999 = vpop.f32.mrb[0].mxu0
  %v8000 = vadd.f32 0.0, %v7999
  %v8001 = vpop.f32.mrb[0].mxu0
  %8002 = vmatprep.mubr.bf16.mxu0 0
  %8003 = vmatmul.mubr.bf16.gmra.mrb[0].mxu0 %v7397
  %v8004 = vpop.f32.mrb[0].mxu0
  %v8005 = vadd.f32 0.0, %v8004
  %v8006 = vpop.f32.mrb[0].mxu0
  %v8007 = vpop.f32.mrb[0].mxu0
  %v8008 = vadd.f32 0.0, %v8007
  %v8009 = vpop.f32.mrb[0].mxu0
  %8010 = vmatprep.mubr.bf16.mxu0 0
  %8011 = vmatmul.mubr.bf16.gmra.mrb[0].mxu0 %v7400
  %v8012 = vpop.f32.mrb[0].mxu0
  %v8013 = vadd.f32 0.0, %v8012
  %v8014 = vpop.f32.mrb[0].mxu0
  %v8015 = vpop.f32.mrb[0].mxu0
  %v8016 = vadd.f32 0.0, %v8015
  %v8017 = vpop.f32.mrb[0].mxu0
  %8018 = vmatprep.mubr.bf16.mxu0 0
  %8019 = vmatmul.mubr.bf16.gmra.mrb[0].mxu0 %v7403
  %v8020 = vpop.f32.mrb[0].mxu0
  %v8021 = vadd.f32 0.0, %v8020
  %v8022 = vpop.f32.mrb[0].mxu0
  %v8023 = vpop.f32.mrb[0].mxu0
  %v8024 = vadd.f32 0.0, %v8023
  %v8025 = vpop.f32.mrb[0].mxu0
  %8026 = vmatprep.mubr.bf16.mxu0 0
  %8027 = vmatmul.mubr.bf16.gmra.mrb[0].mxu0 %v7406
  %v8028 = vpop.f32.mrb[0].mxu0
  %v8029 = vadd.f32 0.0, %v8028
  %v8030 = vpop.f32.mrb[0].mxu0
  %v8031 = vpop.f32.mrb[0].mxu0
  %v8032 = vadd.f32 0.0, %v8031
  %v8033 = vpop.f32.mrb[0].mxu0
  %8034 = vmatprep.mubr.bf16.mxu0 0
  %8035 = vmatmul.mubr.bf16.gmra.mrb[0].mxu0 %v7409
  %v8036 = vpop.f32.mrb[0].mxu0
  %v8037 = vadd.f32 0.0, %v8036
  %v8038 = vpop.f32.mrb[0].mxu0
  %v8039 = vpop.f32.mrb[0].mxu0
  %v8040 = vadd.f32 0.0, %v8039
  %v8041 = vpop.f32.mrb[0].mxu0
  %8042 = vmatprep.mubr.bf16.mxu0 0
  %8043 = vmatmul.mubr.bf16.gmra.mrb[0].mxu0 %v7412
  %v8044 = vpop.f32.mrb[0].mxu0
  %v8045 = vadd.f32 0.0, %v8044
  %v8046 = vpop.f32.mrb[0].mxu0
  %v8047 = vpop.f32.mrb[0].mxu0
  %v8048 = vadd.f32 0.0, %v8047
  %v8049 = vpop.f32.mrb[0].mxu0
  %8050 = vmatprep.mubr.bf16.mxu0 0
  %8051 = vmatmul.mubr.bf16.gmra.mrb[0].mxu0 %v7415
  %v8052 = vpop.f32.mrb[0].mxu0
  %v8053 = vadd.f32 0.0, %v8052
  %v8054 = vpop.f32.mrb[0].mxu0
  %v8055 = vpop.f32.mrb[0].mxu0
  %v8056 = vadd.f32 0.0, %v8055
  %v8057 = vpop.f32.mrb[0].mxu0
  %8058 = vmatprep.mubr.bf16.mxu0 0
  %8059 = vmatmul.mubr.bf16.gmra.mrb[0].mxu0 %v7418
  %v8060 = vpop.f32.mrb[0].mxu0
  %v8061 = vadd.f32 0.0, %v8060
  %v8062 = vpop.f32.mrb[0].mxu0
  %v8063 = vpop.f32.mrb[0].mxu0
  %v8064 = vadd.f32 0.0, %v8063
  %v8065 = vpop.f32.mrb[0].mxu0
  %8066 = vdwg.mxu0
  %v8082 = vunpack.c.l.b16 %v7087
  %v8083 = vunpack.c.l.b16 %v7088
  %v8084 = vunpack.c.l.b16 %v7089
  %v8085 = vunpack.c.l.b16 %v7090
  %v8086 = vunpack.c.l.b16 %v7091
  %v8087 = vunpack.c.l.b16 %v7092
  %v8088 = vunpack.c.l.b16 %v7093
  %v8089 = vunpack.c.l.b16 %v7094
  %v8090 = vunpack.c.l.b16 %v7095
  %v8091 = vunpack.c.l.b16 %v7096
  %v8092 = vunpack.c.l.b16 %v7097
  %v8093 = vunpack.c.l.b16 %v7098
  %v8094 = vunpack.c.l.b16 %v7099
  %v8095 = vunpack.c.l.b16 %v7100
  %v8096 = vunpack.c.l.b16 %v7101
  %v8097 = vpack.c.b16 %v8083, %v8082
  %v8098 = vpack.c.b16 %v8085, %v8084
  %v8099 = vpack.c.b16 %v8087, %v8086
  %v8100 = vpack.c.b16 %v8089, %v8088
  %v8101 = vpack.c.b16 %v8091, %v8090
  %v8102 = vpack.c.b16 %v8093, %v8092
  %v8103 = vpack.c.b16 %v8095, %v8094
  %v8104 = vpack.c.b16 %v8096, %v8096
  %v8113 = vsel %vm7420, %v8104, 0
  %8115 = vmatprep.subr.bf16.mxu0 0
  %8116 = vmatpush1.bf16.msra.mxu0 %v8097
  %8117 = vmatprep.subr.bf16.mxu0 0
  %8118 = vmatpush1.bf16.msra.mxu0 %v8098
  %8119 = vmatprep.subr.bf16.mxu0 0
  %8120 = vmatpush1.bf16.msra.mxu0 %v8099
  %8121 = vmatprep.subr.bf16.mxu0 0
  %8122 = vmatpush1.bf16.msra.mxu0 %v8100
  %8123 = vmatprep.subr.bf16.mxu0 0
  %8124 = vmatpush1.bf16.msra.mxu0 %v8101
  %8125 = vmatprep.subr.bf16.mxu0 0
  %8126 = vmatpush1.bf16.msra.mxu0 %v8102
  %8127 = vmatprep.subr.bf16.mxu0 0
  %8128 = vmatpush1.bf16.msra.mxu0 %v8103
  %8129 = vmatprep.subr.bf16.mxu0 0
  %8130 = vmatpush1.bf16.msra.mxu0 %v8113
  %8131 = vmatprep.subr.bf16.mxu0 0
  %8132 = vmatpush1.bf16.msra.mxu0 0
  %8133 = vmatprep.subr.bf16.mxu0 0
  %8134 = vmatpush1.bf16.msra.mxu0 0
  %8135 = vmatprep.subr.bf16.mxu0 0
  %8136 = vmatpush1.bf16.msra.mxu0 0
  %8137 = vmatprep.subr.bf16.mxu0 0
  %8138 = vmatpush1.bf16.msra.mxu0 0
  %8139 = vmatprep.subr.bf16.mxu0 0
  %8140 = vmatpush1.bf16.msra.mxu0 0
  %8141 = vmatprep.subr.bf16.mxu0 0
  %8142 = vmatpush1.bf16.msra.mxu0 0
  %8143 = vmatprep.subr.bf16.mxu0 0
  %8144 = vmatpush1.bf16.msra.mxu0 0
  %8145 = vmatprep.subr.bf16.mxu0 0
  %8146 = vmatpush1.bf16.msra.mxu0 0
  %8147 = vmatprep.mubr.bf16.mxu0 0
  %8148 = vmatmul.mubr.bf16.gmra.mrb[0].mxu0 %v7631
  %v8149 = vpop.f32.mrb[0].mxu0
  %v8150 = vadd.f32 %v7941, %v8149
  %v8151 = vpop.f32.mrb[0].mxu0
  %v8152 = vpop.f32.mrb[0].mxu0
  %v8153 = vadd.f32 %v7944, %v8152
  %v8154 = vpop.f32.mrb[0].mxu0
  %8155 = vmatprep.mubr.bf16.mxu0 0
  %8156 = vmatmul.mubr.bf16.gmra.mrb[0].mxu0 %v7634
  %v8157 = vpop.f32.mrb[0].mxu0
  %v8158 = vadd.f32 %v7949, %v8157
  %v8159 = vpop.f32.mrb[0].mxu0
  %v8160 = vpop.f32.mrb[0].mxu0
  %v8161 = vadd.f32 %v7952, %v8160
  %v8162 = vpop.f32.mrb[0].mxu0
  %8163 = vmatprep.mubr.bf16.mxu0 0
  %8164 = vmatmul.mubr.bf16.gmra.mrb[0].mxu0 %v7637
  %v8165 = vpop.f32.mrb[0].mxu0
  %v8166 = vadd.f32 %v7957, %v8165
  %v8167 = vpop.f32.mrb[0].mxu0
  %v8168 = vpop.f32.mrb[0].mxu0
  %v8169 = vadd.f32 %v7960, %v8168
  %v8170 = vpop.f32.mrb[0].mxu0
  %8171 = vmatprep.mubr.bf16.mxu0 0
  %8172 = vmatmul.mubr.bf16.gmra.mrb[0].mxu0 %v7640
  %v8173 = vpop.f32.mrb[0].mxu0
  %v8174 = vadd.f32 %v7965, %v8173
  %v8175 = vpop.f32.mrb[0].mxu0
  %v8176 = vpop.f32.mrb[0].mxu0
  %v8177 = vadd.f32 %v7968, %v8176
  %v8178 = vpop.f32.mrb[0].mxu0
  %8179 = vmatprep.mubr.bf16.mxu0 0
  %8180 = vmatmul.mubr.bf16.gmra.mrb[0].mxu0 %v7643
  %v8181 = vpop.f32.mrb[0].mxu0
  %v8182 = vadd.f32 %v7973, %v8181
  %v8183 = vpop.f32.mrb[0].mxu0
  %v8184 = vpop.f32.mrb[0].mxu0
  %v8185 = vadd.f32 %v7976, %v8184
  %v8186 = vpop.f32.mrb[0].mxu0
  %8187 = vmatprep.mubr.bf16.mxu0 0
  %8188 = vmatmul.mubr.bf16.gmra.mrb[0].mxu0 %v7646
  %v8189 = vpop.f32.mrb[0].mxu0
  %v8190 = vadd.f32 %v7981, %v8189
  %v8191 = vpop.f32.mrb[0].mxu0
  %v8192 = vpop.f32.mrb[0].mxu0
  %v8193 = vadd.f32 %v7984, %v8192
  %v8194 = vpop.f32.mrb[0].mxu0
  %8195 = vmatprep.mubr.bf16.mxu0 0
  %8196 = vmatmul.mubr.bf16.gmra.mrb[0].mxu0 %v7649
  %v8197 = vpop.f32.mrb[0].mxu0
  %v8198 = vadd.f32 %v7989, %v8197
  %v8199 = vpop.f32.mrb[0].mxu0
  %v8200 = vpop.f32.mrb[0].mxu0
  %v8201 = vadd.f32 %v7992, %v8200
  %v8202 = vpop.f32.mrb[0].mxu0
  %8203 = vmatprep.mubr.bf16.mxu0 0
  %8204 = vmatmul.mubr.bf16.gmra.mrb[0].mxu0 %v7652
  %v8205 = vpop.f32.mrb[0].mxu0
  %v8206 = vadd.f32 %v7997, %v8205
  %v8207 = vpop.f32.mrb[0].mxu0
  %v8208 = vpop.f32.mrb[0].mxu0
  %v8209 = vadd.f32 %v8000, %v8208
  %v8210 = vpop.f32.mrb[0].mxu0
  %8211 = vmatprep.mubr.bf16.mxu0 0
  %8212 = vmatmul.mubr.bf16.gmra.mrb[0].mxu0 %v7655
  %v8213 = vpop.f32.mrb[0].mxu0
  %v8214 = vadd.f32 %v8005, %v8213
  %v8215 = vpop.f32.mrb[0].mxu0
  %v8216 = vpop.f32.mrb[0].mxu0
  %v8217 = vadd.f32 %v8008, %v8216
  %v8218 = vpop.f32.mrb[0].mxu0
  %8219 = vmatprep.mubr.bf16.mxu0 0
  %8220 = vmatmul.mubr.bf16.gmra.mrb[0].mxu0 %v7658
  %v8221 = vpop.f32.mrb[0].mxu0
  %v8222 = vadd.f32 %v8013, %v8221
  %v8223 = vpop.f32.mrb[0].mxu0
  %v8224 = vpop.f32.mrb[0].mxu0
  %v8225 = vadd.f32 %v8016, %v8224
  %v8226 = vpop.f32.mrb[0].mxu0
  %8227 = vmatprep.mubr.bf16.mxu0 0
  %8228 = vmatmul.mubr.bf16.gmra.mrb[0].mxu0 %v7661
  %v8229 = vpop.f32.mrb[0].mxu0
  %v8230 = vadd.f32 %v8021, %v8229
  %v8231 = vpop.f32.mrb[0].mxu0
  %v8232 = vpop.f32.mrb[0].mxu0
  %v8233 = vadd.f32 %v8024, %v8232
  %v8234 = vpop.f32.mrb[0].mxu0
  %8235 = vmatprep.mubr.bf16.mxu0 0
  %8236 = vmatmul.mubr.bf16.gmra.mrb[0].mxu0 %v7664
  %v8237 = vpop.f32.mrb[0].mxu0
  %v8238 = vadd.f32 %v8029, %v8237
  %v8239 = vpop.f32.mrb[0].mxu0
  %v8240 = vpop.f32.mrb[0].mxu0
  %v8241 = vadd.f32 %v8032, %v8240
  %v8242 = vpop.f32.mrb[0].mxu0
  %8243 = vmatprep.mubr.bf16.mxu0 0
  %8244 = vmatmul.mubr.bf16.gmra.mrb[0].mxu0 %v7667
  %v8245 = vpop.f32.mrb[0].mxu0
  %v8246 = vadd.f32 %v8037, %v8245
  %v8247 = vpop.f32.mrb[0].mxu0
  %v8248 = vpop.f32.mrb[0].mxu0
  %v8249 = vadd.f32 %v8040, %v8248
  %v8250 = vpop.f32.mrb[0].mxu0
  %8251 = vmatprep.mubr.bf16.mxu0 0
  %8252 = vmatmul.mubr.bf16.gmra.mrb[0].mxu0 %v7670
  %v8253 = vpop.f32.mrb[0].mxu0
  %v8254 = vadd.f32 %v8045, %v8253
  %v8255 = vpop.f32.mrb[0].mxu0
  %v8256 = vpop.f32.mrb[0].mxu0
  %v8257 = vadd.f32 %v8048, %v8256
  %v8258 = vpop.f32.mrb[0].mxu0
  %8259 = vmatprep.mubr.bf16.mxu0 0
  %8260 = vmatmul.mubr.bf16.gmra.mrb[0].mxu0 %v7673
  %v8261 = vpop.f32.mrb[0].mxu0
  %v8262 = vadd.f32 %v8053, %v8261
  %v8263 = vpop.f32.mrb[0].mxu0
  %v8264 = vpop.f32.mrb[0].mxu0
  %v8265 = vadd.f32 %v8056, %v8264
  %v8266 = vpop.f32.mrb[0].mxu0
  %8267 = vmatprep.mubr.bf16.mxu0 0
  %8268 = vmatmul.mubr.bf16.gmra.mrb[0].mxu0 %v7676
  %v8269 = vpop.f32.mrb[0].mxu0
  %v8270 = vadd.f32 %v8061, %v8269
  %v8271 = vpop.f32.mrb[0].mxu0
  %v8272 = vpop.f32.mrb[0].mxu0
  %v8273 = vadd.f32 %v8064, %v8272
  %v8274 = vpop.f32.mrb[0].mxu0
  %8275 = vdwg.mxu0
  %v8276 = vrot.slane %v6992, 2
  %v8277 = vrot.slane %v6993, 2
  %v8278 = vsel %vm490, %v8276, %v8277
  %v8279 = vrot.slane %v6994, 2
  %v8280 = vrot.slane %v6995, 2
  %v8281 = vsel %vm490, %v8279, %v8280
  %v8282 = vrot.slane %v6996, 2
  %v8283 = vrot.slane %v6997, 2
  %v8284 = vsel %vm490, %v8282, %v8283
  %v8285 = vrot.slane %v6998, 2
  %v8286 = vrot.slane %v6999, 2
  %v8287 = vsel %vm490, %v8285, %v8286
  %v8288 = vrot.slane %v7000, 2
  %v8289 = vrot.slane %v7001, 2
  %v8290 = vsel %vm490, %v8288, %v8289
  %v8291 = vrot.slane %v7002, 2
  %v8292 = vrot.slane %v7003, 2
  %v8293 = vsel %vm490, %v8291, %v8292
  %v8294 = vrot.slane %v7004, 2
  %v8295 = vrot.slane %v7005, 2
  %v8296 = vsel %vm490, %v8294, %v8295
  %v8297 = vrot.slane %v7006, 2
  %v8298 = vrot.slane %v7007, 2
  %v8299 = vsel %vm490, %v8297, %v8298
  %v8300 = vrot.slane %v7008, 2
  %v8301 = vrot.slane %v7009, 2
  %v8302 = vsel %vm490, %v8300, %v8301
  %v8303 = vrot.slane %v7010, 2
  %v8304 = vrot.slane %v7011, 2
  %v8305 = vsel %vm490, %v8303, %v8304
  %v8306 = vrot.slane %v7012, 2
  %v8307 = vrot.slane %v7013, 2
  %v8308 = vsel %vm490, %v8306, %v8307
  %v8309 = vrot.slane %v7014, 2
  %v8310 = vrot.slane %v7015, 2
  %v8311 = vsel %vm490, %v8309, %v8310
  %v8312 = vrot.slane %v7016, 2
  %v8313 = vrot.slane %v7017, 2
  %v8314 = vsel %vm490, %v8312, %v8313
  %v8315 = vrot.slane %v7018, 2
  %v8316 = vrot.slane %v7019, 2
  %v8317 = vsel %vm490, %v8315, %v8316
  %v8318 = vrot.slane %v7020, 2
  %v8319 = vrot.slane %v7021, 2
  %v8320 = vsel %vm490, %v8318, %v8319
  %v8321 = vrot.slane %v7022, 2
  %v8322 = vrot.slane %v7023, 2
  %v8323 = vsel %vm490, %v8321, %v8322
  %v8324 = vrot.slane %v7024, 2
  %v8325 = vrot.slane %v7025, 2
  %v8326 = vsel %vm490, %v8324, %v8325
  %v8327 = vrot.slane %v7026, 2
  %v8328 = vrot.slane %v7027, 2
  %v8329 = vsel %vm490, %v8327, %v8328
  %v8330 = vrot.slane %v7028, 2
  %v8331 = vrot.slane %v7029, 2
  %v8332 = vsel %vm490, %v8330, %v8331
  %v8333 = vrot.slane %v7030, 2
  %v8334 = vrot.slane %v7031, 2
  %v8335 = vsel %vm490, %v8333, %v8334
  %v8336 = vrot.slane %v7032, 2
  %v8337 = vrot.slane %v7033, 2
  %v8338 = vsel %vm490, %v8336, %v8337
  %v8339 = vrot.slane %v7034, 2
  %v8340 = vrot.slane %v7035, 2
  %v8341 = vsel %vm490, %v8339, %v8340
  %v8342 = vrot.slane %v7036, 2
  %v8343 = vrot.slane %v7037, 2
  %v8344 = vsel %vm490, %v8342, %v8343
  %v8345 = vrot.slane %v7038, 2
  %v8346 = vrot.slane %v7039, 2
  %v8347 = vsel %vm490, %v8345, %v8346
  %v8348 = vrot.slane %v7040, 2
  %v8349 = vrot.slane %v7041, 2
  %v8350 = vsel %vm490, %v8348, %v8349
  %v8351 = vrot.slane %v7042, 2
  %v8352 = vrot.slane %v7043, 2
  %v8353 = vsel %vm490, %v8351, %v8352
  %v8354 = vrot.slane %v7044, 2
  %v8355 = vrot.slane %v7045, 2
  %v8356 = vsel %vm490, %v8354, %v8355
  %v8357 = vrot.slane %v7046, 2
  %v8358 = vrot.slane %v7047, 2
  %v8359 = vsel %vm490, %v8357, %v8358
  %v8360 = vrot.slane %v7048, 2
  %v8361 = vrot.slane %v7049, 2
  %v8362 = vsel %vm490, %v8360, %v8361
  %v8363 = vrot.slane %v7050, 2
  %v8364 = vrot.slane %v7051, 2
  %v8365 = vsel %vm490, %v8363, %v8364
  %v8366 = vrot.slane %v7052, 2
  %v8367 = vrot.slane %v7053, 2
  %v8368 = vsel %vm490, %v8366, %v8367
  %v8369 = vrot.slane %v7054, 2
  %v8370 = vrot.slane %v7055, 2
  %v8371 = vsel %vm490, %v8369, %v8370
  %v8404 = vpack.c.bf16 %v8281, %v8278
  %v8405 = vpack.c.bf16 %v8287, %v8284
  %v8406 = vpack.c.bf16 %v8293, %v8290
  %v8407 = vpack.c.bf16 %v8299, %v8296
  %v8408 = vpack.c.bf16 %v8305, %v8302
  %v8409 = vpack.c.bf16 %v8311, %v8308
  %v8410 = vpack.c.bf16 %v8317, %v8314
  %v8411 = vpack.c.bf16 %v8323, %v8320
  %v8412 = vpack.c.bf16 %v8329, %v8326
  %v8413 = vpack.c.bf16 %v8335, %v8332
  %v8414 = vpack.c.bf16 %v8341, %v8338
  %v8415 = vpack.c.bf16 %v8347, %v8344
  %v8416 = vpack.c.bf16 %v8353, %v8350
  %v8417 = vpack.c.bf16 %v8359, %v8356
  %v8418 = vpack.c.bf16 %v8365, %v8362
  %v8419 = vpack.c.bf16 %v8371, %v8368
  %s8420 = scalar_lea.vmem %s4, 120
  %v8421 = vld [vmem:[%s8420] sm:$0xf]
  %v8422 = vld [vmem:[%s8420 + $0x4] sm:$0xf]
  %v8423 = vld [vmem:[%s8420 + $0x8] sm:$0xf]
  %v8424 = vld [vmem:[%s8420 + $0xc] sm:$0xf]
  %v8425 = vld [vmem:[%s8420 + $0x10] sm:$0xf]
  %v8426 = vld [vmem:[%s8420 + $0x14] sm:$0xf]
  %v8427 = vld [vmem:[%s8420 + $0x18] sm:$0xf]
  %v8428 = vld [vmem:[%s8420 + $0x1c] sm:$0xf]
  %v8429 = vld [vmem:[%s8420 + $0x20] sm:$0xf]
  %v8430 = vld [vmem:[%s8420 + $0x24] sm:$0xf]
  %v8431 = vld [vmem:[%s8420 + $0x28] sm:$0xf]
  %v8432 = vld [vmem:[%s8420 + $0x2c] sm:$0xf]
  %v8433 = vld [vmem:[%s8420 + $0x30] sm:$0xf]
  %v8434 = vld [vmem:[%s8420 + $0x34] sm:$0xf]
  %v8435 = vld [vmem:[%s8420 + $0x38] sm:$0xf]
  %v8451 = vunpack.c.l.b16 %v8421
  %v8452 = vunpack.c.l.b16 %v8422
  %v8453 = vunpack.c.l.b16 %v8423
  %v8454 = vunpack.c.l.b16 %v8424
  %v8455 = vunpack.c.l.b16 %v8425
  %v8456 = vunpack.c.l.b16 %v8426
  %v8457 = vunpack.c.l.b16 %v8427
  %v8458 = vunpack.c.l.b16 %v8428
  %v8459 = vunpack.c.l.b16 %v8429
  %v8460 = vunpack.c.l.b16 %v8430
  %v8461 = vunpack.c.l.b16 %v8431
  %v8462 = vunpack.c.l.b16 %v8432
  %v8463 = vunpack.c.l.b16 %v8433
  %v8464 = vunpack.c.l.b16 %v8434
  %v8465 = vunpack.c.l.b16 %v8435
  %v8466 = vpack.c.b16 %v8452, %v8451
  %v8467 = vpack.c.b16 %v8454, %v8453
  %v8468 = vpack.c.b16 %v8456, %v8455
  %v8469 = vpack.c.b16 %v8458, %v8457
  %v8470 = vpack.c.b16 %v8460, %v8459
  %v8471 = vpack.c.b16 %v8462, %v8461
  %v8472 = vpack.c.b16 %v8464, %v8463
  %v8473 = vpack.c.b16 %v8465, %v8465
  %v8482 = vsel %vm6505, %v8404, 0
  %v8485 = vsel %vm6505, %v8405, 0
  %v8488 = vsel %vm6505, %v8406, 0
  %v8491 = vsel %vm6505, %v8407, 0
  %v8494 = vsel %vm6505, %v8408, 0
  %v8497 = vsel %vm6505, %v8409, 0
  %v8500 = vsel %vm6505, %v8410, 0
  %v8503 = vsel %vm6505, %v8411, 0
  %v8506 = vsel %vm6505, %v8412, 0
  %v8509 = vsel %vm6505, %v8413, 0
  %v8512 = vsel %vm6505, %v8414, 0
  %v8515 = vsel %vm6505, %v8415, 0
  %v8518 = vsel %vm6505, %v8416, 0
  %v8521 = vsel %vm6505, %v8417, 0
  %v8524 = vsel %vm6505, %v8418, 0
  %v8527 = vsel %vm6505, %v8419, 0
  %v8530 = vsel %vm7420, %v8473, 0
  %8532 = vmatprep.subr.bf16.mxu0 0
  %8533 = vmatpush1.bf16.msra.mxu0 %v8466
  %8534 = vmatprep.subr.bf16.mxu0 0
  %8535 = vmatpush1.bf16.msra.mxu0 %v8467
  %8536 = vmatprep.subr.bf16.mxu0 0
  %8537 = vmatpush1.bf16.msra.mxu0 %v8468
  %8538 = vmatprep.subr.bf16.mxu0 0
  %8539 = vmatpush1.bf16.msra.mxu0 %v8469
  %8540 = vmatprep.subr.bf16.mxu0 0
  %8541 = vmatpush1.bf16.msra.mxu0 %v8470
  %8542 = vmatprep.subr.bf16.mxu0 0
  %8543 = vmatpush1.bf16.msra.mxu0 %v8471
  %8544 = vmatprep.subr.bf16.mxu0 0
  %8545 = vmatpush1.bf16.msra.mxu0 %v8472
  %8546 = vmatprep.subr.bf16.mxu0 0
  %8547 = vmatpush1.bf16.msra.mxu0 %v8530
  %8548 = vmatprep.subr.bf16.mxu0 0
  %8549 = vmatpush1.bf16.msra.mxu0 0
  %8550 = vmatprep.subr.bf16.mxu0 0
  %8551 = vmatpush1.bf16.msra.mxu0 0
  %8552 = vmatprep.subr.bf16.mxu0 0
  %8553 = vmatpush1.bf16.msra.mxu0 0
  %8554 = vmatprep.subr.bf16.mxu0 0
  %8555 = vmatpush1.bf16.msra.mxu0 0
  %8556 = vmatprep.subr.bf16.mxu0 0
  %8557 = vmatpush1.bf16.msra.mxu0 0
  %8558 = vmatprep.subr.bf16.mxu0 0
  %8559 = vmatpush1.bf16.msra.mxu0 0
  %8560 = vmatprep.subr.bf16.mxu0 0
  %8561 = vmatpush1.bf16.msra.mxu0 0
  %8562 = vmatprep.subr.bf16.mxu0 0
  %8563 = vmatpush1.bf16.msra.mxu0 0
  %8564 = vmatprep.mubr.bf16.mxu0 0
  %8565 = vmatmul.mubr.bf16.gmra.mrb[0].mxu0 %v8482
  %v8566 = vpop.f32.mrb[0].mxu0
  %v8567 = vadd.f32 0.0, %v8566
  %v8568 = vpop.f32.mrb[0].mxu0
  %v8569 = vpop.f32.mrb[0].mxu0
  %v8570 = vadd.f32 0.0, %v8569
  %v8571 = vpop.f32.mrb[0].mxu0
  %8572 = vmatprep.mubr.bf16.mxu0 0
  %8573 = vmatmul.mubr.bf16.gmra.mrb[0].mxu0 %v8485
  %v8574 = vpop.f32.mrb[0].mxu0
  %v8575 = vadd.f32 0.0, %v8574
  %v8576 = vpop.f32.mrb[0].mxu0
  %v8577 = vpop.f32.mrb[0].mxu0
  %v8578 = vadd.f32 0.0, %v8577
  %v8579 = vpop.f32.mrb[0].mxu0
  %8580 = vmatprep.mubr.bf16.mxu0 0
  %8581 = vmatmul.mubr.bf16.gmra.mrb[0].mxu0 %v8488
  %v8582 = vpop.f32.mrb[0].mxu0
  %v8583 = vadd.f32 0.0, %v8582
  %v8584 = vpop.f32.mrb[0].mxu0
  %v8585 = vpop.f32.mrb[0].mxu0
  %v8586 = vadd.f32 0.0, %v8585
  %v8587 = vpop.f32.mrb[0].mxu0
  %8588 = vmatprep.mubr.bf16.mxu0 0
  %8589 = vmatmul.mubr.bf16.gmra.mrb[0].mxu0 %v8491
  %v8590 = vpop.f32.mrb[0].mxu0
  %v8591 = vadd.f32 0.0, %v8590
  %v8592 = vpop.f32.mrb[0].mxu0
  %v8593 = vpop.f32.mrb[0].mxu0
  %v8594 = vadd.f32 0.0, %v8593
  %v8595 = vpop.f32.mrb[0].mxu0
  %8596 = vmatprep.mubr.bf16.mxu0 0
  %8597 = vmatmul.mubr.bf16.gmra.mrb[0].mxu0 %v8494
  %v8598 = vpop.f32.mrb[0].mxu0
  %v8599 = vadd.f32 0.0, %v8598
  %v8600 = vpop.f32.mrb[0].mxu0
  %v8601 = vpop.f32.mrb[0].mxu0
  %v8602 = vadd.f32 0.0, %v8601
  %v8603 = vpop.f32.mrb[0].mxu0
  %8604 = vmatprep.mubr.bf16.mxu0 0
  %8605 = vmatmul.mubr.bf16.gmra.mrb[0].mxu0 %v8497
  %v8606 = vpop.f32.mrb[0].mxu0
  %v8607 = vadd.f32 0.0, %v8606
  %v8608 = vpop.f32.mrb[0].mxu0
  %v8609 = vpop.f32.mrb[0].mxu0
  %v8610 = vadd.f32 0.0, %v8609
  %v8611 = vpop.f32.mrb[0].mxu0
  %8612 = vmatprep.mubr.bf16.mxu0 0
  %8613 = vmatmul.mubr.bf16.gmra.mrb[0].mxu0 %v8500
  %v8614 = vpop.f32.mrb[0].mxu0
  %v8615 = vadd.f32 0.0, %v8614
  %v8616 = vpop.f32.mrb[0].mxu0
  %v8617 = vpop.f32.mrb[0].mxu0
  %v8618 = vadd.f32 0.0, %v8617
  %v8619 = vpop.f32.mrb[0].mxu0
  %8620 = vmatprep.mubr.bf16.mxu0 0
  %8621 = vmatmul.mubr.bf16.gmra.mrb[0].mxu0 %v8503
  %v8622 = vpop.f32.mrb[0].mxu0
  %v8623 = vadd.f32 0.0, %v8622
  %v8624 = vpop.f32.mrb[0].mxu0
  %v8625 = vpop.f32.mrb[0].mxu0
  %v8626 = vadd.f32 0.0, %v8625
  %v8627 = vpop.f32.mrb[0].mxu0
  %8628 = vmatprep.mubr.bf16.mxu0 0
  %8629 = vmatmul.mubr.bf16.gmra.mrb[0].mxu0 %v8506
  %v8630 = vpop.f32.mrb[0].mxu0
  %v8631 = vadd.f32 0.0, %v8630
  %v8632 = vpop.f32.mrb[0].mxu0
  %v8633 = vpop.f32.mrb[0].mxu0
  %v8634 = vadd.f32 0.0, %v8633
  %v8635 = vpop.f32.mrb[0].mxu0
  %8636 = vmatprep.mubr.bf16.mxu0 0
  %8637 = vmatmul.mubr.bf16.gmra.mrb[0].mxu0 %v8509
  %v8638 = vpop.f32.mrb[0].mxu0
  %v8639 = vadd.f32 0.0, %v8638
  %v8640 = vpop.f32.mrb[0].mxu0
  %v8641 = vpop.f32.mrb[0].mxu0
  %v8642 = vadd.f32 0.0, %v8641
  %v8643 = vpop.f32.mrb[0].mxu0
  %8644 = vmatprep.mubr.bf16.mxu0 0
  %8645 = vmatmul.mubr.bf16.gmra.mrb[0].mxu0 %v8512
  %v8646 = vpop.f32.mrb[0].mxu0
  %v8647 = vadd.f32 0.0, %v8646
  %v8648 = vpop.f32.mrb[0].mxu0
  %v8649 = vpop.f32.mrb[0].mxu0
  %v8650 = vadd.f32 0.0, %v8649
  %v8651 = vpop.f32.mrb[0].mxu0
  %8652 = vmatprep.mubr.bf16.mxu0 0
  %8653 = vmatmul.mubr.bf16.gmra.mrb[0].mxu0 %v8515
  %v8654 = vpop.f32.mrb[0].mxu0
  %v8655 = vadd.f32 0.0, %v8654
  %v8656 = vpop.f32.mrb[0].mxu0
  %v8657 = vpop.f32.mrb[0].mxu0
  %v8658 = vadd.f32 0.0, %v8657
  %v8659 = vpop.f32.mrb[0].mxu0
  %8660 = vmatprep.mubr.bf16.mxu0 0
  %8661 = vmatmul.mubr.bf16.gmra.mrb[0].mxu0 %v8518
  %v8662 = vpop.f32.mrb[0].mxu0
  %v8663 = vadd.f32 0.0, %v8662
  %v8664 = vpop.f32.mrb[0].mxu0
  %v8665 = vpop.f32.mrb[0].mxu0
  %v8666 = vadd.f32 0.0, %v8665
  %v8667 = vpop.f32.mrb[0].mxu0
  %8668 = vmatprep.mubr.bf16.mxu0 0
  %8669 = vmatmul.mubr.bf16.gmra.mrb[0].mxu0 %v8521
  %v8670 = vpop.f32.mrb[0].mxu0
  %v8671 = vadd.f32 0.0, %v8670
  %v8672 = vpop.f32.mrb[0].mxu0
  %v8673 = vpop.f32.mrb[0].mxu0
  %v8674 = vadd.f32 0.0, %v8673
  %v8675 = vpop.f32.mrb[0].mxu0
  %8676 = vmatprep.mubr.bf16.mxu0 0
  %8677 = vmatmul.mubr.bf16.gmra.mrb[0].mxu0 %v8524
  %v8678 = vpop.f32.mrb[0].mxu0
  %v8679 = vadd.f32 0.0, %v8678
  %v8680 = vpop.f32.mrb[0].mxu0
  %v8681 = vpop.f32.mrb[0].mxu0
  %v8682 = vadd.f32 0.0, %v8681
  %v8683 = vpop.f32.mrb[0].mxu0
  %8684 = vmatprep.mubr.bf16.mxu0 0
  %8685 = vmatmul.mubr.bf16.gmra.mrb[0].mxu0 %v8527
  %v8686 = vpop.f32.mrb[0].mxu0
  %v8687 = vadd.f32 0.0, %v8686
  %v8688 = vpop.f32.mrb[0].mxu0
  %v8689 = vpop.f32.mrb[0].mxu0
  %v8690 = vadd.f32 0.0, %v8689
  %v8691 = vpop.f32.mrb[0].mxu0
  %8692 = vdwg.mxu0
  %v8693 = vadd.f32 %v7716, %v8567
  %v8694 = vadd.f32 %v7719, %v8570
  %v8695 = vadd.f32 %v7724, %v8575
  %v8696 = vadd.f32 %v7727, %v8578
  %v8697 = vadd.f32 %v7732, %v8583
  %v8698 = vadd.f32 %v7735, %v8586
  %v8699 = vadd.f32 %v7740, %v8591
  %v8700 = vadd.f32 %v7743, %v8594
  %v8701 = vadd.f32 %v7748, %v8599
  %v8702 = vadd.f32 %v7751, %v8602
  %v8703 = vadd.f32 %v7756, %v8607
  %v8704 = vadd.f32 %v7759, %v8610
  %v8705 = vadd.f32 %v7764, %v8615
  %v8706 = vadd.f32 %v7767, %v8618
  %v8707 = vadd.f32 %v7772, %v8623
  %v8708 = vadd.f32 %v7775, %v8626
  %v8709 = vadd.f32 %v7780, %v8631
  %v8710 = vadd.f32 %v7783, %v8634
  %v8711 = vadd.f32 %v7788, %v8639
  %v8712 = vadd.f32 %v7791, %v8642
  %v8713 = vadd.f32 %v7796, %v8647
  %v8714 = vadd.f32 %v7799, %v8650
  %v8715 = vadd.f32 %v7804, %v8655
  %v8716 = vadd.f32 %v7807, %v8658
  %v8717 = vadd.f32 %v7812, %v8663
  %v8718 = vadd.f32 %v7815, %v8666
  %v8719 = vadd.f32 %v7820, %v8671
  %v8720 = vadd.f32 %v7823, %v8674
  %v8721 = vadd.f32 %v7828, %v8679
  %v8722 = vadd.f32 %v7831, %v8682
  %v8723 = vadd.f32 %v7836, %v8687
  %v8724 = vadd.f32 %v7839, %v8690
  %s8725 = scalar_lea.vmem %s5, 120
  %v8726 = vld [vmem:[%s8725] sm:$0xf]
  %v8727 = vld [vmem:[%s8725 + $0x4] sm:$0xf]
  %v8728 = vld [vmem:[%s8725 + $0x8] sm:$0xf]
  %v8729 = vld [vmem:[%s8725 + $0xc] sm:$0xf]
  %v8730 = vld [vmem:[%s8725 + $0x10] sm:$0xf]
  %v8731 = vld [vmem:[%s8725 + $0x14] sm:$0xf]
  %v8732 = vld [vmem:[%s8725 + $0x18] sm:$0xf]
  %v8733 = vld [vmem:[%s8725 + $0x1c] sm:$0xf]
  %v8734 = vld [vmem:[%s8725 + $0x20] sm:$0xf]
  %v8735 = vld [vmem:[%s8725 + $0x24] sm:$0xf]
  %v8736 = vld [vmem:[%s8725 + $0x28] sm:$0xf]
  %v8737 = vld [vmem:[%s8725 + $0x2c] sm:$0xf]
  %v8738 = vld [vmem:[%s8725 + $0x30] sm:$0xf]
  %v8739 = vld [vmem:[%s8725 + $0x34] sm:$0xf]
  %v8740 = vld [vmem:[%s8725 + $0x38] sm:$0xf]
  %v8756 = vunpack.c.l.b16 %v8726
  %v8757 = vunpack.c.l.b16 %v8727
  %v8758 = vunpack.c.l.b16 %v8728
  %v8759 = vunpack.c.l.b16 %v8729
  %v8760 = vunpack.c.l.b16 %v8730
  %v8761 = vunpack.c.l.b16 %v8731
  %v8762 = vunpack.c.l.b16 %v8732
  %v8763 = vunpack.c.l.b16 %v8733
  %v8764 = vunpack.c.l.b16 %v8734
  %v8765 = vunpack.c.l.b16 %v8735
  %v8766 = vunpack.c.l.b16 %v8736
  %v8767 = vunpack.c.l.b16 %v8737
  %v8768 = vunpack.c.l.b16 %v8738
  %v8769 = vunpack.c.l.b16 %v8739
  %v8770 = vunpack.c.l.b16 %v8740
  %v8771 = vpack.c.b16 %v8757, %v8756
  %v8772 = vpack.c.b16 %v8759, %v8758
  %v8773 = vpack.c.b16 %v8761, %v8760
  %v8774 = vpack.c.b16 %v8763, %v8762
  %v8775 = vpack.c.b16 %v8765, %v8764
  %v8776 = vpack.c.b16 %v8767, %v8766
  %v8777 = vpack.c.b16 %v8769, %v8768
  %v8778 = vpack.c.b16 %v8770, %v8770
  %v8787 = vsel %vm7420, %v8778, 0
  %8789 = vmatprep.subr.bf16.mxu0 0
  %8790 = vmatpush1.bf16.msra.mxu0 %v8771
  %8791 = vmatprep.subr.bf16.mxu0 0
  %8792 = vmatpush1.bf16.msra.mxu0 %v8772
  %8793 = vmatprep.subr.bf16.mxu0 0
  %8794 = vmatpush1.bf16.msra.mxu0 %v8773
  %8795 = vmatprep.subr.bf16.mxu0 0
  %8796 = vmatpush1.bf16.msra.mxu0 %v8774
  %8797 = vmatprep.subr.bf16.mxu0 0
  %8798 = vmatpush1.bf16.msra.mxu0 %v8775
  %8799 = vmatprep.subr.bf16.mxu0 0
  %8800 = vmatpush1.bf16.msra.mxu0 %v8776
  %8801 = vmatprep.subr.bf16.mxu0 0
  %8802 = vmatpush1.bf16.msra.mxu0 %v8777
  %8803 = vmatprep.subr.bf16.mxu0 0
  %8804 = vmatpush1.bf16.msra.mxu0 %v8787
  %8805 = vmatprep.subr.bf16.mxu0 0
  %8806 = vmatpush1.bf16.msra.mxu0 0
  %8807 = vmatprep.subr.bf16.mxu0 0
  %8808 = vmatpush1.bf16.msra.mxu0 0
  %8809 = vmatprep.subr.bf16.mxu0 0
  %8810 = vmatpush1.bf16.msra.mxu0 0
  %8811 = vmatprep.subr.bf16.mxu0 0
  %8812 = vmatpush1.bf16.msra.mxu0 0
  %8813 = vmatprep.subr.bf16.mxu0 0
  %8814 = vmatpush1.bf16.msra.mxu0 0
  %8815 = vmatprep.subr.bf16.mxu0 0
  %8816 = vmatpush1.bf16.msra.mxu0 0
  %8817 = vmatprep.subr.bf16.mxu0 0
  %8818 = vmatpush1.bf16.msra.mxu0 0
  %8819 = vmatprep.subr.bf16.mxu0 0
  %8820 = vmatpush1.bf16.msra.mxu0 0
  %8821 = vmatprep.mubr.bf16.mxu0 0
  %8822 = vmatmul.mubr.bf16.gmra.mrb[0].mxu0 %v8482
  %v8823 = vpop.f32.mrb[0].mxu0
  %v8824 = vadd.f32 0.0, %v8823
  %v8825 = vpop.f32.mrb[0].mxu0
  %v8826 = vpop.f32.mrb[0].mxu0
  %v8827 = vadd.f32 0.0, %v8826
  %v8828 = vpop.f32.mrb[0].mxu0
  %8829 = vmatprep.mubr.bf16.mxu0 0
  %8830 = vmatmul.mubr.bf16.gmra.mrb[0].mxu0 %v8485
  %v8831 = vpop.f32.mrb[0].mxu0
  %v8832 = vadd.f32 0.0, %v8831
  %v8833 = vpop.f32.mrb[0].mxu0
  %v8834 = vpop.f32.mrb[0].mxu0
  %v8835 = vadd.f32 0.0, %v8834
  %v8836 = vpop.f32.mrb[0].mxu0
  %8837 = vmatprep.mubr.bf16.mxu0 0
  %8838 = vmatmul.mubr.bf16.gmra.mrb[0].mxu0 %v8488
  %v8839 = vpop.f32.mrb[0].mxu0
  %v8840 = vadd.f32 0.0, %v8839
  %v8841 = vpop.f32.mrb[0].mxu0
  %v8842 = vpop.f32.mrb[0].mxu0
  %v8843 = vadd.f32 0.0, %v8842
  %v8844 = vpop.f32.mrb[0].mxu0
  %8845 = vmatprep.mubr.bf16.mxu0 0
  %8846 = vmatmul.mubr.bf16.gmra.mrb[0].mxu0 %v8491
  %v8847 = vpop.f32.mrb[0].mxu0
  %v8848 = vadd.f32 0.0, %v8847
  %v8849 = vpop.f32.mrb[0].mxu0
  %v8850 = vpop.f32.mrb[0].mxu0
  %v8851 = vadd.f32 0.0, %v8850
  %v8852 = vpop.f32.mrb[0].mxu0
  %8853 = vmatprep.mubr.bf16.mxu0 0
  %8854 = vmatmul.mubr.bf16.gmra.mrb[0].mxu0 %v8494
  %v8855 = vpop.f32.mrb[0].mxu0
  %v8856 = vadd.f32 0.0, %v8855
  %v8857 = vpop.f32.mrb[0].mxu0
  %v8858 = vpop.f32.mrb[0].mxu0
  %v8859 = vadd.f32 0.0, %v8858
  %v8860 = vpop.f32.mrb[0].mxu0
  %8861 = vmatprep.mubr.bf16.mxu0 0
  %8862 = vmatmul.mubr.bf16.gmra.mrb[0].mxu0 %v8497
  %v8863 = vpop.f32.mrb[0].mxu0
  %v8864 = vadd.f32 0.0, %v8863
  %v8865 = vpop.f32.mrb[0].mxu0
  %v8866 = vpop.f32.mrb[0].mxu0
  %v8867 = vadd.f32 0.0, %v8866
  %v8868 = vpop.f32.mrb[0].mxu0
  %8869 = vmatprep.mubr.bf16.mxu0 0
  %8870 = vmatmul.mubr.bf16.gmra.mrb[0].mxu0 %v8500
  %v8871 = vpop.f32.mrb[0].mxu0
  %v8872 = vadd.f32 0.0, %v8871
  %v8873 = vpop.f32.mrb[0].mxu0
  %v8874 = vpop.f32.mrb[0].mxu0
  %v8875 = vadd.f32 0.0, %v8874
  %v8876 = vpop.f32.mrb[0].mxu0
  %8877 = vmatprep.mubr.bf16.mxu0 0
  %8878 = vmatmul.mubr.bf16.gmra.mrb[0].mxu0 %v8503
  %v8879 = vpop.f32.mrb[0].mxu0
  %v8880 = vadd.f32 0.0, %v8879
  %v8881 = vpop.f32.mrb[0].mxu0
  %v8882 = vpop.f32.mrb[0].mxu0
  %v8883 = vadd.f32 0.0, %v8882
  %v8884 = vpop.f32.mrb[0].mxu0
  %8885 = vmatprep.mubr.bf16.mxu0 0
  %8886 = vmatmul.mubr.bf16.gmra.mrb[0].mxu0 %v8506
  %v8887 = vpop.f32.mrb[0].mxu0
  %v8888 = vadd.f32 0.0, %v8887
  %v8889 = vpop.f32.mrb[0].mxu0
  %v8890 = vpop.f32.mrb[0].mxu0
  %v8891 = vadd.f32 0.0, %v8890
  %v8892 = vpop.f32.mrb[0].mxu0
  %8893 = vmatprep.mubr.bf16.mxu0 0
  %8894 = vmatmul.mubr.bf16.gmra.mrb[0].mxu0 %v8509
  %v8895 = vpop.f32.mrb[0].mxu0
  %v8896 = vadd.f32 0.0, %v8895
  %v8897 = vpop.f32.mrb[0].mxu0
  %v8898 = vpop.f32.mrb[0].mxu0
  %v8899 = vadd.f32 0.0, %v8898
  %v8900 = vpop.f32.mrb[0].mxu0
  %8901 = vmatprep.mubr.bf16.mxu0 0
  %8902 = vmatmul.mubr.bf16.gmra.mrb[0].mxu0 %v8512
  %v8903 = vpop.f32.mrb[0].mxu0
  %v8904 = vadd.f32 0.0, %v8903
  %v8905 = vpop.f32.mrb[0].mxu0
  %v8906 = vpop.f32.mrb[0].mxu0
  %v8907 = vadd.f32 0.0, %v8906
  %v8908 = vpop.f32.mrb[0].mxu0
  %8909 = vmatprep.mubr.bf16.mxu0 0
  %8910 = vmatmul.mubr.bf16.gmra.mrb[0].mxu0 %v8515
  %v8911 = vpop.f32.mrb[0].mxu0
  %v8912 = vadd.f32 0.0, %v8911
  %v8913 = vpop.f32.mrb[0].mxu0
  %v8914 = vpop.f32.mrb[0].mxu0
  %v8915 = vadd.f32 0.0, %v8914
  %v8916 = vpop.f32.mrb[0].mxu0
  %8917 = vmatprep.mubr.bf16.mxu0 0
  %8918 = vmatmul.mubr.bf16.gmra.mrb[0].mxu0 %v8518
  %v8919 = vpop.f32.mrb[0].mxu0
  %v8920 = vadd.f32 0.0, %v8919
  %v8921 = vpop.f32.mrb[0].mxu0
  %v8922 = vpop.f32.mrb[0].mxu0
  %v8923 = vadd.f32 0.0, %v8922
  %v8924 = vpop.f32.mrb[0].mxu0
  %8925 = vmatprep.mubr.bf16.mxu0 0
  %8926 = vmatmul.mubr.bf16.gmra.mrb[0].mxu0 %v8521
  %v8927 = vpop.f32.mrb[0].mxu0
  %v8928 = vadd.f32 0.0, %v8927
  %v8929 = vpop.f32.mrb[0].mxu0
  %v8930 = vpop.f32.mrb[0].mxu0
  %v8931 = vadd.f32 0.0, %v8930
  %v8932 = vpop.f32.mrb[0].mxu0
  %8933 = vmatprep.mubr.bf16.mxu0 0
  %8934 = vmatmul.mubr.bf16.gmra.mrb[0].mxu0 %v8524
  %v8935 = vpop.f32.mrb[0].mxu0
  %v8936 = vadd.f32 0.0, %v8935
  %v8937 = vpop.f32.mrb[0].mxu0
  %v8938 = vpop.f32.mrb[0].mxu0
  %v8939 = vadd.f32 0.0, %v8938
  %v8940 = vpop.f32.mrb[0].mxu0
  %8941 = vmatprep.mubr.bf16.mxu0 0
  %8942 = vmatmul.mubr.bf16.gmra.mrb[0].mxu0 %v8527
  %v8943 = vpop.f32.mrb[0].mxu0
  %v8944 = vadd.f32 0.0, %v8943
  %v8945 = vpop.f32.mrb[0].mxu0
  %v8946 = vpop.f32.mrb[0].mxu0
  %v8947 = vadd.f32 0.0, %v8946
  %v8948 = vpop.f32.mrb[0].mxu0
  %8949 = vdwg.mxu0
  %v8950 = vadd.f32 %v8150, %v8824
  %v8951 = vadd.f32 %v8153, %v8827
  %v8952 = vadd.f32 %v8158, %v8832
  %v8953 = vadd.f32 %v8161, %v8835
  %v8954 = vadd.f32 %v8166, %v8840
  %v8955 = vadd.f32 %v8169, %v8843
  %v8956 = vadd.f32 %v8174, %v8848
  %v8957 = vadd.f32 %v8177, %v8851
  %v8958 = vadd.f32 %v8182, %v8856
  %v8959 = vadd.f32 %v8185, %v8859
  %v8960 = vadd.f32 %v8190, %v8864
  %v8961 = vadd.f32 %v8193, %v8867
  %v8962 = vadd.f32 %v8198, %v8872
  %v8963 = vadd.f32 %v8201, %v8875
  %v8964 = vadd.f32 %v8206, %v8880
  %v8965 = vadd.f32 %v8209, %v8883
  %v8966 = vadd.f32 %v8214, %v8888
  %v8967 = vadd.f32 %v8217, %v8891
  %v8968 = vadd.f32 %v8222, %v8896
  %v8969 = vadd.f32 %v8225, %v8899
  %v8970 = vadd.f32 %v8230, %v8904
  %v8971 = vadd.f32 %v8233, %v8907
  %v8972 = vadd.f32 %v8238, %v8912
  %v8973 = vadd.f32 %v8241, %v8915
  %v8974 = vadd.f32 %v8246, %v8920
  %v8975 = vadd.f32 %v8249, %v8923
  %v8976 = vadd.f32 %v8254, %v8928
  %v8977 = vadd.f32 %v8257, %v8931
  %v8978 = vadd.f32 %v8262, %v8936
  %v8979 = vadd.f32 %v8265, %v8939
  %v8980 = vadd.f32 %v8270, %v8944
  %v8981 = vadd.f32 %v8273, %v8947
  %vm8982 = vcmask 1044480
  %v8983 = vrot.slane %v6992, 3
  %v8984 = vrot.slane %v6993, 3
  %v8985 = vsel %vm8982, %v8983, %v8984
  %v8986 = vrot.slane %v6994, 3
  %v8987 = vrot.slane %v6995, 3
  %v8988 = vsel %vm8982, %v8986, %v8987
  %v8989 = vrot.slane %v6996, 3
  %v8990 = vrot.slane %v6997, 3
  %v8991 = vsel %vm8982, %v8989, %v8990
  %v8992 = vrot.slane %v6998, 3
  %v8993 = vrot.slane %v6999, 3
  %v8994 = vsel %vm8982, %v8992, %v8993
  %v8995 = vrot.slane %v7000, 3
  %v8996 = vrot.slane %v7001, 3
  %v8997 = vsel %vm8982, %v8995, %v8996
  %v8998 = vrot.slane %v7002, 3
  %v8999 = vrot.slane %v7003, 3
  %v9000 = vsel %vm8982, %v8998, %v8999
  %v9001 = vrot.slane %v7004, 3
  %v9002 = vrot.slane %v7005, 3
  %v9003 = vsel %vm8982, %v9001, %v9002
  %v9004 = vrot.slane %v7006, 3
  %v9005 = vrot.slane %v7007, 3
  %v9006 = vsel %vm8982, %v9004, %v9005
  %v9007 = vrot.slane %v7008, 3
  %v9008 = vrot.slane %v7009, 3
  %v9009 = vsel %vm8982, %v9007, %v9008
  %v9010 = vrot.slane %v7010, 3
  %v9011 = vrot.slane %v7011, 3
  %v9012 = vsel %vm8982, %v9010, %v9011
  %v9013 = vrot.slane %v7012, 3
  %v9014 = vrot.slane %v7013, 3
  %v9015 = vsel %vm8982, %v9013, %v9014
  %v9016 = vrot.slane %v7014, 3
  %v9017 = vrot.slane %v7015, 3
  %v9018 = vsel %vm8982, %v9016, %v9017
  %v9019 = vrot.slane %v7016, 3
  %v9020 = vrot.slane %v7017, 3
  %v9021 = vsel %vm8982, %v9019, %v9020
  %v9022 = vrot.slane %v7018, 3
  %v9023 = vrot.slane %v7019, 3
  %v9024 = vsel %vm8982, %v9022, %v9023
  %v9025 = vrot.slane %v7020, 3
  %v9026 = vrot.slane %v7021, 3
  %v9027 = vsel %vm8982, %v9025, %v9026
  %v9028 = vrot.slane %v7022, 3
  %v9029 = vrot.slane %v7023, 3
  %v9030 = vsel %vm8982, %v9028, %v9029
  %v9031 = vrot.slane %v7024, 3
  %v9032 = vrot.slane %v7025, 3
  %v9033 = vsel %vm8982, %v9031, %v9032
  %v9034 = vrot.slane %v7026, 3
  %v9035 = vrot.slane %v7027, 3
  %v9036 = vsel %vm8982, %v9034, %v9035
  %v9037 = vrot.slane %v7028, 3
  %v9038 = vrot.slane %v7029, 3
  %v9039 = vsel %vm8982, %v9037, %v9038
  %v9040 = vrot.slane %v7030, 3
  %v9041 = vrot.slane %v7031, 3
  %v9042 = vsel %vm8982, %v9040, %v9041
  %v9043 = vrot.slane %v7032, 3
  %v9044 = vrot.slane %v7033, 3
  %v9045 = vsel %vm8982, %v9043, %v9044
  %v9046 = vrot.slane %v7034, 3
  %v9047 = vrot.slane %v7035, 3
  %v9048 = vsel %vm8982, %v9046, %v9047
  %v9049 = vrot.slane %v7036, 3
  %v9050 = vrot.slane %v7037, 3
  %v9051 = vsel %vm8982, %v9049, %v9050
  %v9052 = vrot.slane %v7038, 3
  %v9053 = vrot.slane %v7039, 3
  %v9054 = vsel %vm8982, %v9052, %v9053
  %v9055 = vrot.slane %v7040, 3
  %v9056 = vrot.slane %v7041, 3
  %v9057 = vsel %vm8982, %v9055, %v9056
  %v9058 = vrot.slane %v7042, 3
  %v9059 = vrot.slane %v7043, 3
  %v9060 = vsel %vm8982, %v9058, %v9059
  %v9061 = vrot.slane %v7044, 3
  %v9062 = vrot.slane %v7045, 3
  %v9063 = vsel %vm8982, %v9061, %v9062
  %v9064 = vrot.slane %v7046, 3
  %v9065 = vrot.slane %v7047, 3
  %v9066 = vsel %vm8982, %v9064, %v9065
  %v9067 = vrot.slane %v7048, 3
  %v9068 = vrot.slane %v7049, 3
  %v9069 = vsel %vm8982, %v9067, %v9068
  %v9070 = vrot.slane %v7050, 3
  %v9071 = vrot.slane %v7051, 3
  %v9072 = vsel %vm8982, %v9070, %v9071
  %v9073 = vrot.slane %v7052, 3
  %v9074 = vrot.slane %v7053, 3
  %v9075 = vsel %vm8982, %v9073, %v9074
  %v9076 = vrot.slane %v7054, 3
  %v9077 = vrot.slane %v7055, 3
  %v9078 = vsel %vm8982, %v9076, %v9077
  %v9111 = vpack.c.bf16 %v8988, %v8985
  %v9112 = vpack.c.bf16 %v8994, %v8991
  %v9113 = vpack.c.bf16 %v9000, %v8997
  %v9114 = vpack.c.bf16 %v9006, %v9003
  %v9115 = vpack.c.bf16 %v9012, %v9009
  %v9116 = vpack.c.bf16 %v9018, %v9015
  %v9117 = vpack.c.bf16 %v9024, %v9021
  %v9118 = vpack.c.bf16 %v9030, %v9027
  %v9119 = vpack.c.bf16 %v9036, %v9033
  %v9120 = vpack.c.bf16 %v9042, %v9039
  %v9121 = vpack.c.bf16 %v9048, %v9045
  %v9122 = vpack.c.bf16 %v9054, %v9051
  %v9123 = vpack.c.bf16 %v9060, %v9057
  %v9124 = vpack.c.bf16 %v9066, %v9063
  %v9125 = vpack.c.bf16 %v9072, %v9069
  %v9126 = vpack.c.bf16 %v9078, %v9075
  %s9127 = scalar_lea.vmem %s4, 180
  %v9128 = vld [vmem:[%s9127] sm:$0xf]
  %v9129 = vld [vmem:[%s9127 + $0x4] sm:$0xf]
  %v9130 = vld [vmem:[%s9127 + $0x8] sm:$0xf]
  %v9131 = vld [vmem:[%s9127 + $0xc] sm:$0xf]
  %v9132 = vld [vmem:[%s9127 + $0x10] sm:$0xf]
  %v9133 = vld [vmem:[%s9127 + $0x14] sm:$0xf]
  %v9134 = vld [vmem:[%s9127 + $0x18] sm:$0xf]
  %v9135 = vld [vmem:[%s9127 + $0x1c] sm:$0xf]
  %v9136 = vld [vmem:[%s9127 + $0x20] sm:$0xf]
  %v9137 = vld [vmem:[%s9127 + $0x24] sm:$0xf]
  %v9138 = vld [vmem:[%s9127 + $0x28] sm:$0xf]
  %v9139 = vld [vmem:[%s9127 + $0x2c] sm:$0xf]
  %v9140 = vld [vmem:[%s9127 + $0x30] sm:$0xf]
  %v9141 = vld [vmem:[%s9127 + $0x34] sm:$0xf]
  %v9142 = vld [vmem:[%s9127 + $0x38] sm:$0xf]
  %v9158 = vunpack.c.l.b16 %v9128
  %v9159 = vunpack.c.l.b16 %v9129
  %v9160 = vunpack.c.l.b16 %v9130
  %v9161 = vunpack.c.l.b16 %v9131
  %v9162 = vunpack.c.l.b16 %v9132
  %v9163 = vunpack.c.l.b16 %v9133
  %v9164 = vunpack.c.l.b16 %v9134
  %v9165 = vunpack.c.l.b16 %v9135
  %v9166 = vunpack.c.l.b16 %v9136
  %v9167 = vunpack.c.l.b16 %v9137
  %v9168 = vunpack.c.l.b16 %v9138
  %v9169 = vunpack.c.l.b16 %v9139
  %v9170 = vunpack.c.l.b16 %v9140
  %v9171 = vunpack.c.l.b16 %v9141
  %v9172 = vunpack.c.l.b16 %v9142
  %v9173 = vpack.c.b16 %v9159, %v9158
  %v9174 = vpack.c.b16 %v9161, %v9160
  %v9175 = vpack.c.b16 %v9163, %v9162
  %v9176 = vpack.c.b16 %v9165, %v9164
  %v9177 = vpack.c.b16 %v9167, %v9166
  %v9178 = vpack.c.b16 %v9169, %v9168
  %v9179 = vpack.c.b16 %v9171, %v9170
  %v9180 = vpack.c.b16 %v9172, %v9172
  %v9189 = vsel %vm6505, %v9111, 0
  %v9192 = vsel %vm6505, %v9112, 0
  %v9195 = vsel %vm6505, %v9113, 0
  %v9198 = vsel %vm6505, %v9114, 0
  %v9201 = vsel %vm6505, %v9115, 0
  %v9204 = vsel %vm6505, %v9116, 0
  %v9207 = vsel %vm6505, %v9117, 0
  %v9210 = vsel %vm6505, %v9118, 0
  %v9213 = vsel %vm6505, %v9119, 0
  %v9216 = vsel %vm6505, %v9120, 0
  %v9219 = vsel %vm6505, %v9121, 0
  %v9222 = vsel %vm6505, %v9122, 0
  %v9225 = vsel %vm6505, %v9123, 0
  %v9228 = vsel %vm6505, %v9124, 0
  %v9231 = vsel %vm6505, %v9125, 0
  %v9234 = vsel %vm6505, %v9126, 0
  %v9237 = vsel %vm7420, %v9180, 0
  %9239 = vmatprep.subr.bf16.mxu0 0
  %9240 = vmatpush1.bf16.msra.mxu0 %v9173
  %9241 = vmatprep.subr.bf16.mxu0 0
  %9242 = vmatpush1.bf16.msra.mxu0 %v9174
  %9243 = vmatprep.subr.bf16.mxu0 0
  %9244 = vmatpush1.bf16.msra.mxu0 %v9175
  %9245 = vmatprep.subr.bf16.mxu0 0
  %9246 = vmatpush1.bf16.msra.mxu0 %v9176
  %9247 = vmatprep.subr.bf16.mxu0 0
  %9248 = vmatpush1.bf16.msra.mxu0 %v9177
  %9249 = vmatprep.subr.bf16.mxu0 0
  %9250 = vmatpush1.bf16.msra.mxu0 %v9178
  %9251 = vmatprep.subr.bf16.mxu0 0
  %9252 = vmatpush1.bf16.msra.mxu0 %v9179
  %9253 = vmatprep.subr.bf16.mxu0 0
  %9254 = vmatpush1.bf16.msra.mxu0 %v9237
  %9255 = vmatprep.subr.bf16.mxu0 0
  %9256 = vmatpush1.bf16.msra.mxu0 0
  %9257 = vmatprep.subr.bf16.mxu0 0
  %9258 = vmatpush1.bf16.msra.mxu0 0
  %9259 = vmatprep.subr.bf16.mxu0 0
  %9260 = vmatpush1.bf16.msra.mxu0 0
  %9261 = vmatprep.subr.bf16.mxu0 0
  %9262 = vmatpush1.bf16.msra.mxu0 0
  %9263 = vmatprep.subr.bf16.mxu0 0
  %9264 = vmatpush1.bf16.msra.mxu0 0
  %9265 = vmatprep.subr.bf16.mxu0 0
  %9266 = vmatpush1.bf16.msra.mxu0 0
  %9267 = vmatprep.subr.bf16.mxu0 0
  %9268 = vmatpush1.bf16.msra.mxu0 0
  %9269 = vmatprep.subr.bf16.mxu0 0
  %9270 = vmatpush1.bf16.msra.mxu0 0
  %9271 = vmatprep.mubr.bf16.mxu0 0
  %9272 = vmatmul.mubr.bf16.gmra.mrb[0].mxu0 %v9189
  %v9273 = vpop.f32.mrb[0].mxu0
  %v9274 = vadd.f32 0.0, %v9273
  %v9275 = vpop.f32.mrb[0].mxu0
  %v9276 = vpop.f32.mrb[0].mxu0
  %v9277 = vadd.f32 0.0, %v9276
  %v9278 = vpop.f32.mrb[0].mxu0
  %9279 = vmatprep.mubr.bf16.mxu0 0
  %9280 = vmatmul.mubr.bf16.gmra.mrb[0].mxu0 %v9192
  %v9281 = vpop.f32.mrb[0].mxu0
  %v9282 = vadd.f32 0.0, %v9281
  %v9283 = vpop.f32.mrb[0].mxu0
  %v9284 = vpop.f32.mrb[0].mxu0
  %v9285 = vadd.f32 0.0, %v9284
  %v9286 = vpop.f32.mrb[0].mxu0
  %9287 = vmatprep.mubr.bf16.mxu0 0
  %9288 = vmatmul.mubr.bf16.gmra.mrb[0].mxu0 %v9195
  %v9289 = vpop.f32.mrb[0].mxu0
  %v9290 = vadd.f32 0.0, %v9289
  %v9291 = vpop.f32.mrb[0].mxu0
  %v9292 = vpop.f32.mrb[0].mxu0
  %v9293 = vadd.f32 0.0, %v9292
  %v9294 = vpop.f32.mrb[0].mxu0
  %9295 = vmatprep.mubr.bf16.mxu0 0
  %9296 = vmatmul.mubr.bf16.gmra.mrb[0].mxu0 %v9198
  %v9297 = vpop.f32.mrb[0].mxu0
  %v9298 = vadd.f32 0.0, %v9297
  %v9299 = vpop.f32.mrb[0].mxu0
  %v9300 = vpop.f32.mrb[0].mxu0
  %v9301 = vadd.f32 0.0, %v9300
  %v9302 = vpop.f32.mrb[0].mxu0
  %9303 = vmatprep.mubr.bf16.mxu0 0
  %9304 = vmatmul.mubr.bf16.gmra.mrb[0].mxu0 %v9201
  %v9305 = vpop.f32.mrb[0].mxu0
  %v9306 = vadd.f32 0.0, %v9305
  %v9307 = vpop.f32.mrb[0].mxu0
  %v9308 = vpop.f32.mrb[0].mxu0
  %v9309 = vadd.f32 0.0, %v9308
  %v9310 = vpop.f32.mrb[0].mxu0
  %9311 = vmatprep.mubr.bf16.mxu0 0
  %9312 = vmatmul.mubr.bf16.gmra.mrb[0].mxu0 %v9204
  %v9313 = vpop.f32.mrb[0].mxu0
  %v9314 = vadd.f32 0.0, %v9313
  %v9315 = vpop.f32.mrb[0].mxu0
  %v9316 = vpop.f32.mrb[0].mxu0
  %v9317 = vadd.f32 0.0, %v9316
  %v9318 = vpop.f32.mrb[0].mxu0
  %9319 = vmatprep.mubr.bf16.mxu0 0
  %9320 = vmatmul.mubr.bf16.gmra.mrb[0].mxu0 %v9207
  %v9321 = vpop.f32.mrb[0].mxu0
  %v9322 = vadd.f32 0.0, %v9321
  %v9323 = vpop.f32.mrb[0].mxu0
  %v9324 = vpop.f32.mrb[0].mxu0
  %v9325 = vadd.f32 0.0, %v9324
  %v9326 = vpop.f32.mrb[0].mxu0
  %9327 = vmatprep.mubr.bf16.mxu0 0
  %9328 = vmatmul.mubr.bf16.gmra.mrb[0].mxu0 %v9210
  %v9329 = vpop.f32.mrb[0].mxu0
  %v9330 = vadd.f32 0.0, %v9329
  %v9331 = vpop.f32.mrb[0].mxu0
  %v9332 = vpop.f32.mrb[0].mxu0
  %v9333 = vadd.f32 0.0, %v9332
  %v9334 = vpop.f32.mrb[0].mxu0
  %9335 = vmatprep.mubr.bf16.mxu0 0
  %9336 = vmatmul.mubr.bf16.gmra.mrb[0].mxu0 %v9213
  %v9337 = vpop.f32.mrb[0].mxu0
  %v9338 = vadd.f32 0.0, %v9337
  %v9339 = vpop.f32.mrb[0].mxu0
  %v9340 = vpop.f32.mrb[0].mxu0
  %v9341 = vadd.f32 0.0, %v9340
  %v9342 = vpop.f32.mrb[0].mxu0
  %9343 = vmatprep.mubr.bf16.mxu0 0
  %9344 = vmatmul.mubr.bf16.gmra.mrb[0].mxu0 %v9216
  %v9345 = vpop.f32.mrb[0].mxu0
  %v9346 = vadd.f32 0.0, %v9345
  %v9347 = vpop.f32.mrb[0].mxu0
  %v9348 = vpop.f32.mrb[0].mxu0
  %v9349 = vadd.f32 0.0, %v9348
  %v9350 = vpop.f32.mrb[0].mxu0
  %9351 = vmatprep.mubr.bf16.mxu0 0
  %9352 = vmatmul.mubr.bf16.gmra.mrb[0].mxu0 %v9219
  %v9353 = vpop.f32.mrb[0].mxu0
  %v9354 = vadd.f32 0.0, %v9353
  %v9355 = vpop.f32.mrb[0].mxu0
  %v9356 = vpop.f32.mrb[0].mxu0
  %v9357 = vadd.f32 0.0, %v9356
  %v9358 = vpop.f32.mrb[0].mxu0
  %9359 = vmatprep.mubr.bf16.mxu0 0
  %9360 = vmatmul.mubr.bf16.gmra.mrb[0].mxu0 %v9222
  %v9361 = vpop.f32.mrb[0].mxu0
  %v9362 = vadd.f32 0.0, %v9361
  %v9363 = vpop.f32.mrb[0].mxu0
  %v9364 = vpop.f32.mrb[0].mxu0
  %v9365 = vadd.f32 0.0, %v9364
  %v9366 = vpop.f32.mrb[0].mxu0
  %9367 = vmatprep.mubr.bf16.mxu0 0
  %9368 = vmatmul.mubr.bf16.gmra.mrb[0].mxu0 %v9225
  %v9369 = vpop.f32.mrb[0].mxu0
  %v9370 = vadd.f32 0.0, %v9369
  %v9371 = vpop.f32.mrb[0].mxu0
  %v9372 = vpop.f32.mrb[0].mxu0
  %v9373 = vadd.f32 0.0, %v9372
  %v9374 = vpop.f32.mrb[0].mxu0
  %9375 = vmatprep.mubr.bf16.mxu0 0
  %9376 = vmatmul.mubr.bf16.gmra.mrb[0].mxu0 %v9228
  %v9377 = vpop.f32.mrb[0].mxu0
  %v9378 = vadd.f32 0.0, %v9377
  %v9379 = vpop.f32.mrb[0].mxu0
  %v9380 = vpop.f32.mrb[0].mxu0
  %v9381 = vadd.f32 0.0, %v9380
  %v9382 = vpop.f32.mrb[0].mxu0
  %9383 = vmatprep.mubr.bf16.mxu0 0
  %9384 = vmatmul.mubr.bf16.gmra.mrb[0].mxu0 %v9231
  %v9385 = vpop.f32.mrb[0].mxu0
  %v9386 = vadd.f32 0.0, %v9385
  %v9387 = vpop.f32.mrb[0].mxu0
  %v9388 = vpop.f32.mrb[0].mxu0
  %v9389 = vadd.f32 0.0, %v9388
  %v9390 = vpop.f32.mrb[0].mxu0
  %9391 = vmatprep.mubr.bf16.mxu0 0
  %9392 = vmatmul.mubr.bf16.gmra.mrb[0].mxu0 %v9234
  %v9393 = vpop.f32.mrb[0].mxu0
  %v9394 = vadd.f32 0.0, %v9393
  %v9395 = vpop.f32.mrb[0].mxu0
  %v9396 = vpop.f32.mrb[0].mxu0
  %v9397 = vadd.f32 0.0, %v9396
  %v9398 = vpop.f32.mrb[0].mxu0
  %9399 = vdwg.mxu0
  %v9400 = vadd.f32 %v8693, %v9274
  %v9401 = vadd.f32 %v8694, %v9277
  %v9402 = vadd.f32 %v8695, %v9282
  %v9403 = vadd.f32 %v8696, %v9285
  %v9404 = vadd.f32 %v8697, %v9290
  %v9405 = vadd.f32 %v8698, %v9293
  %v9406 = vadd.f32 %v8699, %v9298
  %v9407 = vadd.f32 %v8700, %v9301
  %v9408 = vadd.f32 %v8701, %v9306
  %v9409 = vadd.f32 %v8702, %v9309
  %v9410 = vadd.f32 %v8703, %v9314
  %v9411 = vadd.f32 %v8704, %v9317
  %v9412 = vadd.f32 %v8705, %v9322
  %v9413 = vadd.f32 %v8706, %v9325
  %v9414 = vadd.f32 %v8707, %v9330
  %v9415 = vadd.f32 %v8708, %v9333
  %v9416 = vadd.f32 %v8709, %v9338
  %v9417 = vadd.f32 %v8710, %v9341
  %v9418 = vadd.f32 %v8711, %v9346
  %v9419 = vadd.f32 %v8712, %v9349
  %v9420 = vadd.f32 %v8713, %v9354
  %v9421 = vadd.f32 %v8714, %v9357
  %v9422 = vadd.f32 %v8715, %v9362
  %v9423 = vadd.f32 %v8716, %v9365
  %v9424 = vadd.f32 %v8717, %v9370
  %v9425 = vadd.f32 %v8718, %v9373
  %v9426 = vadd.f32 %v8719, %v9378
  %v9427 = vadd.f32 %v8720, %v9381
  %v9428 = vadd.f32 %v8721, %v9386
  %v9429 = vadd.f32 %v8722, %v9389
  %v9430 = vadd.f32 %v8723, %v9394
  %v9431 = vadd.f32 %v8724, %v9397
  %s9432 = scalar_lea.vmem %s5, 180
  %v9433 = vld [vmem:[%s9432] sm:$0xf]
  %v9434 = vld [vmem:[%s9432 + $0x4] sm:$0xf]
  %v9435 = vld [vmem:[%s9432 + $0x8] sm:$0xf]
  %v9436 = vld [vmem:[%s9432 + $0xc] sm:$0xf]
  %v9437 = vld [vmem:[%s9432 + $0x10] sm:$0xf]
  %v9438 = vld [vmem:[%s9432 + $0x14] sm:$0xf]
  %v9439 = vld [vmem:[%s9432 + $0x18] sm:$0xf]
  %v9440 = vld [vmem:[%s9432 + $0x1c] sm:$0xf]
  %v9441 = vld [vmem:[%s9432 + $0x20] sm:$0xf]
  %v9442 = vld [vmem:[%s9432 + $0x24] sm:$0xf]
  %v9443 = vld [vmem:[%s9432 + $0x28] sm:$0xf]
  %v9444 = vld [vmem:[%s9432 + $0x2c] sm:$0xf]
  %v9445 = vld [vmem:[%s9432 + $0x30] sm:$0xf]
  %v9446 = vld [vmem:[%s9432 + $0x34] sm:$0xf]
  %v9447 = vld [vmem:[%s9432 + $0x38] sm:$0xf]
  %v9463 = vunpack.c.l.b16 %v9433
  %v9464 = vunpack.c.l.b16 %v9434
  %v9465 = vunpack.c.l.b16 %v9435
  %v9466 = vunpack.c.l.b16 %v9436
  %v9467 = vunpack.c.l.b16 %v9437
  %v9468 = vunpack.c.l.b16 %v9438
  %v9469 = vunpack.c.l.b16 %v9439
  %v9470 = vunpack.c.l.b16 %v9440
  %v9471 = vunpack.c.l.b16 %v9441
  %v9472 = vunpack.c.l.b16 %v9442
  %v9473 = vunpack.c.l.b16 %v9443
  %v9474 = vunpack.c.l.b16 %v9444
  %v9475 = vunpack.c.l.b16 %v9445
  %v9476 = vunpack.c.l.b16 %v9446
  %v9477 = vunpack.c.l.b16 %v9447
  %v9478 = vpack.c.b16 %v9464, %v9463
  %v9479 = vpack.c.b16 %v9466, %v9465
  %v9480 = vpack.c.b16 %v9468, %v9467
  %v9481 = vpack.c.b16 %v9470, %v9469
  %v9482 = vpack.c.b16 %v9472, %v9471
  %v9483 = vpack.c.b16 %v9474, %v9473
  %v9484 = vpack.c.b16 %v9476, %v9475
  %v9485 = vpack.c.b16 %v9477, %v9477
  %v9494 = vsel %vm7420, %v9485, 0
  %9496 = vmatprep.subr.bf16.mxu0 0
  %9497 = vmatpush1.bf16.msra.mxu0 %v9478
  %9498 = vmatprep.subr.bf16.mxu0 0
  %9499 = vmatpush1.bf16.msra.mxu0 %v9479
  %9500 = vmatprep.subr.bf16.mxu0 0
  %9501 = vmatpush1.bf16.msra.mxu0 %v9480
  %9502 = vmatprep.subr.bf16.mxu0 0
  %9503 = vmatpush1.bf16.msra.mxu0 %v9481
  %9504 = vmatprep.subr.bf16.mxu0 0
  %9505 = vmatpush1.bf16.msra.mxu0 %v9482
  %9506 = vmatprep.subr.bf16.mxu0 0
  %9507 = vmatpush1.bf16.msra.mxu0 %v9483
  %9508 = vmatprep.subr.bf16.mxu0 0
  %9509 = vmatpush1.bf16.msra.mxu0 %v9484
  %9510 = vmatprep.subr.bf16.mxu0 0
  %9511 = vmatpush1.bf16.msra.mxu0 %v9494
  %9512 = vmatprep.subr.bf16.mxu0 0
  %9513 = vmatpush1.bf16.msra.mxu0 0
  %9514 = vmatprep.subr.bf16.mxu0 0
  %9515 = vmatpush1.bf16.msra.mxu0 0
  %9516 = vmatprep.subr.bf16.mxu0 0
  %9517 = vmatpush1.bf16.msra.mxu0 0
  %9518 = vmatprep.subr.bf16.mxu0 0
  %9519 = vmatpush1.bf16.msra.mxu0 0
  %9520 = vmatprep.subr.bf16.mxu0 0
  %9521 = vmatpush1.bf16.msra.mxu0 0
  %9522 = vmatprep.subr.bf16.mxu0 0
  %9523 = vmatpush1.bf16.msra.mxu0 0
  %9524 = vmatprep.subr.bf16.mxu0 0
  %9525 = vmatpush1.bf16.msra.mxu0 0
  %9526 = vmatprep.subr.bf16.mxu0 0
  %9527 = vmatpush1.bf16.msra.mxu0 0
  %9528 = vmatprep.mubr.bf16.mxu0 0
  %9529 = vmatmul.mubr.bf16.gmra.mrb[0].mxu0 %v9189
  %v9530 = vpop.f32.mrb[0].mxu0
  %v9531 = vadd.f32 0.0, %v9530
  %v9532 = vpop.f32.mrb[0].mxu0
  %v9533 = vpop.f32.mrb[0].mxu0
  %v9534 = vadd.f32 0.0, %v9533
  %v9535 = vpop.f32.mrb[0].mxu0
  %9536 = vmatprep.mubr.bf16.mxu0 0
  %9537 = vmatmul.mubr.bf16.gmra.mrb[0].mxu0 %v9192
  %v9538 = vpop.f32.mrb[0].mxu0
  %v9539 = vadd.f32 0.0, %v9538
  %v9540 = vpop.f32.mrb[0].mxu0
  %v9541 = vpop.f32.mrb[0].mxu0
  %v9542 = vadd.f32 0.0, %v9541
  %v9543 = vpop.f32.mrb[0].mxu0
  %9544 = vmatprep.mubr.bf16.mxu0 0
  %9545 = vmatmul.mubr.bf16.gmra.mrb[0].mxu0 %v9195
  %v9546 = vpop.f32.mrb[0].mxu0
  %v9547 = vadd.f32 0.0, %v9546
  %v9548 = vpop.f32.mrb[0].mxu0
  %v9549 = vpop.f32.mrb[0].mxu0
  %v9550 = vadd.f32 0.0, %v9549
  %v9551 = vpop.f32.mrb[0].mxu0
  %9552 = vmatprep.mubr.bf16.mxu0 0
  %9553 = vmatmul.mubr.bf16.gmra.mrb[0].mxu0 %v9198
  %v9554 = vpop.f32.mrb[0].mxu0
  %v9555 = vadd.f32 0.0, %v9554
  %v9556 = vpop.f32.mrb[0].mxu0
  %v9557 = vpop.f32.mrb[0].mxu0
  %v9558 = vadd.f32 0.0, %v9557
  %v9559 = vpop.f32.mrb[0].mxu0
  %9560 = vmatprep.mubr.bf16.mxu0 0
  %9561 = vmatmul.mubr.bf16.gmra.mrb[0].mxu0 %v9201
  %v9562 = vpop.f32.mrb[0].mxu0
  %v9563 = vadd.f32 0.0, %v9562
  %v9564 = vpop.f32.mrb[0].mxu0
  %v9565 = vpop.f32.mrb[0].mxu0
  %v9566 = vadd.f32 0.0, %v9565
  %v9567 = vpop.f32.mrb[0].mxu0
  %9568 = vmatprep.mubr.bf16.mxu0 0
  %9569 = vmatmul.mubr.bf16.gmra.mrb[0].mxu0 %v9204
  %v9570 = vpop.f32.mrb[0].mxu0
  %v9571 = vadd.f32 0.0, %v9570
  %v9572 = vpop.f32.mrb[0].mxu0
  %v9573 = vpop.f32.mrb[0].mxu0
  %v9574 = vadd.f32 0.0, %v9573
  %v9575 = vpop.f32.mrb[0].mxu0
  %9576 = vmatprep.mubr.bf16.mxu0 0
  %9577 = vmatmul.mubr.bf16.gmra.mrb[0].mxu0 %v9207
  %v9578 = vpop.f32.mrb[0].mxu0
  %v9579 = vadd.f32 0.0, %v9578
  %v9580 = vpop.f32.mrb[0].mxu0
  %v9581 = vpop.f32.mrb[0].mxu0
  %v9582 = vadd.f32 0.0, %v9581
  %v9583 = vpop.f32.mrb[0].mxu0
  %9584 = vmatprep.mubr.bf16.mxu0 0
  %9585 = vmatmul.mubr.bf16.gmra.mrb[0].mxu0 %v9210
  %v9586 = vpop.f32.mrb[0].mxu0
  %v9587 = vadd.f32 0.0, %v9586
  %v9588 = vpop.f32.mrb[0].mxu0
  %v9589 = vpop.f32.mrb[0].mxu0
  %v9590 = vadd.f32 0.0, %v9589
  %v9591 = vpop.f32.mrb[0].mxu0
  %9592 = vmatprep.mubr.bf16.mxu0 0
  %9593 = vmatmul.mubr.bf16.gmra.mrb[0].mxu0 %v9213
  %v9594 = vpop.f32.mrb[0].mxu0
  %v9595 = vadd.f32 0.0, %v9594
  %v9596 = vpop.f32.mrb[0].mxu0
  %v9597 = vpop.f32.mrb[0].mxu0
  %v9598 = vadd.f32 0.0, %v9597
  %v9599 = vpop.f32.mrb[0].mxu0
  %9600 = vmatprep.mubr.bf16.mxu0 0
  %9601 = vmatmul.mubr.bf16.gmra.mrb[0].mxu0 %v9216
  %v9602 = vpop.f32.mrb[0].mxu0
  %v9603 = vadd.f32 0.0, %v9602
  %v9604 = vpop.f32.mrb[0].mxu0
  %v9605 = vpop.f32.mrb[0].mxu0
  %v9606 = vadd.f32 0.0, %v9605
  %v9607 = vpop.f32.mrb[0].mxu0
  %9608 = vmatprep.mubr.bf16.mxu0 0
  %9609 = vmatmul.mubr.bf16.gmra.mrb[0].mxu0 %v9219
  %v9610 = vpop.f32.mrb[0].mxu0
  %v9611 = vadd.f32 0.0, %v9610
  %v9612 = vpop.f32.mrb[0].mxu0
  %v9613 = vpop.f32.mrb[0].mxu0
  %v9614 = vadd.f32 0.0, %v9613
  %v9615 = vpop.f32.mrb[0].mxu0
  %9616 = vmatprep.mubr.bf16.mxu0 0
  %9617 = vmatmul.mubr.bf16.gmra.mrb[0].mxu0 %v9222
  %v9618 = vpop.f32.mrb[0].mxu0
  %v9619 = vadd.f32 0.0, %v9618
  %v9620 = vpop.f32.mrb[0].mxu0
  %v9621 = vpop.f32.mrb[0].mxu0
  %v9622 = vadd.f32 0.0, %v9621
  %v9623 = vpop.f32.mrb[0].mxu0
  %9624 = vmatprep.mubr.bf16.mxu0 0
  %9625 = vmatmul.mubr.bf16.gmra.mrb[0].mxu0 %v9225
  %v9626 = vpop.f32.mrb[0].mxu0
  %v9627 = vadd.f32 0.0, %v9626
  %v9628 = vpop.f32.mrb[0].mxu0
  %v9629 = vpop.f32.mrb[0].mxu0
  %v9630 = vadd.f32 0.0, %v9629
  %v9631 = vpop.f32.mrb[0].mxu0
  %9632 = vmatprep.mubr.bf16.mxu0 0
  %9633 = vmatmul.mubr.bf16.gmra.mrb[0].mxu0 %v9228
  %v9634 = vpop.f32.mrb[0].mxu0
  %v9635 = vadd.f32 0.0, %v9634
  %v9636 = vpop.f32.mrb[0].mxu0
  %v9637 = vpop.f32.mrb[0].mxu0
  %v9638 = vadd.f32 0.0, %v9637
  %v9639 = vpop.f32.mrb[0].mxu0
  %9640 = vmatprep.mubr.bf16.mxu0 0
  %9641 = vmatmul.mubr.bf16.gmra.mrb[0].mxu0 %v9231
  %v9642 = vpop.f32.mrb[0].mxu0
  %v9643 = vadd.f32 0.0, %v9642
  %v9644 = vpop.f32.mrb[0].mxu0
  %v9645 = vpop.f32.mrb[0].mxu0
  %v9646 = vadd.f32 0.0, %v9645
  %v9647 = vpop.f32.mrb[0].mxu0
  %9648 = vmatprep.mubr.bf16.mxu0 0
  %9649 = vmatmul.mubr.bf16.gmra.mrb[0].mxu0 %v9234
  %v9650 = vpop.f32.mrb[0].mxu0
  %v9651 = vadd.f32 0.0, %v9650
  %v9652 = vpop.f32.mrb[0].mxu0
  %v9653 = vpop.f32.mrb[0].mxu0
  %v9654 = vadd.f32 0.0, %v9653
  %v9655 = vpop.f32.mrb[0].mxu0
  %9656 = vdwg.mxu0
  %v9657 = vadd.f32 %v8950, %v9531
  %v9658 = vadd.f32 %v8951, %v9534
  %v9659 = vadd.f32 %v8952, %v9539
  %v9660 = vadd.f32 %v8953, %v9542
  %v9661 = vadd.f32 %v8954, %v9547
  %v9662 = vadd.f32 %v8955, %v9550
  %v9663 = vadd.f32 %v8956, %v9555
  %v9664 = vadd.f32 %v8957, %v9558
  %v9665 = vadd.f32 %v8958, %v9563
  %v9666 = vadd.f32 %v8959, %v9566
  %v9667 = vadd.f32 %v8960, %v9571
  %v9668 = vadd.f32 %v8961, %v9574
  %v9669 = vadd.f32 %v8962, %v9579
  %v9670 = vadd.f32 %v8963, %v9582
  %v9671 = vadd.f32 %v8964, %v9587
  %v9672 = vadd.f32 %v8965, %v9590
  %v9673 = vadd.f32 %v8966, %v9595
  %v9674 = vadd.f32 %v8967, %v9598
  %v9675 = vadd.f32 %v8968, %v9603
  %v9676 = vadd.f32 %v8969, %v9606
  %v9677 = vadd.f32 %v8970, %v9611
  %v9678 = vadd.f32 %v8971, %v9614
  %v9679 = vadd.f32 %v8972, %v9619
  %v9680 = vadd.f32 %v8973, %v9622
  %v9681 = vadd.f32 %v8974, %v9627
  %v9682 = vadd.f32 %v8975, %v9630
  %v9683 = vadd.f32 %v8976, %v9635
  %v9684 = vadd.f32 %v8977, %v9638
  %v9685 = vadd.f32 %v8978, %v9643
  %v9686 = vadd.f32 %v8979, %v9646
  %v9687 = vadd.f32 %v8980, %v9651
  %v9688 = vadd.f32 %v8981, %v9654
  %v9689 = vrot.slane %v6992, 4
  %v9690 = vrot.slane %v6993, 4
  %v9691 = vsel %vm7420, %v9689, %v9690
  %v9692 = vrot.slane %v6994, 4
  %v9693 = vrot.slane %v6995, 4
  %v9694 = vsel %vm7420, %v9692, %v9693
  %v9695 = vrot.slane %v6996, 4
  %v9696 = vrot.slane %v6997, 4
  %v9697 = vsel %vm7420, %v9695, %v9696
  %v9698 = vrot.slane %v6998, 4
  %v9699 = vrot.slane %v6999, 4
  %v9700 = vsel %vm7420, %v9698, %v9699
  %v9701 = vrot.slane %v7000, 4
  %v9702 = vrot.slane %v7001, 4
  %v9703 = vsel %vm7420, %v9701, %v9702
  %v9704 = vrot.slane %v7002, 4
  %v9705 = vrot.slane %v7003, 4
  %v9706 = vsel %vm7420, %v9704, %v9705
  %v9707 = vrot.slane %v7004, 4
  %v9708 = vrot.slane %v7005, 4
  %v9709 = vsel %vm7420, %v9707, %v9708
  %v9710 = vrot.slane %v7006, 4
  %v9711 = vrot.slane %v7007, 4
  %v9712 = vsel %vm7420, %v9710, %v9711
  %v9713 = vrot.slane %v7008, 4
  %v9714 = vrot.slane %v7009, 4
  %v9715 = vsel %vm7420, %v9713, %v9714
  %v9716 = vrot.slane %v7010, 4
  %v9717 = vrot.slane %v7011, 4
  %v9718 = vsel %vm7420, %v9716, %v9717
  %v9719 = vrot.slane %v7012, 4
  %v9720 = vrot.slane %v7013, 4
  %v9721 = vsel %vm7420, %v9719, %v9720
  %v9722 = vrot.slane %v7014, 4
  %v9723 = vrot.slane %v7015, 4
  %v9724 = vsel %vm7420, %v9722, %v9723
  %v9725 = vrot.slane %v7016, 4
  %v9726 = vrot.slane %v7017, 4
  %v9727 = vsel %vm7420, %v9725, %v9726
  %v9728 = vrot.slane %v7018, 4
  %v9729 = vrot.slane %v7019, 4
  %v9730 = vsel %vm7420, %v9728, %v9729
  %v9731 = vrot.slane %v7020, 4
  %v9732 = vrot.slane %v7021, 4
  %v9733 = vsel %vm7420, %v9731, %v9732
  %v9734 = vrot.slane %v7022, 4
  %v9735 = vrot.slane %v7023, 4
  %v9736 = vsel %vm7420, %v9734, %v9735
  %v9737 = vrot.slane %v7024, 4
  %v9738 = vrot.slane %v7025, 4
  %v9739 = vsel %vm7420, %v9737, %v9738
  %v9740 = vrot.slane %v7026, 4
  %v9741 = vrot.slane %v7027, 4
  %v9742 = vsel %vm7420, %v9740, %v9741
  %v9743 = vrot.slane %v7028, 4
  %v9744 = vrot.slane %v7029, 4
  %v9745 = vsel %vm7420, %v9743, %v9744
  %v9746 = vrot.slane %v7030, 4
  %v9747 = vrot.slane %v7031, 4
  %v9748 = vsel %vm7420, %v9746, %v9747
  %v9749 = vrot.slane %v7032, 4
  %v9750 = vrot.slane %v7033, 4
  %v9751 = vsel %vm7420, %v9749, %v9750
  %v9752 = vrot.slane %v7034, 4
  %v9753 = vrot.slane %v7035, 4
  %v9754 = vsel %vm7420, %v9752, %v9753
  %v9755 = vrot.slane %v7036, 4
  %v9756 = vrot.slane %v7037, 4
  %v9757 = vsel %vm7420, %v9755, %v9756
  %v9758 = vrot.slane %v7038, 4
  %v9759 = vrot.slane %v7039, 4
  %v9760 = vsel %vm7420, %v9758, %v9759
  %v9761 = vrot.slane %v7040, 4
  %v9762 = vrot.slane %v7041, 4
  %v9763 = vsel %vm7420, %v9761, %v9762
  %v9764 = vrot.slane %v7042, 4
  %v9765 = vrot.slane %v7043, 4
  %v9766 = vsel %vm7420, %v9764, %v9765
  %v9767 = vrot.slane %v7044, 4
  %v9768 = vrot.slane %v7045, 4
  %v9769 = vsel %vm7420, %v9767, %v9768
  %v9770 = vrot.slane %v7046, 4
  %v9771 = vrot.slane %v7047, 4
  %v9772 = vsel %vm7420, %v9770, %v9771
  %v9773 = vrot.slane %v7048, 4
  %v9774 = vrot.slane %v7049, 4
  %v9775 = vsel %vm7420, %v9773, %v9774
  %v9776 = vrot.slane %v7050, 4
  %v9777 = vrot.slane %v7051, 4
  %v9778 = vsel %vm7420, %v9776, %v9777
  %v9779 = vrot.slane %v7052, 4
  %v9780 = vrot.slane %v7053, 4
  %v9781 = vsel %vm7420, %v9779, %v9780
  %v9782 = vrot.slane %v7054, 4
  %v9783 = vrot.slane %v7055, 4
  %v9784 = vsel %vm7420, %v9782, %v9783
  %v9817 = vpack.c.bf16 %v9694, %v9691
  %v9818 = vpack.c.bf16 %v9700, %v9697
  %v9819 = vpack.c.bf16 %v9706, %v9703
  %v9820 = vpack.c.bf16 %v9712, %v9709
  %v9821 = vpack.c.bf16 %v9718, %v9715
  %v9822 = vpack.c.bf16 %v9724, %v9721
  %v9823 = vpack.c.bf16 %v9730, %v9727
  %v9824 = vpack.c.bf16 %v9736, %v9733
  %v9825 = vpack.c.bf16 %v9742, %v9739
  %v9826 = vpack.c.bf16 %v9748, %v9745
  %v9827 = vpack.c.bf16 %v9754, %v9751
  %v9828 = vpack.c.bf16 %v9760, %v9757
  %v9829 = vpack.c.bf16 %v9766, %v9763
  %v9830 = vpack.c.bf16 %v9772, %v9769
  %v9831 = vpack.c.bf16 %v9778, %v9775
  %v9832 = vpack.c.bf16 %v9784, %v9781
  %s9833 = scalar_lea.vmem %s4, 240
  %v9834 = vld [vmem:[%s9833] sm:$0xf]
  %v9835 = vld [vmem:[%s9833 + $0x4] sm:$0xf]
  %v9836 = vld [vmem:[%s9833 + $0x8] sm:$0xf]
  %v9837 = vld [vmem:[%s9833 + $0xc] sm:$0xf]
  %v9838 = vld [vmem:[%s9833 + $0x10] sm:$0xf]
  %v9839 = vld [vmem:[%s9833 + $0x14] sm:$0xf]
  %v9840 = vld [vmem:[%s9833 + $0x18] sm:$0xf]
  %v9841 = vld [vmem:[%s9833 + $0x1c] sm:$0xf]
  %v9842 = vld [vmem:[%s9833 + $0x20] sm:$0xf]
  %v9843 = vld [vmem:[%s9833 + $0x24] sm:$0xf]
  %v9844 = vld [vmem:[%s9833 + $0x28] sm:$0xf]
  %v9845 = vld [vmem:[%s9833 + $0x2c] sm:$0xf]
  %v9846 = vld [vmem:[%s9833 + $0x30] sm:$0xf]
  %v9847 = vld [vmem:[%s9833 + $0x34] sm:$0xf]
  %v9848 = vld [vmem:[%s9833 + $0x38] sm:$0xf]
  %v9864 = vunpack.c.l.b16 %v9834
  %v9865 = vunpack.c.l.b16 %v9835
  %v9866 = vunpack.c.l.b16 %v9836
  %v9867 = vunpack.c.l.b16 %v9837
  %v9868 = vunpack.c.l.b16 %v9838
  %v9869 = vunpack.c.l.b16 %v9839
  %v9870 = vunpack.c.l.b16 %v9840
  %v9871 = vunpack.c.l.b16 %v9841
  %v9872 = vunpack.c.l.b16 %v9842
  %v9873 = vunpack.c.l.b16 %v9843
  %v9874 = vunpack.c.l.b16 %v9844
  %v9875 = vunpack.c.l.b16 %v9845
  %v9876 = vunpack.c.l.b16 %v9846
  %v9877 = vunpack.c.l.b16 %v9847
  %v9878 = vunpack.c.l.b16 %v9848
  %v9879 = vpack.c.b16 %v9865, %v9864
  %v9880 = vpack.c.b16 %v9867, %v9866
  %v9881 = vpack.c.b16 %v9869, %v9868
  %v9882 = vpack.c.b16 %v9871, %v9870
  %v9883 = vpack.c.b16 %v9873, %v9872
  %v9884 = vpack.c.b16 %v9875, %v9874
  %v9885 = vpack.c.b16 %v9877, %v9876
  %v9886 = vpack.c.b16 %v9878, %v9878
  %v9895 = vsel %vm6505, %v9817, 0
  %v9898 = vsel %vm6505, %v9818, 0
  %v9901 = vsel %vm6505, %v9819, 0
  %v9904 = vsel %vm6505, %v9820, 0
  %v9907 = vsel %vm6505, %v9821, 0
  %v9910 = vsel %vm6505, %v9822, 0
  %v9913 = vsel %vm6505, %v9823, 0
  %v9916 = vsel %vm6505, %v9824, 0
  %v9919 = vsel %vm6505, %v9825, 0
  %v9922 = vsel %vm6505, %v9826, 0
  %v9925 = vsel %vm6505, %v9827, 0
  %v9928 = vsel %vm6505, %v9828, 0
  %v9931 = vsel %vm6505, %v9829, 0
  %v9934 = vsel %vm6505, %v9830, 0
  %v9937 = vsel %vm6505, %v9831, 0
  %v9940 = vsel %vm6505, %v9832, 0
  %v9943 = vsel %vm7420, %v9886, 0
  %9945 = vmatprep.subr.bf16.mxu0 0
  %9946 = vmatpush1.bf16.msra.mxu0 %v9879
  %9947 = vmatprep.subr.bf16.mxu0 0
  %9948 = vmatpush1.bf16.msra.mxu0 %v9880
  %9949 = vmatprep.subr.bf16.mxu0 0
  %9950 = vmatpush1.bf16.msra.mxu0 %v9881
  %9951 = vmatprep.subr.bf16.mxu0 0
  %9952 = vmatpush1.bf16.msra.mxu0 %v9882
  %9953 = vmatprep.subr.bf16.mxu0 0
  %9954 = vmatpush1.bf16.msra.mxu0 %v9883
  %9955 = vmatprep.subr.bf16.mxu0 0
  %9956 = vmatpush1.bf16.msra.mxu0 %v9884
  %9957 = vmatprep.subr.bf16.mxu0 0
  %9958 = vmatpush1.bf16.msra.mxu0 %v9885
  %9959 = vmatprep.subr.bf16.mxu0 0
  %9960 = vmatpush1.bf16.msra.mxu0 %v9943
  %9961 = vmatprep.subr.bf16.mxu0 0
  %9962 = vmatpush1.bf16.msra.mxu0 0
  %9963 = vmatprep.subr.bf16.mxu0 0
  %9964 = vmatpush1.bf16.msra.mxu0 0
  %9965 = vmatprep.subr.bf16.mxu0 0
  %9966 = vmatpush1.bf16.msra.mxu0 0
  %9967 = vmatprep.subr.bf16.mxu0 0
  %9968 = vmatpush1.bf16.msra.mxu0 0
  %9969 = vmatprep.subr.bf16.mxu0 0
  %9970 = vmatpush1.bf16.msra.mxu0 0
  %9971 = vmatprep.subr.bf16.mxu0 0
  %9972 = vmatpush1.bf16.msra.mxu0 0
  %9973 = vmatprep.subr.bf16.mxu0 0
  %9974 = vmatpush1.bf16.msra.mxu0 0
  %9975 = vmatprep.subr.bf16.mxu0 0
  %9976 = vmatpush1.bf16.msra.mxu0 0
  %9977 = vmatprep.mubr.bf16.mxu0 0
  %9978 = vmatmul.mubr.bf16.gmra.mrb[0].mxu0 %v9895
  %v9979 = vpop.f32.mrb[0].mxu0
  %v9980 = vadd.f32 0.0, %v9979
  %v9981 = vpop.f32.mrb[0].mxu0
  %v9982 = vpop.f32.mrb[0].mxu0
  %v9983 = vadd.f32 0.0, %v9982
  %v9984 = vpop.f32.mrb[0].mxu0
  %9985 = vmatprep.mubr.bf16.mxu0 0
  %9986 = vmatmul.mubr.bf16.gmra.mrb[0].mxu0 %v9898
  %v9987 = vpop.f32.mrb[0].mxu0
  %v9988 = vadd.f32 0.0, %v9987
  %v9989 = vpop.f32.mrb[0].mxu0
  %v9990 = vpop.f32.mrb[0].mxu0
  %v9991 = vadd.f32 0.0, %v9990
  %v9992 = vpop.f32.mrb[0].mxu0
  %9993 = vmatprep.mubr.bf16.mxu0 0
  %9994 = vmatmul.mubr.bf16.gmra.mrb[0].mxu0 %v9901
  %v9995 = vpop.f32.mrb[0].mxu0
  %v9996 = vadd.f32 0.0, %v9995
  %v9997 = vpop.f32.mrb[0].mxu0
  %v9998 = vpop.f32.mrb[0].mxu0
  %v9999 = vadd.f32 0.0, %v9998
  %v10000 = vpop.f32.mrb[0].mxu0
  %10001 = vmatprep.mubr.bf16.mxu0 0
  %10002 = vmatmul.mubr.bf16.gmra.mrb[0].mxu0 %v9904
  %v10003 = vpop.f32.mrb[0].mxu0
  %v10004 = vadd.f32 0.0, %v10003
  %v10005 = vpop.f32.mrb[0].mxu0
  %v10006 = vpop.f32.mrb[0].mxu0
  %v10007 = vadd.f32 0.0, %v10006
  %v10008 = vpop.f32.mrb[0].mxu0
  %10009 = vmatprep.mubr.bf16.mxu0 0
  %10010 = vmatmul.mubr.bf16.gmra.mrb[0].mxu0 %v9907
  %v10011 = vpop.f32.mrb[0].mxu0
  %v10012 = vadd.f32 0.0, %v10011
  %v10013 = vpop.f32.mrb[0].mxu0
  %v10014 = vpop.f32.mrb[0].mxu0
  %v10015 = vadd.f32 0.0, %v10014
  %v10016 = vpop.f32.mrb[0].mxu0
  %10017 = vmatprep.mubr.bf16.mxu0 0
  %10018 = vmatmul.mubr.bf16.gmra.mrb[0].mxu0 %v9910
  %v10019 = vpop.f32.mrb[0].mxu0
  %v10020 = vadd.f32 0.0, %v10019
  %v10021 = vpop.f32.mrb[0].mxu0
  %v10022 = vpop.f32.mrb[0].mxu0
  %v10023 = vadd.f32 0.0, %v10022
  %v10024 = vpop.f32.mrb[0].mxu0
  %10025 = vmatprep.mubr.bf16.mxu0 0
  %10026 = vmatmul.mubr.bf16.gmra.mrb[0].mxu0 %v9913
  %v10027 = vpop.f32.mrb[0].mxu0
  %v10028 = vadd.f32 0.0, %v10027
  %v10029 = vpop.f32.mrb[0].mxu0
  %v10030 = vpop.f32.mrb[0].mxu0
  %v10031 = vadd.f32 0.0, %v10030
  %v10032 = vpop.f32.mrb[0].mxu0
  %10033 = vmatprep.mubr.bf16.mxu0 0
  %10034 = vmatmul.mubr.bf16.gmra.mrb[0].mxu0 %v9916
  %v10035 = vpop.f32.mrb[0].mxu0
  %v10036 = vadd.f32 0.0, %v10035
  %v10037 = vpop.f32.mrb[0].mxu0
  %v10038 = vpop.f32.mrb[0].mxu0
  %v10039 = vadd.f32 0.0, %v10038
  %v10040 = vpop.f32.mrb[0].mxu0
  %10041 = vmatprep.mubr.bf16.mxu0 0
  %10042 = vmatmul.mubr.bf16.gmra.mrb[0].mxu0 %v9919
  %v10043 = vpop.f32.mrb[0].mxu0
  %v10044 = vadd.f32 0.0, %v10043
  %v10045 = vpop.f32.mrb[0].mxu0
  %v10046 = vpop.f32.mrb[0].mxu0
  %v10047 = vadd.f32 0.0, %v10046
  %v10048 = vpop.f32.mrb[0].mxu0
  %10049 = vmatprep.mubr.bf16.mxu0 0
  %10050 = vmatmul.mubr.bf16.gmra.mrb[0].mxu0 %v9922
  %v10051 = vpop.f32.mrb[0].mxu0
  %v10052 = vadd.f32 0.0, %v10051
  %v10053 = vpop.f32.mrb[0].mxu0
  %v10054 = vpop.f32.mrb[0].mxu0
  %v10055 = vadd.f32 0.0, %v10054
  %v10056 = vpop.f32.mrb[0].mxu0
  %10057 = vmatprep.mubr.bf16.mxu0 0
  %10058 = vmatmul.mubr.bf16.gmra.mrb[0].mxu0 %v9925
  %v10059 = vpop.f32.mrb[0].mxu0
  %v10060 = vadd.f32 0.0, %v10059
  %v10061 = vpop.f32.mrb[0].mxu0
  %v10062 = vpop.f32.mrb[0].mxu0
  %v10063 = vadd.f32 0.0, %v10062
  %v10064 = vpop.f32.mrb[0].mxu0
  %10065 = vmatprep.mubr.bf16.mxu0 0
  %10066 = vmatmul.mubr.bf16.gmra.mrb[0].mxu0 %v9928
  %v10067 = vpop.f32.mrb[0].mxu0
  %v10068 = vadd.f32 0.0, %v10067
  %v10069 = vpop.f32.mrb[0].mxu0
  %v10070 = vpop.f32.mrb[0].mxu0
  %v10071 = vadd.f32 0.0, %v10070
  %v10072 = vpop.f32.mrb[0].mxu0
  %10073 = vmatprep.mubr.bf16.mxu0 0
  %10074 = vmatmul.mubr.bf16.gmra.mrb[0].mxu0 %v9931
  %v10075 = vpop.f32.mrb[0].mxu0
  %v10076 = vadd.f32 0.0, %v10075
  %v10077 = vpop.f32.mrb[0].mxu0
  %v10078 = vpop.f32.mrb[0].mxu0
  %v10079 = vadd.f32 0.0, %v10078
  %v10080 = vpop.f32.mrb[0].mxu0
  %10081 = vmatprep.mubr.bf16.mxu0 0
  %10082 = vmatmul.mubr.bf16.gmra.mrb[0].mxu0 %v9934
  %v10083 = vpop.f32.mrb[0].mxu0
  %v10084 = vadd.f32 0.0, %v10083
  %v10085 = vpop.f32.mrb[0].mxu0
  %v10086 = vpop.f32.mrb[0].mxu0
  %v10087 = vadd.f32 0.0, %v10086
  %v10088 = vpop.f32.mrb[0].mxu0
  %10089 = vmatprep.mubr.bf16.mxu0 0
  %10090 = vmatmul.mubr.bf16.gmra.mrb[0].mxu0 %v9937
  %v10091 = vpop.f32.mrb[0].mxu0
  %v10092 = vadd.f32 0.0, %v10091
  %v10093 = vpop.f32.mrb[0].mxu0
  %v10094 = vpop.f32.mrb[0].mxu0
  %v10095 = vadd.f32 0.0, %v10094
  %v10096 = vpop.f32.mrb[0].mxu0
  %10097 = vmatprep.mubr.bf16.mxu0 0
  %10098 = vmatmul.mubr.bf16.gmra.mrb[0].mxu0 %v9940
  %v10099 = vpop.f32.mrb[0].mxu0
  %v10100 = vadd.f32 0.0, %v10099
  %v10101 = vpop.f32.mrb[0].mxu0
  %v10102 = vpop.f32.mrb[0].mxu0
  %v10103 = vadd.f32 0.0, %v10102
  %v10104 = vpop.f32.mrb[0].mxu0
  %10105 = vdwg.mxu0
  %v10106 = vadd.f32 %v9400, %v9980
  %v10107 = vadd.f32 %v9401, %v9983
  %v10108 = vadd.f32 %v9402, %v9988
  %v10109 = vadd.f32 %v9403, %v9991
  %v10110 = vadd.f32 %v9404, %v9996
  %v10111 = vadd.f32 %v9405, %v9999
  %v10112 = vadd.f32 %v9406, %v10004
  %v10113 = vadd.f32 %v9407, %v10007
  %v10114 = vadd.f32 %v9408, %v10012
  %v10115 = vadd.f32 %v9409, %v10015
  %v10116 = vadd.f32 %v9410, %v10020
  %v10117 = vadd.f32 %v9411, %v10023
  %v10118 = vadd.f32 %v9412, %v10028
  %v10119 = vadd.f32 %v9413, %v10031
  %v10120 = vadd.f32 %v9414, %v10036
  %v10121 = vadd.f32 %v9415, %v10039
  %v10122 = vadd.f32 %v9416, %v10044
  %v10123 = vadd.f32 %v9417, %v10047
  %v10124 = vadd.f32 %v9418, %v10052
  %v10125 = vadd.f32 %v9419, %v10055
  %v10126 = vadd.f32 %v9420, %v10060
  %v10127 = vadd.f32 %v9421, %v10063
  %v10128 = vadd.f32 %v9422, %v10068
  %v10129 = vadd.f32 %v9423, %v10071
  %v10130 = vadd.f32 %v9424, %v10076
  %v10131 = vadd.f32 %v9425, %v10079
  %v10132 = vadd.f32 %v9426, %v10084
  %v10133 = vadd.f32 %v9427, %v10087
  %v10134 = vadd.f32 %v9428, %v10092
  %v10135 = vadd.f32 %v9429, %v10095
  %v10136 = vadd.f32 %v9430, %v10100
  %v10137 = vadd.f32 %v9431, %v10103
  %s10138 = scalar_lea.vmem %s5, 240
  %v10139 = vld [vmem:[%s10138] sm:$0xf]
  %v10140 = vld [vmem:[%s10138 + $0x4] sm:$0xf]
  %v10141 = vld [vmem:[%s10138 + $0x8] sm:$0xf]
  %v10142 = vld [vmem:[%s10138 + $0xc] sm:$0xf]
  %v10143 = vld [vmem:[%s10138 + $0x10] sm:$0xf]
  %v10144 = vld [vmem:[%s10138 + $0x14] sm:$0xf]
  %v10145 = vld [vmem:[%s10138 + $0x18] sm:$0xf]
  %v10146 = vld [vmem:[%s10138 + $0x1c] sm:$0xf]
  %v10147 = vld [vmem:[%s10138 + $0x20] sm:$0xf]
  %v10148 = vld [vmem:[%s10138 + $0x24] sm:$0xf]
  %v10149 = vld [vmem:[%s10138 + $0x28] sm:$0xf]
  %v10150 = vld [vmem:[%s10138 + $0x2c] sm:$0xf]
  %v10151 = vld [vmem:[%s10138 + $0x30] sm:$0xf]
  %v10152 = vld [vmem:[%s10138 + $0x34] sm:$0xf]
  %v10153 = vld [vmem:[%s10138 + $0x38] sm:$0xf]
  %v10169 = vunpack.c.l.b16 %v10139
  %v10170 = vunpack.c.l.b16 %v10140
  %v10171 = vunpack.c.l.b16 %v10141
  %v10172 = vunpack.c.l.b16 %v10142
  %v10173 = vunpack.c.l.b16 %v10143
  %v10174 = vunpack.c.l.b16 %v10144
  %v10175 = vunpack.c.l.b16 %v10145
  %v10176 = vunpack.c.l.b16 %v10146
  %v10177 = vunpack.c.l.b16 %v10147
  %v10178 = vunpack.c.l.b16 %v10148
  %v10179 = vunpack.c.l.b16 %v10149
  %v10180 = vunpack.c.l.b16 %v10150
  %v10181 = vunpack.c.l.b16 %v10151
  %v10182 = vunpack.c.l.b16 %v10152
  %v10183 = vunpack.c.l.b16 %v10153
  %v10184 = vpack.c.b16 %v10170, %v10169
  %v10185 = vpack.c.b16 %v10172, %v10171
  %v10186 = vpack.c.b16 %v10174, %v10173
  %v10187 = vpack.c.b16 %v10176, %v10175
  %v10188 = vpack.c.b16 %v10178, %v10177
  %v10189 = vpack.c.b16 %v10180, %v10179
  %v10190 = vpack.c.b16 %v10182, %v10181
  %v10191 = vpack.c.b16 %v10183, %v10183
  %v10200 = vsel %vm7420, %v10191, 0
  %10202 = vmatprep.subr.bf16.mxu0 0
  %10203 = vmatpush1.bf16.msra.mxu0 %v10184
  %10204 = vmatprep.subr.bf16.mxu0 0
  %10205 = vmatpush1.bf16.msra.mxu0 %v10185
  %10206 = vmatprep.subr.bf16.mxu0 0
  %10207 = vmatpush1.bf16.msra.mxu0 %v10186
  %10208 = vmatprep.subr.bf16.mxu0 0
  %10209 = vmatpush1.bf16.msra.mxu0 %v10187
  %10210 = vmatprep.subr.bf16.mxu0 0
  %10211 = vmatpush1.bf16.msra.mxu0 %v10188
  %10212 = vmatprep.subr.bf16.mxu0 0
  %10213 = vmatpush1.bf16.msra.mxu0 %v10189
  %10214 = vmatprep.subr.bf16.mxu0 0
  %10215 = vmatpush1.bf16.msra.mxu0 %v10190
  %10216 = vmatprep.subr.bf16.mxu0 0
  %10217 = vmatpush1.bf16.msra.mxu0 %v10200
  %10218 = vmatprep.subr.bf16.mxu0 0
  %10219 = vmatpush1.bf16.msra.mxu0 0
  %10220 = vmatprep.subr.bf16.mxu0 0
  %10221 = vmatpush1.bf16.msra.mxu0 0
  %10222 = vmatprep.subr.bf16.mxu0 0
  %10223 = vmatpush1.bf16.msra.mxu0 0
  %10224 = vmatprep.subr.bf16.mxu0 0
  %10225 = vmatpush1.bf16.msra.mxu0 0
  %10226 = vmatprep.subr.bf16.mxu0 0
  %10227 = vmatpush1.bf16.msra.mxu0 0
  %10228 = vmatprep.subr.bf16.mxu0 0
  %10229 = vmatpush1.bf16.msra.mxu0 0
  %10230 = vmatprep.subr.bf16.mxu0 0
  %10231 = vmatpush1.bf16.msra.mxu0 0
  %10232 = vmatprep.subr.bf16.mxu0 0
  %10233 = vmatpush1.bf16.msra.mxu0 0
  %10234 = vmatprep.mubr.bf16.mxu0 0
  %10235 = vmatmul.mubr.bf16.gmra.mrb[0].mxu0 %v9895
  %v10236 = vpop.f32.mrb[0].mxu0
  %v10237 = vadd.f32 0.0, %v10236
  %v10238 = vpop.f32.mrb[0].mxu0
  %v10239 = vpop.f32.mrb[0].mxu0
  %v10240 = vadd.f32 0.0, %v10239
  %v10241 = vpop.f32.mrb[0].mxu0
  %10242 = vmatprep.mubr.bf16.mxu0 0
  %10243 = vmatmul.mubr.bf16.gmra.mrb[0].mxu0 %v9898
  %v10244 = vpop.f32.mrb[0].mxu0
  %v10245 = vadd.f32 0.0, %v10244
  %v10246 = vpop.f32.mrb[0].mxu0
  %v10247 = vpop.f32.mrb[0].mxu0
  %v10248 = vadd.f32 0.0, %v10247
  %v10249 = vpop.f32.mrb[0].mxu0
  %10250 = vmatprep.mubr.bf16.mxu0 0
  %10251 = vmatmul.mubr.bf16.gmra.mrb[0].mxu0 %v9901
  %v10252 = vpop.f32.mrb[0].mxu0
  %v10253 = vadd.f32 0.0, %v10252
  %v10254 = vpop.f32.mrb[0].mxu0
  %v10255 = vpop.f32.mrb[0].mxu0
  %v10256 = vadd.f32 0.0, %v10255
  %v10257 = vpop.f32.mrb[0].mxu0
  %10258 = vmatprep.mubr.bf16.mxu0 0
  %10259 = vmatmul.mubr.bf16.gmra.mrb[0].mxu0 %v9904
  %v10260 = vpop.f32.mrb[0].mxu0
  %v10261 = vadd.f32 0.0, %v10260
  %v10262 = vpop.f32.mrb[0].mxu0
  %v10263 = vpop.f32.mrb[0].mxu0
  %v10264 = vadd.f32 0.0, %v10263
  %v10265 = vpop.f32.mrb[0].mxu0
  %10266 = vmatprep.mubr.bf16.mxu0 0
  %10267 = vmatmul.mubr.bf16.gmra.mrb[0].mxu0 %v9907
  %v10268 = vpop.f32.mrb[0].mxu0
  %v10269 = vadd.f32 0.0, %v10268
  %v10270 = vpop.f32.mrb[0].mxu0
  %v10271 = vpop.f32.mrb[0].mxu0
  %v10272 = vadd.f32 0.0, %v10271
  %v10273 = vpop.f32.mrb[0].mxu0
  %10274 = vmatprep.mubr.bf16.mxu0 0
  %10275 = vmatmul.mubr.bf16.gmra.mrb[0].mxu0 %v9910
  %v10276 = vpop.f32.mrb[0].mxu0
  %v10277 = vadd.f32 0.0, %v10276
  %v10278 = vpop.f32.mrb[0].mxu0
  %v10279 = vpop.f32.mrb[0].mxu0
  %v10280 = vadd.f32 0.0, %v10279
  %v10281 = vpop.f32.mrb[0].mxu0
  %10282 = vmatprep.mubr.bf16.mxu0 0
  %10283 = vmatmul.mubr.bf16.gmra.mrb[0].mxu0 %v9913
  %v10284 = vpop.f32.mrb[0].mxu0
  %v10285 = vadd.f32 0.0, %v10284
  %v10286 = vpop.f32.mrb[0].mxu0
  %v10287 = vpop.f32.mrb[0].mxu0
  %v10288 = vadd.f32 0.0, %v10287
  %v10289 = vpop.f32.mrb[0].mxu0
  %10290 = vmatprep.mubr.bf16.mxu0 0
  %10291 = vmatmul.mubr.bf16.gmra.mrb[0].mxu0 %v9916
  %v10292 = vpop.f32.mrb[0].mxu0
  %v10293 = vadd.f32 0.0, %v10292
  %v10294 = vpop.f32.mrb[0].mxu0
  %v10295 = vpop.f32.mrb[0].mxu0
  %v10296 = vadd.f32 0.0, %v10295
  %v10297 = vpop.f32.mrb[0].mxu0
  %10298 = vmatprep.mubr.bf16.mxu0 0
  %10299 = vmatmul.mubr.bf16.gmra.mrb[0].mxu0 %v9919
  %v10300 = vpop.f32.mrb[0].mxu0
  %v10301 = vadd.f32 0.0, %v10300
  %v10302 = vpop.f32.mrb[0].mxu0
  %v10303 = vpop.f32.mrb[0].mxu0
  %v10304 = vadd.f32 0.0, %v10303
  %v10305 = vpop.f32.mrb[0].mxu0
  %10306 = vmatprep.mubr.bf16.mxu0 0
  %10307 = vmatmul.mubr.bf16.gmra.mrb[0].mxu0 %v9922
  %v10308 = vpop.f32.mrb[0].mxu0
  %v10309 = vadd.f32 0.0, %v10308
  %v10310 = vpop.f32.mrb[0].mxu0
  %v10311 = vpop.f32.mrb[0].mxu0
  %v10312 = vadd.f32 0.0, %v10311
  %v10313 = vpop.f32.mrb[0].mxu0
  %10314 = vmatprep.mubr.bf16.mxu0 0
  %10315 = vmatmul.mubr.bf16.gmra.mrb[0].mxu0 %v9925
  %v10316 = vpop.f32.mrb[0].mxu0
  %v10317 = vadd.f32 0.0, %v10316
  %v10318 = vpop.f32.mrb[0].mxu0
  %v10319 = vpop.f32.mrb[0].mxu0
  %v10320 = vadd.f32 0.0, %v10319
  %v10321 = vpop.f32.mrb[0].mxu0
  %10322 = vmatprep.mubr.bf16.mxu0 0
  %10323 = vmatmul.mubr.bf16.gmra.mrb[0].mxu0 %v9928
  %v10324 = vpop.f32.mrb[0].mxu0
  %v10325 = vadd.f32 0.0, %v10324
  %v10326 = vpop.f32.mrb[0].mxu0
  %v10327 = vpop.f32.mrb[0].mxu0
  %v10328 = vadd.f32 0.0, %v10327
  %v10329 = vpop.f32.mrb[0].mxu0
  %10330 = vmatprep.mubr.bf16.mxu0 0
  %10331 = vmatmul.mubr.bf16.gmra.mrb[0].mxu0 %v9931
  %v10332 = vpop.f32.mrb[0].mxu0
  %v10333 = vadd.f32 0.0, %v10332
  %v10334 = vpop.f32.mrb[0].mxu0
  %v10335 = vpop.f32.mrb[0].mxu0
  %v10336 = vadd.f32 0.0, %v10335
  %v10337 = vpop.f32.mrb[0].mxu0
  %10338 = vmatprep.mubr.bf16.mxu0 0
  %10339 = vmatmul.mubr.bf16.gmra.mrb[0].mxu0 %v9934
  %v10340 = vpop.f32.mrb[0].mxu0
  %v10341 = vadd.f32 0.0, %v10340
  %v10342 = vpop.f32.mrb[0].mxu0
  %v10343 = vpop.f32.mrb[0].mxu0
  %v10344 = vadd.f32 0.0, %v10343
  %v10345 = vpop.f32.mrb[0].mxu0
  %10346 = vmatprep.mubr.bf16.mxu0 0
  %10347 = vmatmul.mubr.bf16.gmra.mrb[0].mxu0 %v9937
  %v10348 = vpop.f32.mrb[0].mxu0
  %v10349 = vadd.f32 0.0, %v10348
  %v10350 = vpop.f32.mrb[0].mxu0
  %v10351 = vpop.f32.mrb[0].mxu0
  %v10352 = vadd.f32 0.0, %v10351
  %v10353 = vpop.f32.mrb[0].mxu0
  %10354 = vmatprep.mubr.bf16.mxu0 0
  %10355 = vmatmul.mubr.bf16.gmra.mrb[0].mxu0 %v9940
  %v10356 = vpop.f32.mrb[0].mxu0
  %v10357 = vadd.f32 0.0, %v10356
  %v10358 = vpop.f32.mrb[0].mxu0
  %v10359 = vpop.f32.mrb[0].mxu0
  %v10360 = vadd.f32 0.0, %v10359
  %v10361 = vpop.f32.mrb[0].mxu0
  %10362 = vdwg.mxu0
  %v10363 = vadd.f32 %v9657, %v10237
  %v10364 = vadd.f32 %v9658, %v10240
  %v10365 = vadd.f32 %v9659, %v10245
  %v10366 = vadd.f32 %v9660, %v10248
  %v10367 = vadd.f32 %v9661, %v10253
  %v10368 = vadd.f32 %v9662, %v10256
  %v10369 = vadd.f32 %v9663, %v10261
  %v10370 = vadd.f32 %v9664, %v10264
  %v10371 = vadd.f32 %v9665, %v10269
  %v10372 = vadd.f32 %v9666, %v10272
  %v10373 = vadd.f32 %v9667, %v10277
  %v10374 = vadd.f32 %v9668, %v10280
  %v10375 = vadd.f32 %v9669, %v10285
  %v10376 = vadd.f32 %v9670, %v10288
  %v10377 = vadd.f32 %v9671, %v10293
  %v10378 = vadd.f32 %v9672, %v10296
  %v10379 = vadd.f32 %v9673, %v10301
  %v10380 = vadd.f32 %v9674, %v10304
  %v10381 = vadd.f32 %v9675, %v10309
  %v10382 = vadd.f32 %v9676, %v10312
  %v10383 = vadd.f32 %v9677, %v10317
  %v10384 = vadd.f32 %v9678, %v10320
  %v10385 = vadd.f32 %v9679, %v10325
  %v10386 = vadd.f32 %v9680, %v10328
  %v10387 = vadd.f32 %v9681, %v10333
  %v10388 = vadd.f32 %v9682, %v10336
  %v10389 = vadd.f32 %v9683, %v10341
  %v10390 = vadd.f32 %v9684, %v10344
  %v10391 = vadd.f32 %v9685, %v10349
  %v10392 = vadd.f32 %v9686, %v10352
  %v10393 = vadd.f32 %v9687, %v10357
  %v10394 = vadd.f32 %v9688, %v10360
  %v10395 = vmax.f32 %v10106, %v10363
  %v10396 = vmax.f32 %v10107, %v10364
  %v10397 = vmax.f32 %v10108, %v10365
  %v10398 = vmax.f32 %v10109, %v10366
  %v10399 = vmax.f32 %v10110, %v10367
  %v10400 = vmax.f32 %v10111, %v10368
  %v10401 = vmax.f32 %v10112, %v10369
  %v10402 = vmax.f32 %v10113, %v10370
  %v10403 = vmax.f32 %v10114, %v10371
  %v10404 = vmax.f32 %v10115, %v10372
  %v10405 = vmax.f32 %v10116, %v10373
  %v10406 = vmax.f32 %v10117, %v10374
  %v10407 = vmax.f32 %v10118, %v10375
  %v10408 = vmax.f32 %v10119, %v10376
  %v10409 = vmax.f32 %v10120, %v10377
  %v10410 = vmax.f32 %v10121, %v10378
  %v10411 = vmax.f32 %v10122, %v10379
  %v10412 = vmax.f32 %v10123, %v10380
  %v10413 = vmax.f32 %v10124, %v10381
  %v10414 = vmax.f32 %v10125, %v10382
  %v10415 = vmax.f32 %v10126, %v10383
  %v10416 = vmax.f32 %v10127, %v10384
  %v10417 = vmax.f32 %v10128, %v10385
  %v10418 = vmax.f32 %v10129, %v10386
  %v10419 = vmax.f32 %v10130, %v10387
  %v10420 = vmax.f32 %v10131, %v10388
  %v10421 = vmax.f32 %v10132, %v10389
  %v10422 = vmax.f32 %v10133, %v10390
  %v10423 = vmax.f32 %v10134, %v10391
  %v10424 = vmax.f32 %v10135, %v10392
  %v10425 = vmax.f32 %v10136, %v10393
  %v10426 = vmax.f32 %v10137, %v10394
  %vm10427 = vcmask 654336
  %10428 = vst.msk [vmem:[#allocation3] sm:$0xff] %vm10427, %v10395
  %10429 = vst.msk [vmem:[#allocation3 + $0x8] sm:$0xff] %vm10427, %v10396
  %10430 = vst.msk [vmem:[#allocation3 + $0x10] sm:$0xff] %vm10427, %v10397
  %10431 = vst.msk [vmem:[#allocation3 + $0x18] sm:$0xff] %vm10427, %v10398
  %10432 = vst.msk [vmem:[#allocation3 + $0x20] sm:$0xff] %vm10427, %v10399
  %10433 = vst.msk [vmem:[#allocation3 + $0x28] sm:$0xff] %vm10427, %v10400
  %10434 = vst.msk [vmem:[#allocation3 + $0x30] sm:$0xff] %vm10427, %v10401
  %10435 = vst.msk [vmem:[#allocation3 + $0x38] sm:$0xff] %vm10427, %v10402
  %10436 = vst.msk [vmem:[#allocation3 + $0x40] sm:$0xff] %vm10427, %v10403
  %10437 = vst.msk [vmem:[#allocation3 + $0x48] sm:$0xff] %vm10427, %v10404
  %10438 = vst.msk [vmem:[#allocation3 + $0x50] sm:$0xff] %vm10427, %v10405
  %10439 = vst.msk [vmem:[#allocation3 + $0x58] sm:$0xff] %vm10427, %v10406
  %10440 = vst.msk [vmem:[#allocation3 + $0x60] sm:$0xff] %vm10427, %v10407
  %10441 = vst.msk [vmem:[#allocation3 + $0x68] sm:$0xff] %vm10427, %v10408
  %10442 = vst.msk [vmem:[#allocation3 + $0x70] sm:$0xff] %vm10427, %v10409
  %10443 = vst.msk [vmem:[#allocation3 + $0x78] sm:$0xff] %vm10427, %v10410
  %10444 = vst.msk [vmem:[#allocation3 + $0x80] sm:$0xff] %vm10427, %v10411
  %10445 = vst.msk [vmem:[#allocation3 + $0x88] sm:$0xff] %vm10427, %v10412
  %10446 = vst.msk [vmem:[#allocation3 + $0x90] sm:$0xff] %vm10427, %v10413
  %10447 = vst.msk [vmem:[#allocation3 + $0x98] sm:$0xff] %vm10427, %v10414
  %10448 = vst.msk [vmem:[#allocation3 + $0xa0] sm:$0xff] %vm10427, %v10415
  %10449 = vst.msk [vmem:[#allocation3 + $0xa8] sm:$0xff] %vm10427, %v10416
  %10450 = vst.msk [vmem:[#allocation3 + $0xb0] sm:$0xff] %vm10427, %v10417
  %10451 = vst.msk [vmem:[#allocation3 + $0xb8] sm:$0xff] %vm10427, %v10418
  %10452 = vst.msk [vmem:[#allocation3 + $0xc0] sm:$0xff] %vm10427, %v10419
  %10453 = vst.msk [vmem:[#allocation3 + $0xc8] sm:$0xff] %vm10427, %v10420
  %10454 = vst.msk [vmem:[#allocation3 + $0xd0] sm:$0xff] %vm10427, %v10421
  %10455 = vst.msk [vmem:[#allocation3 + $0xd8] sm:$0xff] %vm10427, %v10422
  %10456 = vst.msk [vmem:[#allocation3 + $0xe0] sm:$0xff] %vm10427, %v10423
  %10457 = vst.msk [vmem:[#allocation3 + $0xe8] sm:$0xff] %vm10427, %v10424
  %10458 = vst.msk [vmem:[#allocation3 + $0xf0] sm:$0xff] %vm10427, %v10425
  %10459 = vst.msk [vmem:[#allocation3 + $0xf8] sm:$0xff] %vm10427, %v10426
  %v10460 = vld [vmem:[%s8] sm:$0x1]
  %v10461 = vld [vmem:[#allocation3] sm:$0x1]
  %v10462 = vld [vmem:[#allocation3 + $0x8] sm:$0x1]
  %v10463 = vld [vmem:[#allocation3 + $0x10] sm:$0x1]
  %v10464 = vld [vmem:[#allocation3 + $0x18] sm:$0x1]
  %v10465 = vld [vmem:[#allocation3 + $0x20] sm:$0x1]
  %v10466 = vld [vmem:[#allocation3 + $0x28] sm:$0x1]
  %v10467 = vld [vmem:[#allocation3 + $0x30] sm:$0x1]
  %v10468 = vld [vmem:[#allocation3 + $0x38] sm:$0x1]
  %v10469 = vld [vmem:[#allocation3 + $0x40] sm:$0x1]
  %v10470 = vld [vmem:[#allocation3 + $0x48] sm:$0x1]
  %v10471 = vld [vmem:[#allocation3 + $0x50] sm:$0x1]
  %v10472 = vld [vmem:[#allocation3 + $0x58] sm:$0x1]
  %v10473 = vld [vmem:[#allocation3 + $0x60] sm:$0x1]
  %v10474 = vld [vmem:[#allocation3 + $0x68] sm:$0x1]
  %v10475 = vld [vmem:[#allocation3 + $0x70] sm:$0x1]
  %v10476 = vld [vmem:[#allocation3 + $0x78] sm:$0x1]
  %v10477 = vld [vmem:[#allocation3 + $0x80] sm:$0x1]
  %v10478 = vld [vmem:[#allocation3 + $0x88] sm:$0x1]
  %v10479 = vld [vmem:[#allocation3 + $0x90] sm:$0x1]
  %v10480 = vld [vmem:[#allocation3 + $0x98] sm:$0x1]
  %v10481 = vld [vmem:[#allocation3 + $0xa0] sm:$0x1]
  %v10482 = vld [vmem:[#allocation3 + $0xa8] sm:$0x1]
  %v10483 = vld [vmem:[#allocation3 + $0xb0] sm:$0x1]
  %v10484 = vld [vmem:[#allocation3 + $0xb8] sm:$0x1]
  %v10485 = vld [vmem:[#allocation3 + $0xc0] sm:$0x1]
  %v10486 = vld [vmem:[#allocation3 + $0xc8] sm:$0x1]
  %v10487 = vld [vmem:[#allocation3 + $0xd0] sm:$0x1]
  %v10488 = vld [vmem:[#allocation3 + $0xd8] sm:$0x1]
  %v10489 = vld [vmem:[#allocation3 + $0xe0] sm:$0x1]
  %v10490 = vld [vmem:[#allocation3 + $0xe8] sm:$0x1]
  %v10491 = vld [vmem:[#allocation3 + $0xf0] sm:$0x1]
  %v10492 = vld [vmem:[#allocation3 + $0xf8] sm:$0x1]
  %v10493 = vld [vmem:[#allocation3 + $0x1] sm:$0x1]
  %v10494 = vld [vmem:[#allocation3 + $0x9] sm:$0x1]
  %v10495 = vld [vmem:[#allocation3 + $0x11] sm:$0x1]
  %v10496 = vld [vmem:[#allocation3 + $0x19] sm:$0x1]
  %v10497 = vld [vmem:[#allocation3 + $0x21] sm:$0x1]
  %v10498 = vld [vmem:[#allocation3 + $0x29] sm:$0x1]
  %v10499 = vld [vmem:[#allocation3 + $0x31] sm:$0x1]
  %v10500 = vld [vmem:[#allocation3 + $0x39] sm:$0x1]
  %v10501 = vld [vmem:[#allocation3 + $0x41] sm:$0x1]
  %v10502 = vld [vmem:[#allocation3 + $0x49] sm:$0x1]
  %v10503 = vld [vmem:[#allocation3 + $0x51] sm:$0x1]
  %v10504 = vld [vmem:[#allocation3 + $0x59] sm:$0x1]
  %v10505 = vld [vmem:[#allocation3 + $0x61] sm:$0x1]
  %v10506 = vld [vmem:[#allocation3 + $0x69] sm:$0x1]
  %v10507 = vld [vmem:[#allocation3 + $0x71] sm:$0x1]
  %v10508 = vld [vmem:[#allocation3 + $0x79] sm:$0x1]
  %v10509 = vld [vmem:[#allocation3 + $0x81] sm:$0x1]
  %v10510 = vld [vmem:[#allocation3 + $0x89] sm:$0x1]
  %v10511 = vld [vmem:[#allocation3 + $0x91] sm:$0x1]
  %v10512 = vld [vmem:[#allocation3 + $0x99] sm:$0x1]
  %v10513 = vld [vmem:[#allocation3 + $0xa1] sm:$0x1]
  %v10514 = vld [vmem:[#allocation3 + $0xa9] sm:$0x1]
  %v10515 = vld [vmem:[#allocation3 + $0xb1] sm:$0x1]
  %v10516 = vld [vmem:[#allocation3 + $0xb9] sm:$0x1]
  %v10517 = vld [vmem:[#allocation3 + $0xc1] sm:$0x1]
  %v10518 = vld [vmem:[#allocation3 + $0xc9] sm:$0x1]
  %v10519 = vld [vmem:[#allocation3 + $0xd1] sm:$0x1]
  %v10520 = vld [vmem:[#allocation3 + $0xd9] sm:$0x1]
  %v10521 = vld [vmem:[#allocation3 + $0xe1] sm:$0x1]
  %v10522 = vld [vmem:[#allocation3 + $0xe9] sm:$0x1]
  %v10523 = vld [vmem:[#allocation3 + $0xf1] sm:$0x1]
  %v10524 = vld [vmem:[#allocation3 + $0xf9] sm:$0x1]
  %v10525 = vmax.f32 %v10461, %v10493
  %v10526 = vmax.f32 %v10462, %v10494
  %v10527 = vmax.f32 %v10463, %v10495
  %v10528 = vmax.f32 %v10464, %v10496
  %v10529 = vmax.f32 %v10465, %v10497
  %v10530 = vmax.f32 %v10466, %v10498
  %v10531 = vmax.f32 %v10467, %v10499
  %v10532 = vmax.f32 %v10468, %v10500
  %v10533 = vmax.f32 %v10469, %v10501
  %v10534 = vmax.f32 %v10470, %v10502
  %v10535 = vmax.f32 %v10471, %v10503
  %v10536 = vmax.f32 %v10472, %v10504
  %v10537 = vmax.f32 %v10473, %v10505
  %v10538 = vmax.f32 %v10474, %v10506
  %v10539 = vmax.f32 %v10475, %v10507
  %v10540 = vmax.f32 %v10476, %v10508
  %v10541 = vmax.f32 %v10477, %v10509
  %v10542 = vmax.f32 %v10478, %v10510
  %v10543 = vmax.f32 %v10479, %v10511
  %v10544 = vmax.f32 %v10480, %v10512
  %v10545 = vmax.f32 %v10481, %v10513
  %v10546 = vmax.f32 %v10482, %v10514
  %v10547 = vmax.f32 %v10483, %v10515
  %v10548 = vmax.f32 %v10484, %v10516
  %v10549 = vmax.f32 %v10485, %v10517
  %v10550 = vmax.f32 %v10486, %v10518
  %v10551 = vmax.f32 %v10487, %v10519
  %v10552 = vmax.f32 %v10488, %v10520
  %v10553 = vmax.f32 %v10489, %v10521
  %v10554 = vmax.f32 %v10490, %v10522
  %v10555 = vmax.f32 %v10491, %v10523
  %v10556 = vmax.f32 %v10492, %v10524
  %v10557 = vld [vmem:[%s6] sm:$0x1]
  %v10559 = vlaneseq
  %v10560 = vshrl.u32 %v10559, 7
  %v10561 = vsub.s32 0, %v10560
  %v10562 = vrot.slane %v10557, %v10561
  %v10564 = vadd.f32 %v10525, %v10562
  %v10565 = vadd.f32 %v10526, %v10562
  %v10566 = vadd.f32 %v10527, %v10562
  %v10567 = vadd.f32 %v10528, %v10562
  %v10568 = vadd.f32 %v10529, %v10562
  %v10569 = vadd.f32 %v10530, %v10562
  %v10570 = vadd.f32 %v10531, %v10562
  %v10571 = vadd.f32 %v10532, %v10562
  %v10572 = vadd.f32 %v10533, %v10562
  %v10573 = vadd.f32 %v10534, %v10562
  %v10574 = vadd.f32 %v10535, %v10562
  %v10575 = vadd.f32 %v10536, %v10562
  %v10576 = vadd.f32 %v10537, %v10562
  %v10577 = vadd.f32 %v10538, %v10562
  %v10578 = vadd.f32 %v10539, %v10562
  %v10579 = vadd.f32 %v10540, %v10562
  %v10580 = vadd.f32 %v10541, %v10562
  %v10581 = vadd.f32 %v10542, %v10562
  %v10582 = vadd.f32 %v10543, %v10562
  %v10583 = vadd.f32 %v10544, %v10562
  %v10584 = vadd.f32 %v10545, %v10562
  %v10585 = vadd.f32 %v10546, %v10562
  %v10586 = vadd.f32 %v10547, %v10562
  %v10587 = vadd.f32 %v10548, %v10562
  %v10588 = vadd.f32 %v10549, %v10562
  %v10589 = vadd.f32 %v10550, %v10562
  %v10590 = vadd.f32 %v10551, %v10562
  %v10591 = vadd.f32 %v10552, %v10562
  %v10592 = vadd.f32 %v10553, %v10562
  %v10593 = vadd.f32 %v10554, %v10562
  %v10594 = vadd.f32 %v10555, %v10562
  %v10595 = vadd.f32 %v10556, %v10562
  %v10596 = vmax.f32 %v10564, 0.0
  %v10597 = vmax.f32 %v10565, 0.0
  %v10598 = vmax.f32 %v10566, 0.0
  %v10599 = vmax.f32 %v10567, 0.0
  %v10600 = vmax.f32 %v10568, 0.0
  %v10601 = vmax.f32 %v10569, 0.0
  %v10602 = vmax.f32 %v10570, 0.0
  %v10603 = vmax.f32 %v10571, 0.0
  %v10604 = vmax.f32 %v10572, 0.0
  %v10605 = vmax.f32 %v10573, 0.0
  %v10606 = vmax.f32 %v10574, 0.0
  %v10607 = vmax.f32 %v10575, 0.0
  %v10608 = vmax.f32 %v10576, 0.0
  %v10609 = vmax.f32 %v10577, 0.0
  %v10610 = vmax.f32 %v10578, 0.0
  %v10611 = vmax.f32 %v10579, 0.0
  %v10612 = vmax.f32 %v10580, 0.0
  %v10613 = vmax.f32 %v10581, 0.0
  %v10614 = vmax.f32 %v10582, 0.0
  %v10615 = vmax.f32 %v10583, 0.0
  %v10616 = vmax.f32 %v10584, 0.0
  %v10617 = vmax.f32 %v10585, 0.0
  %v10618 = vmax.f32 %v10586, 0.0
  %v10619 = vmax.f32 %v10587, 0.0
  %v10620 = vmax.f32 %v10588, 0.0
  %v10621 = vmax.f32 %v10589, 0.0
  %v10622 = vmax.f32 %v10590, 0.0
  %v10623 = vmax.f32 %v10591, 0.0
  %v10624 = vmax.f32 %v10592, 0.0
  %v10625 = vmax.f32 %v10593, 0.0
  %v10626 = vmax.f32 %v10594, 0.0
  %v10627 = vmax.f32 %v10595, 0.0
  %v10628 = vpack.c.bf16 %v10596, %v10596
  %v10629 = vpack.c.bf16 %v10597, %v10597
  %v10630 = vpack.c.bf16 %v10598, %v10598
  %v10631 = vpack.c.bf16 %v10599, %v10599
  %v10632 = vpack.c.bf16 %v10600, %v10600
  %v10633 = vpack.c.bf16 %v10601, %v10601
  %v10634 = vpack.c.bf16 %v10602, %v10602
  %v10635 = vpack.c.bf16 %v10603, %v10603
  %v10636 = vpack.c.bf16 %v10604, %v10604
  %v10637 = vpack.c.bf16 %v10605, %v10605
  %v10638 = vpack.c.bf16 %v10606, %v10606
  %v10639 = vpack.c.bf16 %v10607, %v10607
  %v10640 = vpack.c.bf16 %v10608, %v10608
  %v10641 = vpack.c.bf16 %v10609, %v10609
  %v10642 = vpack.c.bf16 %v10610, %v10610
  %v10643 = vpack.c.bf16 %v10611, %v10611
  %v10644 = vpack.c.bf16 %v10612, %v10612
  %v10645 = vpack.c.bf16 %v10613, %v10613
  %v10646 = vpack.c.bf16 %v10614, %v10614
  %v10647 = vpack.c.bf16 %v10615, %v10615
  %v10648 = vpack.c.bf16 %v10616, %v10616
  %v10649 = vpack.c.bf16 %v10617, %v10617
  %v10650 = vpack.c.bf16 %v10618, %v10618
  %v10651 = vpack.c.bf16 %v10619, %v10619
  %v10652 = vpack.c.bf16 %v10620, %v10620
  %v10653 = vpack.c.bf16 %v10621, %v10621
  %v10654 = vpack.c.bf16 %v10622, %v10622
  %v10655 = vpack.c.bf16 %v10623, %v10623
  %v10656 = vpack.c.bf16 %v10624, %v10624
  %v10657 = vpack.c.bf16 %v10625, %v10625
  %v10658 = vpack.c.bf16 %v10626, %v10626
  %v10659 = vpack.c.bf16 %v10627, %v10627
  %v10660 = vld [vmem:[%s7] sm:$0xf]
  %v10661 = vld [vmem:[%s7 + $0x4] sm:$0xf]
  %v10662 = vld [vmem:[%s7 + $0x8] sm:$0xf]
  %v10663 = vld [vmem:[%s7 + $0xc] sm:$0xf]
  %v10664 = vld [vmem:[%s7 + $0x10] sm:$0xf]
  %v10665 = vld [vmem:[%s7 + $0x14] sm:$0xf]
  %v10666 = vld [vmem:[%s7 + $0x18] sm:$0xf]
  %v10667 = vld [vmem:[%s7 + $0x1c] sm:$0xf]
  %v10668 = vld [vmem:[%s7 + $0x20] sm:$0xf]
  %v10669 = vld [vmem:[%s7 + $0x24] sm:$0xf]
  %v10702 = vunpack.c.l.b16 %v10628
  %v10703 = vunpack.c.l.b16 %v10629
  %v10704 = vunpack.c.l.b16 %v10630
  %v10705 = vunpack.c.l.b16 %v10631
  %v10706 = vunpack.c.l.b16 %v10632
  %v10707 = vunpack.c.l.b16 %v10633
  %v10708 = vunpack.c.l.b16 %v10634
  %v10709 = vunpack.c.l.b16 %v10635
  %v10710 = vunpack.c.l.b16 %v10636
  %v10711 = vunpack.c.l.b16 %v10637
  %v10712 = vunpack.c.l.b16 %v10638
  %v10713 = vunpack.c.l.b16 %v10639
  %v10714 = vunpack.c.l.b16 %v10640
  %v10715 = vunpack.c.l.b16 %v10641
  %v10716 = vunpack.c.l.b16 %v10642
  %v10717 = vunpack.c.l.b16 %v10643
  %v10718 = vunpack.c.l.b16 %v10644
  %v10719 = vunpack.c.l.b16 %v10645
  %v10720 = vunpack.c.l.b16 %v10646
  %v10721 = vunpack.c.l.b16 %v10647
  %v10722 = vunpack.c.l.b16 %v10648
  %v10723 = vunpack.c.l.b16 %v10649
  %v10724 = vunpack.c.l.b16 %v10650
  %v10725 = vunpack.c.l.b16 %v10651
  %v10726 = vunpack.c.l.b16 %v10652
  %v10727 = vunpack.c.l.b16 %v10653
  %v10728 = vunpack.c.l.b16 %v10654
  %v10729 = vunpack.c.l.b16 %v10655
  %v10730 = vunpack.c.l.b16 %v10656
  %v10731 = vunpack.c.l.b16 %v10657
  %v10732 = vunpack.c.l.b16 %v10658
  %v10733 = vunpack.c.l.b16 %v10659
  %v10734 = vrot.slane %v10703, 7
  %vm10735 = vcmask 1041409
  %v10736 = vsel %vm10735, %v10734, %v10702
  %v10737 = vrot.slane %v10704, 6
  %vm10738 = vcmask 1042434
  %v10739 = vsel %vm10738, %v10737, %v10736
  %v10740 = vrot.slane %v10705, 5
  %vm10741 = vcmask 1043459
  %v10742 = vsel %vm10741, %v10740, %v10739
  %v10743 = vrot.slane %v10706, 4
  %vm10744 = vcmask 1044484
  %v10745 = vsel %vm10744, %v10743, %v10742
  %v10746 = vrot.slane %v10707, 3
  %vm10747 = vcmask 1045509
  %v10748 = vsel %vm10747, %v10746, %v10745
  %v10749 = vrot.slane %v10708, 2
  %vm10750 = vcmask 1046534
  %v10751 = vsel %vm10750, %v10749, %v10748
  %v10752 = vrot.slane %v10709, 1
  %vm10753 = vcmask 1047559
  %v10754 = vsel %vm10753, %v10752, %v10751
  %v10755 = vrot.slane %v10711, 7
  %v10756 = vsel %vm10735, %v10755, %v10710
  %v10757 = vrot.slane %v10712, 6
  %v10758 = vsel %vm10738, %v10757, %v10756
  %v10759 = vrot.slane %v10713, 5
  %v10760 = vsel %vm10741, %v10759, %v10758
  %v10761 = vrot.slane %v10714, 4
  %v10762 = vsel %vm10744, %v10761, %v10760
  %v10763 = vrot.slane %v10715, 3
  %v10764 = vsel %vm10747, %v10763, %v10762
  %v10765 = vrot.slane %v10716, 2
  %v10766 = vsel %vm10750, %v10765, %v10764
  %v10767 = vrot.slane %v10717, 1
  %v10768 = vsel %vm10753, %v10767, %v10766
  %v10769 = vrot.slane %v10719, 7
  %v10770 = vsel %vm10735, %v10769, %v10718
  %v10771 = vrot.slane %v10720, 6
  %v10772 = vsel %vm10738, %v10771, %v10770
  %v10773 = vrot.slane %v10721, 5
  %v10774 = vsel %vm10741, %v10773, %v10772
  %v10775 = vrot.slane %v10722, 4
  %v10776 = vsel %vm10744, %v10775, %v10774
  %v10777 = vrot.slane %v10723, 3
  %v10778 = vsel %vm10747, %v10777, %v10776
  %v10779 = vrot.slane %v10724, 2
  %v10780 = vsel %vm10750, %v10779, %v10778
  %v10781 = vrot.slane %v10725, 1
  %v10782 = vsel %vm10753, %v10781, %v10780
  %v10783 = vrot.slane %v10727, 7
  %v10784 = vsel %vm10735, %v10783, %v10726
  %v10785 = vrot.slane %v10728, 6
  %v10786 = vsel %vm10738, %v10785, %v10784
  %v10787 = vrot.slane %v10729, 5
  %v10788 = vsel %vm10741, %v10787, %v10786
  %v10789 = vrot.slane %v10730, 4
  %v10790 = vsel %vm10744, %v10789, %v10788
  %v10791 = vrot.slane %v10731, 3
  %v10792 = vsel %vm10747, %v10791, %v10790
  %v10793 = vrot.slane %v10732, 2
  %v10794 = vsel %vm10750, %v10793, %v10792
  %v10795 = vrot.slane %v10733, 1
  %v10796 = vsel %vm10753, %v10795, %v10794
  %v10797 = vpack.c.b16 %v10768, %v10754
  %v10798 = vpack.c.b16 %v10796, %v10782
  %v10809 = vunpack.c.l.b16 %v10660
  %v10810 = vunpack.c.l.b16 %v10661
  %v10811 = vunpack.c.l.b16 %v10662
  %v10812 = vunpack.c.l.b16 %v10663
  %v10813 = vunpack.c.l.b16 %v10664
  %v10814 = vunpack.c.l.b16 %v10665
  %v10815 = vunpack.c.l.b16 %v10666
  %v10816 = vunpack.c.l.b16 %v10667
  %v10817 = vunpack.c.l.b16 %v10668
  %v10818 = vunpack.c.l.b16 %v10669
  %v10819 = vpack.c.b16 %v10810, %v10809
  %v10820 = vpack.c.b16 %v10812, %v10811
  %v10821 = vpack.c.b16 %v10814, %v10813
  %v10822 = vpack.c.b16 %v10816, %v10815
  %v10823 = vpack.c.b16 %v10818, %v10817
  %v10830 = vsel %vm10427, %v10797, 0
  %v10833 = vsel %vm10427, %v10798, 0
  %10835 = vmatprep.subr.bf16.mxu0 0
  %10836 = vmatpush1.bf16.msra.mxu0 %v10819
  %10837 = vmatprep.subr.bf16.mxu0 0
  %10838 = vmatpush1.bf16.msra.mxu0 %v10820
  %10839 = vmatprep.subr.bf16.mxu0 0
  %10840 = vmatpush1.bf16.msra.mxu0 %v10821
  %10841 = vmatprep.subr.bf16.mxu0 0
  %10842 = vmatpush1.bf16.msra.mxu0 %v10822
  %10843 = vmatprep.subr.bf16.mxu0 0
  %10844 = vmatpush1.bf16.msra.mxu0 %v10823
  %10845 = vmatprep.subr.bf16.mxu0 0
  %10846 = vmatpush1.bf16.msra.mxu0 0
  %10847 = vmatprep.subr.bf16.mxu0 0
  %10848 = vmatpush1.bf16.msra.mxu0 0
  %10849 = vmatprep.subr.bf16.mxu0 0
  %10850 = vmatpush1.bf16.msra.mxu0 0
  %10851 = vmatprep.subr.bf16.mxu0 0
  %10852 = vmatpush1.bf16.msra.mxu0 0
  %10853 = vmatprep.subr.bf16.mxu0 0
  %10854 = vmatpush1.bf16.msra.mxu0 0
  %10855 = vmatprep.subr.bf16.mxu0 0
  %10856 = vmatpush1.bf16.msra.mxu0 0
  %10857 = vmatprep.subr.bf16.mxu0 0
  %10858 = vmatpush1.bf16.msra.mxu0 0
  %10859 = vmatprep.subr.bf16.mxu0 0
  %10860 = vmatpush1.bf16.msra.mxu0 0
  %10861 = vmatprep.subr.bf16.mxu0 0
  %10862 = vmatpush1.bf16.msra.mxu0 0
  %10863 = vmatprep.subr.bf16.mxu0 0
  %10864 = vmatpush1.bf16.msra.mxu0 0
  %10865 = vmatprep.subr.bf16.mxu0 0
  %10866 = vmatpush1.bf16.msra.mxu0 0
  %10867 = vmatprep.mubr.bf16.mxu0 0
  %10868 = vmatmul.mubr.bf16.gmra.mrb[0].mxu0 %v10830
  %v10869 = vpop.f32.mrb[0].mxu0
  %v10870 = vadd.f32 0.0, %v10869
  %v10871 = vpop.f32.mrb[0].mxu0
  %v10872 = vpop.f32.mrb[0].mxu0
  %v10873 = vadd.f32 0.0, %v10872
  %v10874 = vpop.f32.mrb[0].mxu0
  %10875 = vmatprep.mubr.bf16.mxu0 0
  %10876 = vmatmul.mubr.bf16.gmra.mrb[0].mxu0 %v10833
  %v10877 = vpop.f32.mrb[0].mxu0
  %v10878 = vadd.f32 0.0, %v10877
  %v10879 = vpop.f32.mrb[0].mxu0
  %v10880 = vpop.f32.mrb[0].mxu0
  %v10881 = vadd.f32 0.0, %v10880
  %v10882 = vpop.f32.mrb[0].mxu0
  %10883 = vdwg.mxu0
  %v10885 = vlaneseq
  %v10886 = vshrl.u32 %v10885, 7
  %v10887 = vsub.s32 0, %v10886
  %v10888 = vrot.slane %v10460, %v10887
  %v10890 = vadd.f32 %v10888, %v10870
  %v10891 = vadd.f32 %v10888, %v10873
  %v10892 = vadd.f32 %v10888, %v10878
  %v10893 = vadd.f32 %v10888, %v10881
  %v10894 = vld [vmem:[#allocation3 + $0x2] sm:$0x1]
  %v10895 = vld [vmem:[#allocation3 + $0xa] sm:$0x1]
  %v10896 = vld [vmem:[#allocation3 + $0x12] sm:$0x1]
  %v10897 = vld [vmem:[#allocation3 + $0x1a] sm:$0x1]
  %v10898 = vld [vmem:[#allocation3 + $0x22] sm:$0x1]
  %v10899 = vld [vmem:[#allocation3 + $0x2a] sm:$0x1]
  %v10900 = vld [vmem:[#allocation3 + $0x32] sm:$0x1]
  %v10901 = vld [vmem:[#allocation3 + $0x3a] sm:$0x1]
  %v10902 = vld [vmem:[#allocation3 + $0x42] sm:$0x1]
  %v10903 = vld [vmem:[#allocation3 + $0x4a] sm:$0x1]
  %v10904 = vld [vmem:[#allocation3 + $0x52] sm:$0x1]
  %v10905 = vld [vmem:[#allocation3 + $0x5a] sm:$0x1]
  %v10906 = vld [vmem:[#allocation3 + $0x62] sm:$0x1]
  %v10907 = vld [vmem:[#allocation3 + $0x6a] sm:$0x1]
  %v10908 = vld [vmem:[#allocation3 + $0x72] sm:$0x1]
  %v10909 = vld [vmem:[#allocation3 + $0x7a] sm:$0x1]
  %v10910 = vld [vmem:[#allocation3 + $0x82] sm:$0x1]
  %v10911 = vld [vmem:[#allocation3 + $0x8a] sm:$0x1]
  %v10912 = vld [vmem:[#allocation3 + $0x92] sm:$0x1]
  %v10913 = vld [vmem:[#allocation3 + $0x9a] sm:$0x1]
  %v10914 = vld [vmem:[#allocation3 + $0xa2] sm:$0x1]
  %v10915 = vld [vmem:[#allocation3 + $0xaa] sm:$0x1]
  %v10916 = vld [vmem:[#allocation3 + $0xb2] sm:$0x1]
  %v10917 = vld [vmem:[#allocation3 + $0xba] sm:$0x1]
  %v10918 = vld [vmem:[#allocation3 + $0xc2] sm:$0x1]
  %v10919 = vld [vmem:[#allocation3 + $0xca] sm:$0x1]
  %v10920 = vld [vmem:[#allocation3 + $0xd2] sm:$0x1]
  %v10921 = vld [vmem:[#allocation3 + $0xda] sm:$0x1]
  %v10922 = vld [vmem:[#allocation3 + $0xe2] sm:$0x1]
  %v10923 = vld [vmem:[#allocation3 + $0xea] sm:$0x1]
  %v10924 = vld [vmem:[#allocation3 + $0xf2] sm:$0x1]
  %v10925 = vld [vmem:[#allocation3 + $0xfa] sm:$0x1]
  %v10926 = vld [vmem:[#allocation3 + $0x3] sm:$0x1]
  %v10927 = vld [vmem:[#allocation3 + $0xb] sm:$0x1]
  %v10928 = vld [vmem:[#allocation3 + $0x13] sm:$0x1]
  %v10929 = vld [vmem:[#allocation3 + $0x1b] sm:$0x1]
  %v10930 = vld [vmem:[#allocation3 + $0x23] sm:$0x1]
  %v10931 = vld [vmem:[#allocation3 + $0x2b] sm:$0x1]
  %v10932 = vld [vmem:[#allocation3 + $0x33] sm:$0x1]
  %v10933 = vld [vmem:[#allocation3 + $0x3b] sm:$0x1]
  %v10934 = vld [vmem:[#allocation3 + $0x43] sm:$0x1]
  %v10935 = vld [vmem:[#allocation3 + $0x4b] sm:$0x1]
  %v10936 = vld [vmem:[#allocation3 + $0x53] sm:$0x1]
  %v10937 = vld [vmem:[#allocation3 + $0x5b] sm:$0x1]
  %v10938 = vld [vmem:[#allocation3 + $0x63] sm:$0x1]
  %v10939 = vld [vmem:[#allocation3 + $0x6b] sm:$0x1]
  %v10940 = vld [vmem:[#allocation3 + $0x73] sm:$0x1]
  %v10941 = vld [vmem:[#allocation3 + $0x7b] sm:$0x1]
  %v10942 = vld [vmem:[#allocation3 + $0x83] sm:$0x1]
  %v10943 = vld [vmem:[#allocation3 + $0x8b] sm:$0x1]
  %v10944 = vld [vmem:[#allocation3 + $0x93] sm:$0x1]
  %v10945 = vld [vmem:[#allocation3 + $0x9b] sm:$0x1]
  %v10946 = vld [vmem:[#allocation3 + $0xa3] sm:$0x1]
  %v10947 = vld [vmem:[#allocation3 + $0xab] sm:$0x1]
  %v10948 = vld [vmem:[#allocation3 + $0xb3] sm:$0x1]
  %v10949 = vld [vmem:[#allocation3 + $0xbb] sm:$0x1]
  %v10950 = vld [vmem:[#allocation3 + $0xc3] sm:$0x1]
  %v10951 = vld [vmem:[#allocation3 + $0xcb] sm:$0x1]
  %v10952 = vld [vmem:[#allocation3 + $0xd3] sm:$0x1]
  %v10953 = vld [vmem:[#allocation3 + $0xdb] sm:$0x1]
  %v10954 = vld [vmem:[#allocation3 + $0xe3] sm:$0x1]
  %v10955 = vld [vmem:[#allocation3 + $0xeb] sm:$0x1]
  %v10956 = vld [vmem:[#allocation3 + $0xf3] sm:$0x1]
  %v10957 = vld [vmem:[#allocation3 + $0xfb] sm:$0x1]
  %v10958 = vmax.f32 %v10894, %v10926
  %v10959 = vmax.f32 %v10895, %v10927
  %v10960 = vmax.f32 %v10896, %v10928
  %v10961 = vmax.f32 %v10897, %v10929
  %v10962 = vmax.f32 %v10898, %v10930
  %v10963 = vmax.f32 %v10899, %v10931
  %v10964 = vmax.f32 %v10900, %v10932
  %v10965 = vmax.f32 %v10901, %v10933
  %v10966 = vmax.f32 %v10902, %v10934
  %v10967 = vmax.f32 %v10903, %v10935
  %v10968 = vmax.f32 %v10904, %v10936
  %v10969 = vmax.f32 %v10905, %v10937
  %v10970 = vmax.f32 %v10906, %v10938
  %v10971 = vmax.f32 %v10907, %v10939
  %v10972 = vmax.f32 %v10908, %v10940
  %v10973 = vmax.f32 %v10909, %v10941
  %v10974 = vmax.f32 %v10910, %v10942
  %v10975 = vmax.f32 %v10911, %v10943
  %v10976 = vmax.f32 %v10912, %v10944
  %v10977 = vmax.f32 %v10913, %v10945
  %v10978 = vmax.f32 %v10914, %v10946
  %v10979 = vmax.f32 %v10915, %v10947
  %v10980 = vmax.f32 %v10916, %v10948
  %v10981 = vmax.f32 %v10917, %v10949
  %v10982 = vmax.f32 %v10918, %v10950
  %v10983 = vmax.f32 %v10919, %v10951
  %v10984 = vmax.f32 %v10920, %v10952
  %v10985 = vmax.f32 %v10921, %v10953
  %v10986 = vmax.f32 %v10922, %v10954
  %v10987 = vmax.f32 %v10923, %v10955
  %v10988 = vmax.f32 %v10924, %v10956
  %v10989 = vmax.f32 %v10925, %v10957
  %v10990 = vadd.f32 %v10958, %v10562
  %v10991 = vadd.f32 %v10959, %v10562
  %v10992 = vadd.f32 %v10960, %v10562
  %v10993 = vadd.f32 %v10961, %v10562
  %v10994 = vadd.f32 %v10962, %v10562
  %v10995 = vadd.f32 %v10963, %v10562
  %v10996 = vadd.f32 %v10964, %v10562
  %v10997 = vadd.f32 %v10965, %v10562
  %v10998 = vadd.f32 %v10966, %v10562
  %v10999 = vadd.f32 %v10967, %v10562
  %v11000 = vadd.f32 %v10968, %v10562
  %v11001 = vadd.f32 %v10969, %v10562
  %v11002 = vadd.f32 %v10970, %v10562
  %v11003 = vadd.f32 %v10971, %v10562
  %v11004 = vadd.f32 %v10972, %v10562
  %v11005 = vadd.f32 %v10973, %v10562
  %v11006 = vadd.f32 %v10974, %v10562
  %v11007 = vadd.f32 %v10975, %v10562
  %v11008 = vadd.f32 %v10976, %v10562
  %v11009 = vadd.f32 %v10977, %v10562
  %v11010 = vadd.f32 %v10978, %v10562
  %v11011 = vadd.f32 %v10979, %v10562
  %v11012 = vadd.f32 %v10980, %v10562
  %v11013 = vadd.f32 %v10981, %v10562
  %v11014 = vadd.f32 %v10982, %v10562
  %v11015 = vadd.f32 %v10983, %v10562
  %v11016 = vadd.f32 %v10984, %v10562
  %v11017 = vadd.f32 %v10985, %v10562
  %v11018 = vadd.f32 %v10986, %v10562
  %v11019 = vadd.f32 %v10987, %v10562
  %v11020 = vadd.f32 %v10988, %v10562
  %v11021 = vadd.f32 %v10989, %v10562
  %v11022 = vmax.f32 %v10990, 0.0
  %v11023 = vmax.f32 %v10991, 0.0
  %v11024 = vmax.f32 %v10992, 0.0
  %v11025 = vmax.f32 %v10993, 0.0
  %v11026 = vmax.f32 %v10994, 0.0
  %v11027 = vmax.f32 %v10995, 0.0
  %v11028 = vmax.f32 %v10996, 0.0
  %v11029 = vmax.f32 %v10997, 0.0
  %v11030 = vmax.f32 %v10998, 0.0
  %v11031 = vmax.f32 %v10999, 0.0
  %v11032 = vmax.f32 %v11000, 0.0
  %v11033 = vmax.f32 %v11001, 0.0
  %v11034 = vmax.f32 %v11002, 0.0
  %v11035 = vmax.f32 %v11003, 0.0
  %v11036 = vmax.f32 %v11004, 0.0
  %v11037 = vmax.f32 %v11005, 0.0
  %v11038 = vmax.f32 %v11006, 0.0
  %v11039 = vmax.f32 %v11007, 0.0
  %v11040 = vmax.f32 %v11008, 0.0
  %v11041 = vmax.f32 %v11009, 0.0
  %v11042 = vmax.f32 %v11010, 0.0
  %v11043 = vmax.f32 %v11011, 0.0
  %v11044 = vmax.f32 %v11012, 0.0
  %v11045 = vmax.f32 %v11013, 0.0
  %v11046 = vmax.f32 %v11014, 0.0
  %v11047 = vmax.f32 %v11015, 0.0
  %v11048 = vmax.f32 %v11016, 0.0
  %v11049 = vmax.f32 %v11017, 0.0
  %v11050 = vmax.f32 %v11018, 0.0
  %v11051 = vmax.f32 %v11019, 0.0
  %v11052 = vmax.f32 %v11020, 0.0
  %v11053 = vmax.f32 %v11021, 0.0
  %v11054 = vpack.c.bf16 %v11022, %v11022
  %v11055 = vpack.c.bf16 %v11023, %v11023
  %v11056 = vpack.c.bf16 %v11024, %v11024
  %v11057 = vpack.c.bf16 %v11025, %v11025
  %v11058 = vpack.c.bf16 %v11026, %v11026
  %v11059 = vpack.c.bf16 %v11027, %v11027
  %v11060 = vpack.c.bf16 %v11028, %v11028
  %v11061 = vpack.c.bf16 %v11029, %v11029
  %v11062 = vpack.c.bf16 %v11030, %v11030
  %v11063 = vpack.c.bf16 %v11031, %v11031
  %v11064 = vpack.c.bf16 %v11032, %v11032
  %v11065 = vpack.c.bf16 %v11033, %v11033
  %v11066 = vpack.c.bf16 %v11034, %v11034
  %v11067 = vpack.c.bf16 %v11035, %v11035
  %v11068 = vpack.c.bf16 %v11036, %v11036
  %v11069 = vpack.c.bf16 %v11037, %v11037
  %v11070 = vpack.c.bf16 %v11038, %v11038
  %v11071 = vpack.c.bf16 %v11039, %v11039
  %v11072 = vpack.c.bf16 %v11040, %v11040
  %v11073 = vpack.c.bf16 %v11041, %v11041
  %v11074 = vpack.c.bf16 %v11042, %v11042
  %v11075 = vpack.c.bf16 %v11043, %v11043
  %v11076 = vpack.c.bf16 %v11044, %v11044
  %v11077 = vpack.c.bf16 %v11045, %v11045
  %v11078 = vpack.c.bf16 %v11046, %v11046
  %v11079 = vpack.c.bf16 %v11047, %v11047
  %v11080 = vpack.c.bf16 %v11048, %v11048
  %v11081 = vpack.c.bf16 %v11049, %v11049
  %v11082 = vpack.c.bf16 %v11050, %v11050
  %v11083 = vpack.c.bf16 %v11051, %v11051
  %v11084 = vpack.c.bf16 %v11052, %v11052
  %v11085 = vpack.c.bf16 %v11053, %v11053
  %s11086 = scalar_lea.vmem %s7, 40
  %v11087 = vld [vmem:[%s11086] sm:$0xf]
  %v11088 = vld [vmem:[%s11086 + $0x4] sm:$0xf]
  %v11089 = vld [vmem:[%s11086 + $0x8] sm:$0xf]
  %v11090 = vld [vmem:[%s11086 + $0xc] sm:$0xf]
  %v11091 = vld [vmem:[%s11086 + $0x10] sm:$0xf]
  %v11092 = vld [vmem:[%s11086 + $0x14] sm:$0xf]
  %v11093 = vld [vmem:[%s11086 + $0x18] sm:$0xf]
  %v11094 = vld [vmem:[%s11086 + $0x1c] sm:$0xf]
  %v11095 = vld [vmem:[%s11086 + $0x20] sm:$0xf]
  %v11096 = vld [vmem:[%s11086 + $0x24] sm:$0xf]
  %v11129 = vunpack.c.l.b16 %v11054
  %v11130 = vunpack.c.l.b16 %v11055
  %v11131 = vunpack.c.l.b16 %v11056
  %v11132 = vunpack.c.l.b16 %v11057
  %v11133 = vunpack.c.l.b16 %v11058
  %v11134 = vunpack.c.l.b16 %v11059
  %v11135 = vunpack.c.l.b16 %v11060
  %v11136 = vunpack.c.l.b16 %v11061
  %v11137 = vunpack.c.l.b16 %v11062
  %v11138 = vunpack.c.l.b16 %v11063
  %v11139 = vunpack.c.l.b16 %v11064
  %v11140 = vunpack.c.l.b16 %v11065
  %v11141 = vunpack.c.l.b16 %v11066
  %v11142 = vunpack.c.l.b16 %v11067
  %v11143 = vunpack.c.l.b16 %v11068
  %v11144 = vunpack.c.l.b16 %v11069
  %v11145 = vunpack.c.l.b16 %v11070
  %v11146 = vunpack.c.l.b16 %v11071
  %v11147 = vunpack.c.l.b16 %v11072
  %v11148 = vunpack.c.l.b16 %v11073
  %v11149 = vunpack.c.l.b16 %v11074
  %v11150 = vunpack.c.l.b16 %v11075
  %v11151 = vunpack.c.l.b16 %v11076
  %v11152 = vunpack.c.l.b16 %v11077
  %v11153 = vunpack.c.l.b16 %v11078
  %v11154 = vunpack.c.l.b16 %v11079
  %v11155 = vunpack.c.l.b16 %v11080
  %v11156 = vunpack.c.l.b16 %v11081
  %v11157 = vunpack.c.l.b16 %v11082
  %v11158 = vunpack.c.l.b16 %v11083
  %v11159 = vunpack.c.l.b16 %v11084
  %v11160 = vunpack.c.l.b16 %v11085
  %v11161 = vrot.slane %v11130, 7
  %v11162 = vsel %vm10735, %v11161, %v11129
  %v11163 = vrot.slane %v11131, 6
  %v11164 = vsel %vm10738, %v11163, %v11162
  %v11165 = vrot.slane %v11132, 5
  %v11166 = vsel %vm10741, %v11165, %v11164
  %v11167 = vrot.slane %v11133, 4
  %v11168 = vsel %vm10744, %v11167, %v11166
  %v11169 = vrot.slane %v11134, 3
  %v11170 = vsel %vm10747, %v11169, %v11168
  %v11171 = vrot.slane %v11135, 2
  %v11172 = vsel %vm10750, %v11171, %v11170
  %v11173 = vrot.slane %v11136, 1
  %v11174 = vsel %vm10753, %v11173, %v11172
  %v11175 = vrot.slane %v11138, 7
  %v11176 = vsel %vm10735, %v11175, %v11137
  %v11177 = vrot.slane %v11139, 6
  %v11178 = vsel %vm10738, %v11177, %v11176
  %v11179 = vrot.slane %v11140, 5
  %v11180 = vsel %vm10741, %v11179, %v11178
  %v11181 = vrot.slane %v11141, 4
  %v11182 = vsel %vm10744, %v11181, %v11180
  %v11183 = vrot.slane %v11142, 3
  %v11184 = vsel %vm10747, %v11183, %v11182
  %v11185 = vrot.slane %v11143, 2
  %v11186 = vsel %vm10750, %v11185, %v11184
  %v11187 = vrot.slane %v11144, 1
  %v11188 = vsel %vm10753, %v11187, %v11186
  %v11189 = vrot.slane %v11146, 7
  %v11190 = vsel %vm10735, %v11189, %v11145
  %v11191 = vrot.slane %v11147, 6
  %v11192 = vsel %vm10738, %v11191, %v11190
  %v11193 = vrot.slane %v11148, 5
  %v11194 = vsel %vm10741, %v11193, %v11192
  %v11195 = vrot.slane %v11149, 4
  %v11196 = vsel %vm10744, %v11195, %v11194
  %v11197 = vrot.slane %v11150, 3
  %v11198 = vsel %vm10747, %v11197, %v11196
  %v11199 = vrot.slane %v11151, 2
  %v11200 = vsel %vm10750, %v11199, %v11198
  %v11201 = vrot.slane %v11152, 1
  %v11202 = vsel %vm10753, %v11201, %v11200
  %v11203 = vrot.slane %v11154, 7
  %v11204 = vsel %vm10735, %v11203, %v11153
  %v11205 = vrot.slane %v11155, 6
  %v11206 = vsel %vm10738, %v11205, %v11204
  %v11207 = vrot.slane %v11156, 5
  %v11208 = vsel %vm10741, %v11207, %v11206
  %v11209 = vrot.slane %v11157, 4
  %v11210 = vsel %vm10744, %v11209, %v11208
  %v11211 = vrot.slane %v11158, 3
  %v11212 = vsel %vm10747, %v11211, %v11210
  %v11213 = vrot.slane %v11159, 2
  %v11214 = vsel %vm10750, %v11213, %v11212
  %v11215 = vrot.slane %v11160, 1
  %v11216 = vsel %vm10753, %v11215, %v11214
  %v11217 = vpack.c.b16 %v11188, %v11174
  %v11218 = vpack.c.b16 %v11216, %v11202
  %v11229 = vunpack.c.l.b16 %v11087
  %v11230 = vunpack.c.l.b16 %v11088
  %v11231 = vunpack.c.l.b16 %v11089
  %v11232 = vunpack.c.l.b16 %v11090
  %v11233 = vunpack.c.l.b16 %v11091
  %v11234 = vunpack.c.l.b16 %v11092
  %v11235 = vunpack.c.l.b16 %v11093
  %v11236 = vunpack.c.l.b16 %v11094
  %v11237 = vunpack.c.l.b16 %v11095
  %v11238 = vunpack.c.l.b16 %v11096
  %v11239 = vpack.c.b16 %v11230, %v11229
  %v11240 = vpack.c.b16 %v11232, %v11231
  %v11241 = vpack.c.b16 %v11234, %v11233
  %v11242 = vpack.c.b16 %v11236, %v11235
  %v11243 = vpack.c.b16 %v11238, %v11237
  %v11250 = vsel %vm10427, %v11217, 0
  %v11253 = vsel %vm10427, %v11218, 0
  %11255 = vmatprep.subr.bf16.mxu0 0
  %11256 = vmatpush1.bf16.msra.mxu0 %v11239
  %11257 = vmatprep.subr.bf16.mxu0 0
  %11258 = vmatpush1.bf16.msra.mxu0 %v11240
  %11259 = vmatprep.subr.bf16.mxu0 0
  %11260 = vmatpush1.bf16.msra.mxu0 %v11241
  %11261 = vmatprep.subr.bf16.mxu0 0
  %11262 = vmatpush1.bf16.msra.mxu0 %v11242
  %11263 = vmatprep.subr.bf16.mxu0 0
  %11264 = vmatpush1.bf16.msra.mxu0 %v11243
  %11265 = vmatprep.subr.bf16.mxu0 0
  %11266 = vmatpush1.bf16.msra.mxu0 0
  %11267 = vmatprep.subr.bf16.mxu0 0
  %11268 = vmatpush1.bf16.msra.mxu0 0
  %11269 = vmatprep.subr.bf16.mxu0 0
  %11270 = vmatpush1.bf16.msra.mxu0 0
  %11271 = vmatprep.subr.bf16.mxu0 0
  %11272 = vmatpush1.bf16.msra.mxu0 0
  %11273 = vmatprep.subr.bf16.mxu0 0
  %11274 = vmatpush1.bf16.msra.mxu0 0
  %11275 = vmatprep.subr.bf16.mxu0 0
  %11276 = vmatpush1.bf16.msra.mxu0 0
  %11277 = vmatprep.subr.bf16.mxu0 0
  %11278 = vmatpush1.bf16.msra.mxu0 0
  %11279 = vmatprep.subr.bf16.mxu0 0
  %11280 = vmatpush1.bf16.msra.mxu0 0
  %11281 = vmatprep.subr.bf16.mxu0 0
  %11282 = vmatpush1.bf16.msra.mxu0 0
  %11283 = vmatprep.subr.bf16.mxu0 0
  %11284 = vmatpush1.bf16.msra.mxu0 0
  %11285 = vmatprep.subr.bf16.mxu0 0
  %11286 = vmatpush1.bf16.msra.mxu0 0
  %11287 = vmatprep.mubr.bf16.mxu0 0
  %11288 = vmatmul.mubr.bf16.gmra.mrb[0].mxu0 %v11250
  %v11289 = vpop.f32.mrb[0].mxu0
  %v11290 = vadd.f32 0.0, %v11289
  %v11291 = vpop.f32.mrb[0].mxu0
  %v11292 = vpop.f32.mrb[0].mxu0
  %v11293 = vadd.f32 0.0, %v11292
  %v11294 = vpop.f32.mrb[0].mxu0
  %11295 = vmatprep.mubr.bf16.mxu0 0
  %11296 = vmatmul.mubr.bf16.gmra.mrb[0].mxu0 %v11253
  %v11297 = vpop.f32.mrb[0].mxu0
  %v11298 = vadd.f32 0.0, %v11297
  %v11299 = vpop.f32.mrb[0].mxu0
  %v11300 = vpop.f32.mrb[0].mxu0
  %v11301 = vadd.f32 0.0, %v11300
  %v11302 = vpop.f32.mrb[0].mxu0
  %11303 = vdwg.mxu0
  %v11304 = vadd.f32 %v10890, %v11290
  %v11305 = vadd.f32 %v10891, %v11293
  %v11306 = vadd.f32 %v10892, %v11298
  %v11307 = vadd.f32 %v10893, %v11301
  %v11308 = vld [vmem:[#allocation3 + $0x4] sm:$0x1]
  %v11309 = vld [vmem:[#allocation3 + $0xc] sm:$0x1]
  %v11310 = vld [vmem:[#allocation3 + $0x14] sm:$0x1]
  %v11311 = vld [vmem:[#allocation3 + $0x1c] sm:$0x1]
  %v11312 = vld [vmem:[#allocation3 + $0x24] sm:$0x1]
  %v11313 = vld [vmem:[#allocation3 + $0x2c] sm:$0x1]
  %v11314 = vld [vmem:[#allocation3 + $0x34] sm:$0x1]
  %v11315 = vld [vmem:[#allocation3 + $0x3c] sm:$0x1]
  %v11316 = vld [vmem:[#allocation3 + $0x44] sm:$0x1]
  %v11317 = vld [vmem:[#allocation3 + $0x4c] sm:$0x1]
  %v11318 = vld [vmem:[#allocation3 + $0x54] sm:$0x1]
  %v11319 = vld [vmem:[#allocation3 + $0x5c] sm:$0x1]
  %v11320 = vld [vmem:[#allocation3 + $0x64] sm:$0x1]
  %v11321 = vld [vmem:[#allocation3 + $0x6c] sm:$0x1]
  %v11322 = vld [vmem:[#allocation3 + $0x74] sm:$0x1]
  %v11323 = vld [vmem:[#allocation3 + $0x7c] sm:$0x1]
  %v11324 = vld [vmem:[#allocation3 + $0x84] sm:$0x1]
  %v11325 = vld [vmem:[#allocation3 + $0x8c] sm:$0x1]
  %v11326 = vld [vmem:[#allocation3 + $0x94] sm:$0x1]
  %v11327 = vld [vmem:[#allocation3 + $0x9c] sm:$0x1]
  %v11328 = vld [vmem:[#allocation3 + $0xa4] sm:$0x1]
  %v11329 = vld [vmem:[#allocation3 + $0xac] sm:$0x1]
  %v11330 = vld [vmem:[#allocation3 + $0xb4] sm:$0x1]
  %v11331 = vld [vmem:[#allocation3 + $0xbc] sm:$0x1]
  %v11332 = vld [vmem:[#allocation3 + $0xc4] sm:$0x1]
  %v11333 = vld [vmem:[#allocation3 + $0xcc] sm:$0x1]
  %v11334 = vld [vmem:[#allocation3 + $0xd4] sm:$0x1]
  %v11335 = vld [vmem:[#allocation3 + $0xdc] sm:$0x1]
  %v11336 = vld [vmem:[#allocation3 + $0xe4] sm:$0x1]
  %v11337 = vld [vmem:[#allocation3 + $0xec] sm:$0x1]
  %v11338 = vld [vmem:[#allocation3 + $0xf4] sm:$0x1]
  %v11339 = vld [vmem:[#allocation3 + $0xfc] sm:$0x1]
  %v11340 = vld [vmem:[#allocation3 + $0x5] sm:$0x1]
  %v11341 = vld [vmem:[#allocation3 + $0xd] sm:$0x1]
  %v11342 = vld [vmem:[#allocation3 + $0x15] sm:$0x1]
  %v11343 = vld [vmem:[#allocation3 + $0x1d] sm:$0x1]
  %v11344 = vld [vmem:[#allocation3 + $0x25] sm:$0x1]
  %v11345 = vld [vmem:[#allocation3 + $0x2d] sm:$0x1]
  %v11346 = vld [vmem:[#allocation3 + $0x35] sm:$0x1]
  %v11347 = vld [vmem:[#allocation3 + $0x3d] sm:$0x1]
  %v11348 = vld [vmem:[#allocation3 + $0x45] sm:$0x1]
  %v11349 = vld [vmem:[#allocation3 + $0x4d] sm:$0x1]
  %v11350 = vld [vmem:[#allocation3 + $0x55] sm:$0x1]
  %v11351 = vld [vmem:[#allocation3 + $0x5d] sm:$0x1]
  %v11352 = vld [vmem:[#allocation3 + $0x65] sm:$0x1]
  %v11353 = vld [vmem:[#allocation3 + $0x6d] sm:$0x1]
  %v11354 = vld [vmem:[#allocation3 + $0x75] sm:$0x1]
  %v11355 = vld [vmem:[#allocation3 + $0x7d] sm:$0x1]
  %v11356 = vld [vmem:[#allocation3 + $0x85] sm:$0x1]
  %v11357 = vld [vmem:[#allocation3 + $0x8d] sm:$0x1]
  %v11358 = vld [vmem:[#allocation3 + $0x95] sm:$0x1]
  %v11359 = vld [vmem:[#allocation3 + $0x9d] sm:$0x1]
  %v11360 = vld [vmem:[#allocation3 + $0xa5] sm:$0x1]
  %v11361 = vld [vmem:[#allocation3 + $0xad] sm:$0x1]
  %v11362 = vld [vmem:[#allocation3 + $0xb5] sm:$0x1]
  %v11363 = vld [vmem:[#allocation3 + $0xbd] sm:$0x1]
  %v11364 = vld [vmem:[#allocation3 + $0xc5] sm:$0x1]
  %v11365 = vld [vmem:[#allocation3 + $0xcd] sm:$0x1]
  %v11366 = vld [vmem:[#allocation3 + $0xd5] sm:$0x1]
  %v11367 = vld [vmem:[#allocation3 + $0xdd] sm:$0x1]
  %v11368 = vld [vmem:[#allocation3 + $0xe5] sm:$0x1]
  %v11369 = vld [vmem:[#allocation3 + $0xed] sm:$0x1]
  %v11370 = vld [vmem:[#allocation3 + $0xf5] sm:$0x1]
  %v11371 = vld [vmem:[#allocation3 + $0xfd] sm:$0x1]
  %v11372 = vmax.f32 %v11308, %v11340
  %v11373 = vmax.f32 %v11309, %v11341
  %v11374 = vmax.f32 %v11310, %v11342
  %v11375 = vmax.f32 %v11311, %v11343
  %v11376 = vmax.f32 %v11312, %v11344
  %v11377 = vmax.f32 %v11313, %v11345
  %v11378 = vmax.f32 %v11314, %v11346
  %v11379 = vmax.f32 %v11315, %v11347
  %v11380 = vmax.f32 %v11316, %v11348
  %v11381 = vmax.f32 %v11317, %v11349
  %v11382 = vmax.f32 %v11318, %v11350
  %v11383 = vmax.f32 %v11319, %v11351
  %v11384 = vmax.f32 %v11320, %v11352
  %v11385 = vmax.f32 %v11321, %v11353
  %v11386 = vmax.f32 %v11322, %v11354
  %v11387 = vmax.f32 %v11323, %v11355
  %v11388 = vmax.f32 %v11324, %v11356
  %v11389 = vmax.f32 %v11325, %v11357
  %v11390 = vmax.f32 %v11326, %v11358
  %v11391 = vmax.f32 %v11327, %v11359
  %v11392 = vmax.f32 %v11328, %v11360
  %v11393 = vmax.f32 %v11329, %v11361
  %v11394 = vmax.f32 %v11330, %v11362
  %v11395 = vmax.f32 %v11331, %v11363
  %v11396 = vmax.f32 %v11332, %v11364
  %v11397 = vmax.f32 %v11333, %v11365
  %v11398 = vmax.f32 %v11334, %v11366
  %v11399 = vmax.f32 %v11335, %v11367
  %v11400 = vmax.f32 %v11336, %v11368
  %v11401 = vmax.f32 %v11337, %v11369
  %v11402 = vmax.f32 %v11338, %v11370
  %v11403 = vmax.f32 %v11339, %v11371
  %v11404 = vadd.f32 %v11372, %v10562
  %v11405 = vadd.f32 %v11373, %v10562
  %v11406 = vadd.f32 %v11374, %v10562
  %v11407 = vadd.f32 %v11375, %v10562
  %v11408 = vadd.f32 %v11376, %v10562
  %v11409 = vadd.f32 %v11377, %v10562
  %v11410 = vadd.f32 %v11378, %v10562
  %v11411 = vadd.f32 %v11379, %v10562
  %v11412 = vadd.f32 %v11380, %v10562
  %v11413 = vadd.f32 %v11381, %v10562
  %v11414 = vadd.f32 %v11382, %v10562
  %v11415 = vadd.f32 %v11383, %v10562
  %v11416 = vadd.f32 %v11384, %v10562
  %v11417 = vadd.f32 %v11385, %v10562
  %v11418 = vadd.f32 %v11386, %v10562
  %v11419 = vadd.f32 %v11387, %v10562
  %v11420 = vadd.f32 %v11388, %v10562
  %v11421 = vadd.f32 %v11389, %v10562
  %v11422 = vadd.f32 %v11390, %v10562
  %v11423 = vadd.f32 %v11391, %v10562
  %v11424 = vadd.f32 %v11392, %v10562
  %v11425 = vadd.f32 %v11393, %v10562
  %v11426 = vadd.f32 %v11394, %v10562
  %v11427 = vadd.f32 %v11395, %v10562
  %v11428 = vadd.f32 %v11396, %v10562
  %v11429 = vadd.f32 %v11397, %v10562
  %v11430 = vadd.f32 %v11398, %v10562
  %v11431 = vadd.f32 %v11399, %v10562
  %v11432 = vadd.f32 %v11400, %v10562
  %v11433 = vadd.f32 %v11401, %v10562
  %v11434 = vadd.f32 %v11402, %v10562
  %v11435 = vadd.f32 %v11403, %v10562
  %v11436 = vmax.f32 %v11404, 0.0
  %v11437 = vmax.f32 %v11405, 0.0
  %v11438 = vmax.f32 %v11406, 0.0
  %v11439 = vmax.f32 %v11407, 0.0
  %v11440 = vmax.f32 %v11408, 0.0
  %v11441 = vmax.f32 %v11409, 0.0
  %v11442 = vmax.f32 %v11410, 0.0
  %v11443 = vmax.f32 %v11411, 0.0
  %v11444 = vmax.f32 %v11412, 0.0
  %v11445 = vmax.f32 %v11413, 0.0
  %v11446 = vmax.f32 %v11414, 0.0
  %v11447 = vmax.f32 %v11415, 0.0
  %v11448 = vmax.f32 %v11416, 0.0
  %v11449 = vmax.f32 %v11417, 0.0
  %v11450 = vmax.f32 %v11418, 0.0
  %v11451 = vmax.f32 %v11419, 0.0
  %v11452 = vmax.f32 %v11420, 0.0
  %v11453 = vmax.f32 %v11421, 0.0
  %v11454 = vmax.f32 %v11422, 0.0
  %v11455 = vmax.f32 %v11423, 0.0
  %v11456 = vmax.f32 %v11424, 0.0
  %v11457 = vmax.f32 %v11425, 0.0
  %v11458 = vmax.f32 %v11426, 0.0
  %v11459 = vmax.f32 %v11427, 0.0
  %v11460 = vmax.f32 %v11428, 0.0
  %v11461 = vmax.f32 %v11429, 0.0
  %v11462 = vmax.f32 %v11430, 0.0
  %v11463 = vmax.f32 %v11431, 0.0
  %v11464 = vmax.f32 %v11432, 0.0
  %v11465 = vmax.f32 %v11433, 0.0
  %v11466 = vmax.f32 %v11434, 0.0
  %v11467 = vmax.f32 %v11435, 0.0
  %v11468 = vpack.c.bf16 %v11436, %v11436
  %v11469 = vpack.c.bf16 %v11437, %v11437
  %v11470 = vpack.c.bf16 %v11438, %v11438
  %v11471 = vpack.c.bf16 %v11439, %v11439
  %v11472 = vpack.c.bf16 %v11440, %v11440
  %v11473 = vpack.c.bf16 %v11441, %v11441
  %v11474 = vpack.c.bf16 %v11442, %v11442
  %v11475 = vpack.c.bf16 %v11443, %v11443
  %v11476 = vpack.c.bf16 %v11444, %v11444
  %v11477 = vpack.c.bf16 %v11445, %v11445
  %v11478 = vpack.c.bf16 %v11446, %v11446
  %v11479 = vpack.c.bf16 %v11447, %v11447
  %v11480 = vpack.c.bf16 %v11448, %v11448
  %v11481 = vpack.c.bf16 %v11449, %v11449
  %v11482 = vpack.c.bf16 %v11450, %v11450
  %v11483 = vpack.c.bf16 %v11451, %v11451
  %v11484 = vpack.c.bf16 %v11452, %v11452
  %v11485 = vpack.c.bf16 %v11453, %v11453
  %v11486 = vpack.c.bf16 %v11454, %v11454
  %v11487 = vpack.c.bf16 %v11455, %v11455
  %v11488 = vpack.c.bf16 %v11456, %v11456
  %v11489 = vpack.c.bf16 %v11457, %v11457
  %v11490 = vpack.c.bf16 %v11458, %v11458
  %v11491 = vpack.c.bf16 %v11459, %v11459
  %v11492 = vpack.c.bf16 %v11460, %v11460
  %v11493 = vpack.c.bf16 %v11461, %v11461
  %v11494 = vpack.c.bf16 %v11462, %v11462
  %v11495 = vpack.c.bf16 %v11463, %v11463
  %v11496 = vpack.c.bf16 %v11464, %v11464
  %v11497 = vpack.c.bf16 %v11465, %v11465
  %v11498 = vpack.c.bf16 %v11466, %v11466
  %v11499 = vpack.c.bf16 %v11467, %v11467
  %s11500 = scalar_lea.vmem %s7, 80
  %v11501 = vld [vmem:[%s11500] sm:$0xf]
  %v11502 = vld [vmem:[%s11500 + $0x4] sm:$0xf]
  %v11503 = vld [vmem:[%s11500 + $0x8] sm:$0xf]
  %v11504 = vld [vmem:[%s11500 + $0xc] sm:$0xf]
  %v11505 = vld [vmem:[%s11500 + $0x10] sm:$0xf]
  %v11506 = vld [vmem:[%s11500 + $0x14] sm:$0xf]
  %v11507 = vld [vmem:[%s11500 + $0x18] sm:$0xf]
  %v11508 = vld [vmem:[%s11500 + $0x1c] sm:$0xf]
  %v11509 = vld [vmem:[%s11500 + $0x20] sm:$0xf]
  %v11510 = vld [vmem:[%s11500 + $0x24] sm:$0xf]
  %v11543 = vunpack.c.l.b16 %v11468
  %v11544 = vunpack.c.l.b16 %v11469
  %v11545 = vunpack.c.l.b16 %v11470
  %v11546 = vunpack.c.l.b16 %v11471
  %v11547 = vunpack.c.l.b16 %v11472
  %v11548 = vunpack.c.l.b16 %v11473
  %v11549 = vunpack.c.l.b16 %v11474
  %v11550 = vunpack.c.l.b16 %v11475
  %v11551 = vunpack.c.l.b16 %v11476
  %v11552 = vunpack.c.l.b16 %v11477
  %v11553 = vunpack.c.l.b16 %v11478
  %v11554 = vunpack.c.l.b16 %v11479
  %v11555 = vunpack.c.l.b16 %v11480
  %v11556 = vunpack.c.l.b16 %v11481
  %v11557 = vunpack.c.l.b16 %v11482
  %v11558 = vunpack.c.l.b16 %v11483
  %v11559 = vunpack.c.l.b16 %v11484
  %v11560 = vunpack.c.l.b16 %v11485
  %v11561 = vunpack.c.l.b16 %v11486
  %v11562 = vunpack.c.l.b16 %v11487
  %v11563 = vunpack.c.l.b16 %v11488
  %v11564 = vunpack.c.l.b16 %v11489
  %v11565 = vunpack.c.l.b16 %v11490
  %v11566 = vunpack.c.l.b16 %v11491
  %v11567 = vunpack.c.l.b16 %v11492
  %v11568 = vunpack.c.l.b16 %v11493
  %v11569 = vunpack.c.l.b16 %v11494
  %v11570 = vunpack.c.l.b16 %v11495
  %v11571 = vunpack.c.l.b16 %v11496
  %v11572 = vunpack.c.l.b16 %v11497
  %v11573 = vunpack.c.l.b16 %v11498
  %v11574 = vunpack.c.l.b16 %v11499
  %v11575 = vrot.slane %v11544, 7
  %v11576 = vsel %vm10735, %v11575, %v11543
  %v11577 = vrot.slane %v11545, 6
  %v11578 = vsel %vm10738, %v11577, %v11576
  %v11579 = vrot.slane %v11546, 5
  %v11580 = vsel %vm10741, %v11579, %v11578
  %v11581 = vrot.slane %v11547, 4
  %v11582 = vsel %vm10744, %v11581, %v11580
  %v11583 = vrot.slane %v11548, 3
  %v11584 = vsel %vm10747, %v11583, %v11582
  %v11585 = vrot.slane %v11549, 2
  %v11586 = vsel %vm10750, %v11585, %v11584
  %v11587 = vrot.slane %v11550, 1
  %v11588 = vsel %vm10753, %v11587, %v11586
  %v11589 = vrot.slane %v11552, 7
  %v11590 = vsel %vm10735, %v11589, %v11551
  %v11591 = vrot.slane %v11553, 6
  %v11592 = vsel %vm10738, %v11591, %v11590
  %v11593 = vrot.slane %v11554, 5
  %v11594 = vsel %vm10741, %v11593, %v11592
  %v11595 = vrot.slane %v11555, 4
  %v11596 = vsel %vm10744, %v11595, %v11594
  %v11597 = vrot.slane %v11556, 3
  %v11598 = vsel %vm10747, %v11597, %v11596
  %v11599 = vrot.slane %v11557, 2
  %v11600 = vsel %vm10750, %v11599, %v11598
  %v11601 = vrot.slane %v11558, 1
  %v11602 = vsel %vm10753, %v11601, %v11600
  %v11603 = vrot.slane %v11560, 7
  %v11604 = vsel %vm10735, %v11603, %v11559
  %v11605 = vrot.slane %v11561, 6
  %v11606 = vsel %vm10738, %v11605, %v11604
  %v11607 = vrot.slane %v11562, 5
  %v11608 = vsel %vm10741, %v11607, %v11606
  %v11609 = vrot.slane %v11563, 4
  %v11610 = vsel %vm10744, %v11609, %v11608
  %v11611 = vrot.slane %v11564, 3
  %v11612 = vsel %vm10747, %v11611, %v11610
  %v11613 = vrot.slane %v11565, 2
  %v11614 = vsel %vm10750, %v11613, %v11612
  %v11615 = vrot.slane %v11566, 1
  %v11616 = vsel %vm10753, %v11615, %v11614
  %v11617 = vrot.slane %v11568, 7
  %v11618 = vsel %vm10735, %v11617, %v11567
  %v11619 = vrot.slane %v11569, 6
  %v11620 = vsel %vm10738, %v11619, %v11618
  %v11621 = vrot.slane %v11570, 5
  %v11622 = vsel %vm10741, %v11621, %v11620
  %v11623 = vrot.slane %v11571, 4
  %v11624 = vsel %vm10744, %v11623, %v11622
  %v11625 = vrot.slane %v11572, 3
  %v11626 = vsel %vm10747, %v11625, %v11624
  %v11627 = vrot.slane %v11573, 2
  %v11628 = vsel %vm10750, %v11627, %v11626
  %v11629 = vrot.slane %v11574, 1
  %v11630 = vsel %vm10753, %v11629, %v11628
  %v11631 = vpack.c.b16 %v11602, %v11588
  %v11632 = vpack.c.b16 %v11630, %v11616
  %v11643 = vunpack.c.l.b16 %v11501
  %v11644 = vunpack.c.l.b16 %v11502
  %v11645 = vunpack.c.l.b16 %v11503
  %v11646 = vunpack.c.l.b16 %v11504
  %v11647 = vunpack.c.l.b16 %v11505
  %v11648 = vunpack.c.l.b16 %v11506
  %v11649 = vunpack.c.l.b16 %v11507
  %v11650 = vunpack.c.l.b16 %v11508
  %v11651 = vunpack.c.l.b16 %v11509
  %v11652 = vunpack.c.l.b16 %v11510
  %v11653 = vpack.c.b16 %v11644, %v11643
  %v11654 = vpack.c.b16 %v11646, %v11645
  %v11655 = vpack.c.b16 %v11648, %v11647
  %v11656 = vpack.c.b16 %v11650, %v11649
  %v11657 = vpack.c.b16 %v11652, %v11651
  %v11664 = vsel %vm10427, %v11631, 0
  %v11667 = vsel %vm10427, %v11632, 0
  %11669 = vmatprep.subr.bf16.mxu0 0
  %11670 = vmatpush1.bf16.msra.mxu0 %v11653
  %11671 = vmatprep.subr.bf16.mxu0 0
  %11672 = vmatpush1.bf16.msra.mxu0 %v11654
  %11673 = vmatprep.subr.bf16.mxu0 0
  %11674 = vmatpush1.bf16.msra.mxu0 %v11655
  %11675 = vmatprep.subr.bf16.mxu0 0
  %11676 = vmatpush1.bf16.msra.mxu0 %v11656
  %11677 = vmatprep.subr.bf16.mxu0 0
  %11678 = vmatpush1.bf16.msra.mxu0 %v11657
  %11679 = vmatprep.subr.bf16.mxu0 0
  %11680 = vmatpush1.bf16.msra.mxu0 0
  %11681 = vmatprep.subr.bf16.mxu0 0
  %11682 = vmatpush1.bf16.msra.mxu0 0
  %11683 = vmatprep.subr.bf16.mxu0 0
  %11684 = vmatpush1.bf16.msra.mxu0 0
  %11685 = vmatprep.subr.bf16.mxu0 0
  %11686 = vmatpush1.bf16.msra.mxu0 0
  %11687 = vmatprep.subr.bf16.mxu0 0
  %11688 = vmatpush1.bf16.msra.mxu0 0
  %11689 = vmatprep.subr.bf16.mxu0 0
  %11690 = vmatpush1.bf16.msra.mxu0 0
  %11691 = vmatprep.subr.bf16.mxu0 0
  %11692 = vmatpush1.bf16.msra.mxu0 0
  %11693 = vmatprep.subr.bf16.mxu0 0
  %11694 = vmatpush1.bf16.msra.mxu0 0
  %11695 = vmatprep.subr.bf16.mxu0 0
  %11696 = vmatpush1.bf16.msra.mxu0 0
  %11697 = vmatprep.subr.bf16.mxu0 0
  %11698 = vmatpush1.bf16.msra.mxu0 0
  %11699 = vmatprep.subr.bf16.mxu0 0
  %11700 = vmatpush1.bf16.msra.mxu0 0
  %11701 = vmatprep.mubr.bf16.mxu0 0
  %11702 = vmatmul.mubr.bf16.gmra.mrb[0].mxu0 %v11664
  %v11703 = vpop.f32.mrb[0].mxu0
  %v11704 = vadd.f32 0.0, %v11703
  %v11705 = vpop.f32.mrb[0].mxu0
  %v11706 = vpop.f32.mrb[0].mxu0
  %v11707 = vadd.f32 0.0, %v11706
  %v11708 = vpop.f32.mrb[0].mxu0
  %11709 = vmatprep.mubr.bf16.mxu0 0
  %11710 = vmatmul.mubr.bf16.gmra.mrb[0].mxu0 %v11667
  %v11711 = vpop.f32.mrb[0].mxu0
  %v11712 = vadd.f32 0.0, %v11711
  %v11713 = vpop.f32.mrb[0].mxu0
  %v11714 = vpop.f32.mrb[0].mxu0
  %v11715 = vadd.f32 0.0, %v11714
  %v11716 = vpop.f32.mrb[0].mxu0
  %11717 = vdwg.mxu0
  %v11718 = vadd.f32 %v11304, %v11704
  %v11719 = vadd.f32 %v11305, %v11707
  %v11720 = vadd.f32 %v11306, %v11712
  %v11721 = vadd.f32 %v11307, %v11715
  %v11722 = vld [vmem:[#allocation3 + $0x6] sm:$0x1]
  %v11723 = vld [vmem:[#allocation3 + $0xe] sm:$0x1]
  %v11724 = vld [vmem:[#allocation3 + $0x16] sm:$0x1]
  %v11725 = vld [vmem:[#allocation3 + $0x1e] sm:$0x1]
  %v11726 = vld [vmem:[#allocation3 + $0x26] sm:$0x1]
  %v11727 = vld [vmem:[#allocation3 + $0x2e] sm:$0x1]
  %v11728 = vld [vmem:[#allocation3 + $0x36] sm:$0x1]
  %v11729 = vld [vmem:[#allocation3 + $0x3e] sm:$0x1]
  %v11730 = vld [vmem:[#allocation3 + $0x46] sm:$0x1]
  %v11731 = vld [vmem:[#allocation3 + $0x4e] sm:$0x1]
  %v11732 = vld [vmem:[#allocation3 + $0x56] sm:$0x1]
  %v11733 = vld [vmem:[#allocation3 + $0x5e] sm:$0x1]
  %v11734 = vld [vmem:[#allocation3 + $0x66] sm:$0x1]
  %v11735 = vld [vmem:[#allocation3 + $0x6e] sm:$0x1]
  %v11736 = vld [vmem:[#allocation3 + $0x76] sm:$0x1]
  %v11737 = vld [vmem:[#allocation3 + $0x7e] sm:$0x1]
  %v11738 = vld [vmem:[#allocation3 + $0x86] sm:$0x1]
  %v11739 = vld [vmem:[#allocation3 + $0x8e] sm:$0x1]
  %v11740 = vld [vmem:[#allocation3 + $0x96] sm:$0x1]
  %v11741 = vld [vmem:[#allocation3 + $0x9e] sm:$0x1]
  %v11742 = vld [vmem:[#allocation3 + $0xa6] sm:$0x1]
  %v11743 = vld [vmem:[#allocation3 + $0xae] sm:$0x1]
  %v11744 = vld [vmem:[#allocation3 + $0xb6] sm:$0x1]
  %v11745 = vld [vmem:[#allocation3 + $0xbe] sm:$0x1]
  %v11746 = vld [vmem:[#allocation3 + $0xc6] sm:$0x1]
  %v11747 = vld [vmem:[#allocation3 + $0xce] sm:$0x1]
  %v11748 = vld [vmem:[#allocation3 + $0xd6] sm:$0x1]
  %v11749 = vld [vmem:[#allocation3 + $0xde] sm:$0x1]
  %v11750 = vld [vmem:[#allocation3 + $0xe6] sm:$0x1]
  %v11751 = vld [vmem:[#allocation3 + $0xee] sm:$0x1]
  %v11752 = vld [vmem:[#allocation3 + $0xf6] sm:$0x1]
  %v11753 = vld [vmem:[#allocation3 + $0xfe] sm:$0x1]
  %v11754 = vld [vmem:[#allocation3 + $0x7] sm:$0x1]
  %v11755 = vld [vmem:[#allocation3 + $0xf] sm:$0x1]
  %v11756 = vld [vmem:[#allocation3 + $0x17] sm:$0x1]
  %v11757 = vld [vmem:[#allocation3 + $0x1f] sm:$0x1]
  %v11758 = vld [vmem:[#allocation3 + $0x27] sm:$0x1]
  %v11759 = vld [vmem:[#allocation3 + $0x2f] sm:$0x1]
  %v11760 = vld [vmem:[#allocation3 + $0x37] sm:$0x1]
  %v11761 = vld [vmem:[#allocation3 + $0x3f] sm:$0x1]
  %v11762 = vld [vmem:[#allocation3 + $0x47] sm:$0x1]
  %v11763 = vld [vmem:[#allocation3 + $0x4f] sm:$0x1]
  %v11764 = vld [vmem:[#allocation3 + $0x57] sm:$0x1]
  %v11765 = vld [vmem:[#allocation3 + $0x5f] sm:$0x1]
  %v11766 = vld [vmem:[#allocation3 + $0x67] sm:$0x1]
  %v11767 = vld [vmem:[#allocation3 + $0x6f] sm:$0x1]
  %v11768 = vld [vmem:[#allocation3 + $0x77] sm:$0x1]
  %v11769 = vld [vmem:[#allocation3 + $0x7f] sm:$0x1]
  %v11770 = vld [vmem:[#allocation3 + $0x87] sm:$0x1]
  %v11771 = vld [vmem:[#allocation3 + $0x8f] sm:$0x1]
  %v11772 = vld [vmem:[#allocation3 + $0x97] sm:$0x1]
  %v11773 = vld [vmem:[#allocation3 + $0x9f] sm:$0x1]
  %v11774 = vld [vmem:[#allocation3 + $0xa7] sm:$0x1]
  %v11775 = vld [vmem:[#allocation3 + $0xaf] sm:$0x1]
  %v11776 = vld [vmem:[#allocation3 + $0xb7] sm:$0x1]
  %v11777 = vld [vmem:[#allocation3 + $0xbf] sm:$0x1]
  %v11778 = vld [vmem:[#allocation3 + $0xc7] sm:$0x1]
  %v11779 = vld [vmem:[#allocation3 + $0xcf] sm:$0x1]
  %v11780 = vld [vmem:[#allocation3 + $0xd7] sm:$0x1]
  %v11781 = vld [vmem:[#allocation3 + $0xdf] sm:$0x1]
  %v11782 = vld [vmem:[#allocation3 + $0xe7] sm:$0x1]
  %v11783 = vld [vmem:[#allocation3 + $0xef] sm:$0x1]
  %v11784 = vld [vmem:[#allocation3 + $0xf7] sm:$0x1]
  %v11785 = vld [vmem:[#allocation3 + $0xff] sm:$0x1]
  %v11786 = vmax.f32 %v11722, %v11754
  %v11787 = vmax.f32 %v11723, %v11755
  %v11788 = vmax.f32 %v11724, %v11756
  %v11789 = vmax.f32 %v11725, %v11757
  %v11790 = vmax.f32 %v11726, %v11758
  %v11791 = vmax.f32 %v11727, %v11759
  %v11792 = vmax.f32 %v11728, %v11760
  %v11793 = vmax.f32 %v11729, %v11761
  %v11794 = vmax.f32 %v11730, %v11762
  %v11795 = vmax.f32 %v11731, %v11763
  %v11796 = vmax.f32 %v11732, %v11764
  %v11797 = vmax.f32 %v11733, %v11765
  %v11798 = vmax.f32 %v11734, %v11766
  %v11799 = vmax.f32 %v11735, %v11767
  %v11800 = vmax.f32 %v11736, %v11768
  %v11801 = vmax.f32 %v11737, %v11769
  %v11802 = vmax.f32 %v11738, %v11770
  %v11803 = vmax.f32 %v11739, %v11771
  %v11804 = vmax.f32 %v11740, %v11772
  %v11805 = vmax.f32 %v11741, %v11773
  %v11806 = vmax.f32 %v11742, %v11774
  %v11807 = vmax.f32 %v11743, %v11775
  %v11808 = vmax.f32 %v11744, %v11776
  %v11809 = vmax.f32 %v11745, %v11777
  %v11810 = vmax.f32 %v11746, %v11778
  %v11811 = vmax.f32 %v11747, %v11779
  %v11812 = vmax.f32 %v11748, %v11780
  %v11813 = vmax.f32 %v11749, %v11781
  %v11814 = vmax.f32 %v11750, %v11782
  %v11815 = vmax.f32 %v11751, %v11783
  %v11816 = vmax.f32 %v11752, %v11784
  %v11817 = vmax.f32 %v11753, %v11785
  %v11818 = vadd.f32 %v11786, %v10562
  %v11819 = vadd.f32 %v11787, %v10562
  %v11820 = vadd.f32 %v11788, %v10562
  %v11821 = vadd.f32 %v11789, %v10562
  %v11822 = vadd.f32 %v11790, %v10562
  %v11823 = vadd.f32 %v11791, %v10562
  %v11824 = vadd.f32 %v11792, %v10562
  %v11825 = vadd.f32 %v11793, %v10562
  %v11826 = vadd.f32 %v11794, %v10562
  %v11827 = vadd.f32 %v11795, %v10562
  %v11828 = vadd.f32 %v11796, %v10562
  %v11829 = vadd.f32 %v11797, %v10562
  %v11830 = vadd.f32 %v11798, %v10562
  %v11831 = vadd.f32 %v11799, %v10562
  %v11832 = vadd.f32 %v11800, %v10562
  %v11833 = vadd.f32 %v11801, %v10562
  %v11834 = vadd.f32 %v11802, %v10562
  %v11835 = vadd.f32 %v11803, %v10562
  %v11836 = vadd.f32 %v11804, %v10562
  %v11837 = vadd.f32 %v11805, %v10562
  %v11838 = vadd.f32 %v11806, %v10562
  %v11839 = vadd.f32 %v11807, %v10562
  %v11840 = vadd.f32 %v11808, %v10562
  %v11841 = vadd.f32 %v11809, %v10562
  %v11842 = vadd.f32 %v11810, %v10562
  %v11843 = vadd.f32 %v11811, %v10562
  %v11844 = vadd.f32 %v11812, %v10562
  %v11845 = vadd.f32 %v11813, %v10562
  %v11846 = vadd.f32 %v11814, %v10562
  %v11847 = vadd.f32 %v11815, %v10562
  %v11848 = vadd.f32 %v11816, %v10562
  %v11849 = vadd.f32 %v11817, %v10562
  %v11850 = vmax.f32 %v11818, 0.0
  %v11851 = vmax.f32 %v11819, 0.0
  %v11852 = vmax.f32 %v11820, 0.0
  %v11853 = vmax.f32 %v11821, 0.0
  %v11854 = vmax.f32 %v11822, 0.0
  %v11855 = vmax.f32 %v11823, 0.0
  %v11856 = vmax.f32 %v11824, 0.0
  %v11857 = vmax.f32 %v11825, 0.0
  %v11858 = vmax.f32 %v11826, 0.0
  %v11859 = vmax.f32 %v11827, 0.0
  %v11860 = vmax.f32 %v11828, 0.0
  %v11861 = vmax.f32 %v11829, 0.0
  %v11862 = vmax.f32 %v11830, 0.0
  %v11863 = vmax.f32 %v11831, 0.0
  %v11864 = vmax.f32 %v11832, 0.0
  %v11865 = vmax.f32 %v11833, 0.0
  %v11866 = vmax.f32 %v11834, 0.0
  %v11867 = vmax.f32 %v11835, 0.0
  %v11868 = vmax.f32 %v11836, 0.0
  %v11869 = vmax.f32 %v11837, 0.0
  %v11870 = vmax.f32 %v11838, 0.0
  %v11871 = vmax.f32 %v11839, 0.0
  %v11872 = vmax.f32 %v11840, 0.0
  %v11873 = vmax.f32 %v11841, 0.0
  %v11874 = vmax.f32 %v11842, 0.0
  %v11875 = vmax.f32 %v11843, 0.0
  %v11876 = vmax.f32 %v11844, 0.0
  %v11877 = vmax.f32 %v11845, 0.0
  %v11878 = vmax.f32 %v11846, 0.0
  %v11879 = vmax.f32 %v11847, 0.0
  %v11880 = vmax.f32 %v11848, 0.0
  %v11881 = vmax.f32 %v11849, 0.0
  %v11882 = vpack.c.bf16 %v11850, %v11850
  %v11883 = vpack.c.bf16 %v11851, %v11851
  %v11884 = vpack.c.bf16 %v11852, %v11852
  %v11885 = vpack.c.bf16 %v11853, %v11853
  %v11886 = vpack.c.bf16 %v11854, %v11854
  %v11887 = vpack.c.bf16 %v11855, %v11855
  %v11888 = vpack.c.bf16 %v11856, %v11856
  %v11889 = vpack.c.bf16 %v11857, %v11857
  %v11890 = vpack.c.bf16 %v11858, %v11858
  %v11891 = vpack.c.bf16 %v11859, %v11859
  %v11892 = vpack.c.bf16 %v11860, %v11860
  %v11893 = vpack.c.bf16 %v11861, %v11861
  %v11894 = vpack.c.bf16 %v11862, %v11862
  %v11895 = vpack.c.bf16 %v11863, %v11863
  %v11896 = vpack.c.bf16 %v11864, %v11864
  %v11897 = vpack.c.bf16 %v11865, %v11865
  %v11898 = vpack.c.bf16 %v11866, %v11866
  %v11899 = vpack.c.bf16 %v11867, %v11867
  %v11900 = vpack.c.bf16 %v11868, %v11868
  %v11901 = vpack.c.bf16 %v11869, %v11869
  %v11902 = vpack.c.bf16 %v11870, %v11870
  %v11903 = vpack.c.bf16 %v11871, %v11871
  %v11904 = vpack.c.bf16 %v11872, %v11872
  %v11905 = vpack.c.bf16 %v11873, %v11873
  %v11906 = vpack.c.bf16 %v11874, %v11874
  %v11907 = vpack.c.bf16 %v11875, %v11875
  %v11908 = vpack.c.bf16 %v11876, %v11876
  %v11909 = vpack.c.bf16 %v11877, %v11877
  %v11910 = vpack.c.bf16 %v11878, %v11878
  %v11911 = vpack.c.bf16 %v11879, %v11879
  %v11912 = vpack.c.bf16 %v11880, %v11880
  %v11913 = vpack.c.bf16 %v11881, %v11881
  %s11914 = scalar_lea.vmem %s7, 120
  %v11915 = vld [vmem:[%s11914] sm:$0xf]
  %v11916 = vld [vmem:[%s11914 + $0x4] sm:$0xf]
  %v11917 = vld [vmem:[%s11914 + $0x8] sm:$0xf]
  %v11918 = vld [vmem:[%s11914 + $0xc] sm:$0xf]
  %v11919 = vld [vmem:[%s11914 + $0x10] sm:$0xf]
  %v11920 = vld [vmem:[%s11914 + $0x14] sm:$0xf]
  %v11921 = vld [vmem:[%s11914 + $0x18] sm:$0xf]
  %v11922 = vld [vmem:[%s11914 + $0x1c] sm:$0xf]
  %v11923 = vld [vmem:[%s11914 + $0x20] sm:$0xf]
  %v11924 = vld [vmem:[%s11914 + $0x24] sm:$0xf]
  %v11957 = vunpack.c.l.b16 %v11882
  %v11958 = vunpack.c.l.b16 %v11883
  %v11959 = vunpack.c.l.b16 %v11884
  %v11960 = vunpack.c.l.b16 %v11885
  %v11961 = vunpack.c.l.b16 %v11886
  %v11962 = vunpack.c.l.b16 %v11887
  %v11963 = vunpack.c.l.b16 %v11888
  %v11964 = vunpack.c.l.b16 %v11889
  %v11965 = vunpack.c.l.b16 %v11890
  %v11966 = vunpack.c.l.b16 %v11891
  %v11967 = vunpack.c.l.b16 %v11892
  %v11968 = vunpack.c.l.b16 %v11893
  %v11969 = vunpack.c.l.b16 %v11894
  %v11970 = vunpack.c.l.b16 %v11895
  %v11971 = vunpack.c.l.b16 %v11896
  %v11972 = vunpack.c.l.b16 %v11897
  %v11973 = vunpack.c.l.b16 %v11898
  %v11974 = vunpack.c.l.b16 %v11899
  %v11975 = vunpack.c.l.b16 %v11900
  %v11976 = vunpack.c.l.b16 %v11901
  %v11977 = vunpack.c.l.b16 %v11902
  %v11978 = vunpack.c.l.b16 %v11903
  %v11979 = vunpack.c.l.b16 %v11904
  %v11980 = vunpack.c.l.b16 %v11905
  %v11981 = vunpack.c.l.b16 %v11906
  %v11982 = vunpack.c.l.b16 %v11907
  %v11983 = vunpack.c.l.b16 %v11908
  %v11984 = vunpack.c.l.b16 %v11909
  %v11985 = vunpack.c.l.b16 %v11910
  %v11986 = vunpack.c.l.b16 %v11911
  %v11987 = vunpack.c.l.b16 %v11912
  %v11988 = vunpack.c.l.b16 %v11913
  %v11989 = vrot.slane %v11958, 7
  %v11990 = vsel %vm10735, %v11989, %v11957
  %v11991 = vrot.slane %v11959, 6
  %v11992 = vsel %vm10738, %v11991, %v11990
  %v11993 = vrot.slane %v11960, 5
  %v11994 = vsel %vm10741, %v11993, %v11992
  %v11995 = vrot.slane %v11961, 4
  %v11996 = vsel %vm10744, %v11995, %v11994
  %v11997 = vrot.slane %v11962, 3
  %v11998 = vsel %vm10747, %v11997, %v11996
  %v11999 = vrot.slane %v11963, 2
  %v12000 = vsel %vm10750, %v11999, %v11998
  %v12001 = vrot.slane %v11964, 1
  %v12002 = vsel %vm10753, %v12001, %v12000
  %v12003 = vrot.slane %v11966, 7
  %v12004 = vsel %vm10735, %v12003, %v11965
  %v12005 = vrot.slane %v11967, 6
  %v12006 = vsel %vm10738, %v12005, %v12004
  %v12007 = vrot.slane %v11968, 5
  %v12008 = vsel %vm10741, %v12007, %v12006
  %v12009 = vrot.slane %v11969, 4
  %v12010 = vsel %vm10744, %v12009, %v12008
  %v12011 = vrot.slane %v11970, 3
  %v12012 = vsel %vm10747, %v12011, %v12010
  %v12013 = vrot.slane %v11971, 2
  %v12014 = vsel %vm10750, %v12013, %v12012
  %v12015 = vrot.slane %v11972, 1
  %v12016 = vsel %vm10753, %v12015, %v12014
  %v12017 = vrot.slane %v11974, 7
  %v12018 = vsel %vm10735, %v12017, %v11973
  %v12019 = vrot.slane %v11975, 6
  %v12020 = vsel %vm10738, %v12019, %v12018
  %v12021 = vrot.slane %v11976, 5
  %v12022 = vsel %vm10741, %v12021, %v12020
  %v12023 = vrot.slane %v11977, 4
  %v12024 = vsel %vm10744, %v12023, %v12022
  %v12025 = vrot.slane %v11978, 3
  %v12026 = vsel %vm10747, %v12025, %v12024
  %v12027 = vrot.slane %v11979, 2
  %v12028 = vsel %vm10750, %v12027, %v12026
  %v12029 = vrot.slane %v11980, 1
  %v12030 = vsel %vm10753, %v12029, %v12028
  %v12031 = vrot.slane %v11982, 7
  %v12032 = vsel %vm10735, %v12031, %v11981
  %v12033 = vrot.slane %v11983, 6
  %v12034 = vsel %vm10738, %v12033, %v12032
  %v12035 = vrot.slane %v11984, 5
  %v12036 = vsel %vm10741, %v12035, %v12034
  %v12037 = vrot.slane %v11985, 4
  %v12038 = vsel %vm10744, %v12037, %v12036
  %v12039 = vrot.slane %v11986, 3
  %v12040 = vsel %vm10747, %v12039, %v12038
  %v12041 = vrot.slane %v11987, 2
  %v12042 = vsel %vm10750, %v12041, %v12040
  %v12043 = vrot.slane %v11988, 1
  %v12044 = vsel %vm10753, %v12043, %v12042
  %v12045 = vpack.c.b16 %v12016, %v12002
  %v12046 = vpack.c.b16 %v12044, %v12030
  %v12057 = vunpack.c.l.b16 %v11915
  %v12058 = vunpack.c.l.b16 %v11916
  %v12059 = vunpack.c.l.b16 %v11917
  %v12060 = vunpack.c.l.b16 %v11918
  %v12061 = vunpack.c.l.b16 %v11919
  %v12062 = vunpack.c.l.b16 %v11920
  %v12063 = vunpack.c.l.b16 %v11921
  %v12064 = vunpack.c.l.b16 %v11922
  %v12065 = vunpack.c.l.b16 %v11923
  %v12066 = vunpack.c.l.b16 %v11924
  %v12067 = vpack.c.b16 %v12058, %v12057
  %v12068 = vpack.c.b16 %v12060, %v12059
  %v12069 = vpack.c.b16 %v12062, %v12061
  %v12070 = vpack.c.b16 %v12064, %v12063
  %v12071 = vpack.c.b16 %v12066, %v12065
  %v12078 = vsel %vm10427, %v12045, 0
  %v12081 = vsel %vm10427, %v12046, 0
  %12083 = vmatprep.subr.bf16.mxu0 0
  %12084 = vmatpush1.bf16.msra.mxu0 %v12067
  %12085 = vmatprep.subr.bf16.mxu0 0
  %12086 = vmatpush1.bf16.msra.mxu0 %v12068
  %12087 = vmatprep.subr.bf16.mxu0 0
  %12088 = vmatpush1.bf16.msra.mxu0 %v12069
  %12089 = vmatprep.subr.bf16.mxu0 0
  %12090 = vmatpush1.bf16.msra.mxu0 %v12070
  %12091 = vmatprep.subr.bf16.mxu0 0
  %12092 = vmatpush1.bf16.msra.mxu0 %v12071
  %12093 = vmatprep.subr.bf16.mxu0 0
  %12094 = vmatpush1.bf16.msra.mxu0 0
  %12095 = vmatprep.subr.bf16.mxu0 0
  %12096 = vmatpush1.bf16.msra.mxu0 0
  %12097 = vmatprep.subr.bf16.mxu0 0
  %12098 = vmatpush1.bf16.msra.mxu0 0
  %12099 = vmatprep.subr.bf16.mxu0 0
  %12100 = vmatpush1.bf16.msra.mxu0 0
  %12101 = vmatprep.subr.bf16.mxu0 0
  %12102 = vmatpush1.bf16.msra.mxu0 0
  %12103 = vmatprep.subr.bf16.mxu0 0
  %12104 = vmatpush1.bf16.msra.mxu0 0
  %12105 = vmatprep.subr.bf16.mxu0 0
  %12106 = vmatpush1.bf16.msra.mxu0 0
  %12107 = vmatprep.subr.bf16.mxu0 0
  %12108 = vmatpush1.bf16.msra.mxu0 0
  %12109 = vmatprep.subr.bf16.mxu0 0
  %12110 = vmatpush1.bf16.msra.mxu0 0
  %12111 = vmatprep.subr.bf16.mxu0 0
  %12112 = vmatpush1.bf16.msra.mxu0 0
  %12113 = vmatprep.subr.bf16.mxu0 0
  %12114 = vmatpush1.bf16.msra.mxu0 0
  %12115 = vmatprep.mubr.bf16.mxu0 0
  %12116 = vmatmul.mubr.bf16.gmra.mrb[0].mxu0 %v12078
  %v12117 = vpop.f32.mrb[0].mxu0
  %v12118 = vadd.f32 0.0, %v12117
  %v12119 = vpop.f32.mrb[0].mxu0
  %v12120 = vpop.f32.mrb[0].mxu0
  %v12121 = vadd.f32 0.0, %v12120
  %v12122 = vpop.f32.mrb[0].mxu0
  %12123 = vmatprep.mubr.bf16.mxu0 0
  %12124 = vmatmul.mubr.bf16.gmra.mrb[0].mxu0 %v12081
  %v12125 = vpop.f32.mrb[0].mxu0
  %v12126 = vadd.f32 0.0, %v12125
  %v12127 = vpop.f32.mrb[0].mxu0
  %v12128 = vpop.f32.mrb[0].mxu0
  %v12129 = vadd.f32 0.0, %v12128
  %v12130 = vpop.f32.mrb[0].mxu0
  %12131 = vdwg.mxu0
  %v12132 = vadd.f32 %v11718, %v12118
  %v12133 = vadd.f32 %v11719, %v12121
  %v12134 = vadd.f32 %v11720, %v12126
  %v12135 = vadd.f32 %v11721, %v12129
  %12136 = vmax.xlane.f32.xlu0 %v12132
  %v12137 = vpop.xlane.xlu0 %12136
  %12138 = vmax.xlane.f32.xlu0 %v12133
  %v12139 = vpop.xlane.xlu0 %12138
  %12140 = vmax.xlane.f32.xlu0 %v12134
  %v12141 = vpop.xlane.xlu0 %12140
  %12142 = vmax.xlane.f32.xlu0 %v12135
  %v12143 = vpop.xlane.xlu0 %12142
  %v12144 = vsub.f32 %v12132, %v12137
  %v12145 = vsub.f32 %v12133, %v12139
  %v12146 = vsub.f32 %v12134, %v12141
  %v12147 = vsub.f32 %v12135, %v12143
  %v12148 = vmul.f32 %v12144, 1.442695
  %v12149 = vpow.pop %v12148
  %v12150 = vmul.f32 %v12145, 1.442695
  %v12151 = vpow.pop %v12150
  %v12152 = vmul.f32 %v12146, 1.442695
  %v12153 = vpow.pop %v12152
  %v12154 = vmul.f32 %v12147, 1.442695
  %v12155 = vpow.pop %v12154
  %12156 = vadd.xlane.f32.xlu0 %v12149
  %v12157 = vpop.xlane.xlu0 %12156
  %12158 = vadd.xlane.f32.xlu0 %v12151
  %v12159 = vpop.xlane.xlu0 %12158
  %12160 = vadd.xlane.f32.xlu0 %v12153
  %v12161 = vpop.xlane.xlu0 %12160
  %12162 = vadd.xlane.f32.xlu0 %v12155
  %v12163 = vpop.xlane.xlu0 %12162
  %v12164 = vlog2.pop %v12157
  %v12165 = vmul.f32 %v12164, 0.6931472
  %v12166 = vlog2.pop %v12159
  %v12167 = vmul.f32 %v12166, 0.6931472
  %v12168 = vlog2.pop %v12161
  %v12169 = vmul.f32 %v12168, 0.6931472
  %v12170 = vlog2.pop %v12163
  %v12171 = vmul.f32 %v12170, 0.6931472
  %v12172 = vsub.f32 %v12144, %v12165
  %v12173 = vsub.f32 %v12145, %v12167
  %v12174 = vsub.f32 %v12146, %v12169
  %v12175 = vsub.f32 %v12147, %v12171
  %12176 = vst [vmem:[%s9] sm:$0xff] %v12172
  %12177 = vst [vmem:[%s9 + $0x8] sm:$0xff] %v12173
  %12178 = vst [vmem:[%s9 + $0x10] sm:$0xff] %v12174
  %12179 = vst [vmem:[%s9 + $0x18] sm:$0xff] %v12175
  // Predicated region
  $region38: #{net_forward.1} parent=0 // pred_check
    _
  $region39: #{net_forward.1} parent=0 // pred_check_branch
    %12181 = sbr.rel (0) target = $region41
  $region40: #{net_forward.1} parent=0 // pred_region
    _
  $region41: #{net_forward.1} parent=0 // pred_fallthru
    _
  // Predicated region
  $region42: #{net_forward.1} parent=0 // pred_check
    _
  $region43: #{net_forward.1} parent=0 // pred_check_branch
    %12183 = sbr.rel (0) target = $region45
  $region44: #{net_forward.1} parent=0 // pred_region
    _
  $region45: #{net_forward.1} parent=0 // pred_fallthru
    _

</llo_original>
